<compile_context>
chip_gen: v5e
topology: v5e:2x2
jax: 0.10.0
libtpu: 0.0.40
codegen_flags: <defaults>
</compile_context>

<pallas_src>
import functools

import jax
import jax.numpy as jnp
from jax.experimental import pallas as pl
from jax.experimental.pallas import tpu as pltpu

# ---------------------------------------------------------------------------
# Network configuration (matches the PyTorch module's __init__)
# ---------------------------------------------------------------------------
N_STATES = 4
N_ACTIONS = 6
LAYER_SIZES = [N_STATES, 300, 400, 600, 600, 400, 300, N_ACTIONS]  # 7 Linear layers
LANE = 128


def _round_up(v, m):
    return ((v + m - 1) // m) * m


# Lane-aligned (padded) layer widths: [128, 384, 512, 640, 640, 512, 384, 128]
PADDED_SIZES = [_round_up(s, LANE) for s in LAYER_SIZES]
MAX_OUT = max(PADDED_SIZES[1:])          # 640 — width of the packed bias block
N_LAYERS = len(LAYER_SIZES) - 1          # 7
BIAS_ROWS = _round_up(N_LAYERS, 8)       # 8 — sublane-aligned bias block rows


def qnetwork_kernel(x_ref,
                    w1_ref, w2_ref, w3_ref, w4_ref, w5_ref, w6_ref, w7_ref,
                    b_all_ref, o_ref):
    """Whole forward pass (7 matmuls + bias + ReLU hot path) in one kernel.

    x_ref:    (tile_b, 128) bf16   — padded input states
    wN_ref:   (in_p, out_p) bf16   — padded layer-N weights (x @ W layout)
    b_all_ref:(8, 640)     f32     — row i holds layer-i bias (zero-padded)
    o_ref:    (tile_b, 128) bf16   — padded Q-values
    """

    def layer(h, w_ref, idx, relu):
        out_p = w_ref.shape[1]                      # static per-layer width
        # bf16 x bf16 -> f32 accumulation on the MXU.
        y = jnp.dot(h, w_ref[...], preferred_element_type=jnp.float32)
        y = y + b_all_ref[idx:idx + 1, :out_p]      # (1, out_p) broadcast add
        if relu:
            # Cast to bf16 right after the ReLU: the carried activation is
            # bf16, halving live intermediate footprint for the next matmul.
            return jnp.maximum(y, 0.0).astype(jnp.bfloat16)
        return y

    h = x_ref[...]                                   # already bf16
    h = layer(h, w1_ref, 0, True)
    h = layer(h, w2_ref, 1, True)
    h = layer(h, w3_ref, 2, True)
    h = layer(h, w4_ref, 3, True)
    h = layer(h, w5_ref, 4, True)
    h = layer(h, w6_ref, 5, True)
    # Final layer: no ReLU (raw Q-values), same as the PyTorch forward.
    o_ref[...] = layer(h, w7_ref, 6, False).astype(o_ref.dtype)


def _const_block_spec(shape, single_buffer):
    """Grid-invariant block (weights / packed biases): index_map always (0, 0)."""
    if single_buffer and hasattr(pl, "Buffered"):
        return pl.BlockSpec(shape, lambda i: (0, 0),
                            pipeline_mode=pl.Buffered(1))
    return pl.BlockSpec(shape, lambda i: (0, 0))


@functools.partial(jax.jit, static_argnames=("block_b", "single_buffer_weights"))
def qnetwork_forward(x, weights, b_all, block_b=512, single_buffer_weights=True):
    """x: (B, N_STATES) f32.  weights: list of padded bf16 (in_p, out_p).
    b_all: (8, 640) f32 packed biases.  Returns (B, N_ACTIONS) f32 Q-values."""
    B, n_in = x.shape
    assert n_in == N_STATES
    pad_in, pad_out = PADDED_SIZES[0], PADDED_SIZES[-1]

    # Batch tiling: tiny batches -> one grid step over the whole batch;
    # large batches -> block_b-row tiles, last tile zero-padded.
    b8 = _round_up(B, 8)
    if b8 <= block_b:
        tile_b, grid_b = b8, 1
    else:
        tile_b, grid_b = block_b, (B + block_b - 1) // block_b
    b_total = tile_b * grid_b

    # Cast once to bf16 in the wrapper, zero-pad rows + input features.
    x_p = jnp.pad(x.astype(jnp.bfloat16),
                  ((0, b_total - B), (0, pad_in - n_in)))

    flat_args = [x_p]
    in_specs = [pl.BlockSpec((tile_b, pad_in), lambda i: (i, 0))]
    for w in weights:
        flat_args.append(w)
        in_specs.append(_const_block_spec(w.shape, single_buffer_weights))
    flat_args.append(b_all)
    in_specs.append(_const_block_spec(b_all.shape, single_buffer_weights))

    # Small grids: don't duplicate the ~3 MiB weight stream across v7x's two
    # TensorCores; large grids: shard the batch axis across cores.
    semantics = ("arbitrary",) if grid_b <= 4 else ("parallel",)
    vmem_limit = (48 if tile_b >= 1024 else 32) * 1024 * 1024

    out = pl.pallas_call(
        qnetwork_kernel,
        out_shape=jax.ShapeDtypeStruct((b_total, pad_out), jnp.bfloat16),
        grid_spec=pltpu.PrefetchScalarGridSpec(
            num_scalar_prefetch=0,
            grid=(grid_b,),
            in_specs=in_specs,
            out_specs=pl.BlockSpec((tile_b, pad_out), lambda i: (i, 0)),
        ),
        compiler_params=pltpu.CompilerParams(
            dimension_semantics=semantics,
            vmem_limit_bytes=vmem_limit,
        ),
    )(*flat_args)

    return out[:B, :N_ACTIONS].astype(jnp.float32)


def init_params(key):
    """PyTorch nn.Linear default init: U(-1/sqrt(fan_in), 1/sqrt(fan_in))."""
    params = []
    for idx in range(N_LAYERS):
        fan_in, fan_out = LAYER_SIZES[idx], LAYER_SIZES[idx + 1]
        key, kw, kb = jax.random.split(key, 3)
        bound = 1.0 / (fan_in ** 0.5)
        # Stored as (in, out) == PyTorch weight.T, so forward is x @ W + b.
        w = jax.random.uniform(kw, (fan_in, fan_out), jnp.float32, -bound, bound)
        b = jax.random.uniform(kb, (fan_out,), jnp.float32, -bound, bound)
        params.append((w, b))
    return params


def prepare_params(params, weight_dtype=jnp.bfloat16):
    """Zero-pad every layer to lane-aligned shapes; cast weights to bf16 and
    pack all 7 bias vectors into one (8, 640) f32 block (row i = layer i)."""
    weights = []
    b_all = jnp.zeros((BIAS_ROWS, MAX_OUT), jnp.float32)
    for idx, (w, b) in enumerate(params):
        in_p, out_p = PADDED_SIZES[idx], PADDED_SIZES[idx + 1]
        w_p = jnp.zeros((in_p, out_p), jnp.float32)
        w_p = w_p.at[:w.shape[0], :w.shape[1]].set(w)
        weights.append(w_p.astype(weight_dtype))
        b_all = b_all.at[idx, :b.shape[0]].set(b)
    return weights, b_all


def reference_forward(x, weights, b_all):
    """Plain-JAX reference emulating the kernel's bf16 rounding points."""
    h = jnp.pad(x.astype(jnp.bfloat16),
                ((0, 0), (0, PADDED_SIZES[0] - x.shape[1])))
    y = None
    for i, w in enumerate(weights):
        out_p = w.shape[1]
        y = jnp.dot(h.astype(jnp.float32), w.astype(jnp.float32),
                    precision=jax.lax.Precision.HIGHEST) + b_all[i, :out_p]
        if i < N_LAYERS - 1:
            h = jnp.maximum(y, 0.0).astype(jnp.bfloat16)
        else:
            y = y.astype(jnp.bfloat16).astype(jnp.float32)
    return y[:, :N_ACTIONS]


if __name__ == "__main__":
    key = jax.random.PRNGKey(0)
    key, kx = jax.random.split(key)

    batch = 16  # tiny batch -> single grid step over the whole batch
    x = jax.random.normal(kx, (batch, N_STATES), jnp.float32)

    params = init_params(key)
    weights, b_all = prepare_params(params)

    try:
        out = jax.block_until_ready(qnetwork_forward(x, weights, b_all))
    except Exception:
        # Fallback for JAX versions without BlockSpec pipeline_mode / Buffered.
        out = jax.block_until_ready(
            qnetwork_forward(x, weights, b_all, single_buffer_weights=False))

    ref = reference_forward(x, weights, b_all)
    assert out.shape == (batch, N_ACTIONS)
    assert jnp.allclose(out, ref, atol=2e-2, rtol=2e-2), \
        "Pallas output mismatch vs reference"

    print("KERNEL_OK")
</pallas_src>

<mosaic_0001>
module attributes {stable_mosaic.version = 11 : i64} {
  func.func @qnetwork_kernel(%arg0: i32, %arg1: memref<16x128xbf16, #tpu.memory_space<vmem>>, %arg2: memref<128x384xbf16, #tpu.memory_space<vmem>>, %arg3: memref<384x512xbf16, #tpu.memory_space<vmem>>, %arg4: memref<512x640xbf16, #tpu.memory_space<vmem>>, %arg5: memref<640x640xbf16, #tpu.memory_space<vmem>>, %arg6: memref<640x512xbf16, #tpu.memory_space<vmem>>, %arg7: memref<512x384xbf16, #tpu.memory_space<vmem>>, %arg8: memref<384x128xbf16, #tpu.memory_space<vmem>>, %arg9: memref<8x640xf32, #tpu.memory_space<vmem>>, %arg10: memref<16x128xbf16, #tpu.memory_space<vmem>>) attributes {dimension_semantics = [#tpu.dimension_semantics<arbitrary>], iteration_bounds = array<i64: 1>, scalar_prefetch = 0 : i64, scratch_operands = 0 : i64, tpu.core_type = #tpu.core_type<tc>, window_params = [{transform_indices = @transform_0, window_bounds = array<i64: 16, 128>}, {pipeline_mode = #tpu.pipeline_mode<synchronous>, transform_indices = @transform_1, window_bounds = array<i64: 128, 384>}, {pipeline_mode = #tpu.pipeline_mode<synchronous>, transform_indices = @transform_2, window_bounds = array<i64: 384, 512>}, {pipeline_mode = #tpu.pipeline_mode<synchronous>, transform_indices = @transform_3, window_bounds = array<i64: 512, 640>}, {pipeline_mode = #tpu.pipeline_mode<synchronous>, transform_indices = @transform_4, window_bounds = array<i64: 640, 640>}, {pipeline_mode = #tpu.pipeline_mode<synchronous>, transform_indices = @transform_5, window_bounds = array<i64: 640, 512>}, {pipeline_mode = #tpu.pipeline_mode<synchronous>, transform_indices = @transform_6, window_bounds = array<i64: 512, 384>}, {pipeline_mode = #tpu.pipeline_mode<synchronous>, transform_indices = @transform_7, window_bounds = array<i64: 384, 128>}, {pipeline_mode = #tpu.pipeline_mode<synchronous>, transform_indices = @transform_8, window_bounds = array<i64: 8, 640>}, {transform_indices = @transform_9, window_bounds = array<i64: 16, 128>}]} {
    %c0 = arith.constant 0 : index
    %c0_0 = arith.constant 0 : index
    %0 = vector.load %arg1[%c0, %c0_0] : memref<16x128xbf16, #tpu.memory_space<vmem>>, vector<16x128xbf16>
    %c0_1 = arith.constant 0 : index
    %c0_2 = arith.constant 0 : index
    %1 = vector.load %arg2[%c0_1, %c0_2] : memref<128x384xbf16, #tpu.memory_space<vmem>>, vector<128x384xbf16>
    %cst = arith.constant dense<0.000000e+00> : vector<16x384xf32>
    %2 = tpu.matmul %0, %1, %cst {dimension_numbers = #tpu.dot_dimension_numbers<[1], [0], [0], [1], [0, 0, 1, 1], [], []>} : vector<16x128xbf16>, vector<128x384xbf16>, vector<16x384xf32> -> vector<16x384xf32>
    %c0_3 = arith.constant 0 : index
    %c0_4 = arith.constant 0 : index
    %3 = vector.load %arg9[%c0_3, %c0_4] : memref<8x640xf32, #tpu.memory_space<vmem>>, vector<1x384xf32>
    %4 = vector.broadcast %3 : vector<1x384xf32> to vector<16x384xf32>
    %5 = arith.addf %2, %4 : vector<16x384xf32>
    %cst_5 = arith.constant 0.000000e+00 : f32
    %6 = vector.broadcast %cst_5 : f32 to vector<16x384xf32>
    %7 = arith.maximumf %5, %6 : vector<16x384xf32>
    %8 = arith.truncf %7 : vector<16x384xf32> to vector<16x384xbf16>
    %c0_6 = arith.constant 0 : index
    %c0_7 = arith.constant 0 : index
    %9 = vector.load %arg3[%c0_6, %c0_7] : memref<384x512xbf16, #tpu.memory_space<vmem>>, vector<384x512xbf16>
    %cst_8 = arith.constant dense<0.000000e+00> : vector<16x512xf32>
    %10 = tpu.matmul %8, %9, %cst_8 {dimension_numbers = #tpu.dot_dimension_numbers<[1], [0], [0], [1], [0, 0, 1, 1], [], []>} : vector<16x384xbf16>, vector<384x512xbf16>, vector<16x512xf32> -> vector<16x512xf32>
    %c1 = arith.constant 1 : index
    %c0_9 = arith.constant 0 : index
    %11 = vector.load %arg9[%c1, %c0_9] : memref<8x640xf32, #tpu.memory_space<vmem>>, vector<1x512xf32>
    %12 = vector.broadcast %11 : vector<1x512xf32> to vector<16x512xf32>
    %13 = arith.addf %10, %12 : vector<16x512xf32>
    %cst_10 = arith.constant 0.000000e+00 : f32
    %14 = vector.broadcast %cst_10 : f32 to vector<16x512xf32>
    %15 = arith.maximumf %13, %14 : vector<16x512xf32>
    %16 = arith.truncf %15 : vector<16x512xf32> to vector<16x512xbf16>
    %c0_11 = arith.constant 0 : index
    %c0_12 = arith.constant 0 : index
    %17 = vector.load %arg4[%c0_11, %c0_12] : memref<512x640xbf16, #tpu.memory_space<vmem>>, vector<512x640xbf16>
    %cst_13 = arith.constant dense<0.000000e+00> : vector<16x640xf32>
    %18 = tpu.matmul %16, %17, %cst_13 {dimension_numbers = #tpu.dot_dimension_numbers<[1], [0], [0], [1], [0, 0, 1, 1], [], []>} : vector<16x512xbf16>, vector<512x640xbf16>, vector<16x640xf32> -> vector<16x640xf32>
    %c2 = arith.constant 2 : index
    %c0_14 = arith.constant 0 : index
    %19 = vector.load %arg9[%c2, %c0_14] : memref<8x640xf32, #tpu.memory_space<vmem>>, vector<1x640xf32>
    %20 = vector.broadcast %19 : vector<1x640xf32> to vector<16x640xf32>
    %21 = arith.addf %18, %20 : vector<16x640xf32>
    %cst_15 = arith.constant 0.000000e+00 : f32
    %22 = vector.broadcast %cst_15 : f32 to vector<16x640xf32>
    %23 = arith.maximumf %21, %22 : vector<16x640xf32>
    %24 = arith.truncf %23 : vector<16x640xf32> to vector<16x640xbf16>
    %c0_16 = arith.constant 0 : index
    %c0_17 = arith.constant 0 : index
    %25 = vector.load %arg5[%c0_16, %c0_17] : memref<640x640xbf16, #tpu.memory_space<vmem>>, vector<640x640xbf16>
    %cst_18 = arith.constant dense<0.000000e+00> : vector<16x640xf32>
    %26 = tpu.matmul %24, %25, %cst_18 {dimension_numbers = #tpu.dot_dimension_numbers<[1], [0], [0], [1], [0, 0, 1, 1], [], []>} : vector<16x640xbf16>, vector<640x640xbf16>, vector<16x640xf32> -> vector<16x640xf32>
    %c3 = arith.constant 3 : index
    %c0_19 = arith.constant 0 : index
    %27 = vector.load %arg9[%c3, %c0_19] : memref<8x640xf32, #tpu.memory_space<vmem>>, vector<1x640xf32>
    %28 = vector.broadcast %27 : vector<1x640xf32> to vector<16x640xf32>
    %29 = arith.addf %26, %28 : vector<16x640xf32>
    %cst_20 = arith.constant 0.000000e+00 : f32
    %30 = vector.broadcast %cst_20 : f32 to vector<16x640xf32>
    %31 = arith.maximumf %29, %30 : vector<16x640xf32>
    %32 = arith.truncf %31 : vector<16x640xf32> to vector<16x640xbf16>
    %c0_21 = arith.constant 0 : index
    %c0_22 = arith.constant 0 : index
    %33 = vector.load %arg6[%c0_21, %c0_22] : memref<640x512xbf16, #tpu.memory_space<vmem>>, vector<640x512xbf16>
    %cst_23 = arith.constant dense<0.000000e+00> : vector<16x512xf32>
    %34 = tpu.matmul %32, %33, %cst_23 {dimension_numbers = #tpu.dot_dimension_numbers<[1], [0], [0], [1], [0, 0, 1, 1], [], []>} : vector<16x640xbf16>, vector<640x512xbf16>, vector<16x512xf32> -> vector<16x512xf32>
    %c4 = arith.constant 4 : index
    %c0_24 = arith.constant 0 : index
    %35 = vector.load %arg9[%c4, %c0_24] : memref<8x640xf32, #tpu.memory_space<vmem>>, vector<1x512xf32>
    %36 = vector.broadcast %35 : vector<1x512xf32> to vector<16x512xf32>
    %37 = arith.addf %34, %36 : vector<16x512xf32>
    %cst_25 = arith.constant 0.000000e+00 : f32
    %38 = vector.broadcast %cst_25 : f32 to vector<16x512xf32>
    %39 = arith.maximumf %37, %38 : vector<16x512xf32>
    %40 = arith.truncf %39 : vector<16x512xf32> to vector<16x512xbf16>
    %c0_26 = arith.constant 0 : index
    %c0_27 = arith.constant 0 : index
    %41 = vector.load %arg7[%c0_26, %c0_27] : memref<512x384xbf16, #tpu.memory_space<vmem>>, vector<512x384xbf16>
    %cst_28 = arith.constant dense<0.000000e+00> : vector<16x384xf32>
    %42 = tpu.matmul %40, %41, %cst_28 {dimension_numbers = #tpu.dot_dimension_numbers<[1], [0], [0], [1], [0, 0, 1, 1], [], []>} : vector<16x512xbf16>, vector<512x384xbf16>, vector<16x384xf32> -> vector<16x384xf32>
    %c5 = arith.constant 5 : index
    %c0_29 = arith.constant 0 : index
    %43 = vector.load %arg9[%c5, %c0_29] : memref<8x640xf32, #tpu.memory_space<vmem>>, vector<1x384xf32>
    %44 = vector.broadcast %43 : vector<1x384xf32> to vector<16x384xf32>
    %45 = arith.addf %42, %44 : vector<16x384xf32>
    %cst_30 = arith.constant 0.000000e+00 : f32
    %46 = vector.broadcast %cst_30 : f32 to vector<16x384xf32>
    %47 = arith.maximumf %45, %46 : vector<16x384xf32>
    %48 = arith.truncf %47 : vector<16x384xf32> to vector<16x384xbf16>
    %c0_31 = arith.constant 0 : index
    %c0_32 = arith.constant 0 : index
    %49 = vector.load %arg8[%c0_31, %c0_32] : memref<384x128xbf16, #tpu.memory_space<vmem>>, vector<384x128xbf16>
    %cst_33 = arith.constant dense<0.000000e+00> : vector<16x128xf32>
    %50 = tpu.matmul %48, %49, %cst_33 {dimension_numbers = #tpu.dot_dimension_numbers<[1], [0], [0], [1], [0, 0, 1, 1], [], []>} : vector<16x384xbf16>, vector<384x128xbf16>, vector<16x128xf32> -> vector<16x128xf32>
    %c6 = arith.constant 6 : index
    %c0_34 = arith.constant 0 : index
    %51 = vector.load %arg9[%c6, %c0_34] : memref<8x640xf32, #tpu.memory_space<vmem>>, vector<1x128xf32>
    %52 = vector.broadcast %51 : vector<1x128xf32> to vector<16x128xf32>
    %53 = arith.addf %50, %52 : vector<16x128xf32>
    %54 = arith.truncf %53 : vector<16x128xf32> to vector<16x128xbf16>
    %c0_35 = arith.constant 0 : index
    %c0_36 = arith.constant 0 : index
    %55 = vector.load %arg10[%c0_35, %c0_36] : memref<16x128xbf16, #tpu.memory_space<vmem>>, vector<16x128xbf16>
    tpu.vector_store %arg10[%c0_35, %c0_36], %54 {strides = array<i32>} : memref<16x128xbf16, #tpu.memory_space<vmem>>, vector<16x128xbf16>,
    return
  }
  func.func @transform_0(%arg0: i32) -> (i32, i32) {
    %c0_i32 = arith.constant 0 : i32
    %c0_i32_0 = arith.constant 0 : i32
    return %arg0, %c0_i32 : i32, i32
  }
  func.func @transform_1(%arg0: i32) -> (i32, i32) {
    %c0_i32 = arith.constant 0 : i32
    %c0_i32_0 = arith.constant 0 : i32
    %c0_i32_1 = arith.constant 0 : i32
    return %c0_i32, %c0_i32_0 : i32, i32
  }
  func.func @transform_2(%arg0: i32) -> (i32, i32) {
    %c0_i32 = arith.constant 0 : i32
    %c0_i32_0 = arith.constant 0 : i32
    %c0_i32_1 = arith.constant 0 : i32
    return %c0_i32, %c0_i32_0 : i32, i32
  }
  func.func @transform_3(%arg0: i32) -> (i32, i32) {
    %c0_i32 = arith.constant 0 : i32
    %c0_i32_0 = arith.constant 0 : i32
    %c0_i32_1 = arith.constant 0 : i32
    return %c0_i32, %c0_i32_0 : i32, i32
  }
  func.func @transform_4(%arg0: i32) -> (i32, i32) {
    %c0_i32 = arith.constant 0 : i32
    %c0_i32_0 = arith.constant 0 : i32
    %c0_i32_1 = arith.constant 0 : i32
    return %c0_i32, %c0_i32_0 : i32, i32
  }
  func.func @transform_5(%arg0: i32) -> (i32, i32) {
    %c0_i32 = arith.constant 0 : i32
    %c0_i32_0 = arith.constant 0 : i32
    %c0_i32_1 = arith.constant 0 : i32
    return %c0_i32, %c0_i32_0 : i32, i32
  }
  func.func @transform_6(%arg0: i32) -> (i32, i32) {
    %c0_i32 = arith.constant 0 : i32
    %c0_i32_0 = arith.constant 0 : i32
    %c0_i32_1 = arith.constant 0 : i32
    return %c0_i32, %c0_i32_0 : i32, i32
  }
  func.func @transform_7(%arg0: i32) -> (i32, i32) {
    %c0_i32 = arith.constant 0 : i32
    %c0_i32_0 = arith.constant 0 : i32
    %c0_i32_1 = arith.constant 0 : i32
    return %c0_i32, %c0_i32_0 : i32, i32
  }
  func.func @transform_8(%arg0: i32) -> (i32, i32) {
    %c0_i32 = arith.constant 0 : i32
    %c0_i32_0 = arith.constant 0 : i32
    %c0_i32_1 = arith.constant 0 : i32
    return %c0_i32, %c0_i32_0 : i32, i32
  }
  func.func @transform_9(%arg0: i32) -> (i32, i32) {
    %c0_i32 = arith.constant 0 : i32
    %c0_i32_0 = arith.constant 0 : i32
    return %arg0, %c0_i32 : i32, i32
  }
}

module attributes {stable_mosaic.version = 11 : i64} {
  func.func @qnetwork_kernel(%arg0: i32, %arg1: memref<16x128xbf16, #tpu.memory_space<vmem>>, %arg2: memref<128x384xbf16, #tpu.memory_space<vmem>>, %arg3: memref<384x512xbf16, #tpu.memory_space<vmem>>, %arg4: memref<512x640xbf16, #tpu.memory_space<vmem>>, %arg5: memref<640x640xbf16, #tpu.memory_space<vmem>>, %arg6: memref<640x512xbf16, #tpu.memory_space<vmem>>, %arg7: memref<512x384xbf16, #tpu.memory_space<vmem>>, %arg8: memref<384x128xbf16, #tpu.memory_space<vmem>>, %arg9: memref<8x640xf32, #tpu.memory_space<vmem>>, %arg10: memref<16x128xbf16, #tpu.memory_space<vmem>>) attributes {dimension_semantics = [#tpu.dimension_semantics<arbitrary>], iteration_bounds = array<i64: 1>, scalar_prefetch = 0 : i64, scratch_operands = 0 : i64, tpu.core_type = #tpu.core_type<tc>, window_params = [{transform_indices = @transform_0, window_bounds = array<i64: 16, 128>}, {pipeline_mode = #tpu.pipeline_mode<synchronous>, transform_indices = @transform_1, window_bounds = array<i64: 128, 384>}, {pipeline_mode = #tpu.pipeline_mode<synchronous>, transform_indices = @transform_2, window_bounds = array<i64: 384, 512>}, {pipeline_mode = #tpu.pipeline_mode<synchronous>, transform_indices = @transform_3, window_bounds = array<i64: 512, 640>}, {pipeline_mode = #tpu.pipeline_mode<synchronous>, transform_indices = @transform_4, window_bounds = array<i64: 640, 640>}, {pipeline_mode = #tpu.pipeline_mode<synchronous>, transform_indices = @transform_5, window_bounds = array<i64: 640, 512>}, {pipeline_mode = #tpu.pipeline_mode<synchronous>, transform_indices = @transform_6, window_bounds = array<i64: 512, 384>}, {pipeline_mode = #tpu.pipeline_mode<synchronous>, transform_indices = @transform_7, window_bounds = array<i64: 384, 128>}, {pipeline_mode = #tpu.pipeline_mode<synchronous>, transform_indices = @transform_8, window_bounds = array<i64: 8, 640>}, {transform_indices = @transform_9, window_bounds = array<i64: 16, 128>}]} {
    %c0 = arith.constant 0 : index
    %c0_0 = arith.constant 0 : index
    %0 = vector.load %arg1[%c0, %c0_0] : memref<16x128xbf16, #tpu.memory_space<vmem>>, vector<16x128xbf16>
    %c0_1 = arith.constant 0 : index
    %c0_2 = arith.constant 0 : index
    %1 = vector.load %arg2[%c0_1, %c0_2] : memref<128x384xbf16, #tpu.memory_space<vmem>>, vector<128x384xbf16>
    %cst = arith.constant dense<0.000000e+00> : vector<16x384xf32>
    %2 = tpu.matmul %0, %1, %cst {dimension_numbers = #tpu.dot_dimension_numbers<[1], [0], [0], [1], [0, 0, 1, 1], [], []>} : vector<16x128xbf16>, vector<128x384xbf16>, vector<16x384xf32> -> vector<16x384xf32>
    %c0_3 = arith.constant 0 : index
    %c0_4 = arith.constant 0 : index
    %3 = vector.load %arg9[%c0_3, %c0_4] : memref<8x640xf32, #tpu.memory_space<vmem>>, vector<1x384xf32>
    %4 = vector.broadcast %3 : vector<1x384xf32> to vector<16x384xf32>
    %5 = arith.addf %2, %4 : vector<16x384xf32>
    %cst_5 = arith.constant 0.000000e+00 : f32
    %6 = vector.broadcast %cst_5 : f32 to vector<16x384xf32>
    %7 = arith.maximumf %5, %6 : vector<16x384xf32>
    %8 = arith.truncf %7 : vector<16x384xf32> to vector<16x384xbf16>
    %c0_6 = arith.constant 0 : index
    %c0_7 = arith.constant 0 : index
    %9 = vector.load %arg3[%c0_6, %c0_7] : memref<384x512xbf16, #tpu.memory_space<vmem>>, vector<384x512xbf16>
    %cst_8 = arith.constant dense<0.000000e+00> : vector<16x512xf32>
    %10 = tpu.matmul %8, %9, %cst_8 {dimension_numbers = #tpu.dot_dimension_numbers<[1], [0], [0], [1], [0, 0, 1, 1], [], []>} : vector<16x384xbf16>, vector<384x512xbf16>, vector<16x512xf32> -> vector<16x512xf32>
    %c1 = arith.constant 1 : index
    %c0_9 = arith.constant 0 : index
    %11 = vector.load %arg9[%c1, %c0_9] : memref<8x640xf32, #tpu.memory_space<vmem>>, vector<1x512xf32>
    %12 = vector.broadcast %11 : vector<1x512xf32> to vector<16x512xf32>
    %13 = arith.addf %10, %12 : vector<16x512xf32>
    %cst_10 = arith.constant 0.000000e+00 : f32
    %14 = vector.broadcast %cst_10 : f32 to vector<16x512xf32>
    %15 = arith.maximumf %13, %14 : vector<16x512xf32>
    %16 = arith.truncf %15 : vector<16x512xf32> to vector<16x512xbf16>
    %c0_11 = arith.constant 0 : index
    %c0_12 = arith.constant 0 : index
    %17 = vector.load %arg4[%c0_11, %c0_12] : memref<512x640xbf16, #tpu.memory_space<vmem>>, vector<512x640xbf16>
    %cst_13 = arith.constant dense<0.000000e+00> : vector<16x640xf32>
    %18 = tpu.matmul %16, %17, %cst_13 {dimension_numbers = #tpu.dot_dimension_numbers<[1], [0], [0], [1], [0, 0, 1, 1], [], []>} : vector<16x512xbf16>, vector<512x640xbf16>, vector<16x640xf32> -> vector<16x640xf32>
    %c2 = arith.constant 2 : index
    %c0_14 = arith.constant 0 : index
    %19 = vector.load %arg9[%c2, %c0_14] : memref<8x640xf32, #tpu.memory_space<vmem>>, vector<1x640xf32>
    %20 = vector.broadcast %19 : vector<1x640xf32> to vector<16x640xf32>
    %21 = arith.addf %18, %20 : vector<16x640xf32>
    %cst_15 = arith.constant 0.000000e+00 : f32
    %22 = vector.broadcast %cst_15 : f32 to vector<16x640xf32>
    %23 = arith.maximumf %21, %22 : vector<16x640xf32>
    %24 = arith.truncf %23 : vector<16x640xf32> to vector<16x640xbf16>
    %c0_16 = arith.constant 0 : index
    %c0_17 = arith.constant 0 : index
    %25 = vector.load %arg5[%c0_16, %c0_17] : memref<640x640xbf16, #tpu.memory_space<vmem>>, vector<640x640xbf16>
    %cst_18 = arith.constant dense<0.000000e+00> : vector<16x640xf32>
    %26 = tpu.matmul %24, %25, %cst_18 {dimension_numbers = #tpu.dot_dimension_numbers<[1], [0], [0], [1], [0, 0, 1, 1], [], []>} : vector<16x640xbf16>, vector<640x640xbf16>, vector<16x640xf32> -> vector<16x640xf32>
    %c3 = arith.constant 3 : index
    %c0_19 = arith.constant 0 : index
    %27 = vector.load %arg9[%c3, %c0_19] : memref<8x640xf32, #tpu.memory_space<vmem>>, vector<1x640xf32>
    %28 = vector.broadcast %27 : vector<1x640xf32> to vector<16x640xf32>
    %29 = arith.addf %26, %28 : vector<16x640xf32>
    %cst_20 = arith.constant 0.000000e+00 : f32
    %30 = vector.broadcast %cst_20 : f32 to vector<16x640xf32>
    %31 = arith.maximumf %29, %30 : vector<16x640xf32>
    %32 = arith.truncf %31 : vector<16x640xf32> to vector<16x640xbf16>
    %c0_21 = arith.constant 0 : index
    %c0_22 = arith.constant 0 : index
    %33 = vector.load %arg6[%c0_21, %c0_22] : memref<640x512xbf16, #tpu.memory_space<vmem>>, vector<640x512xbf16>
    %cst_23 = arith.constant dense<0.000000e+00> : vector<16x512xf32>
    %34 = tpu.matmul %32, %33, %cst_23 {dimension_numbers = #tpu.dot_dimension_numbers<[1], [0], [0], [1], [0, 0, 1, 1], [], []>} : vector<16x640xbf16>, vector<640x512xbf16>, vector<16x512xf32> -> vector<16x512xf32>
    %c4 = arith.constant 4 : index
    %c0_24 = arith.constant 0 : index
    %35 = vector.load %arg9[%c4, %c0_24] : memref<8x640xf32, #tpu.memory_space<vmem>>, vector<1x512xf32>
    %36 = vector.broadcast %35 : vector<1x512xf32> to vector<16x512xf32>
    %37 = arith.addf %34, %36 : vector<16x512xf32>
    %cst_25 = arith.constant 0.000000e+00 : f32
    %38 = vector.broadcast %cst_25 : f32 to vector<16x512xf32>
    %39 = arith.maximumf %37, %38 : vector<16x512xf32>
    %40 = arith.truncf %39 : vector<16x512xf32> to vector<16x512xbf16>
    %c0_26 = arith.constant 0 : index
    %c0_27 = arith.constant 0 : index
    %41 = vector.load %arg7[%c0_26, %c0_27] : memref<512x384xbf16, #tpu.memory_space<vmem>>, vector<512x384xbf16>
    %cst_28 = arith.constant dense<0.000000e+00> : vector<16x384xf32>
    %42 = tpu.matmul %40, %41, %cst_28 {dimension_numbers = #tpu.dot_dimension_numbers<[1], [0], [0], [1], [0, 0, 1, 1], [], []>} : vector<16x512xbf16>, vector<512x384xbf16>, vector<16x384xf32> -> vector<16x384xf32>
    %c5 = arith.constant 5 : index
    %c0_29 = arith.constant 0 : index
    %43 = vector.load %arg9[%c5, %c0_29] : memref<8x640xf32, #tpu.memory_space<vmem>>, vector<1x384xf32>
    %44 = vector.broadcast %43 : vector<1x384xf32> to vector<16x384xf32>
    %45 = arith.addf %42, %44 : vector<16x384xf32>
    %cst_30 = arith.constant 0.000000e+00 : f32
    %46 = vector.broadcast %cst_30 : f32 to vector<16x384xf32>
    %47 = arith.maximumf %45, %46 : vector<16x384xf32>
    %48 = arith.truncf %47 : vector<16x384xf32> to vector<16x384xbf16>
    %c0_31 = arith.constant 0 : index
    %c0_32 = arith.constant 0 : index
    %49 = vector.load %arg8[%c0_31, %c0_32] : memref<384x128xbf16, #tpu.memory_space<vmem>>, vector<384x128xbf16>
    %cst_33 = arith.constant dense<0.000000e+00> : vector<16x128xf32>
    %50 = tpu.matmul %48, %49, %cst_33 {dimension_numbers = #tpu.dot_dimension_numbers<[1], [0], [0], [1], [0, 0, 1, 1], [], []>} : vector<16x384xbf16>, vector<384x128xbf16>, vector<16x128xf32> -> vector<16x128xf32>
    %c6 = arith.constant 6 : index
    %c0_34 = arith.constant 0 : index
    %51 = vector.load %arg9[%c6, %c0_34] : memref<8x640xf32, #tpu.memory_space<vmem>>, vector<1x128xf32>
    %52 = vector.broadcast %51 : vector<1x128xf32> to vector<16x128xf32>
    %53 = arith.addf %50, %52 : vector<16x128xf32>
    %54 = arith.truncf %53 : vector<16x128xf32> to vector<16x128xbf16>
    %c0_35 = arith.constant 0 : index
    %c0_36 = arith.constant 0 : index
    %55 = vector.load %arg10[%c0_35, %c0_36] : memref<16x128xbf16, #tpu.memory_space<vmem>>, vector<16x128xbf16>
    tpu.vector_store %arg10[%c0_35, %c0_36], %54 {strides = array<i32>} : memref<16x128xbf16, #tpu.memory_space<vmem>>, vector<16x128xbf16>,
    return
  }
  func.func @transform_0(%arg0: i32) -> (i32, i32) {
    %c0_i32 = arith.constant 0 : i32
    %c0_i32_0 = arith.constant 0 : i32
    return %arg0, %c0_i32 : i32, i32
  }
  func.func @transform_1(%arg0: i32) -> (i32, i32) {
    %c0_i32 = arith.constant 0 : i32
    %c0_i32_0 = arith.constant 0 : i32
    %c0_i32_1 = arith.constant 0 : i32
    return %c0_i32, %c0_i32_0 : i32, i32
  }
  func.func @transform_2(%arg0: i32) -> (i32, i32) {
    %c0_i32 = arith.constant 0 : i32
    %c0_i32_0 = arith.constant 0 : i32
    %c0_i32_1 = arith.constant 0 : i32
    return %c0_i32, %c0_i32_0 : i32, i32
  }
  func.func @transform_3(%arg0: i32) -> (i32, i32) {
    %c0_i32 = arith.constant 0 : i32
    %c0_i32_0 = arith.constant 0 : i32
    %c0_i32_1 = arith.constant 0 : i32
    return %c0_i32, %c0_i32_0 : i32, i32
  }
  func.func @transform_4(%arg0: i32) -> (i32, i32) {
    %c0_i32 = arith.constant 0 : i32
    %c0_i32_0 = arith.constant 0 : i32
    %c0_i32_1 = arith.constant 0 : i32
    return %c0_i32, %c0_i32_0 : i32, i32
  }
  func.func @transform_5(%arg0: i32) -> (i32, i32) {
    %c0_i32 = arith.constant 0 : i32
    %c0_i32_0 = arith.constant 0 : i32
    %c0_i32_1 = arith.constant 0 : i32
    return %c0_i32, %c0_i32_0 : i32, i32
  }
  func.func @transform_6(%arg0: i32) -> (i32, i32) {
    %c0_i32 = arith.constant 0 : i32
    %c0_i32_0 = arith.constant 0 : i32
    %c0_i32_1 = arith.constant 0 : i32
    return %c0_i32, %c0_i32_0 : i32, i32
  }
  func.func @transform_7(%arg0: i32) -> (i32, i32) {
    %c0_i32 = arith.constant 0 : i32
    %c0_i32_0 = arith.constant 0 : i32
    %c0_i32_1 = arith.constant 0 : i32
    return %c0_i32, %c0_i32_0 : i32, i32
  }
  func.func @transform_8(%arg0: i32) -> (i32, i32) {
    %c0_i32 = arith.constant 0 : i32
    %c0_i32_0 = arith.constant 0 : i32
    %c0_i32_1 = arith.constant 0 : i32
    return %c0_i32, %c0_i32_0 : i32, i32
  }
  func.func @transform_9(%arg0: i32) -> (i32, i32) {
    %c0_i32 = arith.constant 0 : i32
    %c0_i32_0 = arith.constant 0 : i32
    return %arg0, %c0_i32 : i32, i32
  }
}

</mosaic_0001>

<llo_original>
// kernel: qnetwork_forward.1
$region0: #{qnetwork_forward.1}
  #allocation0 [shape = 'u32[]', space=smem, size = 0x4, offset = 0x4, fixed_abs, tag = 'smem constant byte address 0x4 - core index']
  #allocation1 [shape = 'u32[72,128]{1,0:T(1,128)}', space=vmem, size = 0x9000, scoped, tag = 'internal scratch']
  %s0 = inlined_call_operand.vmem [shape: bf16[16,128], index: 0, kind: input, shape index: {}]
  %s1 = inlined_call_operand.hbm [shape: bf16[128,384], index: 1, kind: input, shape index: {}]
  %s2 = inlined_call_operand.hbm [shape: bf16[384,512], index: 2, kind: input, shape index: {}]
  %s3 = inlined_call_operand.hbm [shape: bf16[512,640], index: 3, kind: input, shape index: {}]
  %s4 = inlined_call_operand.hbm [shape: bf16[640,640], index: 4, kind: input, shape index: {}]
  %s5 = inlined_call_operand.hbm [shape: bf16[640,512], index: 5, kind: input, shape index: {}]
  %s6 = inlined_call_operand.hbm [shape: bf16[512,384], index: 6, kind: input, shape index: {}]
  %s7 = inlined_call_operand.hbm [shape: bf16[384,128], index: 7, kind: input, shape index: {}]
  %s8 = inlined_call_operand.vmem [shape: f32[8,640], index: 8, kind: input, shape index: {}]
  %s9 = inlined_call_operand.vmem [shape: bf16[16,128], index: 9, kind: output, shape index: {}]
  %s10 = sld [smem:[#allocation0]]
  $region74: #{qnetwork_forward.1} parent=0
    _
  %s12 = ssub.s32 1, %s10
  %s13 = scalar_select 0, %s12, %s10
  $region1: #{qnetwork_forward.1} parent=0
    #allocation2 [shape = 'u8[98304]{0}', space=vmem, size = 0x18000, scoped, tag = 'input window, operand 1, single buffered']
    #allocation3 [shape = 's32[1]{0}', space=sflag, size = 0x4, scoped, tag = 'scoped memory for qnetwork_forward.1']
    #allocation4 [shape = 'u8[393216]{0}', space=vmem, size = 0x60000, scoped, tag = 'input window, operand 2, single buffered']
    #allocation5 [shape = 's32[1]{0}', space=sflag, size = 0x4, scoped, tag = 'scoped memory for qnetwork_forward.1']
    #allocation6 [shape = 'u8[655360]{0}', space=vmem, size = 0xa0000, scoped, tag = 'input window, operand 3, single buffered']
    #allocation7 [shape = 'u8[819200]{0}', space=vmem, size = 0xc8000, scoped, tag = 'input window, operand 4, single buffered']
    #allocation8 [shape = 's32[1]{0}', space=sflag, size = 0x4, scoped, tag = 'scoped memory for qnetwork_forward.1']
    #allocation9 [shape = 'u8[655360]{0}', space=vmem, size = 0xa0000, scoped, tag = 'input window, operand 5, single buffered']
    #allocation10 [shape = 'u8[393216]{0}', space=vmem, size = 0x60000, scoped, tag = 'input window, operand 6, single buffered']
    #allocation11 [shape = 's32[1]{0}', space=sflag, size = 0x4, scoped, tag = 'scoped memory for qnetwork_forward.1']
    #allocation12 [shape = 'u8[98304]{0}', space=vmem, size = 0x18000, scoped, tag = 'input window, operand 7, single buffered']
    %14 = vsyncpa [#allocation3], 0
    %15 = vsyncpa [#allocation5], 0
    %16 = vsyncpa [#allocation8], 0
    %17 = vsyncpa [#allocation11], 0
    // Predicated region
    $region2: #{qnetwork_forward.1} parent=1 // pred_check
      _
    $region3: #{qnetwork_forward.1} parent=1 // pred_check_branch
      %19 = sbr.rel (0) target = $region5
    $region4: #{qnetwork_forward.1} parent=1 // pred_region
      _
    $region5: #{qnetwork_forward.1} parent=1 // pred_fallthru
      _
    // Predicated region
    $region6: #{qnetwork_forward.1} parent=1 // pred_check
      _
    $region7: #{qnetwork_forward.1} parent=1 // pred_check_branch
      %21 = sbr.rel (0) target = $region9
    $region8: #{qnetwork_forward.1} parent=1 // pred_region
      %23 = vsyncadd [#allocation3], 0
      %s24 = sshll.u32 %s1, 4
      %s25 = int_to_ptr.hbm [resolvable:$true] %s24
      %s26 = sshll.u32 [#allocation2], 4
      %s27 = int_to_ptr.vmem [resolvable:$true] %s26
      %32 = dma.hbm_to_vmem [thread:$0]  %s25, 3072, %s27, [#allocation3], 192, 192, 12
    $region9: #{qnetwork_forward.1} parent=1 // pred_fallthru
      _
    // Predicated region
    $region10: #{qnetwork_forward.1} parent=1 // pred_check
      _
    $region11: #{qnetwork_forward.1} parent=1 // pred_check_branch
      %34 = sbr.rel (0) target = $region13
    $region12: #{qnetwork_forward.1} parent=1 // pred_region
      %36 = vsyncadd [#allocation5], 0
      %s37 = sshll.u32 %s2, 4
      %s38 = int_to_ptr.hbm [resolvable:$true] %s37
      %s39 = sshll.u32 [#allocation4], 4
      %s40 = int_to_ptr.vmem [resolvable:$true] %s39
      %45 = dma.hbm_to_vmem [thread:$0]  %s38, 12288, %s40, [#allocation5], 256, 256, 16
    $region13: #{qnetwork_forward.1} parent=1 // pred_fallthru
      _
    // Predicated region
    $region14: #{qnetwork_forward.1} parent=1 // pred_check
      _
    $region15: #{qnetwork_forward.1} parent=1 // pred_check_branch
      %47 = sbr.rel (0) target = $region17
    $region16: #{qnetwork_forward.1} parent=1 // pred_region
      %49 = vsyncadd [#allocation5], 0
      %s50 = sshll.u32 %s3, 4
      %s51 = int_to_ptr.hbm [resolvable:$true] %s50
      %s52 = sshll.u32 [#allocation6], 4
      %s53 = int_to_ptr.vmem [resolvable:$true] %s52
      %58 = dma.hbm_to_vmem [thread:$0]  %s51, 20480, %s53, [#allocation5], 320, 320, 20
    $region17: #{qnetwork_forward.1} parent=1 // pred_fallthru
      _
    // Predicated region
    $region18: #{qnetwork_forward.1} parent=1 // pred_check
      _
    $region19: #{qnetwork_forward.1} parent=1 // pred_check_branch
      %60 = sbr.rel (0) target = $region21
    $region20: #{qnetwork_forward.1} parent=1 // pred_region
      %62 = vsyncadd [#allocation8], 0
      %s63 = sshll.u32 %s4, 4
      %s64 = int_to_ptr.hbm [resolvable:$true] %s63
      %s65 = sshll.u32 [#allocation7], 4
      %s66 = int_to_ptr.vmem [resolvable:$true] %s65
      %71 = dma.hbm_to_vmem [thread:$0]  %s64, 25600, %s66, [#allocation8], 320, 320, 20
    $region21: #{qnetwork_forward.1} parent=1 // pred_fallthru
      _
    // Predicated region
    $region22: #{qnetwork_forward.1} parent=1 // pred_check
      _
    $region23: #{qnetwork_forward.1} parent=1 // pred_check_branch
      %73 = sbr.rel (0) target = $region25
    $region24: #{qnetwork_forward.1} parent=1 // pred_region
      %75 = vsyncadd [#allocation8], 0
      %s76 = sshll.u32 %s5, 4
      %s77 = int_to_ptr.hbm [resolvable:$true] %s76
      %s78 = sshll.u32 [#allocation9], 4
      %s79 = int_to_ptr.vmem [resolvable:$true] %s78
      %84 = dma.hbm_to_vmem [thread:$0]  %s77, 20480, %s79, [#allocation8], 256, 256, 16
    $region25: #{qnetwork_forward.1} parent=1 // pred_fallthru
      _
    // Predicated region
    $region26: #{qnetwork_forward.1} parent=1 // pred_check
      _
    $region27: #{qnetwork_forward.1} parent=1 // pred_check_branch
      %86 = sbr.rel (0) target = $region29
    $region28: #{qnetwork_forward.1} parent=1 // pred_region
      %88 = vsyncadd [#allocation11], 0
      %s89 = sshll.u32 %s6, 4
      %s90 = int_to_ptr.hbm [resolvable:$true] %s89
      %s91 = sshll.u32 [#allocation10], 4
      %s92 = int_to_ptr.vmem [resolvable:$true] %s91
      %97 = dma.hbm_to_vmem [thread:$0]  %s90, 12288, %s92, [#allocation11], 192, 192, 12
    $region29: #{qnetwork_forward.1} parent=1 // pred_fallthru
      _
    // Predicated region
    $region30: #{qnetwork_forward.1} parent=1 // pred_check
      _
    $region31: #{qnetwork_forward.1} parent=1 // pred_check_branch
      %99 = sbr.rel (0) target = $region33
    $region32: #{qnetwork_forward.1} parent=1 // pred_region
      %101 = vsyncadd [#allocation11], 0
      %s102 = sshll.u32 %s7, 4
      %s103 = int_to_ptr.hbm [resolvable:$true] %s102
      %s104 = sshll.u32 [#allocation12], 4
      %s105 = int_to_ptr.vmem [resolvable:$true] %s104
      %110 = dma.hbm_to_vmem [thread:$0]  %s103, 3072, %s105, [#allocation11], 64, 64, 4
    $region33: #{qnetwork_forward.1} parent=1 // pred_fallthru
      _
    // Predicated region
    $region34: #{qnetwork_forward.1} parent=1 // pred_check
      _
    $region35: #{qnetwork_forward.1} parent=1 // pred_check_branch
      %112 = sbr.rel (0) target = $region37
    $region36: #{qnetwork_forward.1} parent=1 // pred_region
      _
    $region37: #{qnetwork_forward.1} parent=1 // pred_fallthru
      _
    // Predicated region
    $region38: #{qnetwork_forward.1} parent=1 // pred_check
      _
    $region39: #{qnetwork_forward.1} parent=1 // pred_check_branch
      %114 = sbr.rel (0) target = $region41
    $region40: #{qnetwork_forward.1} parent=1 // pred_region
      %116 = dma.done [#allocation3], 3072
    $region41: #{qnetwork_forward.1} parent=1 // pred_fallthru
      _
    // Predicated region
    $region42: #{qnetwork_forward.1} parent=1 // pred_check
      _
    $region43: #{qnetwork_forward.1} parent=1 // pred_check_branch
      %118 = sbr.rel (0) target = $region45
    $region44: #{qnetwork_forward.1} parent=1 // pred_region
      %120 = dma.done [#allocation5], 12288
    $region45: #{qnetwork_forward.1} parent=1 // pred_fallthru
      _
    // Predicated region
    $region46: #{qnetwork_forward.1} parent=1 // pred_check
      _
    $region47: #{qnetwork_forward.1} parent=1 // pred_check_branch
      %122 = sbr.rel (0) target = $region49
    $region48: #{qnetwork_forward.1} parent=1 // pred_region
      %124 = dma.done [#allocation5], 20480
    $region49: #{qnetwork_forward.1} parent=1 // pred_fallthru
      _
    // Predicated region
    $region50: #{qnetwork_forward.1} parent=1 // pred_check
      _
    $region51: #{qnetwork_forward.1} parent=1 // pred_check_branch
      %126 = sbr.rel (0) target = $region53
    $region52: #{qnetwork_forward.1} parent=1 // pred_region
      %128 = dma.done [#allocation8], 25600
    $region53: #{qnetwork_forward.1} parent=1 // pred_fallthru
      _
    // Predicated region
    $region54: #{qnetwork_forward.1} parent=1 // pred_check
      _
    $region55: #{qnetwork_forward.1} parent=1 // pred_check_branch
      %130 = sbr.rel (0) target = $region57
    $region56: #{qnetwork_forward.1} parent=1 // pred_region
      %132 = dma.done [#allocation8], 20480
    $region57: #{qnetwork_forward.1} parent=1 // pred_fallthru
      _
    // Predicated region
    $region58: #{qnetwork_forward.1} parent=1 // pred_check
      _
    $region59: #{qnetwork_forward.1} parent=1 // pred_check_branch
      %134 = sbr.rel (0) target = $region61
    $region60: #{qnetwork_forward.1} parent=1 // pred_region
      %136 = dma.done [#allocation11], 12288
    $region61: #{qnetwork_forward.1} parent=1 // pred_fallthru
      _
    // Predicated region
    $region62: #{qnetwork_forward.1} parent=1 // pred_check
      _
    $region63: #{qnetwork_forward.1} parent=1 // pred_check_branch
      %138 = sbr.rel (0) target = $region65
    $region64: #{qnetwork_forward.1} parent=1 // pred_region
      %140 = dma.done [#allocation11], 3072
    $region65: #{qnetwork_forward.1} parent=1 // pred_fallthru
      _
    %v141 = vld [vmem:[%s0] sm:$0xf]
    %v142 = vld [vmem:[%s0 + $0x4] sm:$0xf]
    %v143 = vld [vmem:[#allocation2] sm:$0xff]
    %v144 = vld [vmem:[#allocation2 + $0x8] sm:$0xf]
    %v145 = vld [vmem:[#allocation2 + $0xc] sm:$0xff]
    %v146 = vld [vmem:[#allocation2 + $0x14] sm:$0xf]
    %v147 = vld [vmem:[#allocation2 + $0x18] sm:$0xff]
    %v148 = vld [vmem:[#allocation2 + $0x20] sm:$0xf]
    %v149 = vld [vmem:[#allocation2 + $0x24] sm:$0xff]
    %v150 = vld [vmem:[#allocation2 + $0x2c] sm:$0xf]
    %v151 = vld [vmem:[#allocation2 + $0x30] sm:$0xff]
    %v152 = vld [vmem:[#allocation2 + $0x38] sm:$0xf]
    %v153 = vld [vmem:[#allocation2 + $0x3c] sm:$0xff]
    %v154 = vld [vmem:[#allocation2 + $0x44] sm:$0xf]
    %v155 = vld [vmem:[#allocation2 + $0x48] sm:$0xff]
    %v156 = vld [vmem:[#allocation2 + $0x50] sm:$0xf]
    %v157 = vld [vmem:[#allocation2 + $0x54] sm:$0xff]
    %v158 = vld [vmem:[#allocation2 + $0x5c] sm:$0xf]
    %v159 = vld [vmem:[#allocation2 + $0x60] sm:$0xff]
    %v160 = vld [vmem:[#allocation2 + $0x68] sm:$0xf]
    %v161 = vld [vmem:[#allocation2 + $0x6c] sm:$0xff]
    %v162 = vld [vmem:[#allocation2 + $0x74] sm:$0xf]
    %v163 = vld [vmem:[#allocation2 + $0x78] sm:$0xff]
    %v164 = vld [vmem:[#allocation2 + $0x80] sm:$0xf]
    %v165 = vld [vmem:[#allocation2 + $0x84] sm:$0xff]
    %v166 = vld [vmem:[#allocation2 + $0x8c] sm:$0xf]
    %v167 = vld [vmem:[#allocation2 + $0x90] sm:$0xff]
    %v168 = vld [vmem:[#allocation2 + $0x98] sm:$0xf]
    %v169 = vld [vmem:[#allocation2 + $0x9c] sm:$0xff]
    %v170 = vld [vmem:[#allocation2 + $0xa4] sm:$0xf]
    %v171 = vld [vmem:[#allocation2 + $0xa8] sm:$0xff]
    %v172 = vld [vmem:[#allocation2 + $0xb0] sm:$0xf]
    %v173 = vld [vmem:[#allocation2 + $0xb4] sm:$0xff]
    %v174 = vld [vmem:[#allocation2 + $0xbc] sm:$0xf]
    %v175 = vld [vmem:[%s8] ss:$8 sm:$0x7]
    %v177 = vperm.slane %v175, 0
    %v178 = vperm.slane %v175, 1
    %v179 = vperm.slane %v175, 2
    %v185 = vunpack.c.l.b16 %v141
    %v186 = vunpack.c.l.b16 %v142
    %v187 = vpack.c.b16 %v186, %v185
    %v221 = vunpack.c.l.b16 %v143
    %v222 = vunpack.c.h.b16 %v143
    %v223 = vunpack.c.l.b16 %v144
    %v224 = vunpack.c.l.b16 %v145
    %v225 = vunpack.c.h.b16 %v145
    %v226 = vunpack.c.l.b16 %v146
    %v227 = vunpack.c.l.b16 %v147
    %v228 = vunpack.c.h.b16 %v147
    %v229 = vunpack.c.l.b16 %v148
    %v230 = vunpack.c.l.b16 %v149
    %v231 = vunpack.c.h.b16 %v149
    %v232 = vunpack.c.l.b16 %v150
    %v233 = vunpack.c.l.b16 %v151
    %v234 = vunpack.c.h.b16 %v151
    %v235 = vunpack.c.l.b16 %v152
    %v236 = vunpack.c.l.b16 %v153
    %v237 = vunpack.c.h.b16 %v153
    %v238 = vunpack.c.l.b16 %v154
    %v239 = vunpack.c.l.b16 %v155
    %v240 = vunpack.c.h.b16 %v155
    %v241 = vunpack.c.l.b16 %v156
    %v242 = vunpack.c.l.b16 %v157
    %v243 = vunpack.c.h.b16 %v157
    %v244 = vunpack.c.l.b16 %v158
    %v245 = vunpack.c.l.b16 %v159
    %v246 = vunpack.c.h.b16 %v159
    %v247 = vunpack.c.l.b16 %v160
    %v248 = vunpack.c.l.b16 %v161
    %v249 = vunpack.c.h.b16 %v161
    %v250 = vunpack.c.l.b16 %v162
    %v251 = vunpack.c.l.b16 %v163
    %v252 = vunpack.c.h.b16 %v163
    %v253 = vunpack.c.l.b16 %v164
    %v254 = vunpack.c.l.b16 %v165
    %v255 = vunpack.c.h.b16 %v165
    %v256 = vunpack.c.l.b16 %v166
    %v257 = vunpack.c.l.b16 %v167
    %v258 = vunpack.c.h.b16 %v167
    %v259 = vunpack.c.l.b16 %v168
    %v260 = vunpack.c.l.b16 %v169
    %v261 = vunpack.c.h.b16 %v169
    %v262 = vunpack.c.l.b16 %v170
    %v263 = vunpack.c.l.b16 %v171
    %v264 = vunpack.c.h.b16 %v171
    %v265 = vunpack.c.l.b16 %v172
    %v266 = vunpack.c.l.b16 %v173
    %v267 = vunpack.c.h.b16 %v173
    %v268 = vunpack.c.l.b16 %v174
    %v269 = vpack.c.b16 %v224, %v221
    %v270 = vpack.c.b16 %v225, %v222
    %v271 = vpack.c.b16 %v226, %v223
    %v272 = vpack.c.b16 %v230, %v227
    %v273 = vpack.c.b16 %v231, %v228
    %v274 = vpack.c.b16 %v232, %v229
    %v275 = vpack.c.b16 %v236, %v233
    %v276 = vpack.c.b16 %v237, %v234
    %v277 = vpack.c.b16 %v238, %v235
    %v278 = vpack.c.b16 %v242, %v239
    %v279 = vpack.c.b16 %v243, %v240
    %v280 = vpack.c.b16 %v244, %v241
    %v281 = vpack.c.b16 %v248, %v245
    %v282 = vpack.c.b16 %v249, %v246
    %v283 = vpack.c.b16 %v250, %v247
    %v284 = vpack.c.b16 %v254, %v251
    %v285 = vpack.c.b16 %v255, %v252
    %v286 = vpack.c.b16 %v256, %v253
    %v287 = vpack.c.b16 %v260, %v257
    %v288 = vpack.c.b16 %v261, %v258
    %v289 = vpack.c.b16 %v262, %v259
    %v290 = vpack.c.b16 %v266, %v263
    %v291 = vpack.c.b16 %v267, %v264
    %v292 = vpack.c.b16 %v268, %v265
    %317 = vmatpush.bf16.msra.mxu0 %v290
    %318 = vmatpush.bf16.msra.mxu0 %v287
    %319 = vmatpush.bf16.msra.mxu0 %v284
    %320 = vmatpush.bf16.msra.mxu0 %v281
    %321 = vmatpush.bf16.msra.mxu0 %v278
    %322 = vmatpush.bf16.msra.mxu0 %v275
    %323 = vmatpush.bf16.msra.mxu0 %v272
    %324 = vmatpush.bf16.msra.mxu0 %v269
    %325 = vmatmul.bf16.gmra.mxu0 %v187
    %v326 = vpop.f32.mrf.mxu0
    %v327 = vadd.f32 %v177, %v326
    %v328 = vpop.f32.mrf.mxu0
    %v329 = vadd.f32 %v177, %v328
    %330 = vdwg.mxu0
    %331 = vmatpush.bf16.msra.mxu0 %v291
    %332 = vmatpush.bf16.msra.mxu0 %v288
    %333 = vmatpush.bf16.msra.mxu0 %v285
    %334 = vmatpush.bf16.msra.mxu0 %v282
    %335 = vmatpush.bf16.msra.mxu0 %v279
    %336 = vmatpush.bf16.msra.mxu0 %v276
    %337 = vmatpush.bf16.msra.mxu0 %v273
    %338 = vmatpush.bf16.msra.mxu0 %v270
    %339 = vmatmul.bf16.gmra.mxu0 %v187
    %v340 = vpop.f32.mrf.mxu0
    %v341 = vadd.f32 %v178, %v340
    %v342 = vpop.f32.mrf.mxu0
    %v343 = vadd.f32 %v178, %v342
    %344 = vdwg.mxu0
    %345 = vmatpush.bf16.msra.mxu0 %v292
    %346 = vmatpush.bf16.msra.mxu0 %v289
    %347 = vmatpush.bf16.msra.mxu0 %v286
    %348 = vmatpush.bf16.msra.mxu0 %v283
    %349 = vmatpush.bf16.msra.mxu0 %v280
    %350 = vmatpush.bf16.msra.mxu0 %v277
    %351 = vmatpush.bf16.msra.mxu0 %v274
    %352 = vmatpush.bf16.msra.mxu0 %v271
    %353 = vmatmul.bf16.gmra.mxu0 %v187
    %v354 = vpop.f32.mrf.mxu0
    %v355 = vadd.f32 %v179, %v354
    %v356 = vpop.f32.mrf.mxu0
    %v357 = vadd.f32 %v179, %v356
    %358 = vdwg.mxu0
    %v359 = vmax.f32 %v327, 0.0
    %v360 = vmax.f32 %v341, 0.0
    %v361 = vmax.f32 %v355, 0.0
    %v362 = vmax.f32 %v329, 0.0
    %v363 = vmax.f32 %v343, 0.0
    %v364 = vmax.f32 %v357, 0.0
    %v365 = vpack.c.bf16 %v362, %v359
    %v366 = vpack.c.bf16 %v363, %v360
    %v367 = vpack.c.bf16 %v364, %v361
    %v368 = vld [vmem:[#allocation4] sm:$0xff]
    %v369 = vld [vmem:[#allocation4 + $0x8] sm:$0xff]
    %v370 = vld [vmem:[#allocation4 + $0x10] sm:$0xff]
    %v371 = vld [vmem:[#allocation4 + $0x18] sm:$0xff]
    %v372 = vld [vmem:[#allocation4 + $0x20] sm:$0xff]
    %v373 = vld [vmem:[#allocation4 + $0x28] sm:$0xff]
    %v374 = vld [vmem:[#allocation4 + $0x30] sm:$0xff]
    %v375 = vld [vmem:[#allocation4 + $0x38] sm:$0xff]
    %v376 = vld [vmem:[#allocation4 + $0x40] sm:$0xff]
    %v377 = vld [vmem:[#allocation4 + $0x48] sm:$0xff]
    %v378 = vld [vmem:[#allocation4 + $0x50] sm:$0xff]
    %v379 = vld [vmem:[#allocation4 + $0x58] sm:$0xff]
    %v380 = vld [vmem:[#allocation4 + $0x60] sm:$0xff]
    %v381 = vld [vmem:[#allocation4 + $0x68] sm:$0xff]
    %v382 = vld [vmem:[#allocation4 + $0x70] sm:$0xff]
    %v383 = vld [vmem:[#allocation4 + $0x78] sm:$0xff]
    %v384 = vld [vmem:[#allocation4 + $0x80] sm:$0xff]
    %v385 = vld [vmem:[#allocation4 + $0x88] sm:$0xff]
    %v386 = vld [vmem:[#allocation4 + $0x90] sm:$0xff]
    %v387 = vld [vmem:[#allocation4 + $0x98] sm:$0xff]
    %v388 = vld [vmem:[#allocation4 + $0xa0] sm:$0xff]
    %v389 = vld [vmem:[#allocation4 + $0xa8] sm:$0xff]
    %v390 = vld [vmem:[#allocation4 + $0xb0] sm:$0xff]
    %v391 = vld [vmem:[#allocation4 + $0xb8] sm:$0xff]
    %v392 = vld [vmem:[#allocation4 + $0xc0] sm:$0xff]
    %v393 = vld [vmem:[#allocation4 + $0xc8] sm:$0xff]
    %v394 = vld [vmem:[#allocation4 + $0xd0] sm:$0xff]
    %v395 = vld [vmem:[#allocation4 + $0xd8] sm:$0xff]
    %v396 = vld [vmem:[#allocation4 + $0xe0] sm:$0xff]
    %v397 = vld [vmem:[#allocation4 + $0xe8] sm:$0xff]
    %v398 = vld [vmem:[#allocation4 + $0xf0] sm:$0xff]
    %v399 = vld [vmem:[#allocation4 + $0xf8] sm:$0xff]
    %v400 = vld [vmem:[#allocation4 + $0x100] sm:$0xff]
    %v401 = vld [vmem:[#allocation4 + $0x108] sm:$0xff]
    %v402 = vld [vmem:[#allocation4 + $0x110] sm:$0xff]
    %v403 = vld [vmem:[#allocation4 + $0x118] sm:$0xff]
    %v404 = vld [vmem:[#allocation4 + $0x120] sm:$0xff]
    %v405 = vld [vmem:[#allocation4 + $0x128] sm:$0xff]
    %v406 = vld [vmem:[#allocation4 + $0x130] sm:$0xff]
    %v407 = vld [vmem:[#allocation4 + $0x138] sm:$0xff]
    %v408 = vld [vmem:[#allocation4 + $0x140] sm:$0xff]
    %v409 = vld [vmem:[#allocation4 + $0x148] sm:$0xff]
    %v410 = vld [vmem:[#allocation4 + $0x150] sm:$0xff]
    %v411 = vld [vmem:[#allocation4 + $0x158] sm:$0xff]
    %v412 = vld [vmem:[#allocation4 + $0x160] sm:$0xff]
    %v413 = vld [vmem:[#allocation4 + $0x168] sm:$0xff]
    %v414 = vld [vmem:[#allocation4 + $0x170] sm:$0xff]
    %v415 = vld [vmem:[#allocation4 + $0x178] sm:$0xff]
    %v416 = vld [vmem:[#allocation4 + $0x180] sm:$0xff]
    %v417 = vld [vmem:[#allocation4 + $0x188] sm:$0xff]
    %v418 = vld [vmem:[#allocation4 + $0x190] sm:$0xff]
    %v419 = vld [vmem:[#allocation4 + $0x198] sm:$0xff]
    %v420 = vld [vmem:[#allocation4 + $0x1a0] sm:$0xff]
    %v421 = vld [vmem:[#allocation4 + $0x1a8] sm:$0xff]
    %v422 = vld [vmem:[#allocation4 + $0x1b0] sm:$0xff]
    %v423 = vld [vmem:[#allocation4 + $0x1b8] sm:$0xff]
    %v424 = vld [vmem:[#allocation4 + $0x1c0] sm:$0xff]
    %v425 = vld [vmem:[#allocation4 + $0x1c8] sm:$0xff]
    %v426 = vld [vmem:[#allocation4 + $0x1d0] sm:$0xff]
    %v427 = vld [vmem:[#allocation4 + $0x1d8] sm:$0xff]
    %v428 = vld [vmem:[#allocation4 + $0x1e0] sm:$0xff]
    %v429 = vld [vmem:[#allocation4 + $0x1e8] sm:$0xff]
    %v430 = vld [vmem:[#allocation4 + $0x1f0] sm:$0xff]
    %v431 = vld [vmem:[#allocation4 + $0x1f8] sm:$0xff]
    %v432 = vld [vmem:[#allocation4 + $0x200] sm:$0xff]
    %v433 = vld [vmem:[#allocation4 + $0x208] sm:$0xff]
    %v434 = vld [vmem:[#allocation4 + $0x210] sm:$0xff]
    %v435 = vld [vmem:[#allocation4 + $0x218] sm:$0xff]
    %v436 = vld [vmem:[#allocation4 + $0x220] sm:$0xff]
    %v437 = vld [vmem:[#allocation4 + $0x228] sm:$0xff]
    %v438 = vld [vmem:[#allocation4 + $0x230] sm:$0xff]
    %v439 = vld [vmem:[#allocation4 + $0x238] sm:$0xff]
    %v440 = vld [vmem:[#allocation4 + $0x240] sm:$0xff]
    %v441 = vld [vmem:[#allocation4 + $0x248] sm:$0xff]
    %v442 = vld [vmem:[#allocation4 + $0x250] sm:$0xff]
    %v443 = vld [vmem:[#allocation4 + $0x258] sm:$0xff]
    %v444 = vld [vmem:[#allocation4 + $0x260] sm:$0xff]
    %v445 = vld [vmem:[#allocation4 + $0x268] sm:$0xff]
    %v446 = vld [vmem:[#allocation4 + $0x270] sm:$0xff]
    %v447 = vld [vmem:[#allocation4 + $0x278] sm:$0xff]
    %v448 = vld [vmem:[#allocation4 + $0x280] sm:$0xff]
    %v449 = vld [vmem:[#allocation4 + $0x288] sm:$0xff]
    %v450 = vld [vmem:[#allocation4 + $0x290] sm:$0xff]
    %v451 = vld [vmem:[#allocation4 + $0x298] sm:$0xff]
    %v452 = vld [vmem:[#allocation4 + $0x2a0] sm:$0xff]
    %v453 = vld [vmem:[#allocation4 + $0x2a8] sm:$0xff]
    %v454 = vld [vmem:[#allocation4 + $0x2b0] sm:$0xff]
    %v455 = vld [vmem:[#allocation4 + $0x2b8] sm:$0xff]
    %v456 = vld [vmem:[#allocation4 + $0x2c0] sm:$0xff]
    %v457 = vld [vmem:[#allocation4 + $0x2c8] sm:$0xff]
    %v458 = vld [vmem:[#allocation4 + $0x2d0] sm:$0xff]
    %v459 = vld [vmem:[#allocation4 + $0x2d8] sm:$0xff]
    %v460 = vld [vmem:[#allocation4 + $0x2e0] sm:$0xff]
    %v461 = vld [vmem:[#allocation4 + $0x2e8] sm:$0xff]
    %v462 = vld [vmem:[#allocation4 + $0x2f0] sm:$0xff]
    %v463 = vld [vmem:[#allocation4 + $0x2f8] sm:$0xff]
    %s464 = scalar_lea.vmem %s8, 1
    %v465 = vld [vmem:[%s464] ss:$8 sm:$0xf]
    %v467 = vperm.slane %v465, 0
    %v468 = vperm.slane %v465, 1
    %v469 = vperm.slane %v465, 2
    %v470 = vperm.slane %v465, 3
    %v571 = vunpack.c.l.b16 %v368
    %v572 = vunpack.c.h.b16 %v368
    %v573 = vunpack.c.l.b16 %v369
    %v574 = vunpack.c.h.b16 %v369
    %v575 = vunpack.c.l.b16 %v370
    %v576 = vunpack.c.h.b16 %v370
    %v577 = vunpack.c.l.b16 %v371
    %v578 = vunpack.c.h.b16 %v371
    %v579 = vunpack.c.l.b16 %v372
    %v580 = vunpack.c.h.b16 %v372
    %v581 = vunpack.c.l.b16 %v373
    %v582 = vunpack.c.h.b16 %v373
    %v583 = vunpack.c.l.b16 %v374
    %v584 = vunpack.c.h.b16 %v374
    %v585 = vunpack.c.l.b16 %v375
    %v586 = vunpack.c.h.b16 %v375
    %v587 = vunpack.c.l.b16 %v376
    %v588 = vunpack.c.h.b16 %v376
    %v589 = vunpack.c.l.b16 %v377
    %v590 = vunpack.c.h.b16 %v377
    %v591 = vunpack.c.l.b16 %v378
    %v592 = vunpack.c.h.b16 %v378
    %v593 = vunpack.c.l.b16 %v379
    %v594 = vunpack.c.h.b16 %v379
    %v595 = vunpack.c.l.b16 %v380
    %v596 = vunpack.c.h.b16 %v380
    %v597 = vunpack.c.l.b16 %v381
    %v598 = vunpack.c.h.b16 %v381
    %v599 = vunpack.c.l.b16 %v382
    %v600 = vunpack.c.h.b16 %v382
    %v601 = vunpack.c.l.b16 %v383
    %v602 = vunpack.c.h.b16 %v383
    %v603 = vunpack.c.l.b16 %v384
    %v604 = vunpack.c.h.b16 %v384
    %v605 = vunpack.c.l.b16 %v385
    %v606 = vunpack.c.h.b16 %v385
    %v607 = vunpack.c.l.b16 %v386
    %v608 = vunpack.c.h.b16 %v386
    %v609 = vunpack.c.l.b16 %v387
    %v610 = vunpack.c.h.b16 %v387
    %v611 = vunpack.c.l.b16 %v388
    %v612 = vunpack.c.h.b16 %v388
    %v613 = vunpack.c.l.b16 %v389
    %v614 = vunpack.c.h.b16 %v389
    %v615 = vunpack.c.l.b16 %v390
    %v616 = vunpack.c.h.b16 %v390
    %v617 = vunpack.c.l.b16 %v391
    %v618 = vunpack.c.h.b16 %v391
    %v619 = vunpack.c.l.b16 %v392
    %v620 = vunpack.c.h.b16 %v392
    %v621 = vunpack.c.l.b16 %v393
    %v622 = vunpack.c.h.b16 %v393
    %v623 = vunpack.c.l.b16 %v394
    %v624 = vunpack.c.h.b16 %v394
    %v625 = vunpack.c.l.b16 %v395
    %v626 = vunpack.c.h.b16 %v395
    %v627 = vunpack.c.l.b16 %v396
    %v628 = vunpack.c.h.b16 %v396
    %v629 = vunpack.c.l.b16 %v397
    %v630 = vunpack.c.h.b16 %v397
    %v631 = vunpack.c.l.b16 %v398
    %v632 = vunpack.c.h.b16 %v398
    %v633 = vunpack.c.l.b16 %v399
    %v634 = vunpack.c.h.b16 %v399
    %v635 = vunpack.c.l.b16 %v400
    %v636 = vunpack.c.h.b16 %v400
    %v637 = vunpack.c.l.b16 %v401
    %v638 = vunpack.c.h.b16 %v401
    %v639 = vunpack.c.l.b16 %v402
    %v640 = vunpack.c.h.b16 %v402
    %v641 = vunpack.c.l.b16 %v403
    %v642 = vunpack.c.h.b16 %v403
    %v643 = vunpack.c.l.b16 %v404
    %v644 = vunpack.c.h.b16 %v404
    %v645 = vunpack.c.l.b16 %v405
    %v646 = vunpack.c.h.b16 %v405
    %v647 = vunpack.c.l.b16 %v406
    %v648 = vunpack.c.h.b16 %v406
    %v649 = vunpack.c.l.b16 %v407
    %v650 = vunpack.c.h.b16 %v407
    %v651 = vunpack.c.l.b16 %v408
    %v652 = vunpack.c.h.b16 %v408
    %v653 = vunpack.c.l.b16 %v409
    %v654 = vunpack.c.h.b16 %v409
    %v655 = vunpack.c.l.b16 %v410
    %v656 = vunpack.c.h.b16 %v410
    %v657 = vunpack.c.l.b16 %v411
    %v658 = vunpack.c.h.b16 %v411
    %v659 = vunpack.c.l.b16 %v412
    %v660 = vunpack.c.h.b16 %v412
    %v661 = vunpack.c.l.b16 %v413
    %v662 = vunpack.c.h.b16 %v413
    %v663 = vunpack.c.l.b16 %v414
    %v664 = vunpack.c.h.b16 %v414
    %v665 = vunpack.c.l.b16 %v415
    %v666 = vunpack.c.h.b16 %v415
    %v667 = vunpack.c.l.b16 %v416
    %v668 = vunpack.c.h.b16 %v416
    %v669 = vunpack.c.l.b16 %v417
    %v670 = vunpack.c.h.b16 %v417
    %v671 = vunpack.c.l.b16 %v418
    %v672 = vunpack.c.h.b16 %v418
    %v673 = vunpack.c.l.b16 %v419
    %v674 = vunpack.c.h.b16 %v419
    %v675 = vunpack.c.l.b16 %v420
    %v676 = vunpack.c.h.b16 %v420
    %v677 = vunpack.c.l.b16 %v421
    %v678 = vunpack.c.h.b16 %v421
    %v679 = vunpack.c.l.b16 %v422
    %v680 = vunpack.c.h.b16 %v422
    %v681 = vunpack.c.l.b16 %v423
    %v682 = vunpack.c.h.b16 %v423
    %v683 = vunpack.c.l.b16 %v424
    %v684 = vunpack.c.h.b16 %v424
    %v685 = vunpack.c.l.b16 %v425
    %v686 = vunpack.c.h.b16 %v425
    %v687 = vunpack.c.l.b16 %v426
    %v688 = vunpack.c.h.b16 %v426
    %v689 = vunpack.c.l.b16 %v427
    %v690 = vunpack.c.h.b16 %v427
    %v691 = vunpack.c.l.b16 %v428
    %v692 = vunpack.c.h.b16 %v428
    %v693 = vunpack.c.l.b16 %v429
    %v694 = vunpack.c.h.b16 %v429
    %v695 = vunpack.c.l.b16 %v430
    %v696 = vunpack.c.h.b16 %v430
    %v697 = vunpack.c.l.b16 %v431
    %v698 = vunpack.c.h.b16 %v431
    %v699 = vunpack.c.l.b16 %v432
    %v700 = vunpack.c.h.b16 %v432
    %v701 = vunpack.c.l.b16 %v433
    %v702 = vunpack.c.h.b16 %v433
    %v703 = vunpack.c.l.b16 %v434
    %v704 = vunpack.c.h.b16 %v434
    %v705 = vunpack.c.l.b16 %v435
    %v706 = vunpack.c.h.b16 %v435
    %v707 = vunpack.c.l.b16 %v436
    %v708 = vunpack.c.h.b16 %v436
    %v709 = vunpack.c.l.b16 %v437
    %v710 = vunpack.c.h.b16 %v437
    %v711 = vunpack.c.l.b16 %v438
    %v712 = vunpack.c.h.b16 %v438
    %v713 = vunpack.c.l.b16 %v439
    %v714 = vunpack.c.h.b16 %v439
    %v715 = vunpack.c.l.b16 %v440
    %v716 = vunpack.c.h.b16 %v440
    %v717 = vunpack.c.l.b16 %v441
    %v718 = vunpack.c.h.b16 %v441
    %v719 = vunpack.c.l.b16 %v442
    %v720 = vunpack.c.h.b16 %v442
    %v721 = vunpack.c.l.b16 %v443
    %v722 = vunpack.c.h.b16 %v443
    %v723 = vunpack.c.l.b16 %v444
    %v724 = vunpack.c.h.b16 %v444
    %v725 = vunpack.c.l.b16 %v445
    %v726 = vunpack.c.h.b16 %v445
    %v727 = vunpack.c.l.b16 %v446
    %v728 = vunpack.c.h.b16 %v446
    %v729 = vunpack.c.l.b16 %v447
    %v730 = vunpack.c.h.b16 %v447
    %v731 = vunpack.c.l.b16 %v448
    %v732 = vunpack.c.h.b16 %v448
    %v733 = vunpack.c.l.b16 %v449
    %v734 = vunpack.c.h.b16 %v449
    %v735 = vunpack.c.l.b16 %v450
    %v736 = vunpack.c.h.b16 %v450
    %v737 = vunpack.c.l.b16 %v451
    %v738 = vunpack.c.h.b16 %v451
    %v739 = vunpack.c.l.b16 %v452
    %v740 = vunpack.c.h.b16 %v452
    %v741 = vunpack.c.l.b16 %v453
    %v742 = vunpack.c.h.b16 %v453
    %v743 = vunpack.c.l.b16 %v454
    %v744 = vunpack.c.h.b16 %v454
    %v745 = vunpack.c.l.b16 %v455
    %v746 = vunpack.c.h.b16 %v455
    %v747 = vunpack.c.l.b16 %v456
    %v748 = vunpack.c.h.b16 %v456
    %v749 = vunpack.c.l.b16 %v457
    %v750 = vunpack.c.h.b16 %v457
    %v751 = vunpack.c.l.b16 %v458
    %v752 = vunpack.c.h.b16 %v458
    %v753 = vunpack.c.l.b16 %v459
    %v754 = vunpack.c.h.b16 %v459
    %v755 = vunpack.c.l.b16 %v460
    %v756 = vunpack.c.h.b16 %v460
    %v757 = vunpack.c.l.b16 %v461
    %v758 = vunpack.c.h.b16 %v461
    %v759 = vunpack.c.l.b16 %v462
    %v760 = vunpack.c.h.b16 %v462
    %v761 = vunpack.c.l.b16 %v463
    %v762 = vunpack.c.h.b16 %v463
    %v763 = vpack.c.b16 %v575, %v571
    %v764 = vpack.c.b16 %v576, %v572
    %v765 = vpack.c.b16 %v577, %v573
    %v766 = vpack.c.b16 %v578, %v574
    %v767 = vpack.c.b16 %v583, %v579
    %v768 = vpack.c.b16 %v584, %v580
    %v769 = vpack.c.b16 %v585, %v581
    %v770 = vpack.c.b16 %v586, %v582
    %v771 = vpack.c.b16 %v591, %v587
    %v772 = vpack.c.b16 %v592, %v588
    %v773 = vpack.c.b16 %v593, %v589
    %v774 = vpack.c.b16 %v594, %v590
    %v775 = vpack.c.b16 %v599, %v595
    %v776 = vpack.c.b16 %v600, %v596
    %v777 = vpack.c.b16 %v601, %v597
    %v778 = vpack.c.b16 %v602, %v598
    %v779 = vpack.c.b16 %v607, %v603
    %v780 = vpack.c.b16 %v608, %v604
    %v781 = vpack.c.b16 %v609, %v605
    %v782 = vpack.c.b16 %v610, %v606
    %v783 = vpack.c.b16 %v615, %v611
    %v784 = vpack.c.b16 %v616, %v612
    %v785 = vpack.c.b16 %v617, %v613
    %v786 = vpack.c.b16 %v618, %v614
    %v787 = vpack.c.b16 %v623, %v619
    %v788 = vpack.c.b16 %v624, %v620
    %v789 = vpack.c.b16 %v625, %v621
    %v790 = vpack.c.b16 %v626, %v622
    %v791 = vpack.c.b16 %v631, %v627
    %v792 = vpack.c.b16 %v632, %v628
    %v793 = vpack.c.b16 %v633, %v629
    %v794 = vpack.c.b16 %v634, %v630
    %v795 = vpack.c.b16 %v639, %v635
    %v796 = vpack.c.b16 %v640, %v636
    %v797 = vpack.c.b16 %v641, %v637
    %v798 = vpack.c.b16 %v642, %v638
    %v799 = vpack.c.b16 %v647, %v643
    %v800 = vpack.c.b16 %v648, %v644
    %v801 = vpack.c.b16 %v649, %v645
    %v802 = vpack.c.b16 %v650, %v646
    %v803 = vpack.c.b16 %v655, %v651
    %v804 = vpack.c.b16 %v656, %v652
    %v805 = vpack.c.b16 %v657, %v653
    %v806 = vpack.c.b16 %v658, %v654
    %v807 = vpack.c.b16 %v663, %v659
    %v808 = vpack.c.b16 %v664, %v660
    %v809 = vpack.c.b16 %v665, %v661
    %v810 = vpack.c.b16 %v666, %v662
    %v811 = vpack.c.b16 %v671, %v667
    %v812 = vpack.c.b16 %v672, %v668
    %v813 = vpack.c.b16 %v673, %v669
    %v814 = vpack.c.b16 %v674, %v670
    %v815 = vpack.c.b16 %v679, %v675
    %v816 = vpack.c.b16 %v680, %v676
    %v817 = vpack.c.b16 %v681, %v677
    %v818 = vpack.c.b16 %v682, %v678
    %v819 = vpack.c.b16 %v687, %v683
    %v820 = vpack.c.b16 %v688, %v684
    %v821 = vpack.c.b16 %v689, %v685
    %v822 = vpack.c.b16 %v690, %v686
    %v823 = vpack.c.b16 %v695, %v691
    %v824 = vpack.c.b16 %v696, %v692
    %v825 = vpack.c.b16 %v697, %v693
    %v826 = vpack.c.b16 %v698, %v694
    %v827 = vpack.c.b16 %v703, %v699
    %v828 = vpack.c.b16 %v704, %v700
    %v829 = vpack.c.b16 %v705, %v701
    %v830 = vpack.c.b16 %v706, %v702
    %v831 = vpack.c.b16 %v711, %v707
    %v832 = vpack.c.b16 %v712, %v708
    %v833 = vpack.c.b16 %v713, %v709
    %v834 = vpack.c.b16 %v714, %v710
    %v835 = vpack.c.b16 %v719, %v715
    %v836 = vpack.c.b16 %v720, %v716
    %v837 = vpack.c.b16 %v721, %v717
    %v838 = vpack.c.b16 %v722, %v718
    %v839 = vpack.c.b16 %v727, %v723
    %v840 = vpack.c.b16 %v728, %v724
    %v841 = vpack.c.b16 %v729, %v725
    %v842 = vpack.c.b16 %v730, %v726
    %v843 = vpack.c.b16 %v735, %v731
    %v844 = vpack.c.b16 %v736, %v732
    %v845 = vpack.c.b16 %v737, %v733
    %v846 = vpack.c.b16 %v738, %v734
    %v847 = vpack.c.b16 %v743, %v739
    %v848 = vpack.c.b16 %v744, %v740
    %v849 = vpack.c.b16 %v745, %v741
    %v850 = vpack.c.b16 %v746, %v742
    %v851 = vpack.c.b16 %v751, %v747
    %v852 = vpack.c.b16 %v752, %v748
    %v853 = vpack.c.b16 %v753, %v749
    %v854 = vpack.c.b16 %v754, %v750
    %v855 = vpack.c.b16 %v759, %v755
    %v856 = vpack.c.b16 %v760, %v756
    %v857 = vpack.c.b16 %v761, %v757
    %v858 = vpack.c.b16 %v762, %v758
    %955 = vmatpush.bf16.msra.mxu0 %v791
    %956 = vmatpush.bf16.msra.mxu0 %v787
    %957 = vmatpush.bf16.msra.mxu0 %v783
    %958 = vmatpush.bf16.msra.mxu0 %v779
    %959 = vmatpush.bf16.msra.mxu0 %v775
    %960 = vmatpush.bf16.msra.mxu0 %v771
    %961 = vmatpush.bf16.msra.mxu0 %v767
    %962 = vmatpush.bf16.msra.mxu0 %v763
    %963 = vmatmul.bf16.gmra.mxu0 %v365
    %v964 = vpop.f32.mrf.mxu0
    %v965 = vadd.f32 %v467, %v964
    %v966 = vpop.f32.mrf.mxu0
    %v967 = vadd.f32 %v467, %v966
    %968 = vdwg.mxu0
    %969 = vmatpush.bf16.msra.mxu0 %v823
    %970 = vmatpush.bf16.msra.mxu0 %v819
    %971 = vmatpush.bf16.msra.mxu0 %v815
    %972 = vmatpush.bf16.msra.mxu0 %v811
    %973 = vmatpush.bf16.msra.mxu0 %v807
    %974 = vmatpush.bf16.msra.mxu0 %v803
    %975 = vmatpush.bf16.msra.mxu0 %v799
    %976 = vmatpush.bf16.msra.mxu0 %v795
    %977 = vmatmul.bf16.gmra.mxu0 %v366
    %v978 = vpop.f32.mrf.mxu0
    %v979 = vadd.f32 %v965, %v978
    %v980 = vpop.f32.mrf.mxu0
    %v981 = vadd.f32 %v967, %v980
    %982 = vdwg.mxu0
    %983 = vmatpush.bf16.msra.mxu0 %v855
    %984 = vmatpush.bf16.msra.mxu0 %v851
    %985 = vmatpush.bf16.msra.mxu0 %v847
    %986 = vmatpush.bf16.msra.mxu0 %v843
    %987 = vmatpush.bf16.msra.mxu0 %v839
    %988 = vmatpush.bf16.msra.mxu0 %v835
    %989 = vmatpush.bf16.msra.mxu0 %v831
    %990 = vmatpush.bf16.msra.mxu0 %v827
    %991 = vmatmul.bf16.gmra.mxu0 %v367
    %v992 = vpop.f32.mrf.mxu0
    %v993 = vadd.f32 %v979, %v992
    %v994 = vpop.f32.mrf.mxu0
    %v995 = vadd.f32 %v981, %v994
    %996 = vdwg.mxu0
    %997 = vmatpush.bf16.msra.mxu0 %v792
    %998 = vmatpush.bf16.msra.mxu0 %v788
    %999 = vmatpush.bf16.msra.mxu0 %v784
    %1000 = vmatpush.bf16.msra.mxu0 %v780
    %1001 = vmatpush.bf16.msra.mxu0 %v776
    %1002 = vmatpush.bf16.msra.mxu0 %v772
    %1003 = vmatpush.bf16.msra.mxu0 %v768
    %1004 = vmatpush.bf16.msra.mxu0 %v764
    %1005 = vmatmul.bf16.gmra.mxu0 %v365
    %v1006 = vpop.f32.mrf.mxu0
    %v1007 = vadd.f32 %v468, %v1006
    %v1008 = vpop.f32.mrf.mxu0
    %v1009 = vadd.f32 %v468, %v1008
    %1010 = vdwg.mxu0
    %1011 = vmatpush.bf16.msra.mxu0 %v824
    %1012 = vmatpush.bf16.msra.mxu0 %v820
    %1013 = vmatpush.bf16.msra.mxu0 %v816
    %1014 = vmatpush.bf16.msra.mxu0 %v812
    %1015 = vmatpush.bf16.msra.mxu0 %v808
    %1016 = vmatpush.bf16.msra.mxu0 %v804
    %1017 = vmatpush.bf16.msra.mxu0 %v800
    %1018 = vmatpush.bf16.msra.mxu0 %v796
    %1019 = vmatmul.bf16.gmra.mxu0 %v366
    %v1020 = vpop.f32.mrf.mxu0
    %v1021 = vadd.f32 %v1007, %v1020
    %v1022 = vpop.f32.mrf.mxu0
    %v1023 = vadd.f32 %v1009, %v1022
    %1024 = vdwg.mxu0
    %1025 = vmatpush.bf16.msra.mxu0 %v856
    %1026 = vmatpush.bf16.msra.mxu0 %v852
    %1027 = vmatpush.bf16.msra.mxu0 %v848
    %1028 = vmatpush.bf16.msra.mxu0 %v844
    %1029 = vmatpush.bf16.msra.mxu0 %v840
    %1030 = vmatpush.bf16.msra.mxu0 %v836
    %1031 = vmatpush.bf16.msra.mxu0 %v832
    %1032 = vmatpush.bf16.msra.mxu0 %v828
    %1033 = vmatmul.bf16.gmra.mxu0 %v367
    %v1034 = vpop.f32.mrf.mxu0
    %v1035 = vadd.f32 %v1021, %v1034
    %v1036 = vpop.f32.mrf.mxu0
    %v1037 = vadd.f32 %v1023, %v1036
    %1038 = vdwg.mxu0
    %1039 = vmatpush.bf16.msra.mxu0 %v793
    %1040 = vmatpush.bf16.msra.mxu0 %v789
    %1041 = vmatpush.bf16.msra.mxu0 %v785
    %1042 = vmatpush.bf16.msra.mxu0 %v781
    %1043 = vmatpush.bf16.msra.mxu0 %v777
    %1044 = vmatpush.bf16.msra.mxu0 %v773
    %1045 = vmatpush.bf16.msra.mxu0 %v769
    %1046 = vmatpush.bf16.msra.mxu0 %v765
    %1047 = vmatmul.bf16.gmra.mxu0 %v365
    %v1048 = vpop.f32.mrf.mxu0
    %v1049 = vadd.f32 %v469, %v1048
    %v1050 = vpop.f32.mrf.mxu0
    %v1051 = vadd.f32 %v469, %v1050
    %1052 = vdwg.mxu0
    %1053 = vmatpush.bf16.msra.mxu0 %v825
    %1054 = vmatpush.bf16.msra.mxu0 %v821
    %1055 = vmatpush.bf16.msra.mxu0 %v817
    %1056 = vmatpush.bf16.msra.mxu0 %v813
    %1057 = vmatpush.bf16.msra.mxu0 %v809
    %1058 = vmatpush.bf16.msra.mxu0 %v805
    %1059 = vmatpush.bf16.msra.mxu0 %v801
    %1060 = vmatpush.bf16.msra.mxu0 %v797
    %1061 = vmatmul.bf16.gmra.mxu0 %v366
    %v1062 = vpop.f32.mrf.mxu0
    %v1063 = vadd.f32 %v1049, %v1062
    %v1064 = vpop.f32.mrf.mxu0
    %v1065 = vadd.f32 %v1051, %v1064
    %1066 = vdwg.mxu0
    %1067 = vmatpush.bf16.msra.mxu0 %v857
    %1068 = vmatpush.bf16.msra.mxu0 %v853
    %1069 = vmatpush.bf16.msra.mxu0 %v849
    %1070 = vmatpush.bf16.msra.mxu0 %v845
    %1071 = vmatpush.bf16.msra.mxu0 %v841
    %1072 = vmatpush.bf16.msra.mxu0 %v837
    %1073 = vmatpush.bf16.msra.mxu0 %v833
    %1074 = vmatpush.bf16.msra.mxu0 %v829
    %1075 = vmatmul.bf16.gmra.mxu0 %v367
    %v1076 = vpop.f32.mrf.mxu0
    %v1077 = vadd.f32 %v1063, %v1076
    %v1078 = vpop.f32.mrf.mxu0
    %v1079 = vadd.f32 %v1065, %v1078
    %1080 = vdwg.mxu0
    %1081 = vmatpush.bf16.msra.mxu0 %v794
    %1082 = vmatpush.bf16.msra.mxu0 %v790
    %1083 = vmatpush.bf16.msra.mxu0 %v786
    %1084 = vmatpush.bf16.msra.mxu0 %v782
    %1085 = vmatpush.bf16.msra.mxu0 %v778
    %1086 = vmatpush.bf16.msra.mxu0 %v774
    %1087 = vmatpush.bf16.msra.mxu0 %v770
    %1088 = vmatpush.bf16.msra.mxu0 %v766
    %1089 = vmatmul.bf16.gmra.mxu0 %v365
    %v1090 = vpop.f32.mrf.mxu0
    %v1091 = vadd.f32 %v470, %v1090
    %v1092 = vpop.f32.mrf.mxu0
    %v1093 = vadd.f32 %v470, %v1092
    %1094 = vdwg.mxu0
    %1095 = vmatpush.bf16.msra.mxu0 %v826
    %1096 = vmatpush.bf16.msra.mxu0 %v822
    %1097 = vmatpush.bf16.msra.mxu0 %v818
    %1098 = vmatpush.bf16.msra.mxu0 %v814
    %1099 = vmatpush.bf16.msra.mxu0 %v810
    %1100 = vmatpush.bf16.msra.mxu0 %v806
    %1101 = vmatpush.bf16.msra.mxu0 %v802
    %1102 = vmatpush.bf16.msra.mxu0 %v798
    %1103 = vmatmul.bf16.gmra.mxu0 %v366
    %v1104 = vpop.f32.mrf.mxu0
    %v1105 = vadd.f32 %v1091, %v1104
    %v1106 = vpop.f32.mrf.mxu0
    %v1107 = vadd.f32 %v1093, %v1106
    %1108 = vdwg.mxu0
    %1109 = vmatpush.bf16.msra.mxu0 %v858
    %1110 = vmatpush.bf16.msra.mxu0 %v854
    %1111 = vmatpush.bf16.msra.mxu0 %v850
    %1112 = vmatpush.bf16.msra.mxu0 %v846
    %1113 = vmatpush.bf16.msra.mxu0 %v842
    %1114 = vmatpush.bf16.msra.mxu0 %v838
    %1115 = vmatpush.bf16.msra.mxu0 %v834
    %1116 = vmatpush.bf16.msra.mxu0 %v830
    %1117 = vmatmul.bf16.gmra.mxu0 %v367
    %v1118 = vpop.f32.mrf.mxu0
    %v1119 = vadd.f32 %v1105, %v1118
    %v1120 = vpop.f32.mrf.mxu0
    %v1121 = vadd.f32 %v1107, %v1120
    %1122 = vdwg.mxu0
    %v1123 = vmax.f32 %v993, 0.0
    %v1124 = vmax.f32 %v1035, 0.0
    %v1125 = vmax.f32 %v1077, 0.0
    %v1126 = vmax.f32 %v1119, 0.0
    %v1127 = vmax.f32 %v995, 0.0
    %v1128 = vmax.f32 %v1037, 0.0
    %v1129 = vmax.f32 %v1079, 0.0
    %v1130 = vmax.f32 %v1121, 0.0
    %v1131 = vpack.c.bf16 %v1127, %v1123
    %v1132 = vpack.c.bf16 %v1128, %v1124
    %v1133 = vpack.c.bf16 %v1129, %v1125
    %v1134 = vpack.c.bf16 %v1130, %v1126
    %v1135 = vld [vmem:[#allocation6] sm:$0xff]
    %v1136 = vld [vmem:[#allocation6 + $0x8] sm:$0xff]
    %v1137 = vld [vmem:[#allocation6 + $0x10] sm:$0xf]
    %v1138 = vld [vmem:[#allocation6 + $0x14] sm:$0xff]
    %v1139 = vld [vmem:[#allocation6 + $0x1c] sm:$0xff]
    %v1140 = vld [vmem:[#allocation6 + $0x24] sm:$0xf]
    %v1141 = vld [vmem:[#allocation6 + $0x28] sm:$0xff]
    %v1142 = vld [vmem:[#allocation6 + $0x30] sm:$0xff]
    %v1143 = vld [vmem:[#allocation6 + $0x38] sm:$0xf]
    %v1144 = vld [vmem:[#allocation6 + $0x3c] sm:$0xff]
    %v1145 = vld [vmem:[#allocation6 + $0x44] sm:$0xff]
    %v1146 = vld [vmem:[#allocation6 + $0x4c] sm:$0xf]
    %v1147 = vld [vmem:[#allocation6 + $0x50] sm:$0xff]
    %v1148 = vld [vmem:[#allocation6 + $0x58] sm:$0xff]
    %v1149 = vld [vmem:[#allocation6 + $0x60] sm:$0xf]
    %v1150 = vld [vmem:[#allocation6 + $0x64] sm:$0xff]
    %v1151 = vld [vmem:[#allocation6 + $0x6c] sm:$0xff]
    %v1152 = vld [vmem:[#allocation6 + $0x74] sm:$0xf]
    %v1153 = vld [vmem:[#allocation6 + $0x78] sm:$0xff]
    %v1154 = vld [vmem:[#allocation6 + $0x80] sm:$0xff]
    %v1155 = vld [vmem:[#allocation6 + $0x88] sm:$0xf]
    %v1156 = vld [vmem:[#allocation6 + $0x8c] sm:$0xff]
    %v1157 = vld [vmem:[#allocation6 + $0x94] sm:$0xff]
    %v1158 = vld [vmem:[#allocation6 + $0x9c] sm:$0xf]
    %v1159 = vld [vmem:[#allocation6 + $0xa0] sm:$0xff]
    %v1160 = vld [vmem:[#allocation6 + $0xa8] sm:$0xff]
    %v1161 = vld [vmem:[#allocation6 + $0xb0] sm:$0xf]
    %v1162 = vld [vmem:[#allocation6 + $0xb4] sm:$0xff]
    %v1163 = vld [vmem:[#allocation6 + $0xbc] sm:$0xff]
    %v1164 = vld [vmem:[#allocation6 + $0xc4] sm:$0xf]
    %v1165 = vld [vmem:[#allocation6 + $0xc8] sm:$0xff]
    %v1166 = vld [vmem:[#allocation6 + $0xd0] sm:$0xff]
    %v1167 = vld [vmem:[#allocation6 + $0xd8] sm:$0xf]
    %v1168 = vld [vmem:[#allocation6 + $0xdc] sm:$0xff]
    %v1169 = vld [vmem:[#allocation6 + $0xe4] sm:$0xff]
    %v1170 = vld [vmem:[#allocation6 + $0xec] sm:$0xf]
    %v1171 = vld [vmem:[#allocation6 + $0xf0] sm:$0xff]
    %v1172 = vld [vmem:[#allocation6 + $0xf8] sm:$0xff]
    %v1173 = vld [vmem:[#allocation6 + $0x100] sm:$0xf]
    %v1174 = vld [vmem:[#allocation6 + $0x104] sm:$0xff]
    %v1175 = vld [vmem:[#allocation6 + $0x10c] sm:$0xff]
    %v1176 = vld [vmem:[#allocation6 + $0x114] sm:$0xf]
    %v1177 = vld [vmem:[#allocation6 + $0x118] sm:$0xff]
    %v1178 = vld [vmem:[#allocation6 + $0x120] sm:$0xff]
    %v1179 = vld [vmem:[#allocation6 + $0x128] sm:$0xf]
    %v1180 = vld [vmem:[#allocation6 + $0x12c] sm:$0xff]
    %v1181 = vld [vmem:[#allocation6 + $0x134] sm:$0xff]
    %v1182 = vld [vmem:[#allocation6 + $0x13c] sm:$0xf]
    %v1183 = vld [vmem:[#allocation6 + $0x140] sm:$0xff]
    %v1184 = vld [vmem:[#allocation6 + $0x148] sm:$0xff]
    %v1185 = vld [vmem:[#allocation6 + $0x150] sm:$0xf]
    %v1186 = vld [vmem:[#allocation6 + $0x154] sm:$0xff]
    %v1187 = vld [vmem:[#allocation6 + $0x15c] sm:$0xff]
    %v1188 = vld [vmem:[#allocation6 + $0x164] sm:$0xf]
    %v1189 = vld [vmem:[#allocation6 + $0x168] sm:$0xff]
    %v1190 = vld [vmem:[#allocation6 + $0x170] sm:$0xff]
    %v1191 = vld [vmem:[#allocation6 + $0x178] sm:$0xf]
    %v1192 = vld [vmem:[#allocation6 + $0x17c] sm:$0xff]
    %v1193 = vld [vmem:[#allocation6 + $0x184] sm:$0xff]
    %v1194 = vld [vmem:[#allocation6 + $0x18c] sm:$0xf]
    %v1195 = vld [vmem:[#allocation6 + $0x190] sm:$0xff]
    %v1196 = vld [vmem:[#allocation6 + $0x198] sm:$0xff]
    %v1197 = vld [vmem:[#allocation6 + $0x1a0] sm:$0xf]
    %v1198 = vld [vmem:[#allocation6 + $0x1a4] sm:$0xff]
    %v1199 = vld [vmem:[#allocation6 + $0x1ac] sm:$0xff]
    %v1200 = vld [vmem:[#allocation6 + $0x1b4] sm:$0xf]
    %v1201 = vld [vmem:[#allocation6 + $0x1b8] sm:$0xff]
    %v1202 = vld [vmem:[#allocation6 + $0x1c0] sm:$0xff]
    %v1203 = vld [vmem:[#allocation6 + $0x1c8] sm:$0xf]
    %v1204 = vld [vmem:[#allocation6 + $0x1cc] sm:$0xff]
    %v1205 = vld [vmem:[#allocation6 + $0x1d4] sm:$0xff]
    %v1206 = vld [vmem:[#allocation6 + $0x1dc] sm:$0xf]
    %v1207 = vld [vmem:[#allocation6 + $0x1e0] sm:$0xff]
    %v1208 = vld [vmem:[#allocation6 + $0x1e8] sm:$0xff]
    %v1209 = vld [vmem:[#allocation6 + $0x1f0] sm:$0xf]
    %v1210 = vld [vmem:[#allocation6 + $0x1f4] sm:$0xff]
    %v1211 = vld [vmem:[#allocation6 + $0x1fc] sm:$0xff]
    %v1212 = vld [vmem:[#allocation6 + $0x204] sm:$0xf]
    %v1213 = vld [vmem:[#allocation6 + $0x208] sm:$0xff]
    %v1214 = vld [vmem:[#allocation6 + $0x210] sm:$0xff]
    %v1215 = vld [vmem:[#allocation6 + $0x218] sm:$0xf]
    %v1216 = vld [vmem:[#allocation6 + $0x21c] sm:$0xff]
    %v1217 = vld [vmem:[#allocation6 + $0x224] sm:$0xff]
    %v1218 = vld [vmem:[#allocation6 + $0x22c] sm:$0xf]
    %v1219 = vld [vmem:[#allocation6 + $0x230] sm:$0xff]
    %v1220 = vld [vmem:[#allocation6 + $0x238] sm:$0xff]
    %v1221 = vld [vmem:[#allocation6 + $0x240] sm:$0xf]
    %v1222 = vld [vmem:[#allocation6 + $0x244] sm:$0xff]
    %v1223 = vld [vmem:[#allocation6 + $0x24c] sm:$0xff]
    %v1224 = vld [vmem:[#allocation6 + $0x254] sm:$0xf]
    %v1225 = vld [vmem:[#allocation6 + $0x258] sm:$0xff]
    %v1226 = vld [vmem:[#allocation6 + $0x260] sm:$0xff]
    %v1227 = vld [vmem:[#allocation6 + $0x268] sm:$0xf]
    %v1228 = vld [vmem:[#allocation6 + $0x26c] sm:$0xff]
    %v1229 = vld [vmem:[#allocation6 + $0x274] sm:$0xff]
    %v1230 = vld [vmem:[#allocation6 + $0x27c] sm:$0xf]
    %v1231 = vld [vmem:[#allocation6 + $0x280] sm:$0xff]
    %v1232 = vld [vmem:[#allocation6 + $0x288] sm:$0xff]
    %v1233 = vld [vmem:[#allocation6 + $0x290] sm:$0xf]
    %v1234 = vld [vmem:[#allocation6 + $0x294] sm:$0xff]
    %v1235 = vld [vmem:[#allocation6 + $0x29c] sm:$0xff]
    %v1236 = vld [vmem:[#allocation6 + $0x2a4] sm:$0xf]
    %v1237 = vld [vmem:[#allocation6 + $0x2a8] sm:$0xff]
    %v1238 = vld [vmem:[#allocation6 + $0x2b0] sm:$0xff]
    %v1239 = vld [vmem:[#allocation6 + $0x2b8] sm:$0xf]
    %v1240 = vld [vmem:[#allocation6 + $0x2bc] sm:$0xff]
    %v1241 = vld [vmem:[#allocation6 + $0x2c4] sm:$0xff]
    %v1242 = vld [vmem:[#allocation6 + $0x2cc] sm:$0xf]
    %v1243 = vld [vmem:[#allocation6 + $0x2d0] sm:$0xff]
    %v1244 = vld [vmem:[#allocation6 + $0x2d8] sm:$0xff]
    %v1245 = vld [vmem:[#allocation6 + $0x2e0] sm:$0xf]
    %v1246 = vld [vmem:[#allocation6 + $0x2e4] sm:$0xff]
    %v1247 = vld [vmem:[#allocation6 + $0x2ec] sm:$0xff]
    %v1248 = vld [vmem:[#allocation6 + $0x2f4] sm:$0xf]
    %v1249 = vld [vmem:[#allocation6 + $0x2f8] sm:$0xff]
    %v1250 = vld [vmem:[#allocation6 + $0x300] sm:$0xff]
    %v1251 = vld [vmem:[#allocation6 + $0x308] sm:$0xf]
    %v1252 = vld [vmem:[#allocation6 + $0x30c] sm:$0xff]
    %v1253 = vld [vmem:[#allocation6 + $0x314] sm:$0xff]
    %v1254 = vld [vmem:[#allocation6 + $0x31c] sm:$0xf]
    %v1255 = vld [vmem:[#allocation6 + $0x320] sm:$0xff]
    %v1256 = vld [vmem:[#allocation6 + $0x328] sm:$0xff]
    %v1257 = vld [vmem:[#allocation6 + $0x330] sm:$0xf]
    %v1258 = vld [vmem:[#allocation6 + $0x334] sm:$0xff]
    %v1259 = vld [vmem:[#allocation6 + $0x33c] sm:$0xff]
    %v1260 = vld [vmem:[#allocation6 + $0x344] sm:$0xf]
    %v1261 = vld [vmem:[#allocation6 + $0x348] sm:$0xff]
    %v1262 = vld [vmem:[#allocation6 + $0x350] sm:$0xff]
    %v1263 = vld [vmem:[#allocation6 + $0x358] sm:$0xf]
    %v1264 = vld [vmem:[#allocation6 + $0x35c] sm:$0xff]
    %v1265 = vld [vmem:[#allocation6 + $0x364] sm:$0xff]
    %v1266 = vld [vmem:[#allocation6 + $0x36c] sm:$0xf]
    %v1267 = vld [vmem:[#allocation6 + $0x370] sm:$0xff]
    %v1268 = vld [vmem:[#allocation6 + $0x378] sm:$0xff]
    %v1269 = vld [vmem:[#allocation6 + $0x380] sm:$0xf]
    %v1270 = vld [vmem:[#allocation6 + $0x384] sm:$0xff]
    %v1271 = vld [vmem:[#allocation6 + $0x38c] sm:$0xff]
    %v1272 = vld [vmem:[#allocation6 + $0x394] sm:$0xf]
    %v1273 = vld [vmem:[#allocation6 + $0x398] sm:$0xff]
    %v1274 = vld [vmem:[#allocation6 + $0x3a0] sm:$0xff]
    %v1275 = vld [vmem:[#allocation6 + $0x3a8] sm:$0xf]
    %v1276 = vld [vmem:[#allocation6 + $0x3ac] sm:$0xff]
    %v1277 = vld [vmem:[#allocation6 + $0x3b4] sm:$0xff]
    %v1278 = vld [vmem:[#allocation6 + $0x3bc] sm:$0xf]
    %v1279 = vld [vmem:[#allocation6 + $0x3c0] sm:$0xff]
    %v1280 = vld [vmem:[#allocation6 + $0x3c8] sm:$0xff]
    %v1281 = vld [vmem:[#allocation6 + $0x3d0] sm:$0xf]
    %v1282 = vld [vmem:[#allocation6 + $0x3d4] sm:$0xff]
    %v1283 = vld [vmem:[#allocation6 + $0x3dc] sm:$0xff]
    %v1284 = vld [vmem:[#allocation6 + $0x3e4] sm:$0xf]
    %v1285 = vld [vmem:[#allocation6 + $0x3e8] sm:$0xff]
    %v1286 = vld [vmem:[#allocation6 + $0x3f0] sm:$0xff]
    %v1287 = vld [vmem:[#allocation6 + $0x3f8] sm:$0xf]
    %v1288 = vld [vmem:[#allocation6 + $0x3fc] sm:$0xff]
    %v1289 = vld [vmem:[#allocation6 + $0x404] sm:$0xff]
    %v1290 = vld [vmem:[#allocation6 + $0x40c] sm:$0xf]
    %v1291 = vld [vmem:[#allocation6 + $0x410] sm:$0xff]
    %v1292 = vld [vmem:[#allocation6 + $0x418] sm:$0xff]
    %v1293 = vld [vmem:[#allocation6 + $0x420] sm:$0xf]
    %v1294 = vld [vmem:[#allocation6 + $0x424] sm:$0xff]
    %v1295 = vld [vmem:[#allocation6 + $0x42c] sm:$0xff]
    %v1296 = vld [vmem:[#allocation6 + $0x434] sm:$0xf]
    %v1297 = vld [vmem:[#allocation6 + $0x438] sm:$0xff]
    %v1298 = vld [vmem:[#allocation6 + $0x440] sm:$0xff]
    %v1299 = vld [vmem:[#allocation6 + $0x448] sm:$0xf]
    %v1300 = vld [vmem:[#allocation6 + $0x44c] sm:$0xff]
    %v1301 = vld [vmem:[#allocation6 + $0x454] sm:$0xff]
    %v1302 = vld [vmem:[#allocation6 + $0x45c] sm:$0xf]
    %v1303 = vld [vmem:[#allocation6 + $0x460] sm:$0xff]
    %v1304 = vld [vmem:[#allocation6 + $0x468] sm:$0xff]
    %v1305 = vld [vmem:[#allocation6 + $0x470] sm:$0xf]
    %v1306 = vld [vmem:[#allocation6 + $0x474] sm:$0xff]
    %v1307 = vld [vmem:[#allocation6 + $0x47c] sm:$0xff]
    %v1308 = vld [vmem:[#allocation6 + $0x484] sm:$0xf]
    %v1309 = vld [vmem:[#allocation6 + $0x488] sm:$0xff]
    %v1310 = vld [vmem:[#allocation6 + $0x490] sm:$0xff]
    %v1311 = vld [vmem:[#allocation6 + $0x498] sm:$0xf]
    %v1312 = vld [vmem:[#allocation6 + $0x49c] sm:$0xff]
    %v1313 = vld [vmem:[#allocation6 + $0x4a4] sm:$0xff]
    %v1314 = vld [vmem:[#allocation6 + $0x4ac] sm:$0xf]
    %v1315 = vld [vmem:[#allocation6 + $0x4b0] sm:$0xff]
    %v1316 = vld [vmem:[#allocation6 + $0x4b8] sm:$0xff]
    %v1317 = vld [vmem:[#allocation6 + $0x4c0] sm:$0xf]
    %v1318 = vld [vmem:[#allocation6 + $0x4c4] sm:$0xff]
    %v1319 = vld [vmem:[#allocation6 + $0x4cc] sm:$0xff]
    %v1320 = vld [vmem:[#allocation6 + $0x4d4] sm:$0xf]
    %v1321 = vld [vmem:[#allocation6 + $0x4d8] sm:$0xff]
    %v1322 = vld [vmem:[#allocation6 + $0x4e0] sm:$0xff]
    %v1323 = vld [vmem:[#allocation6 + $0x4e8] sm:$0xf]
    %v1324 = vld [vmem:[#allocation6 + $0x4ec] sm:$0xff]
    %v1325 = vld [vmem:[#allocation6 + $0x4f4] sm:$0xff]
    %v1326 = vld [vmem:[#allocation6 + $0x4fc] sm:$0xf]
    %s1327 = scalar_lea.vmem %s8, 2
    %v1328 = vld [vmem:[%s1327] ss:$8 sm:$0xf]
    %v1329 = vld [vmem:[%s1327] ss:$8 sm:$0x10]
    %v1330 = vor.u32 %v1328, %v1329
    %v1332 = vperm.slane %v1330, 0
    %v1333 = vperm.slane %v1330, 1
    %v1334 = vperm.slane %v1330, 2
    %v1335 = vperm.slane %v1330, 3
    %v1336 = vperm.slane %v1330, 4
    %v1534 = vunpack.c.l.b16 %v1135
    %v1535 = vunpack.c.h.b16 %v1135
    %v1536 = vunpack.c.l.b16 %v1136
    %v1537 = vunpack.c.h.b16 %v1136
    %v1538 = vunpack.c.l.b16 %v1137
    %v1539 = vunpack.c.l.b16 %v1138
    %v1540 = vunpack.c.h.b16 %v1138
    %v1541 = vunpack.c.l.b16 %v1139
    %v1542 = vunpack.c.h.b16 %v1139
    %v1543 = vunpack.c.l.b16 %v1140
    %v1544 = vunpack.c.l.b16 %v1141
    %v1545 = vunpack.c.h.b16 %v1141
    %v1546 = vunpack.c.l.b16 %v1142
    %v1547 = vunpack.c.h.b16 %v1142
    %v1548 = vunpack.c.l.b16 %v1143
    %v1549 = vunpack.c.l.b16 %v1144
    %v1550 = vunpack.c.h.b16 %v1144
    %v1551 = vunpack.c.l.b16 %v1145
    %v1552 = vunpack.c.h.b16 %v1145
    %v1553 = vunpack.c.l.b16 %v1146
    %v1554 = vunpack.c.l.b16 %v1147
    %v1555 = vunpack.c.h.b16 %v1147
    %v1556 = vunpack.c.l.b16 %v1148
    %v1557 = vunpack.c.h.b16 %v1148
    %v1558 = vunpack.c.l.b16 %v1149
    %v1559 = vunpack.c.l.b16 %v1150
    %v1560 = vunpack.c.h.b16 %v1150
    %v1561 = vunpack.c.l.b16 %v1151
    %v1562 = vunpack.c.h.b16 %v1151
    %v1563 = vunpack.c.l.b16 %v1152
    %v1564 = vunpack.c.l.b16 %v1153
    %v1565 = vunpack.c.h.b16 %v1153
    %v1566 = vunpack.c.l.b16 %v1154
    %v1567 = vunpack.c.h.b16 %v1154
    %v1568 = vunpack.c.l.b16 %v1155
    %v1569 = vunpack.c.l.b16 %v1156
    %v1570 = vunpack.c.h.b16 %v1156
    %v1571 = vunpack.c.l.b16 %v1157
    %v1572 = vunpack.c.h.b16 %v1157
    %v1573 = vunpack.c.l.b16 %v1158
    %v1574 = vunpack.c.l.b16 %v1159
    %v1575 = vunpack.c.h.b16 %v1159
    %v1576 = vunpack.c.l.b16 %v1160
    %v1577 = vunpack.c.h.b16 %v1160
    %v1578 = vunpack.c.l.b16 %v1161
    %v1579 = vunpack.c.l.b16 %v1162
    %v1580 = vunpack.c.h.b16 %v1162
    %v1581 = vunpack.c.l.b16 %v1163
    %v1582 = vunpack.c.h.b16 %v1163
    %v1583 = vunpack.c.l.b16 %v1164
    %v1584 = vunpack.c.l.b16 %v1165
    %v1585 = vunpack.c.h.b16 %v1165
    %v1586 = vunpack.c.l.b16 %v1166
    %v1587 = vunpack.c.h.b16 %v1166
    %v1588 = vunpack.c.l.b16 %v1167
    %v1589 = vunpack.c.l.b16 %v1168
    %v1590 = vunpack.c.h.b16 %v1168
    %v1591 = vunpack.c.l.b16 %v1169
    %v1592 = vunpack.c.h.b16 %v1169
    %v1593 = vunpack.c.l.b16 %v1170
    %v1594 = vunpack.c.l.b16 %v1171
    %v1595 = vunpack.c.h.b16 %v1171
    %v1596 = vunpack.c.l.b16 %v1172
    %v1597 = vunpack.c.h.b16 %v1172
    %v1598 = vunpack.c.l.b16 %v1173
    %v1599 = vunpack.c.l.b16 %v1174
    %v1600 = vunpack.c.h.b16 %v1174
    %v1601 = vunpack.c.l.b16 %v1175
    %v1602 = vunpack.c.h.b16 %v1175
    %v1603 = vunpack.c.l.b16 %v1176
    %v1604 = vunpack.c.l.b16 %v1177
    %v1605 = vunpack.c.h.b16 %v1177
    %v1606 = vunpack.c.l.b16 %v1178
    %v1607 = vunpack.c.h.b16 %v1178
    %v1608 = vunpack.c.l.b16 %v1179
    %v1609 = vunpack.c.l.b16 %v1180
    %v1610 = vunpack.c.h.b16 %v1180
    %v1611 = vunpack.c.l.b16 %v1181
    %v1612 = vunpack.c.h.b16 %v1181
    %v1613 = vunpack.c.l.b16 %v1182
    %v1614 = vunpack.c.l.b16 %v1183
    %v1615 = vunpack.c.h.b16 %v1183
    %v1616 = vunpack.c.l.b16 %v1184
    %v1617 = vunpack.c.h.b16 %v1184
    %v1618 = vunpack.c.l.b16 %v1185
    %v1619 = vunpack.c.l.b16 %v1186
    %v1620 = vunpack.c.h.b16 %v1186
    %v1621 = vunpack.c.l.b16 %v1187
    %v1622 = vunpack.c.h.b16 %v1187
    %v1623 = vunpack.c.l.b16 %v1188
    %v1624 = vunpack.c.l.b16 %v1189
    %v1625 = vunpack.c.h.b16 %v1189
    %v1626 = vunpack.c.l.b16 %v1190
    %v1627 = vunpack.c.h.b16 %v1190
    %v1628 = vunpack.c.l.b16 %v1191
    %v1629 = vunpack.c.l.b16 %v1192
    %v1630 = vunpack.c.h.b16 %v1192
    %v1631 = vunpack.c.l.b16 %v1193
    %v1632 = vunpack.c.h.b16 %v1193
    %v1633 = vunpack.c.l.b16 %v1194
    %v1634 = vunpack.c.l.b16 %v1195
    %v1635 = vunpack.c.h.b16 %v1195
    %v1636 = vunpack.c.l.b16 %v1196
    %v1637 = vunpack.c.h.b16 %v1196
    %v1638 = vunpack.c.l.b16 %v1197
    %v1639 = vunpack.c.l.b16 %v1198
    %v1640 = vunpack.c.h.b16 %v1198
    %v1641 = vunpack.c.l.b16 %v1199
    %v1642 = vunpack.c.h.b16 %v1199
    %v1643 = vunpack.c.l.b16 %v1200
    %v1644 = vunpack.c.l.b16 %v1201
    %v1645 = vunpack.c.h.b16 %v1201
    %v1646 = vunpack.c.l.b16 %v1202
    %v1647 = vunpack.c.h.b16 %v1202
    %v1648 = vunpack.c.l.b16 %v1203
    %v1649 = vunpack.c.l.b16 %v1204
    %v1650 = vunpack.c.h.b16 %v1204
    %v1651 = vunpack.c.l.b16 %v1205
    %v1652 = vunpack.c.h.b16 %v1205
    %v1653 = vunpack.c.l.b16 %v1206
    %v1654 = vunpack.c.l.b16 %v1207
    %v1655 = vunpack.c.h.b16 %v1207
    %v1656 = vunpack.c.l.b16 %v1208
    %v1657 = vunpack.c.h.b16 %v1208
    %v1658 = vunpack.c.l.b16 %v1209
    %v1659 = vunpack.c.l.b16 %v1210
    %v1660 = vunpack.c.h.b16 %v1210
    %v1661 = vunpack.c.l.b16 %v1211
    %v1662 = vunpack.c.h.b16 %v1211
    %v1663 = vunpack.c.l.b16 %v1212
    %v1664 = vunpack.c.l.b16 %v1213
    %v1665 = vunpack.c.h.b16 %v1213
    %v1666 = vunpack.c.l.b16 %v1214
    %v1667 = vunpack.c.h.b16 %v1214
    %v1668 = vunpack.c.l.b16 %v1215
    %v1669 = vunpack.c.l.b16 %v1216
    %v1670 = vunpack.c.h.b16 %v1216
    %v1671 = vunpack.c.l.b16 %v1217
    %v1672 = vunpack.c.h.b16 %v1217
    %v1673 = vunpack.c.l.b16 %v1218
    %v1674 = vunpack.c.l.b16 %v1219
    %v1675 = vunpack.c.h.b16 %v1219
    %v1676 = vunpack.c.l.b16 %v1220
    %v1677 = vunpack.c.h.b16 %v1220
    %v1678 = vunpack.c.l.b16 %v1221
    %v1679 = vunpack.c.l.b16 %v1222
    %v1680 = vunpack.c.h.b16 %v1222
    %v1681 = vunpack.c.l.b16 %v1223
    %v1682 = vunpack.c.h.b16 %v1223
    %v1683 = vunpack.c.l.b16 %v1224
    %v1684 = vunpack.c.l.b16 %v1225
    %v1685 = vunpack.c.h.b16 %v1225
    %v1686 = vunpack.c.l.b16 %v1226
    %v1687 = vunpack.c.h.b16 %v1226
    %v1688 = vunpack.c.l.b16 %v1227
    %v1689 = vunpack.c.l.b16 %v1228
    %v1690 = vunpack.c.h.b16 %v1228
    %v1691 = vunpack.c.l.b16 %v1229
    %v1692 = vunpack.c.h.b16 %v1229
    %v1693 = vunpack.c.l.b16 %v1230
    %v1694 = vunpack.c.l.b16 %v1231
    %v1695 = vunpack.c.h.b16 %v1231
    %v1696 = vunpack.c.l.b16 %v1232
    %v1697 = vunpack.c.h.b16 %v1232
    %v1698 = vunpack.c.l.b16 %v1233
    %v1699 = vunpack.c.l.b16 %v1234
    %v1700 = vunpack.c.h.b16 %v1234
    %v1701 = vunpack.c.l.b16 %v1235
    %v1702 = vunpack.c.h.b16 %v1235
    %v1703 = vunpack.c.l.b16 %v1236
    %v1704 = vunpack.c.l.b16 %v1237
    %v1705 = vunpack.c.h.b16 %v1237
    %v1706 = vunpack.c.l.b16 %v1238
    %v1707 = vunpack.c.h.b16 %v1238
    %v1708 = vunpack.c.l.b16 %v1239
    %v1709 = vunpack.c.l.b16 %v1240
    %v1710 = vunpack.c.h.b16 %v1240
    %v1711 = vunpack.c.l.b16 %v1241
    %v1712 = vunpack.c.h.b16 %v1241
    %v1713 = vunpack.c.l.b16 %v1242
    %v1714 = vunpack.c.l.b16 %v1243
    %v1715 = vunpack.c.h.b16 %v1243
    %v1716 = vunpack.c.l.b16 %v1244
    %v1717 = vunpack.c.h.b16 %v1244
    %v1718 = vunpack.c.l.b16 %v1245
    %v1719 = vunpack.c.l.b16 %v1246
    %v1720 = vunpack.c.h.b16 %v1246
    %v1721 = vunpack.c.l.b16 %v1247
    %v1722 = vunpack.c.h.b16 %v1247
    %v1723 = vunpack.c.l.b16 %v1248
    %v1724 = vunpack.c.l.b16 %v1249
    %v1725 = vunpack.c.h.b16 %v1249
    %v1726 = vunpack.c.l.b16 %v1250
    %v1727 = vunpack.c.h.b16 %v1250
    %v1728 = vunpack.c.l.b16 %v1251
    %v1729 = vunpack.c.l.b16 %v1252
    %v1730 = vunpack.c.h.b16 %v1252
    %v1731 = vunpack.c.l.b16 %v1253
    %v1732 = vunpack.c.h.b16 %v1253
    %v1733 = vunpack.c.l.b16 %v1254
    %v1734 = vunpack.c.l.b16 %v1255
    %v1735 = vunpack.c.h.b16 %v1255
    %v1736 = vunpack.c.l.b16 %v1256
    %v1737 = vunpack.c.h.b16 %v1256
    %v1738 = vunpack.c.l.b16 %v1257
    %v1739 = vunpack.c.l.b16 %v1258
    %v1740 = vunpack.c.h.b16 %v1258
    %v1741 = vunpack.c.l.b16 %v1259
    %v1742 = vunpack.c.h.b16 %v1259
    %v1743 = vunpack.c.l.b16 %v1260
    %v1744 = vunpack.c.l.b16 %v1261
    %v1745 = vunpack.c.h.b16 %v1261
    %v1746 = vunpack.c.l.b16 %v1262
    %v1747 = vunpack.c.h.b16 %v1262
    %v1748 = vunpack.c.l.b16 %v1263
    %v1749 = vunpack.c.l.b16 %v1264
    %v1750 = vunpack.c.h.b16 %v1264
    %v1751 = vunpack.c.l.b16 %v1265
    %v1752 = vunpack.c.h.b16 %v1265
    %v1753 = vunpack.c.l.b16 %v1266
    %v1754 = vunpack.c.l.b16 %v1267
    %v1755 = vunpack.c.h.b16 %v1267
    %v1756 = vunpack.c.l.b16 %v1268
    %v1757 = vunpack.c.h.b16 %v1268
    %v1758 = vunpack.c.l.b16 %v1269
    %v1759 = vunpack.c.l.b16 %v1270
    %v1760 = vunpack.c.h.b16 %v1270
    %v1761 = vunpack.c.l.b16 %v1271
    %v1762 = vunpack.c.h.b16 %v1271
    %v1763 = vunpack.c.l.b16 %v1272
    %v1764 = vunpack.c.l.b16 %v1273
    %v1765 = vunpack.c.h.b16 %v1273
    %v1766 = vunpack.c.l.b16 %v1274
    %v1767 = vunpack.c.h.b16 %v1274
    %v1768 = vunpack.c.l.b16 %v1275
    %v1769 = vunpack.c.l.b16 %v1276
    %v1770 = vunpack.c.h.b16 %v1276
    %v1771 = vunpack.c.l.b16 %v1277
    %v1772 = vunpack.c.h.b16 %v1277
    %v1773 = vunpack.c.l.b16 %v1278
    %v1774 = vunpack.c.l.b16 %v1279
    %v1775 = vunpack.c.h.b16 %v1279
    %v1776 = vunpack.c.l.b16 %v1280
    %v1777 = vunpack.c.h.b16 %v1280
    %v1778 = vunpack.c.l.b16 %v1281
    %v1779 = vunpack.c.l.b16 %v1282
    %v1780 = vunpack.c.h.b16 %v1282
    %v1781 = vunpack.c.l.b16 %v1283
    %v1782 = vunpack.c.h.b16 %v1283
    %v1783 = vunpack.c.l.b16 %v1284
    %v1784 = vunpack.c.l.b16 %v1285
    %v1785 = vunpack.c.h.b16 %v1285
    %v1786 = vunpack.c.l.b16 %v1286
    %v1787 = vunpack.c.h.b16 %v1286
    %v1788 = vunpack.c.l.b16 %v1287
    %v1789 = vunpack.c.l.b16 %v1288
    %v1790 = vunpack.c.h.b16 %v1288
    %v1791 = vunpack.c.l.b16 %v1289
    %v1792 = vunpack.c.h.b16 %v1289
    %v1793 = vunpack.c.l.b16 %v1290
    %v1794 = vunpack.c.l.b16 %v1291
    %v1795 = vunpack.c.h.b16 %v1291
    %v1796 = vunpack.c.l.b16 %v1292
    %v1797 = vunpack.c.h.b16 %v1292
    %v1798 = vunpack.c.l.b16 %v1293
    %v1799 = vunpack.c.l.b16 %v1294
    %v1800 = vunpack.c.h.b16 %v1294
    %v1801 = vunpack.c.l.b16 %v1295
    %v1802 = vunpack.c.h.b16 %v1295
    %v1803 = vunpack.c.l.b16 %v1296
    %v1804 = vunpack.c.l.b16 %v1297
    %v1805 = vunpack.c.h.b16 %v1297
    %v1806 = vunpack.c.l.b16 %v1298
    %v1807 = vunpack.c.h.b16 %v1298
    %v1808 = vunpack.c.l.b16 %v1299
    %v1809 = vunpack.c.l.b16 %v1300
    %v1810 = vunpack.c.h.b16 %v1300
    %v1811 = vunpack.c.l.b16 %v1301
    %v1812 = vunpack.c.h.b16 %v1301
    %v1813 = vunpack.c.l.b16 %v1302
    %v1814 = vunpack.c.l.b16 %v1303
    %v1815 = vunpack.c.h.b16 %v1303
    %v1816 = vunpack.c.l.b16 %v1304
    %v1817 = vunpack.c.h.b16 %v1304
    %v1818 = vunpack.c.l.b16 %v1305
    %v1819 = vunpack.c.l.b16 %v1306
    %v1820 = vunpack.c.h.b16 %v1306
    %v1821 = vunpack.c.l.b16 %v1307
    %v1822 = vunpack.c.h.b16 %v1307
    %v1823 = vunpack.c.l.b16 %v1308
    %v1824 = vunpack.c.l.b16 %v1309
    %v1825 = vunpack.c.h.b16 %v1309
    %v1826 = vunpack.c.l.b16 %v1310
    %v1827 = vunpack.c.h.b16 %v1310
    %v1828 = vunpack.c.l.b16 %v1311
    %v1829 = vunpack.c.l.b16 %v1312
    %v1830 = vunpack.c.h.b16 %v1312
    %v1831 = vunpack.c.l.b16 %v1313
    %v1832 = vunpack.c.h.b16 %v1313
    %v1833 = vunpack.c.l.b16 %v1314
    %v1834 = vunpack.c.l.b16 %v1315
    %v1835 = vunpack.c.h.b16 %v1315
    %v1836 = vunpack.c.l.b16 %v1316
    %v1837 = vunpack.c.h.b16 %v1316
    %v1838 = vunpack.c.l.b16 %v1317
    %v1839 = vunpack.c.l.b16 %v1318
    %v1840 = vunpack.c.h.b16 %v1318
    %v1841 = vunpack.c.l.b16 %v1319
    %v1842 = vunpack.c.h.b16 %v1319
    %v1843 = vunpack.c.l.b16 %v1320
    %v1844 = vunpack.c.l.b16 %v1321
    %v1845 = vunpack.c.h.b16 %v1321
    %v1846 = vunpack.c.l.b16 %v1322
    %v1847 = vunpack.c.h.b16 %v1322
    %v1848 = vunpack.c.l.b16 %v1323
    %v1849 = vunpack.c.l.b16 %v1324
    %v1850 = vunpack.c.h.b16 %v1324
    %v1851 = vunpack.c.l.b16 %v1325
    %v1852 = vunpack.c.h.b16 %v1325
    %v1853 = vunpack.c.l.b16 %v1326
    %v1854 = vpack.c.b16 %v1539, %v1534
    %v1855 = vpack.c.b16 %v1540, %v1535
    %v1856 = vpack.c.b16 %v1541, %v1536
    %v1857 = vpack.c.b16 %v1542, %v1537
    %v1858 = vpack.c.b16 %v1543, %v1538
    %v1859 = vpack.c.b16 %v1549, %v1544
    %v1860 = vpack.c.b16 %v1550, %v1545
    %v1861 = vpack.c.b16 %v1551, %v1546
    %v1862 = vpack.c.b16 %v1552, %v1547
    %v1863 = vpack.c.b16 %v1553, %v1548
    %v1864 = vpack.c.b16 %v1559, %v1554
    %v1865 = vpack.c.b16 %v1560, %v1555
    %v1866 = vpack.c.b16 %v1561, %v1556
    %v1867 = vpack.c.b16 %v1562, %v1557
    %v1868 = vpack.c.b16 %v1563, %v1558
    %v1869 = vpack.c.b16 %v1569, %v1564
    %v1870 = vpack.c.b16 %v1570, %v1565
    %v1871 = vpack.c.b16 %v1571, %v1566
    %v1872 = vpack.c.b16 %v1572, %v1567
    %v1873 = vpack.c.b16 %v1573, %v1568
    %v1874 = vpack.c.b16 %v1579, %v1574
    %v1875 = vpack.c.b16 %v1580, %v1575
    %v1876 = vpack.c.b16 %v1581, %v1576
    %v1877 = vpack.c.b16 %v1582, %v1577
    %v1878 = vpack.c.b16 %v1583, %v1578
    %v1879 = vpack.c.b16 %v1589, %v1584
    %v1880 = vpack.c.b16 %v1590, %v1585
    %v1881 = vpack.c.b16 %v1591, %v1586
    %v1882 = vpack.c.b16 %v1592, %v1587
    %v1883 = vpack.c.b16 %v1593, %v1588
    %v1884 = vpack.c.b16 %v1599, %v1594
    %v1885 = vpack.c.b16 %v1600, %v1595
    %v1886 = vpack.c.b16 %v1601, %v1596
    %v1887 = vpack.c.b16 %v1602, %v1597
    %v1888 = vpack.c.b16 %v1603, %v1598
    %v1889 = vpack.c.b16 %v1609, %v1604
    %v1890 = vpack.c.b16 %v1610, %v1605
    %v1891 = vpack.c.b16 %v1611, %v1606
    %v1892 = vpack.c.b16 %v1612, %v1607
    %v1893 = vpack.c.b16 %v1613, %v1608
    %v1894 = vpack.c.b16 %v1619, %v1614
    %v1895 = vpack.c.b16 %v1620, %v1615
    %v1896 = vpack.c.b16 %v1621, %v1616
    %v1897 = vpack.c.b16 %v1622, %v1617
    %v1898 = vpack.c.b16 %v1623, %v1618
    %v1899 = vpack.c.b16 %v1629, %v1624
    %v1900 = vpack.c.b16 %v1630, %v1625
    %v1901 = vpack.c.b16 %v1631, %v1626
    %v1902 = vpack.c.b16 %v1632, %v1627
    %v1903 = vpack.c.b16 %v1633, %v1628
    %v1904 = vpack.c.b16 %v1639, %v1634
    %v1905 = vpack.c.b16 %v1640, %v1635
    %v1906 = vpack.c.b16 %v1641, %v1636
    %v1907 = vpack.c.b16 %v1642, %v1637
    %v1908 = vpack.c.b16 %v1643, %v1638
    %v1909 = vpack.c.b16 %v1649, %v1644
    %v1910 = vpack.c.b16 %v1650, %v1645
    %v1911 = vpack.c.b16 %v1651, %v1646
    %v1912 = vpack.c.b16 %v1652, %v1647
    %v1913 = vpack.c.b16 %v1653, %v1648
    %v1914 = vpack.c.b16 %v1659, %v1654
    %v1915 = vpack.c.b16 %v1660, %v1655
    %v1916 = vpack.c.b16 %v1661, %v1656
    %v1917 = vpack.c.b16 %v1662, %v1657
    %v1918 = vpack.c.b16 %v1663, %v1658
    %v1919 = vpack.c.b16 %v1669, %v1664
    %v1920 = vpack.c.b16 %v1670, %v1665
    %v1921 = vpack.c.b16 %v1671, %v1666
    %v1922 = vpack.c.b16 %v1672, %v1667
    %v1923 = vpack.c.b16 %v1673, %v1668
    %v1924 = vpack.c.b16 %v1679, %v1674
    %v1925 = vpack.c.b16 %v1680, %v1675
    %v1926 = vpack.c.b16 %v1681, %v1676
    %v1927 = vpack.c.b16 %v1682, %v1677
    %v1928 = vpack.c.b16 %v1683, %v1678
    %v1929 = vpack.c.b16 %v1689, %v1684
    %v1930 = vpack.c.b16 %v1690, %v1685
    %v1931 = vpack.c.b16 %v1691, %v1686
    %v1932 = vpack.c.b16 %v1692, %v1687
    %v1933 = vpack.c.b16 %v1693, %v1688
    %v1934 = vpack.c.b16 %v1699, %v1694
    %v1935 = vpack.c.b16 %v1700, %v1695
    %v1936 = vpack.c.b16 %v1701, %v1696
    %v1937 = vpack.c.b16 %v1702, %v1697
    %v1938 = vpack.c.b16 %v1703, %v1698
    %v1939 = vpack.c.b16 %v1709, %v1704
    %v1940 = vpack.c.b16 %v1710, %v1705
    %v1941 = vpack.c.b16 %v1711, %v1706
    %v1942 = vpack.c.b16 %v1712, %v1707
    %v1943 = vpack.c.b16 %v1713, %v1708
    %v1944 = vpack.c.b16 %v1719, %v1714
    %v1945 = vpack.c.b16 %v1720, %v1715
    %v1946 = vpack.c.b16 %v1721, %v1716
    %v1947 = vpack.c.b16 %v1722, %v1717
    %v1948 = vpack.c.b16 %v1723, %v1718
    %v1949 = vpack.c.b16 %v1729, %v1724
    %v1950 = vpack.c.b16 %v1730, %v1725
    %v1951 = vpack.c.b16 %v1731, %v1726
    %v1952 = vpack.c.b16 %v1732, %v1727
    %v1953 = vpack.c.b16 %v1733, %v1728
    %v1954 = vpack.c.b16 %v1739, %v1734
    %v1955 = vpack.c.b16 %v1740, %v1735
    %v1956 = vpack.c.b16 %v1741, %v1736
    %v1957 = vpack.c.b16 %v1742, %v1737
    %v1958 = vpack.c.b16 %v1743, %v1738
    %v1959 = vpack.c.b16 %v1749, %v1744
    %v1960 = vpack.c.b16 %v1750, %v1745
    %v1961 = vpack.c.b16 %v1751, %v1746
    %v1962 = vpack.c.b16 %v1752, %v1747
    %v1963 = vpack.c.b16 %v1753, %v1748
    %v1964 = vpack.c.b16 %v1759, %v1754
    %v1965 = vpack.c.b16 %v1760, %v1755
    %v1966 = vpack.c.b16 %v1761, %v1756
    %v1967 = vpack.c.b16 %v1762, %v1757
    %v1968 = vpack.c.b16 %v1763, %v1758
    %v1969 = vpack.c.b16 %v1769, %v1764
    %v1970 = vpack.c.b16 %v1770, %v1765
    %v1971 = vpack.c.b16 %v1771, %v1766
    %v1972 = vpack.c.b16 %v1772, %v1767
    %v1973 = vpack.c.b16 %v1773, %v1768
    %v1974 = vpack.c.b16 %v1779, %v1774
    %v1975 = vpack.c.b16 %v1780, %v1775
    %v1976 = vpack.c.b16 %v1781, %v1776
    %v1977 = vpack.c.b16 %v1782, %v1777
    %v1978 = vpack.c.b16 %v1783, %v1778
    %v1979 = vpack.c.b16 %v1789, %v1784
    %v1980 = vpack.c.b16 %v1790, %v1785
    %v1981 = vpack.c.b16 %v1791, %v1786
    %v1982 = vpack.c.b16 %v1792, %v1787
    %v1983 = vpack.c.b16 %v1793, %v1788
    %v1984 = vpack.c.b16 %v1799, %v1794
    %v1985 = vpack.c.b16 %v1800, %v1795
    %v1986 = vpack.c.b16 %v1801, %v1796
    %v1987 = vpack.c.b16 %v1802, %v1797
    %v1988 = vpack.c.b16 %v1803, %v1798
    %v1989 = vpack.c.b16 %v1809, %v1804
    %v1990 = vpack.c.b16 %v1810, %v1805
    %v1991 = vpack.c.b16 %v1811, %v1806
    %v1992 = vpack.c.b16 %v1812, %v1807
    %v1993 = vpack.c.b16 %v1813, %v1808
    %v1994 = vpack.c.b16 %v1819, %v1814
    %v1995 = vpack.c.b16 %v1820, %v1815
    %v1996 = vpack.c.b16 %v1821, %v1816
    %v1997 = vpack.c.b16 %v1822, %v1817
    %v1998 = vpack.c.b16 %v1823, %v1818
    %v1999 = vpack.c.b16 %v1829, %v1824
    %v2000 = vpack.c.b16 %v1830, %v1825
    %v2001 = vpack.c.b16 %v1831, %v1826
    %v2002 = vpack.c.b16 %v1832, %v1827
    %v2003 = vpack.c.b16 %v1833, %v1828
    %v2004 = vpack.c.b16 %v1839, %v1834
    %v2005 = vpack.c.b16 %v1840, %v1835
    %v2006 = vpack.c.b16 %v1841, %v1836
    %v2007 = vpack.c.b16 %v1842, %v1837
    %v2008 = vpack.c.b16 %v1843, %v1838
    %v2009 = vpack.c.b16 %v1849, %v1844
    %v2010 = vpack.c.b16 %v1850, %v1845
    %v2011 = vpack.c.b16 %v1851, %v1846
    %v2012 = vpack.c.b16 %v1852, %v1847
    %v2013 = vpack.c.b16 %v1853, %v1848
    %2174 = vmatpush.bf16.msra.mxu0 %v1889
    %2175 = vmatpush.bf16.msra.mxu0 %v1884
    %2176 = vmatpush.bf16.msra.mxu0 %v1879
    %2177 = vmatpush.bf16.msra.mxu0 %v1874
    %2178 = vmatpush.bf16.msra.mxu0 %v1869
    %2179 = vmatpush.bf16.msra.mxu0 %v1864
    %2180 = vmatpush.bf16.msra.mxu0 %v1859
    %2181 = vmatpush.bf16.msra.mxu0 %v1854
    %2182 = vmatmul.bf16.gmra.mxu0 %v1131
    %v2183 = vpop.f32.mrf.mxu0
    %v2184 = vadd.f32 %v1332, %v2183
    %v2185 = vpop.f32.mrf.mxu0
    %v2186 = vadd.f32 %v1332, %v2185
    %2187 = vdwg.mxu0
    %2188 = vmatpush.bf16.msra.mxu0 %v1929
    %2189 = vmatpush.bf16.msra.mxu0 %v1924
    %2190 = vmatpush.bf16.msra.mxu0 %v1919
    %2191 = vmatpush.bf16.msra.mxu0 %v1914
    %2192 = vmatpush.bf16.msra.mxu0 %v1909
    %2193 = vmatpush.bf16.msra.mxu0 %v1904
    %2194 = vmatpush.bf16.msra.mxu0 %v1899
    %2195 = vmatpush.bf16.msra.mxu0 %v1894
    %2196 = vmatmul.bf16.gmra.mxu0 %v1132
    %v2197 = vpop.f32.mrf.mxu0
    %v2198 = vadd.f32 %v2184, %v2197
    %v2199 = vpop.f32.mrf.mxu0
    %v2200 = vadd.f32 %v2186, %v2199
    %2201 = vdwg.mxu0
    %2202 = vmatpush.bf16.msra.mxu0 %v1969
    %2203 = vmatpush.bf16.msra.mxu0 %v1964
    %2204 = vmatpush.bf16.msra.mxu0 %v1959
    %2205 = vmatpush.bf16.msra.mxu0 %v1954
    %2206 = vmatpush.bf16.msra.mxu0 %v1949
    %2207 = vmatpush.bf16.msra.mxu0 %v1944
    %2208 = vmatpush.bf16.msra.mxu0 %v1939
    %2209 = vmatpush.bf16.msra.mxu0 %v1934
    %2210 = vmatmul.bf16.gmra.mxu0 %v1133
    %v2211 = vpop.f32.mrf.mxu0
    %v2212 = vadd.f32 %v2198, %v2211
    %v2213 = vpop.f32.mrf.mxu0
    %v2214 = vadd.f32 %v2200, %v2213
    %2215 = vdwg.mxu0
    %2216 = vmatpush.bf16.msra.mxu0 %v2009
    %2217 = vmatpush.bf16.msra.mxu0 %v2004
    %2218 = vmatpush.bf16.msra.mxu0 %v1999
    %2219 = vmatpush.bf16.msra.mxu0 %v1994
    %2220 = vmatpush.bf16.msra.mxu0 %v1989
    %2221 = vmatpush.bf16.msra.mxu0 %v1984
    %2222 = vmatpush.bf16.msra.mxu0 %v1979
    %2223 = vmatpush.bf16.msra.mxu0 %v1974
    %2224 = vmatmul.bf16.gmra.mxu0 %v1134
    %v2225 = vpop.f32.mrf.mxu0
    %v2226 = vadd.f32 %v2212, %v2225
    %v2227 = vpop.f32.mrf.mxu0
    %v2228 = vadd.f32 %v2214, %v2227
    %2229 = vdwg.mxu0
    %2230 = vmatpush.bf16.msra.mxu0 %v1890
    %2231 = vmatpush.bf16.msra.mxu0 %v1885
    %2232 = vmatpush.bf16.msra.mxu0 %v1880
    %2233 = vmatpush.bf16.msra.mxu0 %v1875
    %2234 = vmatpush.bf16.msra.mxu0 %v1870
    %2235 = vmatpush.bf16.msra.mxu0 %v1865
    %2236 = vmatpush.bf16.msra.mxu0 %v1860
    %2237 = vmatpush.bf16.msra.mxu0 %v1855
    %2238 = vmatmul.bf16.gmra.mxu0 %v1131
    %v2239 = vpop.f32.mrf.mxu0
    %v2240 = vadd.f32 %v1333, %v2239
    %v2241 = vpop.f32.mrf.mxu0
    %v2242 = vadd.f32 %v1333, %v2241
    %2243 = vdwg.mxu0
    %2244 = vmatpush.bf16.msra.mxu0 %v1930
    %2245 = vmatpush.bf16.msra.mxu0 %v1925
    %2246 = vmatpush.bf16.msra.mxu0 %v1920
    %2247 = vmatpush.bf16.msra.mxu0 %v1915
    %2248 = vmatpush.bf16.msra.mxu0 %v1910
    %2249 = vmatpush.bf16.msra.mxu0 %v1905
    %2250 = vmatpush.bf16.msra.mxu0 %v1900
    %2251 = vmatpush.bf16.msra.mxu0 %v1895
    %2252 = vmatmul.bf16.gmra.mxu0 %v1132
    %v2253 = vpop.f32.mrf.mxu0
    %v2254 = vadd.f32 %v2240, %v2253
    %v2255 = vpop.f32.mrf.mxu0
    %v2256 = vadd.f32 %v2242, %v2255
    %2257 = vdwg.mxu0
    %2258 = vmatpush.bf16.msra.mxu0 %v1970
    %2259 = vmatpush.bf16.msra.mxu0 %v1965
    %2260 = vmatpush.bf16.msra.mxu0 %v1960
    %2261 = vmatpush.bf16.msra.mxu0 %v1955
    %2262 = vmatpush.bf16.msra.mxu0 %v1950
    %2263 = vmatpush.bf16.msra.mxu0 %v1945
    %2264 = vmatpush.bf16.msra.mxu0 %v1940
    %2265 = vmatpush.bf16.msra.mxu0 %v1935
    %2266 = vmatmul.bf16.gmra.mxu0 %v1133
    %v2267 = vpop.f32.mrf.mxu0
    %v2268 = vadd.f32 %v2254, %v2267
    %v2269 = vpop.f32.mrf.mxu0
    %v2270 = vadd.f32 %v2256, %v2269
    %2271 = vdwg.mxu0
    %2272 = vmatpush.bf16.msra.mxu0 %v2010
    %2273 = vmatpush.bf16.msra.mxu0 %v2005
    %2274 = vmatpush.bf16.msra.mxu0 %v2000
    %2275 = vmatpush.bf16.msra.mxu0 %v1995
    %2276 = vmatpush.bf16.msra.mxu0 %v1990
    %2277 = vmatpush.bf16.msra.mxu0 %v1985
    %2278 = vmatpush.bf16.msra.mxu0 %v1980
    %2279 = vmatpush.bf16.msra.mxu0 %v1975
    %2280 = vmatmul.bf16.gmra.mxu0 %v1134
    %v2281 = vpop.f32.mrf.mxu0
    %v2282 = vadd.f32 %v2268, %v2281
    %v2283 = vpop.f32.mrf.mxu0
    %v2284 = vadd.f32 %v2270, %v2283
    %2285 = vdwg.mxu0
    %2286 = vmatpush.bf16.msra.mxu0 %v1891
    %2287 = vmatpush.bf16.msra.mxu0 %v1886
    %2288 = vmatpush.bf16.msra.mxu0 %v1881
    %2289 = vmatpush.bf16.msra.mxu0 %v1876
    %2290 = vmatpush.bf16.msra.mxu0 %v1871
    %2291 = vmatpush.bf16.msra.mxu0 %v1866
    %2292 = vmatpush.bf16.msra.mxu0 %v1861
    %2293 = vmatpush.bf16.msra.mxu0 %v1856
    %2294 = vmatmul.bf16.gmra.mxu0 %v1131
    %v2295 = vpop.f32.mrf.mxu0
    %v2296 = vadd.f32 %v1334, %v2295
    %v2297 = vpop.f32.mrf.mxu0
    %v2298 = vadd.f32 %v1334, %v2297
    %2299 = vdwg.mxu0
    %2300 = vmatpush.bf16.msra.mxu0 %v1931
    %2301 = vmatpush.bf16.msra.mxu0 %v1926
    %2302 = vmatpush.bf16.msra.mxu0 %v1921
    %2303 = vmatpush.bf16.msra.mxu0 %v1916
    %2304 = vmatpush.bf16.msra.mxu0 %v1911
    %2305 = vmatpush.bf16.msra.mxu0 %v1906
    %2306 = vmatpush.bf16.msra.mxu0 %v1901
    %2307 = vmatpush.bf16.msra.mxu0 %v1896
    %2308 = vmatmul.bf16.gmra.mxu0 %v1132
    %v2309 = vpop.f32.mrf.mxu0
    %v2310 = vadd.f32 %v2296, %v2309
    %v2311 = vpop.f32.mrf.mxu0
    %v2312 = vadd.f32 %v2298, %v2311
    %2313 = vdwg.mxu0
    %2314 = vmatpush.bf16.msra.mxu0 %v1971
    %2315 = vmatpush.bf16.msra.mxu0 %v1966
    %2316 = vmatpush.bf16.msra.mxu0 %v1961
    %2317 = vmatpush.bf16.msra.mxu0 %v1956
    %2318 = vmatpush.bf16.msra.mxu0 %v1951
    %2319 = vmatpush.bf16.msra.mxu0 %v1946
    %2320 = vmatpush.bf16.msra.mxu0 %v1941
    %2321 = vmatpush.bf16.msra.mxu0 %v1936
    %2322 = vmatmul.bf16.gmra.mxu0 %v1133
    %v2323 = vpop.f32.mrf.mxu0
    %v2324 = vadd.f32 %v2310, %v2323
    %v2325 = vpop.f32.mrf.mxu0
    %v2326 = vadd.f32 %v2312, %v2325
    %2327 = vdwg.mxu0
    %2328 = vmatpush.bf16.msra.mxu0 %v2011
    %2329 = vmatpush.bf16.msra.mxu0 %v2006
    %2330 = vmatpush.bf16.msra.mxu0 %v2001
    %2331 = vmatpush.bf16.msra.mxu0 %v1996
    %2332 = vmatpush.bf16.msra.mxu0 %v1991
    %2333 = vmatpush.bf16.msra.mxu0 %v1986
    %2334 = vmatpush.bf16.msra.mxu0 %v1981
    %2335 = vmatpush.bf16.msra.mxu0 %v1976
    %2336 = vmatmul.bf16.gmra.mxu0 %v1134
    %v2337 = vpop.f32.mrf.mxu0
    %v2338 = vadd.f32 %v2324, %v2337
    %v2339 = vpop.f32.mrf.mxu0
    %v2340 = vadd.f32 %v2326, %v2339
    %2341 = vdwg.mxu0
    %2342 = vmatpush.bf16.msra.mxu0 %v1892
    %2343 = vmatpush.bf16.msra.mxu0 %v1887
    %2344 = vmatpush.bf16.msra.mxu0 %v1882
    %2345 = vmatpush.bf16.msra.mxu0 %v1877
    %2346 = vmatpush.bf16.msra.mxu0 %v1872
    %2347 = vmatpush.bf16.msra.mxu0 %v1867
    %2348 = vmatpush.bf16.msra.mxu0 %v1862
    %2349 = vmatpush.bf16.msra.mxu0 %v1857
    %2350 = vmatmul.bf16.gmra.mxu0 %v1131
    %v2351 = vpop.f32.mrf.mxu0
    %v2352 = vadd.f32 %v1335, %v2351
    %v2353 = vpop.f32.mrf.mxu0
    %v2354 = vadd.f32 %v1335, %v2353
    %2355 = vdwg.mxu0
    %2356 = vmatpush.bf16.msra.mxu0 %v1932
    %2357 = vmatpush.bf16.msra.mxu0 %v1927
    %2358 = vmatpush.bf16.msra.mxu0 %v1922
    %2359 = vmatpush.bf16.msra.mxu0 %v1917
    %2360 = vmatpush.bf16.msra.mxu0 %v1912
    %2361 = vmatpush.bf16.msra.mxu0 %v1907
    %2362 = vmatpush.bf16.msra.mxu0 %v1902
    %2363 = vmatpush.bf16.msra.mxu0 %v1897
    %2364 = vmatmul.bf16.gmra.mxu0 %v1132
    %v2365 = vpop.f32.mrf.mxu0
    %v2366 = vadd.f32 %v2352, %v2365
    %v2367 = vpop.f32.mrf.mxu0
    %v2368 = vadd.f32 %v2354, %v2367
    %2369 = vdwg.mxu0
    %2370 = vmatpush.bf16.msra.mxu0 %v1972
    %2371 = vmatpush.bf16.msra.mxu0 %v1967
    %2372 = vmatpush.bf16.msra.mxu0 %v1962
    %2373 = vmatpush.bf16.msra.mxu0 %v1957
    %2374 = vmatpush.bf16.msra.mxu0 %v1952
    %2375 = vmatpush.bf16.msra.mxu0 %v1947
    %2376 = vmatpush.bf16.msra.mxu0 %v1942
    %2377 = vmatpush.bf16.msra.mxu0 %v1937
    %2378 = vmatmul.bf16.gmra.mxu0 %v1133
    %v2379 = vpop.f32.mrf.mxu0
    %v2380 = vadd.f32 %v2366, %v2379
    %v2381 = vpop.f32.mrf.mxu0
    %v2382 = vadd.f32 %v2368, %v2381
    %2383 = vdwg.mxu0
    %2384 = vmatpush.bf16.msra.mxu0 %v2012
    %2385 = vmatpush.bf16.msra.mxu0 %v2007
    %2386 = vmatpush.bf16.msra.mxu0 %v2002
    %2387 = vmatpush.bf16.msra.mxu0 %v1997
    %2388 = vmatpush.bf16.msra.mxu0 %v1992
    %2389 = vmatpush.bf16.msra.mxu0 %v1987
    %2390 = vmatpush.bf16.msra.mxu0 %v1982
    %2391 = vmatpush.bf16.msra.mxu0 %v1977
    %2392 = vmatmul.bf16.gmra.mxu0 %v1134
    %v2393 = vpop.f32.mrf.mxu0
    %v2394 = vadd.f32 %v2380, %v2393
    %v2395 = vpop.f32.mrf.mxu0
    %v2396 = vadd.f32 %v2382, %v2395
    %2397 = vdwg.mxu0
    %2398 = vmatpush.bf16.msra.mxu0 %v1893
    %2399 = vmatpush.bf16.msra.mxu0 %v1888
    %2400 = vmatpush.bf16.msra.mxu0 %v1883
    %2401 = vmatpush.bf16.msra.mxu0 %v1878
    %2402 = vmatpush.bf16.msra.mxu0 %v1873
    %2403 = vmatpush.bf16.msra.mxu0 %v1868
    %2404 = vmatpush.bf16.msra.mxu0 %v1863
    %2405 = vmatpush.bf16.msra.mxu0 %v1858
    %2406 = vmatmul.bf16.gmra.mxu0 %v1131
    %v2407 = vpop.f32.mrf.mxu0
    %v2408 = vadd.f32 %v1336, %v2407
    %v2409 = vpop.f32.mrf.mxu0
    %v2410 = vadd.f32 %v1336, %v2409
    %2411 = vdwg.mxu0
    %2412 = vmatpush.bf16.msra.mxu0 %v1933
    %2413 = vmatpush.bf16.msra.mxu0 %v1928
    %2414 = vmatpush.bf16.msra.mxu0 %v1923
    %2415 = vmatpush.bf16.msra.mxu0 %v1918
    %2416 = vmatpush.bf16.msra.mxu0 %v1913
    %2417 = vmatpush.bf16.msra.mxu0 %v1908
    %2418 = vmatpush.bf16.msra.mxu0 %v1903
    %2419 = vmatpush.bf16.msra.mxu0 %v1898
    %2420 = vmatmul.bf16.gmra.mxu0 %v1132
    %v2421 = vpop.f32.mrf.mxu0
    %v2422 = vadd.f32 %v2408, %v2421
    %v2423 = vpop.f32.mrf.mxu0
    %v2424 = vadd.f32 %v2410, %v2423
    %2425 = vdwg.mxu0
    %2426 = vmatpush.bf16.msra.mxu0 %v1973
    %2427 = vmatpush.bf16.msra.mxu0 %v1968
    %2428 = vmatpush.bf16.msra.mxu0 %v1963
    %2429 = vmatpush.bf16.msra.mxu0 %v1958
    %2430 = vmatpush.bf16.msra.mxu0 %v1953
    %2431 = vmatpush.bf16.msra.mxu0 %v1948
    %2432 = vmatpush.bf16.msra.mxu0 %v1943
    %2433 = vmatpush.bf16.msra.mxu0 %v1938
    %2434 = vmatmul.bf16.gmra.mxu0 %v1133
    %v2435 = vpop.f32.mrf.mxu0
    %v2436 = vadd.f32 %v2422, %v2435
    %v2437 = vpop.f32.mrf.mxu0
    %v2438 = vadd.f32 %v2424, %v2437
    %2439 = vdwg.mxu0
    %2440 = vmatpush.bf16.msra.mxu0 %v2013
    %2441 = vmatpush.bf16.msra.mxu0 %v2008
    %2442 = vmatpush.bf16.msra.mxu0 %v2003
    %2443 = vmatpush.bf16.msra.mxu0 %v1998
    %2444 = vmatpush.bf16.msra.mxu0 %v1993
    %2445 = vmatpush.bf16.msra.mxu0 %v1988
    %2446 = vmatpush.bf16.msra.mxu0 %v1983
    %2447 = vmatpush.bf16.msra.mxu0 %v1978
    %2448 = vmatmul.bf16.gmra.mxu0 %v1134
    %v2449 = vpop.f32.mrf.mxu0
    %v2450 = vadd.f32 %v2436, %v2449
    %v2451 = vpop.f32.mrf.mxu0
    %v2452 = vadd.f32 %v2438, %v2451
    %2453 = vdwg.mxu0
    %v2454 = vmax.f32 %v2226, 0.0
    %v2455 = vmax.f32 %v2282, 0.0
    %v2456 = vmax.f32 %v2338, 0.0
    %v2457 = vmax.f32 %v2394, 0.0
    %v2458 = vmax.f32 %v2450, 0.0
    %v2459 = vmax.f32 %v2228, 0.0
    %v2460 = vmax.f32 %v2284, 0.0
    %v2461 = vmax.f32 %v2340, 0.0
    %v2462 = vmax.f32 %v2396, 0.0
    %v2463 = vmax.f32 %v2452, 0.0
    %v2464 = vpack.c.bf16 %v2459, %v2454
    %v2465 = vpack.c.bf16 %v2460, %v2455
    %v2466 = vpack.c.bf16 %v2461, %v2456
    %v2467 = vpack.c.bf16 %v2462, %v2457
    %v2468 = vpack.c.bf16 %v2463, %v2458
    %v2469 = vld [vmem:[#allocation7] sm:$0xff]
    %v2470 = vld [vmem:[#allocation7 + $0x8] sm:$0xff]
    %v2471 = vld [vmem:[#allocation7 + $0x10] sm:$0xf]
    %v2472 = vld [vmem:[#allocation7 + $0x14] sm:$0xff]
    %v2473 = vld [vmem:[#allocation7 + $0x1c] sm:$0xff]
    %v2474 = vld [vmem:[#allocation7 + $0x24] sm:$0xf]
    %v2475 = vld [vmem:[#allocation7 + $0x28] sm:$0xff]
    %v2476 = vld [vmem:[#allocation7 + $0x30] sm:$0xff]
    %v2477 = vld [vmem:[#allocation7 + $0x38] sm:$0xf]
    %v2478 = vld [vmem:[#allocation7 + $0x3c] sm:$0xff]
    %v2479 = vld [vmem:[#allocation7 + $0x44] sm:$0xff]
    %v2480 = vld [vmem:[#allocation7 + $0x4c] sm:$0xf]
    %v2481 = vld [vmem:[#allocation7 + $0x50] sm:$0xff]
    %v2482 = vld [vmem:[#allocation7 + $0x58] sm:$0xff]
    %v2483 = vld [vmem:[#allocation7 + $0x60] sm:$0xf]
    %v2484 = vld [vmem:[#allocation7 + $0x64] sm:$0xff]
    %v2485 = vld [vmem:[#allocation7 + $0x6c] sm:$0xff]
    %v2486 = vld [vmem:[#allocation7 + $0x74] sm:$0xf]
    %v2487 = vld [vmem:[#allocation7 + $0x78] sm:$0xff]
    %v2488 = vld [vmem:[#allocation7 + $0x80] sm:$0xff]
    %v2489 = vld [vmem:[#allocation7 + $0x88] sm:$0xf]
    %v2490 = vld [vmem:[#allocation7 + $0x8c] sm:$0xff]
    %v2491 = vld [vmem:[#allocation7 + $0x94] sm:$0xff]
    %v2492 = vld [vmem:[#allocation7 + $0x9c] sm:$0xf]
    %v2493 = vld [vmem:[#allocation7 + $0xa0] sm:$0xff]
    %v2494 = vld [vmem:[#allocation7 + $0xa8] sm:$0xff]
    %v2495 = vld [vmem:[#allocation7 + $0xb0] sm:$0xf]
    %v2496 = vld [vmem:[#allocation7 + $0xb4] sm:$0xff]
    %v2497 = vld [vmem:[#allocation7 + $0xbc] sm:$0xff]
    %v2498 = vld [vmem:[#allocation7 + $0xc4] sm:$0xf]
    %v2499 = vld [vmem:[#allocation7 + $0xc8] sm:$0xff]
    %v2500 = vld [vmem:[#allocation7 + $0xd0] sm:$0xff]
    %v2501 = vld [vmem:[#allocation7 + $0xd8] sm:$0xf]
    %v2502 = vld [vmem:[#allocation7 + $0xdc] sm:$0xff]
    %v2503 = vld [vmem:[#allocation7 + $0xe4] sm:$0xff]
    %v2504 = vld [vmem:[#allocation7 + $0xec] sm:$0xf]
    %v2505 = vld [vmem:[#allocation7 + $0xf0] sm:$0xff]
    %v2506 = vld [vmem:[#allocation7 + $0xf8] sm:$0xff]
    %v2507 = vld [vmem:[#allocation7 + $0x100] sm:$0xf]
    %v2508 = vld [vmem:[#allocation7 + $0x104] sm:$0xff]
    %v2509 = vld [vmem:[#allocation7 + $0x10c] sm:$0xff]
    %v2510 = vld [vmem:[#allocation7 + $0x114] sm:$0xf]
    %v2511 = vld [vmem:[#allocation7 + $0x118] sm:$0xff]
    %v2512 = vld [vmem:[#allocation7 + $0x120] sm:$0xff]
    %v2513 = vld [vmem:[#allocation7 + $0x128] sm:$0xf]
    %v2514 = vld [vmem:[#allocation7 + $0x12c] sm:$0xff]
    %v2515 = vld [vmem:[#allocation7 + $0x134] sm:$0xff]
    %v2516 = vld [vmem:[#allocation7 + $0x13c] sm:$0xf]
    %v2517 = vld [vmem:[#allocation7 + $0x140] sm:$0xff]
    %v2518 = vld [vmem:[#allocation7 + $0x148] sm:$0xff]
    %v2519 = vld [vmem:[#allocation7 + $0x150] sm:$0xf]
    %v2520 = vld [vmem:[#allocation7 + $0x154] sm:$0xff]
    %v2521 = vld [vmem:[#allocation7 + $0x15c] sm:$0xff]
    %v2522 = vld [vmem:[#allocation7 + $0x164] sm:$0xf]
    %v2523 = vld [vmem:[#allocation7 + $0x168] sm:$0xff]
    %v2524 = vld [vmem:[#allocation7 + $0x170] sm:$0xff]
    %v2525 = vld [vmem:[#allocation7 + $0x178] sm:$0xf]
    %v2526 = vld [vmem:[#allocation7 + $0x17c] sm:$0xff]
    %v2527 = vld [vmem:[#allocation7 + $0x184] sm:$0xff]
    %v2528 = vld [vmem:[#allocation7 + $0x18c] sm:$0xf]
    %v2529 = vld [vmem:[#allocation7 + $0x190] sm:$0xff]
    %v2530 = vld [vmem:[#allocation7 + $0x198] sm:$0xff]
    %v2531 = vld [vmem:[#allocation7 + $0x1a0] sm:$0xf]
    %v2532 = vld [vmem:[#allocation7 + $0x1a4] sm:$0xff]
    %v2533 = vld [vmem:[#allocation7 + $0x1ac] sm:$0xff]
    %v2534 = vld [vmem:[#allocation7 + $0x1b4] sm:$0xf]
    %v2535 = vld [vmem:[#allocation7 + $0x1b8] sm:$0xff]
    %v2536 = vld [vmem:[#allocation7 + $0x1c0] sm:$0xff]
    %v2537 = vld [vmem:[#allocation7 + $0x1c8] sm:$0xf]
    %v2538 = vld [vmem:[#allocation7 + $0x1cc] sm:$0xff]
    %v2539 = vld [vmem:[#allocation7 + $0x1d4] sm:$0xff]
    %v2540 = vld [vmem:[#allocation7 + $0x1dc] sm:$0xf]
    %v2541 = vld [vmem:[#allocation7 + $0x1e0] sm:$0xff]
    %v2542 = vld [vmem:[#allocation7 + $0x1e8] sm:$0xff]
    %v2543 = vld [vmem:[#allocation7 + $0x1f0] sm:$0xf]
    %v2544 = vld [vmem:[#allocation7 + $0x1f4] sm:$0xff]
    %v2545 = vld [vmem:[#allocation7 + $0x1fc] sm:$0xff]
    %v2546 = vld [vmem:[#allocation7 + $0x204] sm:$0xf]
    %v2547 = vld [vmem:[#allocation7 + $0x208] sm:$0xff]
    %v2548 = vld [vmem:[#allocation7 + $0x210] sm:$0xff]
    %v2549 = vld [vmem:[#allocation7 + $0x218] sm:$0xf]
    %v2550 = vld [vmem:[#allocation7 + $0x21c] sm:$0xff]
    %v2551 = vld [vmem:[#allocation7 + $0x224] sm:$0xff]
    %v2552 = vld [vmem:[#allocation7 + $0x22c] sm:$0xf]
    %v2553 = vld [vmem:[#allocation7 + $0x230] sm:$0xff]
    %v2554 = vld [vmem:[#allocation7 + $0x238] sm:$0xff]
    %v2555 = vld [vmem:[#allocation7 + $0x240] sm:$0xf]
    %v2556 = vld [vmem:[#allocation7 + $0x244] sm:$0xff]
    %v2557 = vld [vmem:[#allocation7 + $0x24c] sm:$0xff]
    %v2558 = vld [vmem:[#allocation7 + $0x254] sm:$0xf]
    %v2559 = vld [vmem:[#allocation7 + $0x258] sm:$0xff]
    %v2560 = vld [vmem:[#allocation7 + $0x260] sm:$0xff]
    %v2561 = vld [vmem:[#allocation7 + $0x268] sm:$0xf]
    %v2562 = vld [vmem:[#allocation7 + $0x26c] sm:$0xff]
    %v2563 = vld [vmem:[#allocation7 + $0x274] sm:$0xff]
    %v2564 = vld [vmem:[#allocation7 + $0x27c] sm:$0xf]
    %v2565 = vld [vmem:[#allocation7 + $0x280] sm:$0xff]
    %v2566 = vld [vmem:[#allocation7 + $0x288] sm:$0xff]
    %v2567 = vld [vmem:[#allocation7 + $0x290] sm:$0xf]
    %v2568 = vld [vmem:[#allocation7 + $0x294] sm:$0xff]
    %v2569 = vld [vmem:[#allocation7 + $0x29c] sm:$0xff]
    %v2570 = vld [vmem:[#allocation7 + $0x2a4] sm:$0xf]
    %v2571 = vld [vmem:[#allocation7 + $0x2a8] sm:$0xff]
    %v2572 = vld [vmem:[#allocation7 + $0x2b0] sm:$0xff]
    %v2573 = vld [vmem:[#allocation7 + $0x2b8] sm:$0xf]
    %v2574 = vld [vmem:[#allocation7 + $0x2bc] sm:$0xff]
    %v2575 = vld [vmem:[#allocation7 + $0x2c4] sm:$0xff]
    %v2576 = vld [vmem:[#allocation7 + $0x2cc] sm:$0xf]
    %v2577 = vld [vmem:[#allocation7 + $0x2d0] sm:$0xff]
    %v2578 = vld [vmem:[#allocation7 + $0x2d8] sm:$0xff]
    %v2579 = vld [vmem:[#allocation7 + $0x2e0] sm:$0xf]
    %v2580 = vld [vmem:[#allocation7 + $0x2e4] sm:$0xff]
    %v2581 = vld [vmem:[#allocation7 + $0x2ec] sm:$0xff]
    %v2582 = vld [vmem:[#allocation7 + $0x2f4] sm:$0xf]
    %v2583 = vld [vmem:[#allocation7 + $0x2f8] sm:$0xff]
    %v2584 = vld [vmem:[#allocation7 + $0x300] sm:$0xff]
    %v2585 = vld [vmem:[#allocation7 + $0x308] sm:$0xf]
    %v2586 = vld [vmem:[#allocation7 + $0x30c] sm:$0xff]
    %v2587 = vld [vmem:[#allocation7 + $0x314] sm:$0xff]
    %v2588 = vld [vmem:[#allocation7 + $0x31c] sm:$0xf]
    %v2589 = vld [vmem:[#allocation7 + $0x320] sm:$0xff]
    %v2590 = vld [vmem:[#allocation7 + $0x328] sm:$0xff]
    %v2591 = vld [vmem:[#allocation7 + $0x330] sm:$0xf]
    %v2592 = vld [vmem:[#allocation7 + $0x334] sm:$0xff]
    %v2593 = vld [vmem:[#allocation7 + $0x33c] sm:$0xff]
    %v2594 = vld [vmem:[#allocation7 + $0x344] sm:$0xf]
    %v2595 = vld [vmem:[#allocation7 + $0x348] sm:$0xff]
    %v2596 = vld [vmem:[#allocation7 + $0x350] sm:$0xff]
    %v2597 = vld [vmem:[#allocation7 + $0x358] sm:$0xf]
    %v2598 = vld [vmem:[#allocation7 + $0x35c] sm:$0xff]
    %v2599 = vld [vmem:[#allocation7 + $0x364] sm:$0xff]
    %v2600 = vld [vmem:[#allocation7 + $0x36c] sm:$0xf]
    %v2601 = vld [vmem:[#allocation7 + $0x370] sm:$0xff]
    %v2602 = vld [vmem:[#allocation7 + $0x378] sm:$0xff]
    %v2603 = vld [vmem:[#allocation7 + $0x380] sm:$0xf]
    %v2604 = vld [vmem:[#allocation7 + $0x384] sm:$0xff]
    %v2605 = vld [vmem:[#allocation7 + $0x38c] sm:$0xff]
    %v2606 = vld [vmem:[#allocation7 + $0x394] sm:$0xf]
    %v2607 = vld [vmem:[#allocation7 + $0x398] sm:$0xff]
    %v2608 = vld [vmem:[#allocation7 + $0x3a0] sm:$0xff]
    %v2609 = vld [vmem:[#allocation7 + $0x3a8] sm:$0xf]
    %v2610 = vld [vmem:[#allocation7 + $0x3ac] sm:$0xff]
    %v2611 = vld [vmem:[#allocation7 + $0x3b4] sm:$0xff]
    %v2612 = vld [vmem:[#allocation7 + $0x3bc] sm:$0xf]
    %v2613 = vld [vmem:[#allocation7 + $0x3c0] sm:$0xff]
    %v2614 = vld [vmem:[#allocation7 + $0x3c8] sm:$0xff]
    %v2615 = vld [vmem:[#allocation7 + $0x3d0] sm:$0xf]
    %v2616 = vld [vmem:[#allocation7 + $0x3d4] sm:$0xff]
    %v2617 = vld [vmem:[#allocation7 + $0x3dc] sm:$0xff]
    %v2618 = vld [vmem:[#allocation7 + $0x3e4] sm:$0xf]
    %v2619 = vld [vmem:[#allocation7 + $0x3e8] sm:$0xff]
    %v2620 = vld [vmem:[#allocation7 + $0x3f0] sm:$0xff]
    %v2621 = vld [vmem:[#allocation7 + $0x3f8] sm:$0xf]
    %v2622 = vld [vmem:[#allocation7 + $0x3fc] sm:$0xff]
    %v2623 = vld [vmem:[#allocation7 + $0x404] sm:$0xff]
    %v2624 = vld [vmem:[#allocation7 + $0x40c] sm:$0xf]
    %v2625 = vld [vmem:[#allocation7 + $0x410] sm:$0xff]
    %v2626 = vld [vmem:[#allocation7 + $0x418] sm:$0xff]
    %v2627 = vld [vmem:[#allocation7 + $0x420] sm:$0xf]
    %v2628 = vld [vmem:[#allocation7 + $0x424] sm:$0xff]
    %v2629 = vld [vmem:[#allocation7 + $0x42c] sm:$0xff]
    %v2630 = vld [vmem:[#allocation7 + $0x434] sm:$0xf]
    %v2631 = vld [vmem:[#allocation7 + $0x438] sm:$0xff]
    %v2632 = vld [vmem:[#allocation7 + $0x440] sm:$0xff]
    %v2633 = vld [vmem:[#allocation7 + $0x448] sm:$0xf]
    %v2634 = vld [vmem:[#allocation7 + $0x44c] sm:$0xff]
    %v2635 = vld [vmem:[#allocation7 + $0x454] sm:$0xff]
    %v2636 = vld [vmem:[#allocation7 + $0x45c] sm:$0xf]
    %v2637 = vld [vmem:[#allocation7 + $0x460] sm:$0xff]
    %v2638 = vld [vmem:[#allocation7 + $0x468] sm:$0xff]
    %v2639 = vld [vmem:[#allocation7 + $0x470] sm:$0xf]
    %v2640 = vld [vmem:[#allocation7 + $0x474] sm:$0xff]
    %v2641 = vld [vmem:[#allocation7 + $0x47c] sm:$0xff]
    %v2642 = vld [vmem:[#allocation7 + $0x484] sm:$0xf]
    %v2643 = vld [vmem:[#allocation7 + $0x488] sm:$0xff]
    %v2644 = vld [vmem:[#allocation7 + $0x490] sm:$0xff]
    %v2645 = vld [vmem:[#allocation7 + $0x498] sm:$0xf]
    %v2646 = vld [vmem:[#allocation7 + $0x49c] sm:$0xff]
    %v2647 = vld [vmem:[#allocation7 + $0x4a4] sm:$0xff]
    %v2648 = vld [vmem:[#allocation7 + $0x4ac] sm:$0xf]
    %v2649 = vld [vmem:[#allocation7 + $0x4b0] sm:$0xff]
    %v2650 = vld [vmem:[#allocation7 + $0x4b8] sm:$0xff]
    %v2651 = vld [vmem:[#allocation7 + $0x4c0] sm:$0xf]
    %v2652 = vld [vmem:[#allocation7 + $0x4c4] sm:$0xff]
    %v2653 = vld [vmem:[#allocation7 + $0x4cc] sm:$0xff]
    %v2654 = vld [vmem:[#allocation7 + $0x4d4] sm:$0xf]
    %v2655 = vld [vmem:[#allocation7 + $0x4d8] sm:$0xff]
    %v2656 = vld [vmem:[#allocation7 + $0x4e0] sm:$0xff]
    %v2657 = vld [vmem:[#allocation7 + $0x4e8] sm:$0xf]
    %v2658 = vld [vmem:[#allocation7 + $0x4ec] sm:$0xff]
    %v2659 = vld [vmem:[#allocation7 + $0x4f4] sm:$0xff]
    %v2660 = vld [vmem:[#allocation7 + $0x4fc] sm:$0xf]
    %v2661 = vld [vmem:[#allocation7 + $0x500] sm:$0xff]
    %v2662 = vld [vmem:[#allocation7 + $0x508] sm:$0xff]
    %v2663 = vld [vmem:[#allocation7 + $0x510] sm:$0xf]
    %v2664 = vld [vmem:[#allocation7 + $0x514] sm:$0xff]
    %v2665 = vld [vmem:[#allocation7 + $0x51c] sm:$0xff]
    %v2666 = vld [vmem:[#allocation7 + $0x524] sm:$0xf]
    %v2667 = vld [vmem:[#allocation7 + $0x528] sm:$0xff]
    %v2668 = vld [vmem:[#allocation7 + $0x530] sm:$0xff]
    %v2669 = vld [vmem:[#allocation7 + $0x538] sm:$0xf]
    %v2670 = vld [vmem:[#allocation7 + $0x53c] sm:$0xff]
    %v2671 = vld [vmem:[#allocation7 + $0x544] sm:$0xff]
    %v2672 = vld [vmem:[#allocation7 + $0x54c] sm:$0xf]
    %v2673 = vld [vmem:[#allocation7 + $0x550] sm:$0xff]
    %v2674 = vld [vmem:[#allocation7 + $0x558] sm:$0xff]
    %v2675 = vld [vmem:[#allocation7 + $0x560] sm:$0xf]
    %v2676 = vld [vmem:[#allocation7 + $0x564] sm:$0xff]
    %v2677 = vld [vmem:[#allocation7 + $0x56c] sm:$0xff]
    %v2678 = vld [vmem:[#allocation7 + $0x574] sm:$0xf]
    %v2679 = vld [vmem:[#allocation7 + $0x578] sm:$0xff]
    %v2680 = vld [vmem:[#allocation7 + $0x580] sm:$0xff]
    %v2681 = vld [vmem:[#allocation7 + $0x588] sm:$0xf]
    %v2682 = vld [vmem:[#allocation7 + $0x58c] sm:$0xff]
    %v2683 = vld [vmem:[#allocation7 + $0x594] sm:$0xff]
    %v2684 = vld [vmem:[#allocation7 + $0x59c] sm:$0xf]
    %v2685 = vld [vmem:[#allocation7 + $0x5a0] sm:$0xff]
    %v2686 = vld [vmem:[#allocation7 + $0x5a8] sm:$0xff]
    %v2687 = vld [vmem:[#allocation7 + $0x5b0] sm:$0xf]
    %v2688 = vld [vmem:[#allocation7 + $0x5b4] sm:$0xff]
    %v2689 = vld [vmem:[#allocation7 + $0x5bc] sm:$0xff]
    %v2690 = vld [vmem:[#allocation7 + $0x5c4] sm:$0xf]
    %v2691 = vld [vmem:[#allocation7 + $0x5c8] sm:$0xff]
    %v2692 = vld [vmem:[#allocation7 + $0x5d0] sm:$0xff]
    %v2693 = vld [vmem:[#allocation7 + $0x5d8] sm:$0xf]
    %v2694 = vld [vmem:[#allocation7 + $0x5dc] sm:$0xff]
    %v2695 = vld [vmem:[#allocation7 + $0x5e4] sm:$0xff]
    %v2696 = vld [vmem:[#allocation7 + $0x5ec] sm:$0xf]
    %v2697 = vld [vmem:[#allocation7 + $0x5f0] sm:$0xff]
    %v2698 = vld [vmem:[#allocation7 + $0x5f8] sm:$0xff]
    %v2699 = vld [vmem:[#allocation7 + $0x600] sm:$0xf]
    %v2700 = vld [vmem:[#allocation7 + $0x604] sm:$0xff]
    %v2701 = vld [vmem:[#allocation7 + $0x60c] sm:$0xff]
    %v2702 = vld [vmem:[#allocation7 + $0x614] sm:$0xf]
    %v2703 = vld [vmem:[#allocation7 + $0x618] sm:$0xff]
    %v2704 = vld [vmem:[#allocation7 + $0x620] sm:$0xff]
    %v2705 = vld [vmem:[#allocation7 + $0x628] sm:$0xf]
    %v2706 = vld [vmem:[#allocation7 + $0x62c] sm:$0xff]
    %v2707 = vld [vmem:[#allocation7 + $0x634] sm:$0xff]
    %v2708 = vld [vmem:[#allocation7 + $0x63c] sm:$0xf]
    %s2709 = scalar_lea.vmem %s8, 3
    %v2710 = vld [vmem:[%s2709] ss:$8 sm:$0xf]
    %v2711 = vld [vmem:[%s2709] ss:$8 sm:$0x10]
    %v2712 = vor.u32 %v2710, %v2711
    %v2714 = vperm.slane %v2712, 0
    %v2715 = vperm.slane %v2712, 1
    %v2716 = vperm.slane %v2712, 2
    %v2717 = vperm.slane %v2712, 3
    %v2718 = vperm.slane %v2712, 4
    %v2964 = vunpack.c.l.b16 %v2469
    %v2965 = vunpack.c.h.b16 %v2469
    %v2966 = vunpack.c.l.b16 %v2470
    %v2967 = vunpack.c.h.b16 %v2470
    %v2968 = vunpack.c.l.b16 %v2471
    %v2969 = vunpack.c.l.b16 %v2472
    %v2970 = vunpack.c.h.b16 %v2472
    %v2971 = vunpack.c.l.b16 %v2473
    %v2972 = vunpack.c.h.b16 %v2473
    %v2973 = vunpack.c.l.b16 %v2474
    %v2974 = vunpack.c.l.b16 %v2475
    %v2975 = vunpack.c.h.b16 %v2475
    %v2976 = vunpack.c.l.b16 %v2476
    %v2977 = vunpack.c.h.b16 %v2476
    %v2978 = vunpack.c.l.b16 %v2477
    %v2979 = vunpack.c.l.b16 %v2478
    %v2980 = vunpack.c.h.b16 %v2478
    %v2981 = vunpack.c.l.b16 %v2479
    %v2982 = vunpack.c.h.b16 %v2479
    %v2983 = vunpack.c.l.b16 %v2480
    %v2984 = vunpack.c.l.b16 %v2481
    %v2985 = vunpack.c.h.b16 %v2481
    %v2986 = vunpack.c.l.b16 %v2482
    %v2987 = vunpack.c.h.b16 %v2482
    %v2988 = vunpack.c.l.b16 %v2483
    %v2989 = vunpack.c.l.b16 %v2484
    %v2990 = vunpack.c.h.b16 %v2484
    %v2991 = vunpack.c.l.b16 %v2485
    %v2992 = vunpack.c.h.b16 %v2485
    %v2993 = vunpack.c.l.b16 %v2486
    %v2994 = vunpack.c.l.b16 %v2487
    %v2995 = vunpack.c.h.b16 %v2487
    %v2996 = vunpack.c.l.b16 %v2488
    %v2997 = vunpack.c.h.b16 %v2488
    %v2998 = vunpack.c.l.b16 %v2489
    %v2999 = vunpack.c.l.b16 %v2490
    %v3000 = vunpack.c.h.b16 %v2490
    %v3001 = vunpack.c.l.b16 %v2491
    %v3002 = vunpack.c.h.b16 %v2491
    %v3003 = vunpack.c.l.b16 %v2492
    %v3004 = vunpack.c.l.b16 %v2493
    %v3005 = vunpack.c.h.b16 %v2493
    %v3006 = vunpack.c.l.b16 %v2494
    %v3007 = vunpack.c.h.b16 %v2494
    %v3008 = vunpack.c.l.b16 %v2495
    %v3009 = vunpack.c.l.b16 %v2496
    %v3010 = vunpack.c.h.b16 %v2496
    %v3011 = vunpack.c.l.b16 %v2497
    %v3012 = vunpack.c.h.b16 %v2497
    %v3013 = vunpack.c.l.b16 %v2498
    %v3014 = vunpack.c.l.b16 %v2499
    %v3015 = vunpack.c.h.b16 %v2499
    %v3016 = vunpack.c.l.b16 %v2500
    %v3017 = vunpack.c.h.b16 %v2500
    %v3018 = vunpack.c.l.b16 %v2501
    %v3019 = vunpack.c.l.b16 %v2502
    %v3020 = vunpack.c.h.b16 %v2502
    %v3021 = vunpack.c.l.b16 %v2503
    %v3022 = vunpack.c.h.b16 %v2503
    %v3023 = vunpack.c.l.b16 %v2504
    %v3024 = vunpack.c.l.b16 %v2505
    %v3025 = vunpack.c.h.b16 %v2505
    %v3026 = vunpack.c.l.b16 %v2506
    %v3027 = vunpack.c.h.b16 %v2506
    %v3028 = vunpack.c.l.b16 %v2507
    %v3029 = vunpack.c.l.b16 %v2508
    %v3030 = vunpack.c.h.b16 %v2508
    %v3031 = vunpack.c.l.b16 %v2509
    %v3032 = vunpack.c.h.b16 %v2509
    %v3033 = vunpack.c.l.b16 %v2510
    %v3034 = vunpack.c.l.b16 %v2511
    %v3035 = vunpack.c.h.b16 %v2511
    %v3036 = vunpack.c.l.b16 %v2512
    %v3037 = vunpack.c.h.b16 %v2512
    %v3038 = vunpack.c.l.b16 %v2513
    %v3039 = vunpack.c.l.b16 %v2514
    %v3040 = vunpack.c.h.b16 %v2514
    %v3041 = vunpack.c.l.b16 %v2515
    %v3042 = vunpack.c.h.b16 %v2515
    %v3043 = vunpack.c.l.b16 %v2516
    %v3044 = vunpack.c.l.b16 %v2517
    %v3045 = vunpack.c.h.b16 %v2517
    %v3046 = vunpack.c.l.b16 %v2518
    %v3047 = vunpack.c.h.b16 %v2518
    %v3048 = vunpack.c.l.b16 %v2519
    %v3049 = vunpack.c.l.b16 %v2520
    %v3050 = vunpack.c.h.b16 %v2520
    %v3051 = vunpack.c.l.b16 %v2521
    %v3052 = vunpack.c.h.b16 %v2521
    %v3053 = vunpack.c.l.b16 %v2522
    %v3054 = vunpack.c.l.b16 %v2523
    %v3055 = vunpack.c.h.b16 %v2523
    %v3056 = vunpack.c.l.b16 %v2524
    %v3057 = vunpack.c.h.b16 %v2524
    %v3058 = vunpack.c.l.b16 %v2525
    %v3059 = vunpack.c.l.b16 %v2526
    %v3060 = vunpack.c.h.b16 %v2526
    %v3061 = vunpack.c.l.b16 %v2527
    %v3062 = vunpack.c.h.b16 %v2527
    %v3063 = vunpack.c.l.b16 %v2528
    %v3064 = vunpack.c.l.b16 %v2529
    %v3065 = vunpack.c.h.b16 %v2529
    %v3066 = vunpack.c.l.b16 %v2530
    %v3067 = vunpack.c.h.b16 %v2530
    %v3068 = vunpack.c.l.b16 %v2531
    %v3069 = vunpack.c.l.b16 %v2532
    %v3070 = vunpack.c.h.b16 %v2532
    %v3071 = vunpack.c.l.b16 %v2533
    %v3072 = vunpack.c.h.b16 %v2533
    %v3073 = vunpack.c.l.b16 %v2534
    %v3074 = vunpack.c.l.b16 %v2535
    %v3075 = vunpack.c.h.b16 %v2535
    %v3076 = vunpack.c.l.b16 %v2536
    %v3077 = vunpack.c.h.b16 %v2536
    %v3078 = vunpack.c.l.b16 %v2537
    %v3079 = vunpack.c.l.b16 %v2538
    %v3080 = vunpack.c.h.b16 %v2538
    %v3081 = vunpack.c.l.b16 %v2539
    %v3082 = vunpack.c.h.b16 %v2539
    %v3083 = vunpack.c.l.b16 %v2540
    %v3084 = vunpack.c.l.b16 %v2541
    %v3085 = vunpack.c.h.b16 %v2541
    %v3086 = vunpack.c.l.b16 %v2542
    %v3087 = vunpack.c.h.b16 %v2542
    %v3088 = vunpack.c.l.b16 %v2543
    %v3089 = vunpack.c.l.b16 %v2544
    %v3090 = vunpack.c.h.b16 %v2544
    %v3091 = vunpack.c.l.b16 %v2545
    %v3092 = vunpack.c.h.b16 %v2545
    %v3093 = vunpack.c.l.b16 %v2546
    %v3094 = vunpack.c.l.b16 %v2547
    %v3095 = vunpack.c.h.b16 %v2547
    %v3096 = vunpack.c.l.b16 %v2548
    %v3097 = vunpack.c.h.b16 %v2548
    %v3098 = vunpack.c.l.b16 %v2549
    %v3099 = vunpack.c.l.b16 %v2550
    %v3100 = vunpack.c.h.b16 %v2550
    %v3101 = vunpack.c.l.b16 %v2551
    %v3102 = vunpack.c.h.b16 %v2551
    %v3103 = vunpack.c.l.b16 %v2552
    %v3104 = vunpack.c.l.b16 %v2553
    %v3105 = vunpack.c.h.b16 %v2553
    %v3106 = vunpack.c.l.b16 %v2554
    %v3107 = vunpack.c.h.b16 %v2554
    %v3108 = vunpack.c.l.b16 %v2555
    %v3109 = vunpack.c.l.b16 %v2556
    %v3110 = vunpack.c.h.b16 %v2556
    %v3111 = vunpack.c.l.b16 %v2557
    %v3112 = vunpack.c.h.b16 %v2557
    %v3113 = vunpack.c.l.b16 %v2558
    %v3114 = vunpack.c.l.b16 %v2559
    %v3115 = vunpack.c.h.b16 %v2559
    %v3116 = vunpack.c.l.b16 %v2560
    %v3117 = vunpack.c.h.b16 %v2560
    %v3118 = vunpack.c.l.b16 %v2561
    %v3119 = vunpack.c.l.b16 %v2562
    %v3120 = vunpack.c.h.b16 %v2562
    %v3121 = vunpack.c.l.b16 %v2563
    %v3122 = vunpack.c.h.b16 %v2563
    %v3123 = vunpack.c.l.b16 %v2564
    %v3124 = vunpack.c.l.b16 %v2565
    %v3125 = vunpack.c.h.b16 %v2565
    %v3126 = vunpack.c.l.b16 %v2566
    %v3127 = vunpack.c.h.b16 %v2566
    %v3128 = vunpack.c.l.b16 %v2567
    %v3129 = vunpack.c.l.b16 %v2568
    %v3130 = vunpack.c.h.b16 %v2568
    %v3131 = vunpack.c.l.b16 %v2569
    %v3132 = vunpack.c.h.b16 %v2569
    %v3133 = vunpack.c.l.b16 %v2570
    %v3134 = vunpack.c.l.b16 %v2571
    %v3135 = vunpack.c.h.b16 %v2571
    %v3136 = vunpack.c.l.b16 %v2572
    %v3137 = vunpack.c.h.b16 %v2572
    %v3138 = vunpack.c.l.b16 %v2573
    %v3139 = vunpack.c.l.b16 %v2574
    %v3140 = vunpack.c.h.b16 %v2574
    %v3141 = vunpack.c.l.b16 %v2575
    %v3142 = vunpack.c.h.b16 %v2575
    %v3143 = vunpack.c.l.b16 %v2576
    %v3144 = vunpack.c.l.b16 %v2577
    %v3145 = vunpack.c.h.b16 %v2577
    %v3146 = vunpack.c.l.b16 %v2578
    %v3147 = vunpack.c.h.b16 %v2578
    %v3148 = vunpack.c.l.b16 %v2579
    %v3149 = vunpack.c.l.b16 %v2580
    %v3150 = vunpack.c.h.b16 %v2580
    %v3151 = vunpack.c.l.b16 %v2581
    %v3152 = vunpack.c.h.b16 %v2581
    %v3153 = vunpack.c.l.b16 %v2582
    %v3154 = vunpack.c.l.b16 %v2583
    %v3155 = vunpack.c.h.b16 %v2583
    %v3156 = vunpack.c.l.b16 %v2584
    %v3157 = vunpack.c.h.b16 %v2584
    %v3158 = vunpack.c.l.b16 %v2585
    %v3159 = vunpack.c.l.b16 %v2586
    %v3160 = vunpack.c.h.b16 %v2586
    %v3161 = vunpack.c.l.b16 %v2587
    %v3162 = vunpack.c.h.b16 %v2587
    %v3163 = vunpack.c.l.b16 %v2588
    %v3164 = vunpack.c.l.b16 %v2589
    %v3165 = vunpack.c.h.b16 %v2589
    %v3166 = vunpack.c.l.b16 %v2590
    %v3167 = vunpack.c.h.b16 %v2590
    %v3168 = vunpack.c.l.b16 %v2591
    %v3169 = vunpack.c.l.b16 %v2592
    %v3170 = vunpack.c.h.b16 %v2592
    %v3171 = vunpack.c.l.b16 %v2593
    %v3172 = vunpack.c.h.b16 %v2593
    %v3173 = vunpack.c.l.b16 %v2594
    %v3174 = vunpack.c.l.b16 %v2595
    %v3175 = vunpack.c.h.b16 %v2595
    %v3176 = vunpack.c.l.b16 %v2596
    %v3177 = vunpack.c.h.b16 %v2596
    %v3178 = vunpack.c.l.b16 %v2597
    %v3179 = vunpack.c.l.b16 %v2598
    %v3180 = vunpack.c.h.b16 %v2598
    %v3181 = vunpack.c.l.b16 %v2599
    %v3182 = vunpack.c.h.b16 %v2599
    %v3183 = vunpack.c.l.b16 %v2600
    %v3184 = vunpack.c.l.b16 %v2601
    %v3185 = vunpack.c.h.b16 %v2601
    %v3186 = vunpack.c.l.b16 %v2602
    %v3187 = vunpack.c.h.b16 %v2602
    %v3188 = vunpack.c.l.b16 %v2603
    %v3189 = vunpack.c.l.b16 %v2604
    %v3190 = vunpack.c.h.b16 %v2604
    %v3191 = vunpack.c.l.b16 %v2605
    %v3192 = vunpack.c.h.b16 %v2605
    %v3193 = vunpack.c.l.b16 %v2606
    %v3194 = vunpack.c.l.b16 %v2607
    %v3195 = vunpack.c.h.b16 %v2607
    %v3196 = vunpack.c.l.b16 %v2608
    %v3197 = vunpack.c.h.b16 %v2608
    %v3198 = vunpack.c.l.b16 %v2609
    %v3199 = vunpack.c.l.b16 %v2610
    %v3200 = vunpack.c.h.b16 %v2610
    %v3201 = vunpack.c.l.b16 %v2611
    %v3202 = vunpack.c.h.b16 %v2611
    %v3203 = vunpack.c.l.b16 %v2612
    %v3204 = vunpack.c.l.b16 %v2613
    %v3205 = vunpack.c.h.b16 %v2613
    %v3206 = vunpack.c.l.b16 %v2614
    %v3207 = vunpack.c.h.b16 %v2614
    %v3208 = vunpack.c.l.b16 %v2615
    %v3209 = vunpack.c.l.b16 %v2616
    %v3210 = vunpack.c.h.b16 %v2616
    %v3211 = vunpack.c.l.b16 %v2617
    %v3212 = vunpack.c.h.b16 %v2617
    %v3213 = vunpack.c.l.b16 %v2618
    %v3214 = vunpack.c.l.b16 %v2619
    %v3215 = vunpack.c.h.b16 %v2619
    %v3216 = vunpack.c.l.b16 %v2620
    %v3217 = vunpack.c.h.b16 %v2620
    %v3218 = vunpack.c.l.b16 %v2621
    %v3219 = vunpack.c.l.b16 %v2622
    %v3220 = vunpack.c.h.b16 %v2622
    %v3221 = vunpack.c.l.b16 %v2623
    %v3222 = vunpack.c.h.b16 %v2623
    %v3223 = vunpack.c.l.b16 %v2624
    %v3224 = vunpack.c.l.b16 %v2625
    %v3225 = vunpack.c.h.b16 %v2625
    %v3226 = vunpack.c.l.b16 %v2626
    %v3227 = vunpack.c.h.b16 %v2626
    %v3228 = vunpack.c.l.b16 %v2627
    %v3229 = vunpack.c.l.b16 %v2628
    %v3230 = vunpack.c.h.b16 %v2628
    %v3231 = vunpack.c.l.b16 %v2629
    %v3232 = vunpack.c.h.b16 %v2629
    %v3233 = vunpack.c.l.b16 %v2630
    %v3234 = vunpack.c.l.b16 %v2631
    %v3235 = vunpack.c.h.b16 %v2631
    %v3236 = vunpack.c.l.b16 %v2632
    %v3237 = vunpack.c.h.b16 %v2632
    %v3238 = vunpack.c.l.b16 %v2633
    %v3239 = vunpack.c.l.b16 %v2634
    %v3240 = vunpack.c.h.b16 %v2634
    %v3241 = vunpack.c.l.b16 %v2635
    %v3242 = vunpack.c.h.b16 %v2635
    %v3243 = vunpack.c.l.b16 %v2636
    %v3244 = vunpack.c.l.b16 %v2637
    %v3245 = vunpack.c.h.b16 %v2637
    %v3246 = vunpack.c.l.b16 %v2638
    %v3247 = vunpack.c.h.b16 %v2638
    %v3248 = vunpack.c.l.b16 %v2639
    %v3249 = vunpack.c.l.b16 %v2640
    %v3250 = vunpack.c.h.b16 %v2640
    %v3251 = vunpack.c.l.b16 %v2641
    %v3252 = vunpack.c.h.b16 %v2641
    %v3253 = vunpack.c.l.b16 %v2642
    %v3254 = vunpack.c.l.b16 %v2643
    %v3255 = vunpack.c.h.b16 %v2643
    %v3256 = vunpack.c.l.b16 %v2644
    %v3257 = vunpack.c.h.b16 %v2644
    %v3258 = vunpack.c.l.b16 %v2645
    %v3259 = vunpack.c.l.b16 %v2646
    %v3260 = vunpack.c.h.b16 %v2646
    %v3261 = vunpack.c.l.b16 %v2647
    %v3262 = vunpack.c.h.b16 %v2647
    %v3263 = vunpack.c.l.b16 %v2648
    %v3264 = vunpack.c.l.b16 %v2649
    %v3265 = vunpack.c.h.b16 %v2649
    %v3266 = vunpack.c.l.b16 %v2650
    %v3267 = vunpack.c.h.b16 %v2650
    %v3268 = vunpack.c.l.b16 %v2651
    %v3269 = vunpack.c.l.b16 %v2652
    %v3270 = vunpack.c.h.b16 %v2652
    %v3271 = vunpack.c.l.b16 %v2653
    %v3272 = vunpack.c.h.b16 %v2653
    %v3273 = vunpack.c.l.b16 %v2654
    %v3274 = vunpack.c.l.b16 %v2655
    %v3275 = vunpack.c.h.b16 %v2655
    %v3276 = vunpack.c.l.b16 %v2656
    %v3277 = vunpack.c.h.b16 %v2656
    %v3278 = vunpack.c.l.b16 %v2657
    %v3279 = vunpack.c.l.b16 %v2658
    %v3280 = vunpack.c.h.b16 %v2658
    %v3281 = vunpack.c.l.b16 %v2659
    %v3282 = vunpack.c.h.b16 %v2659
    %v3283 = vunpack.c.l.b16 %v2660
    %v3284 = vunpack.c.l.b16 %v2661
    %v3285 = vunpack.c.h.b16 %v2661
    %v3286 = vunpack.c.l.b16 %v2662
    %v3287 = vunpack.c.h.b16 %v2662
    %v3288 = vunpack.c.l.b16 %v2663
    %v3289 = vunpack.c.l.b16 %v2664
    %v3290 = vunpack.c.h.b16 %v2664
    %v3291 = vunpack.c.l.b16 %v2665
    %v3292 = vunpack.c.h.b16 %v2665
    %v3293 = vunpack.c.l.b16 %v2666
    %v3294 = vunpack.c.l.b16 %v2667
    %v3295 = vunpack.c.h.b16 %v2667
    %v3296 = vunpack.c.l.b16 %v2668
    %v3297 = vunpack.c.h.b16 %v2668
    %v3298 = vunpack.c.l.b16 %v2669
    %v3299 = vunpack.c.l.b16 %v2670
    %v3300 = vunpack.c.h.b16 %v2670
    %v3301 = vunpack.c.l.b16 %v2671
    %v3302 = vunpack.c.h.b16 %v2671
    %v3303 = vunpack.c.l.b16 %v2672
    %v3304 = vunpack.c.l.b16 %v2673
    %v3305 = vunpack.c.h.b16 %v2673
    %v3306 = vunpack.c.l.b16 %v2674
    %v3307 = vunpack.c.h.b16 %v2674
    %v3308 = vunpack.c.l.b16 %v2675
    %v3309 = vunpack.c.l.b16 %v2676
    %v3310 = vunpack.c.h.b16 %v2676
    %v3311 = vunpack.c.l.b16 %v2677
    %v3312 = vunpack.c.h.b16 %v2677
    %v3313 = vunpack.c.l.b16 %v2678
    %v3314 = vunpack.c.l.b16 %v2679
    %v3315 = vunpack.c.h.b16 %v2679
    %v3316 = vunpack.c.l.b16 %v2680
    %v3317 = vunpack.c.h.b16 %v2680
    %v3318 = vunpack.c.l.b16 %v2681
    %v3319 = vunpack.c.l.b16 %v2682
    %v3320 = vunpack.c.h.b16 %v2682
    %v3321 = vunpack.c.l.b16 %v2683
    %v3322 = vunpack.c.h.b16 %v2683
    %v3323 = vunpack.c.l.b16 %v2684
    %v3324 = vunpack.c.l.b16 %v2685
    %v3325 = vunpack.c.h.b16 %v2685
    %v3326 = vunpack.c.l.b16 %v2686
    %v3327 = vunpack.c.h.b16 %v2686
    %v3328 = vunpack.c.l.b16 %v2687
    %v3329 = vunpack.c.l.b16 %v2688
    %v3330 = vunpack.c.h.b16 %v2688
    %v3331 = vunpack.c.l.b16 %v2689
    %v3332 = vunpack.c.h.b16 %v2689
    %v3333 = vunpack.c.l.b16 %v2690
    %v3334 = vunpack.c.l.b16 %v2691
    %v3335 = vunpack.c.h.b16 %v2691
    %v3336 = vunpack.c.l.b16 %v2692
    %v3337 = vunpack.c.h.b16 %v2692
    %v3338 = vunpack.c.l.b16 %v2693
    %v3339 = vunpack.c.l.b16 %v2694
    %v3340 = vunpack.c.h.b16 %v2694
    %v3341 = vunpack.c.l.b16 %v2695
    %v3342 = vunpack.c.h.b16 %v2695
    %v3343 = vunpack.c.l.b16 %v2696
    %v3344 = vunpack.c.l.b16 %v2697
    %v3345 = vunpack.c.h.b16 %v2697
    %v3346 = vunpack.c.l.b16 %v2698
    %v3347 = vunpack.c.h.b16 %v2698
    %v3348 = vunpack.c.l.b16 %v2699
    %v3349 = vunpack.c.l.b16 %v2700
    %v3350 = vunpack.c.h.b16 %v2700
    %v3351 = vunpack.c.l.b16 %v2701
    %v3352 = vunpack.c.h.b16 %v2701
    %v3353 = vunpack.c.l.b16 %v2702
    %v3354 = vunpack.c.l.b16 %v2703
    %v3355 = vunpack.c.h.b16 %v2703
    %v3356 = vunpack.c.l.b16 %v2704
    %v3357 = vunpack.c.h.b16 %v2704
    %v3358 = vunpack.c.l.b16 %v2705
    %v3359 = vunpack.c.l.b16 %v2706
    %v3360 = vunpack.c.h.b16 %v2706
    %v3361 = vunpack.c.l.b16 %v2707
    %v3362 = vunpack.c.h.b16 %v2707
    %v3363 = vunpack.c.l.b16 %v2708
    %v3364 = vpack.c.b16 %v2969, %v2964
    %v3365 = vpack.c.b16 %v2970, %v2965
    %v3366 = vpack.c.b16 %v2971, %v2966
    %v3367 = vpack.c.b16 %v2972, %v2967
    %v3368 = vpack.c.b16 %v2973, %v2968
    %v3369 = vpack.c.b16 %v2979, %v2974
    %v3370 = vpack.c.b16 %v2980, %v2975
    %v3371 = vpack.c.b16 %v2981, %v2976
    %v3372 = vpack.c.b16 %v2982, %v2977
    %v3373 = vpack.c.b16 %v2983, %v2978
    %v3374 = vpack.c.b16 %v2989, %v2984
    %v3375 = vpack.c.b16 %v2990, %v2985
    %v3376 = vpack.c.b16 %v2991, %v2986
    %v3377 = vpack.c.b16 %v2992, %v2987
    %v3378 = vpack.c.b16 %v2993, %v2988
    %v3379 = vpack.c.b16 %v2999, %v2994
    %v3380 = vpack.c.b16 %v3000, %v2995
    %v3381 = vpack.c.b16 %v3001, %v2996
    %v3382 = vpack.c.b16 %v3002, %v2997
    %v3383 = vpack.c.b16 %v3003, %v2998
    %v3384 = vpack.c.b16 %v3009, %v3004
    %v3385 = vpack.c.b16 %v3010, %v3005
    %v3386 = vpack.c.b16 %v3011, %v3006
    %v3387 = vpack.c.b16 %v3012, %v3007
    %v3388 = vpack.c.b16 %v3013, %v3008
    %v3389 = vpack.c.b16 %v3019, %v3014
    %v3390 = vpack.c.b16 %v3020, %v3015
    %v3391 = vpack.c.b16 %v3021, %v3016
    %v3392 = vpack.c.b16 %v3022, %v3017
    %v3393 = vpack.c.b16 %v3023, %v3018
    %v3394 = vpack.c.b16 %v3029, %v3024
    %v3395 = vpack.c.b16 %v3030, %v3025
    %v3396 = vpack.c.b16 %v3031, %v3026
    %v3397 = vpack.c.b16 %v3032, %v3027
    %v3398 = vpack.c.b16 %v3033, %v3028
    %v3399 = vpack.c.b16 %v3039, %v3034
    %v3400 = vpack.c.b16 %v3040, %v3035
    %v3401 = vpack.c.b16 %v3041, %v3036
    %v3402 = vpack.c.b16 %v3042, %v3037
    %v3403 = vpack.c.b16 %v3043, %v3038
    %v3404 = vpack.c.b16 %v3049, %v3044
    %v3405 = vpack.c.b16 %v3050, %v3045
    %v3406 = vpack.c.b16 %v3051, %v3046
    %v3407 = vpack.c.b16 %v3052, %v3047
    %v3408 = vpack.c.b16 %v3053, %v3048
    %v3409 = vpack.c.b16 %v3059, %v3054
    %v3410 = vpack.c.b16 %v3060, %v3055
    %v3411 = vpack.c.b16 %v3061, %v3056
    %v3412 = vpack.c.b16 %v3062, %v3057
    %v3413 = vpack.c.b16 %v3063, %v3058
    %v3414 = vpack.c.b16 %v3069, %v3064
    %v3415 = vpack.c.b16 %v3070, %v3065
    %v3416 = vpack.c.b16 %v3071, %v3066
    %v3417 = vpack.c.b16 %v3072, %v3067
    %v3418 = vpack.c.b16 %v3073, %v3068
    %v3419 = vpack.c.b16 %v3079, %v3074
    %v3420 = vpack.c.b16 %v3080, %v3075
    %v3421 = vpack.c.b16 %v3081, %v3076
    %v3422 = vpack.c.b16 %v3082, %v3077
    %v3423 = vpack.c.b16 %v3083, %v3078
    %v3424 = vpack.c.b16 %v3089, %v3084
    %v3425 = vpack.c.b16 %v3090, %v3085
    %v3426 = vpack.c.b16 %v3091, %v3086
    %v3427 = vpack.c.b16 %v3092, %v3087
    %v3428 = vpack.c.b16 %v3093, %v3088
    %v3429 = vpack.c.b16 %v3099, %v3094
    %v3430 = vpack.c.b16 %v3100, %v3095
    %v3431 = vpack.c.b16 %v3101, %v3096
    %v3432 = vpack.c.b16 %v3102, %v3097
    %v3433 = vpack.c.b16 %v3103, %v3098
    %v3434 = vpack.c.b16 %v3109, %v3104
    %v3435 = vpack.c.b16 %v3110, %v3105
    %v3436 = vpack.c.b16 %v3111, %v3106
    %v3437 = vpack.c.b16 %v3112, %v3107
    %v3438 = vpack.c.b16 %v3113, %v3108
    %v3439 = vpack.c.b16 %v3119, %v3114
    %v3440 = vpack.c.b16 %v3120, %v3115
    %v3441 = vpack.c.b16 %v3121, %v3116
    %v3442 = vpack.c.b16 %v3122, %v3117
    %v3443 = vpack.c.b16 %v3123, %v3118
    %v3444 = vpack.c.b16 %v3129, %v3124
    %v3445 = vpack.c.b16 %v3130, %v3125
    %v3446 = vpack.c.b16 %v3131, %v3126
    %v3447 = vpack.c.b16 %v3132, %v3127
    %v3448 = vpack.c.b16 %v3133, %v3128
    %v3449 = vpack.c.b16 %v3139, %v3134
    %v3450 = vpack.c.b16 %v3140, %v3135
    %v3451 = vpack.c.b16 %v3141, %v3136
    %v3452 = vpack.c.b16 %v3142, %v3137
    %v3453 = vpack.c.b16 %v3143, %v3138
    %v3454 = vpack.c.b16 %v3149, %v3144
    %v3455 = vpack.c.b16 %v3150, %v3145
    %v3456 = vpack.c.b16 %v3151, %v3146
    %v3457 = vpack.c.b16 %v3152, %v3147
    %v3458 = vpack.c.b16 %v3153, %v3148
    %v3459 = vpack.c.b16 %v3159, %v3154
    %v3460 = vpack.c.b16 %v3160, %v3155
    %v3461 = vpack.c.b16 %v3161, %v3156
    %v3462 = vpack.c.b16 %v3162, %v3157
    %v3463 = vpack.c.b16 %v3163, %v3158
    %v3464 = vpack.c.b16 %v3169, %v3164
    %v3465 = vpack.c.b16 %v3170, %v3165
    %v3466 = vpack.c.b16 %v3171, %v3166
    %v3467 = vpack.c.b16 %v3172, %v3167
    %v3468 = vpack.c.b16 %v3173, %v3168
    %v3469 = vpack.c.b16 %v3179, %v3174
    %v3470 = vpack.c.b16 %v3180, %v3175
    %v3471 = vpack.c.b16 %v3181, %v3176
    %v3472 = vpack.c.b16 %v3182, %v3177
    %v3473 = vpack.c.b16 %v3183, %v3178
    %v3474 = vpack.c.b16 %v3189, %v3184
    %v3475 = vpack.c.b16 %v3190, %v3185
    %v3476 = vpack.c.b16 %v3191, %v3186
    %v3477 = vpack.c.b16 %v3192, %v3187
    %v3478 = vpack.c.b16 %v3193, %v3188
    %v3479 = vpack.c.b16 %v3199, %v3194
    %v3480 = vpack.c.b16 %v3200, %v3195
    %v3481 = vpack.c.b16 %v3201, %v3196
    %v3482 = vpack.c.b16 %v3202, %v3197
    %v3483 = vpack.c.b16 %v3203, %v3198
    %v3484 = vpack.c.b16 %v3209, %v3204
    %v3485 = vpack.c.b16 %v3210, %v3205
    %v3486 = vpack.c.b16 %v3211, %v3206
    %v3487 = vpack.c.b16 %v3212, %v3207
    %v3488 = vpack.c.b16 %v3213, %v3208
    %v3489 = vpack.c.b16 %v3219, %v3214
    %v3490 = vpack.c.b16 %v3220, %v3215
    %v3491 = vpack.c.b16 %v3221, %v3216
    %v3492 = vpack.c.b16 %v3222, %v3217
    %v3493 = vpack.c.b16 %v3223, %v3218
    %v3494 = vpack.c.b16 %v3229, %v3224
    %v3495 = vpack.c.b16 %v3230, %v3225
    %v3496 = vpack.c.b16 %v3231, %v3226
    %v3497 = vpack.c.b16 %v3232, %v3227
    %v3498 = vpack.c.b16 %v3233, %v3228
    %v3499 = vpack.c.b16 %v3239, %v3234
    %v3500 = vpack.c.b16 %v3240, %v3235
    %v3501 = vpack.c.b16 %v3241, %v3236
    %v3502 = vpack.c.b16 %v3242, %v3237
    %v3503 = vpack.c.b16 %v3243, %v3238
    %v3504 = vpack.c.b16 %v3249, %v3244
    %v3505 = vpack.c.b16 %v3250, %v3245
    %v3506 = vpack.c.b16 %v3251, %v3246
    %v3507 = vpack.c.b16 %v3252, %v3247
    %v3508 = vpack.c.b16 %v3253, %v3248
    %v3509 = vpack.c.b16 %v3259, %v3254
    %v3510 = vpack.c.b16 %v3260, %v3255
    %v3511 = vpack.c.b16 %v3261, %v3256
    %v3512 = vpack.c.b16 %v3262, %v3257
    %v3513 = vpack.c.b16 %v3263, %v3258
    %v3514 = vpack.c.b16 %v3269, %v3264
    %v3515 = vpack.c.b16 %v3270, %v3265
    %v3516 = vpack.c.b16 %v3271, %v3266
    %v3517 = vpack.c.b16 %v3272, %v3267
    %v3518 = vpack.c.b16 %v3273, %v3268
    %v3519 = vpack.c.b16 %v3279, %v3274
    %v3520 = vpack.c.b16 %v3280, %v3275
    %v3521 = vpack.c.b16 %v3281, %v3276
    %v3522 = vpack.c.b16 %v3282, %v3277
    %v3523 = vpack.c.b16 %v3283, %v3278
    %v3524 = vpack.c.b16 %v3289, %v3284
    %v3525 = vpack.c.b16 %v3290, %v3285
    %v3526 = vpack.c.b16 %v3291, %v3286
    %v3527 = vpack.c.b16 %v3292, %v3287
    %v3528 = vpack.c.b16 %v3293, %v3288
    %v3529 = vpack.c.b16 %v3299, %v3294
    %v3530 = vpack.c.b16 %v3300, %v3295
    %v3531 = vpack.c.b16 %v3301, %v3296
    %v3532 = vpack.c.b16 %v3302, %v3297
    %v3533 = vpack.c.b16 %v3303, %v3298
    %v3534 = vpack.c.b16 %v3309, %v3304
    %v3535 = vpack.c.b16 %v3310, %v3305
    %v3536 = vpack.c.b16 %v3311, %v3306
    %v3537 = vpack.c.b16 %v3312, %v3307
    %v3538 = vpack.c.b16 %v3313, %v3308
    %v3539 = vpack.c.b16 %v3319, %v3314
    %v3540 = vpack.c.b16 %v3320, %v3315
    %v3541 = vpack.c.b16 %v3321, %v3316
    %v3542 = vpack.c.b16 %v3322, %v3317
    %v3543 = vpack.c.b16 %v3323, %v3318
    %v3544 = vpack.c.b16 %v3329, %v3324
    %v3545 = vpack.c.b16 %v3330, %v3325
    %v3546 = vpack.c.b16 %v3331, %v3326
    %v3547 = vpack.c.b16 %v3332, %v3327
    %v3548 = vpack.c.b16 %v3333, %v3328
    %v3549 = vpack.c.b16 %v3339, %v3334
    %v3550 = vpack.c.b16 %v3340, %v3335
    %v3551 = vpack.c.b16 %v3341, %v3336
    %v3552 = vpack.c.b16 %v3342, %v3337
    %v3553 = vpack.c.b16 %v3343, %v3338
    %v3554 = vpack.c.b16 %v3349, %v3344
    %v3555 = vpack.c.b16 %v3350, %v3345
    %v3556 = vpack.c.b16 %v3351, %v3346
    %v3557 = vpack.c.b16 %v3352, %v3347
    %v3558 = vpack.c.b16 %v3353, %v3348
    %v3559 = vpack.c.b16 %v3359, %v3354
    %v3560 = vpack.c.b16 %v3360, %v3355
    %v3561 = vpack.c.b16 %v3361, %v3356
    %v3562 = vpack.c.b16 %v3362, %v3357
    %v3563 = vpack.c.b16 %v3363, %v3358
    %3764 = vmatpush.bf16.msra.mxu0 %v3399
    %3765 = vmatpush.bf16.msra.mxu0 %v3394
    %3766 = vmatpush.bf16.msra.mxu0 %v3389
    %3767 = vmatpush.bf16.msra.mxu0 %v3384
    %3768 = vmatpush.bf16.msra.mxu0 %v3379
    %3769 = vmatpush.bf16.msra.mxu0 %v3374
    %3770 = vmatpush.bf16.msra.mxu0 %v3369
    %3771 = vmatpush.bf16.msra.mxu0 %v3364
    %3772 = vmatmul.bf16.gmra.mxu0 %v2464
    %v3773 = vpop.f32.mrf.mxu0
    %v3774 = vadd.f32 %v2714, %v3773
    %v3775 = vpop.f32.mrf.mxu0
    %v3776 = vadd.f32 %v2714, %v3775
    %3777 = vdwg.mxu0
    %3778 = vmatpush.bf16.msra.mxu0 %v3439
    %3779 = vmatpush.bf16.msra.mxu0 %v3434
    %3780 = vmatpush.bf16.msra.mxu0 %v3429
    %3781 = vmatpush.bf16.msra.mxu0 %v3424
    %3782 = vmatpush.bf16.msra.mxu0 %v3419
    %3783 = vmatpush.bf16.msra.mxu0 %v3414
    %3784 = vmatpush.bf16.msra.mxu0 %v3409
    %3785 = vmatpush.bf16.msra.mxu0 %v3404
    %3786 = vmatmul.bf16.gmra.mxu0 %v2465
    %v3787 = vpop.f32.mrf.mxu0
    %v3788 = vadd.f32 %v3774, %v3787
    %v3789 = vpop.f32.mrf.mxu0
    %v3790 = vadd.f32 %v3776, %v3789
    %3791 = vdwg.mxu0
    %3792 = vmatpush.bf16.msra.mxu0 %v3479
    %3793 = vmatpush.bf16.msra.mxu0 %v3474
    %3794 = vmatpush.bf16.msra.mxu0 %v3469
    %3795 = vmatpush.bf16.msra.mxu0 %v3464
    %3796 = vmatpush.bf16.msra.mxu0 %v3459
    %3797 = vmatpush.bf16.msra.mxu0 %v3454
    %3798 = vmatpush.bf16.msra.mxu0 %v3449
    %3799 = vmatpush.bf16.msra.mxu0 %v3444
    %3800 = vmatmul.bf16.gmra.mxu0 %v2466
    %v3801 = vpop.f32.mrf.mxu0
    %v3802 = vadd.f32 %v3788, %v3801
    %v3803 = vpop.f32.mrf.mxu0
    %v3804 = vadd.f32 %v3790, %v3803
    %3805 = vdwg.mxu0
    %3806 = vmatpush.bf16.msra.mxu0 %v3519
    %3807 = vmatpush.bf16.msra.mxu0 %v3514
    %3808 = vmatpush.bf16.msra.mxu0 %v3509
    %3809 = vmatpush.bf16.msra.mxu0 %v3504
    %3810 = vmatpush.bf16.msra.mxu0 %v3499
    %3811 = vmatpush.bf16.msra.mxu0 %v3494
    %3812 = vmatpush.bf16.msra.mxu0 %v3489
    %3813 = vmatpush.bf16.msra.mxu0 %v3484
    %3814 = vmatmul.bf16.gmra.mxu0 %v2467
    %v3815 = vpop.f32.mrf.mxu0
    %v3816 = vadd.f32 %v3802, %v3815
    %v3817 = vpop.f32.mrf.mxu0
    %v3818 = vadd.f32 %v3804, %v3817
    %3819 = vdwg.mxu0
    %3820 = vmatpush.bf16.msra.mxu0 %v3559
    %3821 = vmatpush.bf16.msra.mxu0 %v3554
    %3822 = vmatpush.bf16.msra.mxu0 %v3549
    %3823 = vmatpush.bf16.msra.mxu0 %v3544
    %3824 = vmatpush.bf16.msra.mxu0 %v3539
    %3825 = vmatpush.bf16.msra.mxu0 %v3534
    %3826 = vmatpush.bf16.msra.mxu0 %v3529
    %3827 = vmatpush.bf16.msra.mxu0 %v3524
    %3828 = vmatmul.bf16.gmra.mxu0 %v2468
    %v3829 = vpop.f32.mrf.mxu0
    %v3830 = vadd.f32 %v3816, %v3829
    %v3831 = vpop.f32.mrf.mxu0
    %v3832 = vadd.f32 %v3818, %v3831
    %3833 = vdwg.mxu0
    %3834 = vmatpush.bf16.msra.mxu0 %v3400
    %3835 = vmatpush.bf16.msra.mxu0 %v3395
    %3836 = vmatpush.bf16.msra.mxu0 %v3390
    %3837 = vmatpush.bf16.msra.mxu0 %v3385
    %3838 = vmatpush.bf16.msra.mxu0 %v3380
    %3839 = vmatpush.bf16.msra.mxu0 %v3375
    %3840 = vmatpush.bf16.msra.mxu0 %v3370
    %3841 = vmatpush.bf16.msra.mxu0 %v3365
    %3842 = vmatmul.bf16.gmra.mxu0 %v2464
    %v3843 = vpop.f32.mrf.mxu0
    %v3844 = vadd.f32 %v2715, %v3843
    %v3845 = vpop.f32.mrf.mxu0
    %v3846 = vadd.f32 %v2715, %v3845
    %3847 = vdwg.mxu0
    %3848 = vmatpush.bf16.msra.mxu0 %v3440
    %3849 = vmatpush.bf16.msra.mxu0 %v3435
    %3850 = vmatpush.bf16.msra.mxu0 %v3430
    %3851 = vmatpush.bf16.msra.mxu0 %v3425
    %3852 = vmatpush.bf16.msra.mxu0 %v3420
    %3853 = vmatpush.bf16.msra.mxu0 %v3415
    %3854 = vmatpush.bf16.msra.mxu0 %v3410
    %3855 = vmatpush.bf16.msra.mxu0 %v3405
    %3856 = vmatmul.bf16.gmra.mxu0 %v2465
    %v3857 = vpop.f32.mrf.mxu0
    %v3858 = vadd.f32 %v3844, %v3857
    %v3859 = vpop.f32.mrf.mxu0
    %v3860 = vadd.f32 %v3846, %v3859
    %3861 = vdwg.mxu0
    %3862 = vmatpush.bf16.msra.mxu0 %v3480
    %3863 = vmatpush.bf16.msra.mxu0 %v3475
    %3864 = vmatpush.bf16.msra.mxu0 %v3470
    %3865 = vmatpush.bf16.msra.mxu0 %v3465
    %3866 = vmatpush.bf16.msra.mxu0 %v3460
    %3867 = vmatpush.bf16.msra.mxu0 %v3455
    %3868 = vmatpush.bf16.msra.mxu0 %v3450
    %3869 = vmatpush.bf16.msra.mxu0 %v3445
    %3870 = vmatmul.bf16.gmra.mxu0 %v2466
    %v3871 = vpop.f32.mrf.mxu0
    %v3872 = vadd.f32 %v3858, %v3871
    %v3873 = vpop.f32.mrf.mxu0
    %v3874 = vadd.f32 %v3860, %v3873
    %3875 = vdwg.mxu0
    %3876 = vmatpush.bf16.msra.mxu0 %v3520
    %3877 = vmatpush.bf16.msra.mxu0 %v3515
    %3878 = vmatpush.bf16.msra.mxu0 %v3510
    %3879 = vmatpush.bf16.msra.mxu0 %v3505
    %3880 = vmatpush.bf16.msra.mxu0 %v3500
    %3881 = vmatpush.bf16.msra.mxu0 %v3495
    %3882 = vmatpush.bf16.msra.mxu0 %v3490
    %3883 = vmatpush.bf16.msra.mxu0 %v3485
    %3884 = vmatmul.bf16.gmra.mxu0 %v2467
    %v3885 = vpop.f32.mrf.mxu0
    %v3886 = vadd.f32 %v3872, %v3885
    %v3887 = vpop.f32.mrf.mxu0
    %v3888 = vadd.f32 %v3874, %v3887
    %3889 = vdwg.mxu0
    %3890 = vmatpush.bf16.msra.mxu0 %v3560
    %3891 = vmatpush.bf16.msra.mxu0 %v3555
    %3892 = vmatpush.bf16.msra.mxu0 %v3550
    %3893 = vmatpush.bf16.msra.mxu0 %v3545
    %3894 = vmatpush.bf16.msra.mxu0 %v3540
    %3895 = vmatpush.bf16.msra.mxu0 %v3535
    %3896 = vmatpush.bf16.msra.mxu0 %v3530
    %3897 = vmatpush.bf16.msra.mxu0 %v3525
    %3898 = vmatmul.bf16.gmra.mxu0 %v2468
    %v3899 = vpop.f32.mrf.mxu0
    %v3900 = vadd.f32 %v3886, %v3899
    %v3901 = vpop.f32.mrf.mxu0
    %v3902 = vadd.f32 %v3888, %v3901
    %3903 = vdwg.mxu0
    %3904 = vmatpush.bf16.msra.mxu0 %v3401
    %3905 = vmatpush.bf16.msra.mxu0 %v3396
    %3906 = vmatpush.bf16.msra.mxu0 %v3391
    %3907 = vmatpush.bf16.msra.mxu0 %v3386
    %3908 = vmatpush.bf16.msra.mxu0 %v3381
    %3909 = vmatpush.bf16.msra.mxu0 %v3376
    %3910 = vmatpush.bf16.msra.mxu0 %v3371
    %3911 = vmatpush.bf16.msra.mxu0 %v3366
    %3912 = vmatmul.bf16.gmra.mxu0 %v2464
    %v3913 = vpop.f32.mrf.mxu0
    %v3914 = vadd.f32 %v2716, %v3913
    %v3915 = vpop.f32.mrf.mxu0
    %v3916 = vadd.f32 %v2716, %v3915
    %3917 = vdwg.mxu0
    %3918 = vmatpush.bf16.msra.mxu0 %v3441
    %3919 = vmatpush.bf16.msra.mxu0 %v3436
    %3920 = vmatpush.bf16.msra.mxu0 %v3431
    %3921 = vmatpush.bf16.msra.mxu0 %v3426
    %3922 = vmatpush.bf16.msra.mxu0 %v3421
    %3923 = vmatpush.bf16.msra.mxu0 %v3416
    %3924 = vmatpush.bf16.msra.mxu0 %v3411
    %3925 = vmatpush.bf16.msra.mxu0 %v3406
    %3926 = vmatmul.bf16.gmra.mxu0 %v2465
    %v3927 = vpop.f32.mrf.mxu0
    %v3928 = vadd.f32 %v3914, %v3927
    %v3929 = vpop.f32.mrf.mxu0
    %v3930 = vadd.f32 %v3916, %v3929
    %3931 = vdwg.mxu0
    %3932 = vmatpush.bf16.msra.mxu0 %v3481
    %3933 = vmatpush.bf16.msra.mxu0 %v3476
    %3934 = vmatpush.bf16.msra.mxu0 %v3471
    %3935 = vmatpush.bf16.msra.mxu0 %v3466
    %3936 = vmatpush.bf16.msra.mxu0 %v3461
    %3937 = vmatpush.bf16.msra.mxu0 %v3456
    %3938 = vmatpush.bf16.msra.mxu0 %v3451
    %3939 = vmatpush.bf16.msra.mxu0 %v3446
    %3940 = vmatmul.bf16.gmra.mxu0 %v2466
    %v3941 = vpop.f32.mrf.mxu0
    %v3942 = vadd.f32 %v3928, %v3941
    %v3943 = vpop.f32.mrf.mxu0
    %v3944 = vadd.f32 %v3930, %v3943
    %3945 = vdwg.mxu0
    %3946 = vmatpush.bf16.msra.mxu0 %v3521
    %3947 = vmatpush.bf16.msra.mxu0 %v3516
    %3948 = vmatpush.bf16.msra.mxu0 %v3511
    %3949 = vmatpush.bf16.msra.mxu0 %v3506
    %3950 = vmatpush.bf16.msra.mxu0 %v3501
    %3951 = vmatpush.bf16.msra.mxu0 %v3496
    %3952 = vmatpush.bf16.msra.mxu0 %v3491
    %3953 = vmatpush.bf16.msra.mxu0 %v3486
    %3954 = vmatmul.bf16.gmra.mxu0 %v2467
    %v3955 = vpop.f32.mrf.mxu0
    %v3956 = vadd.f32 %v3942, %v3955
    %v3957 = vpop.f32.mrf.mxu0
    %v3958 = vadd.f32 %v3944, %v3957
    %3959 = vdwg.mxu0
    %3960 = vmatpush.bf16.msra.mxu0 %v3561
    %3961 = vmatpush.bf16.msra.mxu0 %v3556
    %3962 = vmatpush.bf16.msra.mxu0 %v3551
    %3963 = vmatpush.bf16.msra.mxu0 %v3546
    %3964 = vmatpush.bf16.msra.mxu0 %v3541
    %3965 = vmatpush.bf16.msra.mxu0 %v3536
    %3966 = vmatpush.bf16.msra.mxu0 %v3531
    %3967 = vmatpush.bf16.msra.mxu0 %v3526
    %3968 = vmatmul.bf16.gmra.mxu0 %v2468
    %v3969 = vpop.f32.mrf.mxu0
    %v3970 = vadd.f32 %v3956, %v3969
    %v3971 = vpop.f32.mrf.mxu0
    %v3972 = vadd.f32 %v3958, %v3971
    %3973 = vdwg.mxu0
    %3974 = vmatpush.bf16.msra.mxu0 %v3402
    %3975 = vmatpush.bf16.msra.mxu0 %v3397
    %3976 = vmatpush.bf16.msra.mxu0 %v3392
    %3977 = vmatpush.bf16.msra.mxu0 %v3387
    %3978 = vmatpush.bf16.msra.mxu0 %v3382
    %3979 = vmatpush.bf16.msra.mxu0 %v3377
    %3980 = vmatpush.bf16.msra.mxu0 %v3372
    %3981 = vmatpush.bf16.msra.mxu0 %v3367
    %3982 = vmatmul.bf16.gmra.mxu0 %v2464
    %v3983 = vpop.f32.mrf.mxu0
    %v3984 = vadd.f32 %v2717, %v3983
    %v3985 = vpop.f32.mrf.mxu0
    %v3986 = vadd.f32 %v2717, %v3985
    %3987 = vdwg.mxu0
    %3988 = vmatpush.bf16.msra.mxu0 %v3442
    %3989 = vmatpush.bf16.msra.mxu0 %v3437
    %3990 = vmatpush.bf16.msra.mxu0 %v3432
    %3991 = vmatpush.bf16.msra.mxu0 %v3427
    %3992 = vmatpush.bf16.msra.mxu0 %v3422
    %3993 = vmatpush.bf16.msra.mxu0 %v3417
    %3994 = vmatpush.bf16.msra.mxu0 %v3412
    %3995 = vmatpush.bf16.msra.mxu0 %v3407
    %3996 = vmatmul.bf16.gmra.mxu0 %v2465
    %v3997 = vpop.f32.mrf.mxu0
    %v3998 = vadd.f32 %v3984, %v3997
    %v3999 = vpop.f32.mrf.mxu0
    %v4000 = vadd.f32 %v3986, %v3999
    %4001 = vdwg.mxu0
    %4002 = vmatpush.bf16.msra.mxu0 %v3482
    %4003 = vmatpush.bf16.msra.mxu0 %v3477
    %4004 = vmatpush.bf16.msra.mxu0 %v3472
    %4005 = vmatpush.bf16.msra.mxu0 %v3467
    %4006 = vmatpush.bf16.msra.mxu0 %v3462
    %4007 = vmatpush.bf16.msra.mxu0 %v3457
    %4008 = vmatpush.bf16.msra.mxu0 %v3452
    %4009 = vmatpush.bf16.msra.mxu0 %v3447
    %4010 = vmatmul.bf16.gmra.mxu0 %v2466
    %v4011 = vpop.f32.mrf.mxu0
    %v4012 = vadd.f32 %v3998, %v4011
    %v4013 = vpop.f32.mrf.mxu0
    %v4014 = vadd.f32 %v4000, %v4013
    %4015 = vdwg.mxu0
    %4016 = vmatpush.bf16.msra.mxu0 %v3522
    %4017 = vmatpush.bf16.msra.mxu0 %v3517
    %4018 = vmatpush.bf16.msra.mxu0 %v3512
    %4019 = vmatpush.bf16.msra.mxu0 %v3507
    %4020 = vmatpush.bf16.msra.mxu0 %v3502
    %4021 = vmatpush.bf16.msra.mxu0 %v3497
    %4022 = vmatpush.bf16.msra.mxu0 %v3492
    %4023 = vmatpush.bf16.msra.mxu0 %v3487
    %4024 = vmatmul.bf16.gmra.mxu0 %v2467
    %v4025 = vpop.f32.mrf.mxu0
    %v4026 = vadd.f32 %v4012, %v4025
    %v4027 = vpop.f32.mrf.mxu0
    %v4028 = vadd.f32 %v4014, %v4027
    %4029 = vdwg.mxu0
    %4030 = vmatpush.bf16.msra.mxu0 %v3562
    %4031 = vmatpush.bf16.msra.mxu0 %v3557
    %4032 = vmatpush.bf16.msra.mxu0 %v3552
    %4033 = vmatpush.bf16.msra.mxu0 %v3547
    %4034 = vmatpush.bf16.msra.mxu0 %v3542
    %4035 = vmatpush.bf16.msra.mxu0 %v3537
    %4036 = vmatpush.bf16.msra.mxu0 %v3532
    %4037 = vmatpush.bf16.msra.mxu0 %v3527
    %4038 = vmatmul.bf16.gmra.mxu0 %v2468
    %v4039 = vpop.f32.mrf.mxu0
    %v4040 = vadd.f32 %v4026, %v4039
    %v4041 = vpop.f32.mrf.mxu0
    %v4042 = vadd.f32 %v4028, %v4041
    %4043 = vdwg.mxu0
    %4044 = vmatpush.bf16.msra.mxu0 %v3403
    %4045 = vmatpush.bf16.msra.mxu0 %v3398
    %4046 = vmatpush.bf16.msra.mxu0 %v3393
    %4047 = vmatpush.bf16.msra.mxu0 %v3388
    %4048 = vmatpush.bf16.msra.mxu0 %v3383
    %4049 = vmatpush.bf16.msra.mxu0 %v3378
    %4050 = vmatpush.bf16.msra.mxu0 %v3373
    %4051 = vmatpush.bf16.msra.mxu0 %v3368
    %4052 = vmatmul.bf16.gmra.mxu0 %v2464
    %v4053 = vpop.f32.mrf.mxu0
    %v4054 = vadd.f32 %v2718, %v4053
    %v4055 = vpop.f32.mrf.mxu0
    %v4056 = vadd.f32 %v2718, %v4055
    %4057 = vdwg.mxu0
    %4058 = vmatpush.bf16.msra.mxu0 %v3443
    %4059 = vmatpush.bf16.msra.mxu0 %v3438
    %4060 = vmatpush.bf16.msra.mxu0 %v3433
    %4061 = vmatpush.bf16.msra.mxu0 %v3428
    %4062 = vmatpush.bf16.msra.mxu0 %v3423
    %4063 = vmatpush.bf16.msra.mxu0 %v3418
    %4064 = vmatpush.bf16.msra.mxu0 %v3413
    %4065 = vmatpush.bf16.msra.mxu0 %v3408
    %4066 = vmatmul.bf16.gmra.mxu0 %v2465
    %v4067 = vpop.f32.mrf.mxu0
    %v4068 = vadd.f32 %v4054, %v4067
    %v4069 = vpop.f32.mrf.mxu0
    %v4070 = vadd.f32 %v4056, %v4069
    %4071 = vdwg.mxu0
    %4072 = vmatpush.bf16.msra.mxu0 %v3483
    %4073 = vmatpush.bf16.msra.mxu0 %v3478
    %4074 = vmatpush.bf16.msra.mxu0 %v3473
    %4075 = vmatpush.bf16.msra.mxu0 %v3468
    %4076 = vmatpush.bf16.msra.mxu0 %v3463
    %4077 = vmatpush.bf16.msra.mxu0 %v3458
    %4078 = vmatpush.bf16.msra.mxu0 %v3453
    %4079 = vmatpush.bf16.msra.mxu0 %v3448
    %4080 = vmatmul.bf16.gmra.mxu0 %v2466
    %v4081 = vpop.f32.mrf.mxu0
    %v4082 = vadd.f32 %v4068, %v4081
    %v4083 = vpop.f32.mrf.mxu0
    %v4084 = vadd.f32 %v4070, %v4083
    %4085 = vdwg.mxu0
    %4086 = vmatpush.bf16.msra.mxu0 %v3523
    %4087 = vmatpush.bf16.msra.mxu0 %v3518
    %4088 = vmatpush.bf16.msra.mxu0 %v3513
    %4089 = vmatpush.bf16.msra.mxu0 %v3508
    %4090 = vmatpush.bf16.msra.mxu0 %v3503
    %4091 = vmatpush.bf16.msra.mxu0 %v3498
    %4092 = vmatpush.bf16.msra.mxu0 %v3493
    %4093 = vmatpush.bf16.msra.mxu0 %v3488
    %4094 = vmatmul.bf16.gmra.mxu0 %v2467
    %v4095 = vpop.f32.mrf.mxu0
    %v4096 = vadd.f32 %v4082, %v4095
    %v4097 = vpop.f32.mrf.mxu0
    %v4098 = vadd.f32 %v4084, %v4097
    %4099 = vdwg.mxu0
    %4100 = vmatpush.bf16.msra.mxu0 %v3563
    %4101 = vmatpush.bf16.msra.mxu0 %v3558
    %4102 = vmatpush.bf16.msra.mxu0 %v3553
    %4103 = vmatpush.bf16.msra.mxu0 %v3548
    %4104 = vmatpush.bf16.msra.mxu0 %v3543
    %4105 = vmatpush.bf16.msra.mxu0 %v3538
    %4106 = vmatpush.bf16.msra.mxu0 %v3533
    %4107 = vmatpush.bf16.msra.mxu0 %v3528
    %4108 = vmatmul.bf16.gmra.mxu0 %v2468
    %v4109 = vpop.f32.mrf.mxu0
    %v4110 = vadd.f32 %v4096, %v4109
    %v4111 = vpop.f32.mrf.mxu0
    %v4112 = vadd.f32 %v4098, %v4111
    %4113 = vdwg.mxu0
    %v4114 = vmax.f32 %v3830, 0.0
    %v4115 = vmax.f32 %v3900, 0.0
    %v4116 = vmax.f32 %v3970, 0.0
    %v4117 = vmax.f32 %v4040, 0.0
    %v4118 = vmax.f32 %v4110, 0.0
    %v4119 = vmax.f32 %v3832, 0.0
    %v4120 = vmax.f32 %v3902, 0.0
    %v4121 = vmax.f32 %v3972, 0.0
    %v4122 = vmax.f32 %v4042, 0.0
    %v4123 = vmax.f32 %v4112, 0.0
    %v4124 = vpack.c.bf16 %v4119, %v4114
    %v4125 = vpack.c.bf16 %v4120, %v4115
    %v4126 = vpack.c.bf16 %v4121, %v4116
    %v4127 = vpack.c.bf16 %v4122, %v4117
    %v4128 = vpack.c.bf16 %v4123, %v4118
    %v4129 = vld [vmem:[#allocation9] sm:$0xff]
    %v4130 = vld [vmem:[#allocation9 + $0x8] sm:$0xff]
    %v4131 = vld [vmem:[#allocation9 + $0x10] sm:$0xff]
    %v4132 = vld [vmem:[#allocation9 + $0x18] sm:$0xff]
    %v4133 = vld [vmem:[#allocation9 + $0x20] sm:$0xff]
    %v4134 = vld [vmem:[#allocation9 + $0x28] sm:$0xff]
    %v4135 = vld [vmem:[#allocation9 + $0x30] sm:$0xff]
    %v4136 = vld [vmem:[#allocation9 + $0x38] sm:$0xff]
    %v4137 = vld [vmem:[#allocation9 + $0x40] sm:$0xff]
    %v4138 = vld [vmem:[#allocation9 + $0x48] sm:$0xff]
    %v4139 = vld [vmem:[#allocation9 + $0x50] sm:$0xff]
    %v4140 = vld [vmem:[#allocation9 + $0x58] sm:$0xff]
    %v4141 = vld [vmem:[#allocation9 + $0x60] sm:$0xff]
    %v4142 = vld [vmem:[#allocation9 + $0x68] sm:$0xff]
    %v4143 = vld [vmem:[#allocation9 + $0x70] sm:$0xff]
    %v4144 = vld [vmem:[#allocation9 + $0x78] sm:$0xff]
    %v4145 = vld [vmem:[#allocation9 + $0x80] sm:$0xff]
    %v4146 = vld [vmem:[#allocation9 + $0x88] sm:$0xff]
    %v4147 = vld [vmem:[#allocation9 + $0x90] sm:$0xff]
    %v4148 = vld [vmem:[#allocation9 + $0x98] sm:$0xff]
    %v4149 = vld [vmem:[#allocation9 + $0xa0] sm:$0xff]
    %v4150 = vld [vmem:[#allocation9 + $0xa8] sm:$0xff]
    %v4151 = vld [vmem:[#allocation9 + $0xb0] sm:$0xff]
    %v4152 = vld [vmem:[#allocation9 + $0xb8] sm:$0xff]
    %v4153 = vld [vmem:[#allocation9 + $0xc0] sm:$0xff]
    %v4154 = vld [vmem:[#allocation9 + $0xc8] sm:$0xff]
    %v4155 = vld [vmem:[#allocation9 + $0xd0] sm:$0xff]
    %v4156 = vld [vmem:[#allocation9 + $0xd8] sm:$0xff]
    %v4157 = vld [vmem:[#allocation9 + $0xe0] sm:$0xff]
    %v4158 = vld [vmem:[#allocation9 + $0xe8] sm:$0xff]
    %v4159 = vld [vmem:[#allocation9 + $0xf0] sm:$0xff]
    %v4160 = vld [vmem:[#allocation9 + $0xf8] sm:$0xff]
    %v4161 = vld [vmem:[#allocation9 + $0x100] sm:$0xff]
    %v4162 = vld [vmem:[#allocation9 + $0x108] sm:$0xff]
    %v4163 = vld [vmem:[#allocation9 + $0x110] sm:$0xff]
    %v4164 = vld [vmem:[#allocation9 + $0x118] sm:$0xff]
    %v4165 = vld [vmem:[#allocation9 + $0x120] sm:$0xff]
    %v4166 = vld [vmem:[#allocation9 + $0x128] sm:$0xff]
    %v4167 = vld [vmem:[#allocation9 + $0x130] sm:$0xff]
    %v4168 = vld [vmem:[#allocation9 + $0x138] sm:$0xff]
    %v4169 = vld [vmem:[#allocation9 + $0x140] sm:$0xff]
    %v4170 = vld [vmem:[#allocation9 + $0x148] sm:$0xff]
    %v4171 = vld [vmem:[#allocation9 + $0x150] sm:$0xff]
    %v4172 = vld [vmem:[#allocation9 + $0x158] sm:$0xff]
    %v4173 = vld [vmem:[#allocation9 + $0x160] sm:$0xff]
    %v4174 = vld [vmem:[#allocation9 + $0x168] sm:$0xff]
    %v4175 = vld [vmem:[#allocation9 + $0x170] sm:$0xff]
    %v4176 = vld [vmem:[#allocation9 + $0x178] sm:$0xff]
    %v4177 = vld [vmem:[#allocation9 + $0x180] sm:$0xff]
    %v4178 = vld [vmem:[#allocation9 + $0x188] sm:$0xff]
    %v4179 = vld [vmem:[#allocation9 + $0x190] sm:$0xff]
    %v4180 = vld [vmem:[#allocation9 + $0x198] sm:$0xff]
    %v4181 = vld [vmem:[#allocation9 + $0x1a0] sm:$0xff]
    %v4182 = vld [vmem:[#allocation9 + $0x1a8] sm:$0xff]
    %v4183 = vld [vmem:[#allocation9 + $0x1b0] sm:$0xff]
    %v4184 = vld [vmem:[#allocation9 + $0x1b8] sm:$0xff]
    %v4185 = vld [vmem:[#allocation9 + $0x1c0] sm:$0xff]
    %v4186 = vld [vmem:[#allocation9 + $0x1c8] sm:$0xff]
    %v4187 = vld [vmem:[#allocation9 + $0x1d0] sm:$0xff]
    %v4188 = vld [vmem:[#allocation9 + $0x1d8] sm:$0xff]
    %v4189 = vld [vmem:[#allocation9 + $0x1e0] sm:$0xff]
    %v4190 = vld [vmem:[#allocation9 + $0x1e8] sm:$0xff]
    %v4191 = vld [vmem:[#allocation9 + $0x1f0] sm:$0xff]
    %v4192 = vld [vmem:[#allocation9 + $0x1f8] sm:$0xff]
    %v4193 = vld [vmem:[#allocation9 + $0x200] sm:$0xff]
    %v4194 = vld [vmem:[#allocation9 + $0x208] sm:$0xff]
    %v4195 = vld [vmem:[#allocation9 + $0x210] sm:$0xff]
    %v4196 = vld [vmem:[#allocation9 + $0x218] sm:$0xff]
    %v4197 = vld [vmem:[#allocation9 + $0x220] sm:$0xff]
    %v4198 = vld [vmem:[#allocation9 + $0x228] sm:$0xff]
    %v4199 = vld [vmem:[#allocation9 + $0x230] sm:$0xff]
    %v4200 = vld [vmem:[#allocation9 + $0x238] sm:$0xff]
    %v4201 = vld [vmem:[#allocation9 + $0x240] sm:$0xff]
    %v4202 = vld [vmem:[#allocation9 + $0x248] sm:$0xff]
    %v4203 = vld [vmem:[#allocation9 + $0x250] sm:$0xff]
    %v4204 = vld [vmem:[#allocation9 + $0x258] sm:$0xff]
    %v4205 = vld [vmem:[#allocation9 + $0x260] sm:$0xff]
    %v4206 = vld [vmem:[#allocation9 + $0x268] sm:$0xff]
    %v4207 = vld [vmem:[#allocation9 + $0x270] sm:$0xff]
    %v4208 = vld [vmem:[#allocation9 + $0x278] sm:$0xff]
    %v4209 = vld [vmem:[#allocation9 + $0x280] sm:$0xff]
    %v4210 = vld [vmem:[#allocation9 + $0x288] sm:$0xff]
    %v4211 = vld [vmem:[#allocation9 + $0x290] sm:$0xff]
    %v4212 = vld [vmem:[#allocation9 + $0x298] sm:$0xff]
    %v4213 = vld [vmem:[#allocation9 + $0x2a0] sm:$0xff]
    %v4214 = vld [vmem:[#allocation9 + $0x2a8] sm:$0xff]
    %v4215 = vld [vmem:[#allocation9 + $0x2b0] sm:$0xff]
    %v4216 = vld [vmem:[#allocation9 + $0x2b8] sm:$0xff]
    %v4217 = vld [vmem:[#allocation9 + $0x2c0] sm:$0xff]
    %v4218 = vld [vmem:[#allocation9 + $0x2c8] sm:$0xff]
    %v4219 = vld [vmem:[#allocation9 + $0x2d0] sm:$0xff]
    %v4220 = vld [vmem:[#allocation9 + $0x2d8] sm:$0xff]
    %v4221 = vld [vmem:[#allocation9 + $0x2e0] sm:$0xff]
    %v4222 = vld [vmem:[#allocation9 + $0x2e8] sm:$0xff]
    %v4223 = vld [vmem:[#allocation9 + $0x2f0] sm:$0xff]
    %v4224 = vld [vmem:[#allocation9 + $0x2f8] sm:$0xff]
    %v4225 = vld [vmem:[#allocation9 + $0x300] sm:$0xff]
    %v4226 = vld [vmem:[#allocation9 + $0x308] sm:$0xff]
    %v4227 = vld [vmem:[#allocation9 + $0x310] sm:$0xff]
    %v4228 = vld [vmem:[#allocation9 + $0x318] sm:$0xff]
    %v4229 = vld [vmem:[#allocation9 + $0x320] sm:$0xff]
    %v4230 = vld [vmem:[#allocation9 + $0x328] sm:$0xff]
    %v4231 = vld [vmem:[#allocation9 + $0x330] sm:$0xff]
    %v4232 = vld [vmem:[#allocation9 + $0x338] sm:$0xff]
    %v4233 = vld [vmem:[#allocation9 + $0x340] sm:$0xff]
    %v4234 = vld [vmem:[#allocation9 + $0x348] sm:$0xff]
    %v4235 = vld [vmem:[#allocation9 + $0x350] sm:$0xff]
    %v4236 = vld [vmem:[#allocation9 + $0x358] sm:$0xff]
    %v4237 = vld [vmem:[#allocation9 + $0x360] sm:$0xff]
    %v4238 = vld [vmem:[#allocation9 + $0x368] sm:$0xff]
    %v4239 = vld [vmem:[#allocation9 + $0x370] sm:$0xff]
    %v4240 = vld [vmem:[#allocation9 + $0x378] sm:$0xff]
    %v4241 = vld [vmem:[#allocation9 + $0x380] sm:$0xff]
    %v4242 = vld [vmem:[#allocation9 + $0x388] sm:$0xff]
    %v4243 = vld [vmem:[#allocation9 + $0x390] sm:$0xff]
    %v4244 = vld [vmem:[#allocation9 + $0x398] sm:$0xff]
    %v4245 = vld [vmem:[#allocation9 + $0x3a0] sm:$0xff]
    %v4246 = vld [vmem:[#allocation9 + $0x3a8] sm:$0xff]
    %v4247 = vld [vmem:[#allocation9 + $0x3b0] sm:$0xff]
    %v4248 = vld [vmem:[#allocation9 + $0x3b8] sm:$0xff]
    %v4249 = vld [vmem:[#allocation9 + $0x3c0] sm:$0xff]
    %v4250 = vld [vmem:[#allocation9 + $0x3c8] sm:$0xff]
    %v4251 = vld [vmem:[#allocation9 + $0x3d0] sm:$0xff]
    %v4252 = vld [vmem:[#allocation9 + $0x3d8] sm:$0xff]
    %v4253 = vld [vmem:[#allocation9 + $0x3e0] sm:$0xff]
    %v4254 = vld [vmem:[#allocation9 + $0x3e8] sm:$0xff]
    %v4255 = vld [vmem:[#allocation9 + $0x3f0] sm:$0xff]
    %v4256 = vld [vmem:[#allocation9 + $0x3f8] sm:$0xff]
    %v4257 = vld [vmem:[#allocation9 + $0x400] sm:$0xff]
    %v4258 = vld [vmem:[#allocation9 + $0x408] sm:$0xff]
    %v4259 = vld [vmem:[#allocation9 + $0x410] sm:$0xff]
    %v4260 = vld [vmem:[#allocation9 + $0x418] sm:$0xff]
    %v4261 = vld [vmem:[#allocation9 + $0x420] sm:$0xff]
    %v4262 = vld [vmem:[#allocation9 + $0x428] sm:$0xff]
    %v4263 = vld [vmem:[#allocation9 + $0x430] sm:$0xff]
    %v4264 = vld [vmem:[#allocation9 + $0x438] sm:$0xff]
    %v4265 = vld [vmem:[#allocation9 + $0x440] sm:$0xff]
    %v4266 = vld [vmem:[#allocation9 + $0x448] sm:$0xff]
    %v4267 = vld [vmem:[#allocation9 + $0x450] sm:$0xff]
    %v4268 = vld [vmem:[#allocation9 + $0x458] sm:$0xff]
    %v4269 = vld [vmem:[#allocation9 + $0x460] sm:$0xff]
    %v4270 = vld [vmem:[#allocation9 + $0x468] sm:$0xff]
    %v4271 = vld [vmem:[#allocation9 + $0x470] sm:$0xff]
    %v4272 = vld [vmem:[#allocation9 + $0x478] sm:$0xff]
    %v4273 = vld [vmem:[#allocation9 + $0x480] sm:$0xff]
    %v4274 = vld [vmem:[#allocation9 + $0x488] sm:$0xff]
    %v4275 = vld [vmem:[#allocation9 + $0x490] sm:$0xff]
    %v4276 = vld [vmem:[#allocation9 + $0x498] sm:$0xff]
    %v4277 = vld [vmem:[#allocation9 + $0x4a0] sm:$0xff]
    %v4278 = vld [vmem:[#allocation9 + $0x4a8] sm:$0xff]
    %v4279 = vld [vmem:[#allocation9 + $0x4b0] sm:$0xff]
    %v4280 = vld [vmem:[#allocation9 + $0x4b8] sm:$0xff]
    %v4281 = vld [vmem:[#allocation9 + $0x4c0] sm:$0xff]
    %v4282 = vld [vmem:[#allocation9 + $0x4c8] sm:$0xff]
    %v4283 = vld [vmem:[#allocation9 + $0x4d0] sm:$0xff]
    %v4284 = vld [vmem:[#allocation9 + $0x4d8] sm:$0xff]
    %v4285 = vld [vmem:[#allocation9 + $0x4e0] sm:$0xff]
    %v4286 = vld [vmem:[#allocation9 + $0x4e8] sm:$0xff]
    %v4287 = vld [vmem:[#allocation9 + $0x4f0] sm:$0xff]
    %v4288 = vld [vmem:[#allocation9 + $0x4f8] sm:$0xff]
    %s4289 = scalar_lea.vmem %s8, 4
    %v4290 = vld [vmem:[%s4289] ss:$8 sm:$0xf]
    %v4292 = vperm.slane %v4290, 0
    %v4293 = vperm.slane %v4290, 1
    %v4294 = vperm.slane %v4290, 2
    %v4295 = vperm.slane %v4290, 3
    %v4460 = vunpack.c.l.b16 %v4129
    %v4461 = vunpack.c.h.b16 %v4129
    %v4462 = vunpack.c.l.b16 %v4130
    %v4463 = vunpack.c.h.b16 %v4130
    %v4464 = vunpack.c.l.b16 %v4131
    %v4465 = vunpack.c.h.b16 %v4131
    %v4466 = vunpack.c.l.b16 %v4132
    %v4467 = vunpack.c.h.b16 %v4132
    %v4468 = vunpack.c.l.b16 %v4133
    %v4469 = vunpack.c.h.b16 %v4133
    %v4470 = vunpack.c.l.b16 %v4134
    %v4471 = vunpack.c.h.b16 %v4134
    %v4472 = vunpack.c.l.b16 %v4135
    %v4473 = vunpack.c.h.b16 %v4135
    %v4474 = vunpack.c.l.b16 %v4136
    %v4475 = vunpack.c.h.b16 %v4136
    %v4476 = vunpack.c.l.b16 %v4137
    %v4477 = vunpack.c.h.b16 %v4137
    %v4478 = vunpack.c.l.b16 %v4138
    %v4479 = vunpack.c.h.b16 %v4138
    %v4480 = vunpack.c.l.b16 %v4139
    %v4481 = vunpack.c.h.b16 %v4139
    %v4482 = vunpack.c.l.b16 %v4140
    %v4483 = vunpack.c.h.b16 %v4140
    %v4484 = vunpack.c.l.b16 %v4141
    %v4485 = vunpack.c.h.b16 %v4141
    %v4486 = vunpack.c.l.b16 %v4142
    %v4487 = vunpack.c.h.b16 %v4142
    %v4488 = vunpack.c.l.b16 %v4143
    %v4489 = vunpack.c.h.b16 %v4143
    %v4490 = vunpack.c.l.b16 %v4144
    %v4491 = vunpack.c.h.b16 %v4144
    %v4492 = vunpack.c.l.b16 %v4145
    %v4493 = vunpack.c.h.b16 %v4145
    %v4494 = vunpack.c.l.b16 %v4146
    %v4495 = vunpack.c.h.b16 %v4146
    %v4496 = vunpack.c.l.b16 %v4147
    %v4497 = vunpack.c.h.b16 %v4147
    %v4498 = vunpack.c.l.b16 %v4148
    %v4499 = vunpack.c.h.b16 %v4148
    %v4500 = vunpack.c.l.b16 %v4149
    %v4501 = vunpack.c.h.b16 %v4149
    %v4502 = vunpack.c.l.b16 %v4150
    %v4503 = vunpack.c.h.b16 %v4150
    %v4504 = vunpack.c.l.b16 %v4151
    %v4505 = vunpack.c.h.b16 %v4151
    %v4506 = vunpack.c.l.b16 %v4152
    %v4507 = vunpack.c.h.b16 %v4152
    %v4508 = vunpack.c.l.b16 %v4153
    %v4509 = vunpack.c.h.b16 %v4153
    %v4510 = vunpack.c.l.b16 %v4154
    %v4511 = vunpack.c.h.b16 %v4154
    %v4512 = vunpack.c.l.b16 %v4155
    %v4513 = vunpack.c.h.b16 %v4155
    %v4514 = vunpack.c.l.b16 %v4156
    %v4515 = vunpack.c.h.b16 %v4156
    %v4516 = vunpack.c.l.b16 %v4157
    %v4517 = vunpack.c.h.b16 %v4157
    %v4518 = vunpack.c.l.b16 %v4158
    %v4519 = vunpack.c.h.b16 %v4158
    %v4520 = vunpack.c.l.b16 %v4159
    %v4521 = vunpack.c.h.b16 %v4159
    %v4522 = vunpack.c.l.b16 %v4160
    %v4523 = vunpack.c.h.b16 %v4160
    %v4524 = vunpack.c.l.b16 %v4161
    %v4525 = vunpack.c.h.b16 %v4161
    %v4526 = vunpack.c.l.b16 %v4162
    %v4527 = vunpack.c.h.b16 %v4162
    %v4528 = vunpack.c.l.b16 %v4163
    %v4529 = vunpack.c.h.b16 %v4163
    %v4530 = vunpack.c.l.b16 %v4164
    %v4531 = vunpack.c.h.b16 %v4164
    %v4532 = vunpack.c.l.b16 %v4165
    %v4533 = vunpack.c.h.b16 %v4165
    %v4534 = vunpack.c.l.b16 %v4166
    %v4535 = vunpack.c.h.b16 %v4166
    %v4536 = vunpack.c.l.b16 %v4167
    %v4537 = vunpack.c.h.b16 %v4167
    %v4538 = vunpack.c.l.b16 %v4168
    %v4539 = vunpack.c.h.b16 %v4168
    %v4540 = vunpack.c.l.b16 %v4169
    %v4541 = vunpack.c.h.b16 %v4169
    %v4542 = vunpack.c.l.b16 %v4170
    %v4543 = vunpack.c.h.b16 %v4170
    %v4544 = vunpack.c.l.b16 %v4171
    %v4545 = vunpack.c.h.b16 %v4171
    %v4546 = vunpack.c.l.b16 %v4172
    %v4547 = vunpack.c.h.b16 %v4172
    %v4548 = vunpack.c.l.b16 %v4173
    %v4549 = vunpack.c.h.b16 %v4173
    %v4550 = vunpack.c.l.b16 %v4174
    %v4551 = vunpack.c.h.b16 %v4174
    %v4552 = vunpack.c.l.b16 %v4175
    %v4553 = vunpack.c.h.b16 %v4175
    %v4554 = vunpack.c.l.b16 %v4176
    %v4555 = vunpack.c.h.b16 %v4176
    %v4556 = vunpack.c.l.b16 %v4177
    %v4557 = vunpack.c.h.b16 %v4177
    %v4558 = vunpack.c.l.b16 %v4178
    %v4559 = vunpack.c.h.b16 %v4178
    %v4560 = vunpack.c.l.b16 %v4179
    %v4561 = vunpack.c.h.b16 %v4179
    %v4562 = vunpack.c.l.b16 %v4180
    %v4563 = vunpack.c.h.b16 %v4180
    %v4564 = vunpack.c.l.b16 %v4181
    %v4565 = vunpack.c.h.b16 %v4181
    %v4566 = vunpack.c.l.b16 %v4182
    %v4567 = vunpack.c.h.b16 %v4182
    %v4568 = vunpack.c.l.b16 %v4183
    %v4569 = vunpack.c.h.b16 %v4183
    %v4570 = vunpack.c.l.b16 %v4184
    %v4571 = vunpack.c.h.b16 %v4184
    %v4572 = vunpack.c.l.b16 %v4185
    %v4573 = vunpack.c.h.b16 %v4185
    %v4574 = vunpack.c.l.b16 %v4186
    %v4575 = vunpack.c.h.b16 %v4186
    %v4576 = vunpack.c.l.b16 %v4187
    %v4577 = vunpack.c.h.b16 %v4187
    %v4578 = vunpack.c.l.b16 %v4188
    %v4579 = vunpack.c.h.b16 %v4188
    %v4580 = vunpack.c.l.b16 %v4189
    %v4581 = vunpack.c.h.b16 %v4189
    %v4582 = vunpack.c.l.b16 %v4190
    %v4583 = vunpack.c.h.b16 %v4190
    %v4584 = vunpack.c.l.b16 %v4191
    %v4585 = vunpack.c.h.b16 %v4191
    %v4586 = vunpack.c.l.b16 %v4192
    %v4587 = vunpack.c.h.b16 %v4192
    %v4588 = vunpack.c.l.b16 %v4193
    %v4589 = vunpack.c.h.b16 %v4193
    %v4590 = vunpack.c.l.b16 %v4194
    %v4591 = vunpack.c.h.b16 %v4194
    %v4592 = vunpack.c.l.b16 %v4195
    %v4593 = vunpack.c.h.b16 %v4195
    %v4594 = vunpack.c.l.b16 %v4196
    %v4595 = vunpack.c.h.b16 %v4196
    %v4596 = vunpack.c.l.b16 %v4197
    %v4597 = vunpack.c.h.b16 %v4197
    %v4598 = vunpack.c.l.b16 %v4198
    %v4599 = vunpack.c.h.b16 %v4198
    %v4600 = vunpack.c.l.b16 %v4199
    %v4601 = vunpack.c.h.b16 %v4199
    %v4602 = vunpack.c.l.b16 %v4200
    %v4603 = vunpack.c.h.b16 %v4200
    %v4604 = vunpack.c.l.b16 %v4201
    %v4605 = vunpack.c.h.b16 %v4201
    %v4606 = vunpack.c.l.b16 %v4202
    %v4607 = vunpack.c.h.b16 %v4202
    %v4608 = vunpack.c.l.b16 %v4203
    %v4609 = vunpack.c.h.b16 %v4203
    %v4610 = vunpack.c.l.b16 %v4204
    %v4611 = vunpack.c.h.b16 %v4204
    %v4612 = vunpack.c.l.b16 %v4205
    %v4613 = vunpack.c.h.b16 %v4205
    %v4614 = vunpack.c.l.b16 %v4206
    %v4615 = vunpack.c.h.b16 %v4206
    %v4616 = vunpack.c.l.b16 %v4207
    %v4617 = vunpack.c.h.b16 %v4207
    %v4618 = vunpack.c.l.b16 %v4208
    %v4619 = vunpack.c.h.b16 %v4208
    %v4620 = vunpack.c.l.b16 %v4209
    %v4621 = vunpack.c.h.b16 %v4209
    %v4622 = vunpack.c.l.b16 %v4210
    %v4623 = vunpack.c.h.b16 %v4210
    %v4624 = vunpack.c.l.b16 %v4211
    %v4625 = vunpack.c.h.b16 %v4211
    %v4626 = vunpack.c.l.b16 %v4212
    %v4627 = vunpack.c.h.b16 %v4212
    %v4628 = vunpack.c.l.b16 %v4213
    %v4629 = vunpack.c.h.b16 %v4213
    %v4630 = vunpack.c.l.b16 %v4214
    %v4631 = vunpack.c.h.b16 %v4214
    %v4632 = vunpack.c.l.b16 %v4215
    %v4633 = vunpack.c.h.b16 %v4215
    %v4634 = vunpack.c.l.b16 %v4216
    %v4635 = vunpack.c.h.b16 %v4216
    %v4636 = vunpack.c.l.b16 %v4217
    %v4637 = vunpack.c.h.b16 %v4217
    %v4638 = vunpack.c.l.b16 %v4218
    %v4639 = vunpack.c.h.b16 %v4218
    %v4640 = vunpack.c.l.b16 %v4219
    %v4641 = vunpack.c.h.b16 %v4219
    %v4642 = vunpack.c.l.b16 %v4220
    %v4643 = vunpack.c.h.b16 %v4220
    %v4644 = vunpack.c.l.b16 %v4221
    %v4645 = vunpack.c.h.b16 %v4221
    %v4646 = vunpack.c.l.b16 %v4222
    %v4647 = vunpack.c.h.b16 %v4222
    %v4648 = vunpack.c.l.b16 %v4223
    %v4649 = vunpack.c.h.b16 %v4223
    %v4650 = vunpack.c.l.b16 %v4224
    %v4651 = vunpack.c.h.b16 %v4224
    %v4652 = vunpack.c.l.b16 %v4225
    %v4653 = vunpack.c.h.b16 %v4225
    %v4654 = vunpack.c.l.b16 %v4226
    %v4655 = vunpack.c.h.b16 %v4226
    %v4656 = vunpack.c.l.b16 %v4227
    %v4657 = vunpack.c.h.b16 %v4227
    %v4658 = vunpack.c.l.b16 %v4228
    %v4659 = vunpack.c.h.b16 %v4228
    %v4660 = vunpack.c.l.b16 %v4229
    %v4661 = vunpack.c.h.b16 %v4229
    %v4662 = vunpack.c.l.b16 %v4230
    %v4663 = vunpack.c.h.b16 %v4230
    %v4664 = vunpack.c.l.b16 %v4231
    %v4665 = vunpack.c.h.b16 %v4231
    %v4666 = vunpack.c.l.b16 %v4232
    %v4667 = vunpack.c.h.b16 %v4232
    %v4668 = vunpack.c.l.b16 %v4233
    %v4669 = vunpack.c.h.b16 %v4233
    %v4670 = vunpack.c.l.b16 %v4234
    %v4671 = vunpack.c.h.b16 %v4234
    %v4672 = vunpack.c.l.b16 %v4235
    %v4673 = vunpack.c.h.b16 %v4235
    %v4674 = vunpack.c.l.b16 %v4236
    %v4675 = vunpack.c.h.b16 %v4236
    %v4676 = vunpack.c.l.b16 %v4237
    %v4677 = vunpack.c.h.b16 %v4237
    %v4678 = vunpack.c.l.b16 %v4238
    %v4679 = vunpack.c.h.b16 %v4238
    %v4680 = vunpack.c.l.b16 %v4239
    %v4681 = vunpack.c.h.b16 %v4239
    %v4682 = vunpack.c.l.b16 %v4240
    %v4683 = vunpack.c.h.b16 %v4240
    %v4684 = vunpack.c.l.b16 %v4241
    %v4685 = vunpack.c.h.b16 %v4241
    %v4686 = vunpack.c.l.b16 %v4242
    %v4687 = vunpack.c.h.b16 %v4242
    %v4688 = vunpack.c.l.b16 %v4243
    %v4689 = vunpack.c.h.b16 %v4243
    %v4690 = vunpack.c.l.b16 %v4244
    %v4691 = vunpack.c.h.b16 %v4244
    %v4692 = vunpack.c.l.b16 %v4245
    %v4693 = vunpack.c.h.b16 %v4245
    %v4694 = vunpack.c.l.b16 %v4246
    %v4695 = vunpack.c.h.b16 %v4246
    %v4696 = vunpack.c.l.b16 %v4247
    %v4697 = vunpack.c.h.b16 %v4247
    %v4698 = vunpack.c.l.b16 %v4248
    %v4699 = vunpack.c.h.b16 %v4248
    %v4700 = vunpack.c.l.b16 %v4249
    %v4701 = vunpack.c.h.b16 %v4249
    %v4702 = vunpack.c.l.b16 %v4250
    %v4703 = vunpack.c.h.b16 %v4250
    %v4704 = vunpack.c.l.b16 %v4251
    %v4705 = vunpack.c.h.b16 %v4251
    %v4706 = vunpack.c.l.b16 %v4252
    %v4707 = vunpack.c.h.b16 %v4252
    %v4708 = vunpack.c.l.b16 %v4253
    %v4709 = vunpack.c.h.b16 %v4253
    %v4710 = vunpack.c.l.b16 %v4254
    %v4711 = vunpack.c.h.b16 %v4254
    %v4712 = vunpack.c.l.b16 %v4255
    %v4713 = vunpack.c.h.b16 %v4255
    %v4714 = vunpack.c.l.b16 %v4256
    %v4715 = vunpack.c.h.b16 %v4256
    %v4716 = vunpack.c.l.b16 %v4257
    %v4717 = vunpack.c.h.b16 %v4257
    %v4718 = vunpack.c.l.b16 %v4258
    %v4719 = vunpack.c.h.b16 %v4258
    %v4720 = vunpack.c.l.b16 %v4259
    %v4721 = vunpack.c.h.b16 %v4259
    %v4722 = vunpack.c.l.b16 %v4260
    %v4723 = vunpack.c.h.b16 %v4260
    %v4724 = vunpack.c.l.b16 %v4261
    %v4725 = vunpack.c.h.b16 %v4261
    %v4726 = vunpack.c.l.b16 %v4262
    %v4727 = vunpack.c.h.b16 %v4262
    %v4728 = vunpack.c.l.b16 %v4263
    %v4729 = vunpack.c.h.b16 %v4263
    %v4730 = vunpack.c.l.b16 %v4264
    %v4731 = vunpack.c.h.b16 %v4264
    %v4732 = vunpack.c.l.b16 %v4265
    %v4733 = vunpack.c.h.b16 %v4265
    %v4734 = vunpack.c.l.b16 %v4266
    %v4735 = vunpack.c.h.b16 %v4266
    %v4736 = vunpack.c.l.b16 %v4267
    %v4737 = vunpack.c.h.b16 %v4267
    %v4738 = vunpack.c.l.b16 %v4268
    %v4739 = vunpack.c.h.b16 %v4268
    %v4740 = vunpack.c.l.b16 %v4269
    %v4741 = vunpack.c.h.b16 %v4269
    %v4742 = vunpack.c.l.b16 %v4270
    %v4743 = vunpack.c.h.b16 %v4270
    %v4744 = vunpack.c.l.b16 %v4271
    %v4745 = vunpack.c.h.b16 %v4271
    %v4746 = vunpack.c.l.b16 %v4272
    %v4747 = vunpack.c.h.b16 %v4272
    %v4748 = vunpack.c.l.b16 %v4273
    %v4749 = vunpack.c.h.b16 %v4273
    %v4750 = vunpack.c.l.b16 %v4274
    %v4751 = vunpack.c.h.b16 %v4274
    %v4752 = vunpack.c.l.b16 %v4275
    %v4753 = vunpack.c.h.b16 %v4275
    %v4754 = vunpack.c.l.b16 %v4276
    %v4755 = vunpack.c.h.b16 %v4276
    %v4756 = vunpack.c.l.b16 %v4277
    %v4757 = vunpack.c.h.b16 %v4277
    %v4758 = vunpack.c.l.b16 %v4278
    %v4759 = vunpack.c.h.b16 %v4278
    %v4760 = vunpack.c.l.b16 %v4279
    %v4761 = vunpack.c.h.b16 %v4279
    %v4762 = vunpack.c.l.b16 %v4280
    %v4763 = vunpack.c.h.b16 %v4280
    %v4764 = vunpack.c.l.b16 %v4281
    %v4765 = vunpack.c.h.b16 %v4281
    %v4766 = vunpack.c.l.b16 %v4282
    %v4767 = vunpack.c.h.b16 %v4282
    %v4768 = vunpack.c.l.b16 %v4283
    %v4769 = vunpack.c.h.b16 %v4283
    %v4770 = vunpack.c.l.b16 %v4284
    %v4771 = vunpack.c.h.b16 %v4284
    %v4772 = vunpack.c.l.b16 %v4285
    %v4773 = vunpack.c.h.b16 %v4285
    %v4774 = vunpack.c.l.b16 %v4286
    %v4775 = vunpack.c.h.b16 %v4286
    %v4776 = vunpack.c.l.b16 %v4287
    %v4777 = vunpack.c.h.b16 %v4287
    %v4778 = vunpack.c.l.b16 %v4288
    %v4779 = vunpack.c.h.b16 %v4288
    %v4780 = vpack.c.b16 %v4464, %v4460
    %v4781 = vpack.c.b16 %v4465, %v4461
    %v4782 = vpack.c.b16 %v4466, %v4462
    %v4783 = vpack.c.b16 %v4467, %v4463
    %v4784 = vpack.c.b16 %v4472, %v4468
    %v4785 = vpack.c.b16 %v4473, %v4469
    %v4786 = vpack.c.b16 %v4474, %v4470
    %v4787 = vpack.c.b16 %v4475, %v4471
    %v4788 = vpack.c.b16 %v4480, %v4476
    %v4789 = vpack.c.b16 %v4481, %v4477
    %v4790 = vpack.c.b16 %v4482, %v4478
    %v4791 = vpack.c.b16 %v4483, %v4479
    %v4792 = vpack.c.b16 %v4488, %v4484
    %v4793 = vpack.c.b16 %v4489, %v4485
    %v4794 = vpack.c.b16 %v4490, %v4486
    %v4795 = vpack.c.b16 %v4491, %v4487
    %v4796 = vpack.c.b16 %v4496, %v4492
    %v4797 = vpack.c.b16 %v4497, %v4493
    %v4798 = vpack.c.b16 %v4498, %v4494
    %v4799 = vpack.c.b16 %v4499, %v4495
    %v4800 = vpack.c.b16 %v4504, %v4500
    %v4801 = vpack.c.b16 %v4505, %v4501
    %v4802 = vpack.c.b16 %v4506, %v4502
    %v4803 = vpack.c.b16 %v4507, %v4503
    %v4804 = vpack.c.b16 %v4512, %v4508
    %v4805 = vpack.c.b16 %v4513, %v4509
    %v4806 = vpack.c.b16 %v4514, %v4510
    %v4807 = vpack.c.b16 %v4515, %v4511
    %v4808 = vpack.c.b16 %v4520, %v4516
    %v4809 = vpack.c.b16 %v4521, %v4517
    %v4810 = vpack.c.b16 %v4522, %v4518
    %v4811 = vpack.c.b16 %v4523, %v4519
    %v4812 = vpack.c.b16 %v4528, %v4524
    %v4813 = vpack.c.b16 %v4529, %v4525
    %v4814 = vpack.c.b16 %v4530, %v4526
    %v4815 = vpack.c.b16 %v4531, %v4527
    %v4816 = vpack.c.b16 %v4536, %v4532
    %v4817 = vpack.c.b16 %v4537, %v4533
    %v4818 = vpack.c.b16 %v4538, %v4534
    %v4819 = vpack.c.b16 %v4539, %v4535
    %v4820 = vpack.c.b16 %v4544, %v4540
    %v4821 = vpack.c.b16 %v4545, %v4541
    %v4822 = vpack.c.b16 %v4546, %v4542
    %v4823 = vpack.c.b16 %v4547, %v4543
    %v4824 = vpack.c.b16 %v4552, %v4548
    %v4825 = vpack.c.b16 %v4553, %v4549
    %v4826 = vpack.c.b16 %v4554, %v4550
    %v4827 = vpack.c.b16 %v4555, %v4551
    %v4828 = vpack.c.b16 %v4560, %v4556
    %v4829 = vpack.c.b16 %v4561, %v4557
    %v4830 = vpack.c.b16 %v4562, %v4558
    %v4831 = vpack.c.b16 %v4563, %v4559
    %v4832 = vpack.c.b16 %v4568, %v4564
    %v4833 = vpack.c.b16 %v4569, %v4565
    %v4834 = vpack.c.b16 %v4570, %v4566
    %v4835 = vpack.c.b16 %v4571, %v4567
    %v4836 = vpack.c.b16 %v4576, %v4572
    %v4837 = vpack.c.b16 %v4577, %v4573
    %v4838 = vpack.c.b16 %v4578, %v4574
    %v4839 = vpack.c.b16 %v4579, %v4575
    %v4840 = vpack.c.b16 %v4584, %v4580
    %v4841 = vpack.c.b16 %v4585, %v4581
    %v4842 = vpack.c.b16 %v4586, %v4582
    %v4843 = vpack.c.b16 %v4587, %v4583
    %v4844 = vpack.c.b16 %v4592, %v4588
    %v4845 = vpack.c.b16 %v4593, %v4589
    %v4846 = vpack.c.b16 %v4594, %v4590
    %v4847 = vpack.c.b16 %v4595, %v4591
    %v4848 = vpack.c.b16 %v4600, %v4596
    %v4849 = vpack.c.b16 %v4601, %v4597
    %v4850 = vpack.c.b16 %v4602, %v4598
    %v4851 = vpack.c.b16 %v4603, %v4599
    %v4852 = vpack.c.b16 %v4608, %v4604
    %v4853 = vpack.c.b16 %v4609, %v4605
    %v4854 = vpack.c.b16 %v4610, %v4606
    %v4855 = vpack.c.b16 %v4611, %v4607
    %v4856 = vpack.c.b16 %v4616, %v4612
    %v4857 = vpack.c.b16 %v4617, %v4613
    %v4858 = vpack.c.b16 %v4618, %v4614
    %v4859 = vpack.c.b16 %v4619, %v4615
    %v4860 = vpack.c.b16 %v4624, %v4620
    %v4861 = vpack.c.b16 %v4625, %v4621
    %v4862 = vpack.c.b16 %v4626, %v4622
    %v4863 = vpack.c.b16 %v4627, %v4623
    %v4864 = vpack.c.b16 %v4632, %v4628
    %v4865 = vpack.c.b16 %v4633, %v4629
    %v4866 = vpack.c.b16 %v4634, %v4630
    %v4867 = vpack.c.b16 %v4635, %v4631
    %v4868 = vpack.c.b16 %v4640, %v4636
    %v4869 = vpack.c.b16 %v4641, %v4637
    %v4870 = vpack.c.b16 %v4642, %v4638
    %v4871 = vpack.c.b16 %v4643, %v4639
    %v4872 = vpack.c.b16 %v4648, %v4644
    %v4873 = vpack.c.b16 %v4649, %v4645
    %v4874 = vpack.c.b16 %v4650, %v4646
    %v4875 = vpack.c.b16 %v4651, %v4647
    %v4876 = vpack.c.b16 %v4656, %v4652
    %v4877 = vpack.c.b16 %v4657, %v4653
    %v4878 = vpack.c.b16 %v4658, %v4654
    %v4879 = vpack.c.b16 %v4659, %v4655
    %v4880 = vpack.c.b16 %v4664, %v4660
    %v4881 = vpack.c.b16 %v4665, %v4661
    %v4882 = vpack.c.b16 %v4666, %v4662
    %v4883 = vpack.c.b16 %v4667, %v4663
    %v4884 = vpack.c.b16 %v4672, %v4668
    %v4885 = vpack.c.b16 %v4673, %v4669
    %v4886 = vpack.c.b16 %v4674, %v4670
    %v4887 = vpack.c.b16 %v4675, %v4671
    %v4888 = vpack.c.b16 %v4680, %v4676
    %v4889 = vpack.c.b16 %v4681, %v4677
    %v4890 = vpack.c.b16 %v4682, %v4678
    %v4891 = vpack.c.b16 %v4683, %v4679
    %v4892 = vpack.c.b16 %v4688, %v4684
    %v4893 = vpack.c.b16 %v4689, %v4685
    %v4894 = vpack.c.b16 %v4690, %v4686
    %v4895 = vpack.c.b16 %v4691, %v4687
    %v4896 = vpack.c.b16 %v4696, %v4692
    %v4897 = vpack.c.b16 %v4697, %v4693
    %v4898 = vpack.c.b16 %v4698, %v4694
    %v4899 = vpack.c.b16 %v4699, %v4695
    %v4900 = vpack.c.b16 %v4704, %v4700
    %v4901 = vpack.c.b16 %v4705, %v4701
    %v4902 = vpack.c.b16 %v4706, %v4702
    %v4903 = vpack.c.b16 %v4707, %v4703
    %v4904 = vpack.c.b16 %v4712, %v4708
    %v4905 = vpack.c.b16 %v4713, %v4709
    %v4906 = vpack.c.b16 %v4714, %v4710
    %v4907 = vpack.c.b16 %v4715, %v4711
    %v4908 = vpack.c.b16 %v4720, %v4716
    %v4909 = vpack.c.b16 %v4721, %v4717
    %v4910 = vpack.c.b16 %v4722, %v4718
    %v4911 = vpack.c.b16 %v4723, %v4719
    %v4912 = vpack.c.b16 %v4728, %v4724
    %v4913 = vpack.c.b16 %v4729, %v4725
    %v4914 = vpack.c.b16 %v4730, %v4726
    %v4915 = vpack.c.b16 %v4731, %v4727
    %v4916 = vpack.c.b16 %v4736, %v4732
    %v4917 = vpack.c.b16 %v4737, %v4733
    %v4918 = vpack.c.b16 %v4738, %v4734
    %v4919 = vpack.c.b16 %v4739, %v4735
    %v4920 = vpack.c.b16 %v4744, %v4740
    %v4921 = vpack.c.b16 %v4745, %v4741
    %v4922 = vpack.c.b16 %v4746, %v4742
    %v4923 = vpack.c.b16 %v4747, %v4743
    %v4924 = vpack.c.b16 %v4752, %v4748
    %v4925 = vpack.c.b16 %v4753, %v4749
    %v4926 = vpack.c.b16 %v4754, %v4750
    %v4927 = vpack.c.b16 %v4755, %v4751
    %v4928 = vpack.c.b16 %v4760, %v4756
    %v4929 = vpack.c.b16 %v4761, %v4757
    %v4930 = vpack.c.b16 %v4762, %v4758
    %v4931 = vpack.c.b16 %v4763, %v4759
    %v4932 = vpack.c.b16 %v4768, %v4764
    %v4933 = vpack.c.b16 %v4769, %v4765
    %v4934 = vpack.c.b16 %v4770, %v4766
    %v4935 = vpack.c.b16 %v4771, %v4767
    %v4936 = vpack.c.b16 %v4776, %v4772
    %v4937 = vpack.c.b16 %v4777, %v4773
    %v4938 = vpack.c.b16 %v4778, %v4774
    %v4939 = vpack.c.b16 %v4779, %v4775
    %5100 = vmatpush.bf16.msra.mxu0 %v4808
    %5101 = vmatpush.bf16.msra.mxu0 %v4804
    %5102 = vmatpush.bf16.msra.mxu0 %v4800
    %5103 = vmatpush.bf16.msra.mxu0 %v4796
    %5104 = vmatpush.bf16.msra.mxu0 %v4792
    %5105 = vmatpush.bf16.msra.mxu0 %v4788
    %5106 = vmatpush.bf16.msra.mxu0 %v4784
    %5107 = vmatpush.bf16.msra.mxu0 %v4780
    %5108 = vmatmul.bf16.gmra.mxu0 %v4124
    %v5109 = vpop.f32.mrf.mxu0
    %v5110 = vadd.f32 %v4292, %v5109
    %v5111 = vpop.f32.mrf.mxu0
    %v5112 = vadd.f32 %v4292, %v5111
    %5113 = vdwg.mxu0
    %5114 = vmatpush.bf16.msra.mxu0 %v4840
    %5115 = vmatpush.bf16.msra.mxu0 %v4836
    %5116 = vmatpush.bf16.msra.mxu0 %v4832
    %5117 = vmatpush.bf16.msra.mxu0 %v4828
    %5118 = vmatpush.bf16.msra.mxu0 %v4824
    %5119 = vmatpush.bf16.msra.mxu0 %v4820
    %5120 = vmatpush.bf16.msra.mxu0 %v4816
    %5121 = vmatpush.bf16.msra.mxu0 %v4812
    %5122 = vmatmul.bf16.gmra.mxu0 %v4125
    %v5123 = vpop.f32.mrf.mxu0
    %v5124 = vadd.f32 %v5110, %v5123
    %v5125 = vpop.f32.mrf.mxu0
    %v5126 = vadd.f32 %v5112, %v5125
    %5127 = vdwg.mxu0
    %5128 = vmatpush.bf16.msra.mxu0 %v4872
    %5129 = vmatpush.bf16.msra.mxu0 %v4868
    %5130 = vmatpush.bf16.msra.mxu0 %v4864
    %5131 = vmatpush.bf16.msra.mxu0 %v4860
    %5132 = vmatpush.bf16.msra.mxu0 %v4856
    %5133 = vmatpush.bf16.msra.mxu0 %v4852
    %5134 = vmatpush.bf16.msra.mxu0 %v4848
    %5135 = vmatpush.bf16.msra.mxu0 %v4844
    %5136 = vmatmul.bf16.gmra.mxu0 %v4126
    %v5137 = vpop.f32.mrf.mxu0
    %v5138 = vadd.f32 %v5124, %v5137
    %v5139 = vpop.f32.mrf.mxu0
    %v5140 = vadd.f32 %v5126, %v5139
    %5141 = vdwg.mxu0
    %5142 = vmatpush.bf16.msra.mxu0 %v4904
    %5143 = vmatpush.bf16.msra.mxu0 %v4900
    %5144 = vmatpush.bf16.msra.mxu0 %v4896
    %5145 = vmatpush.bf16.msra.mxu0 %v4892
    %5146 = vmatpush.bf16.msra.mxu0 %v4888
    %5147 = vmatpush.bf16.msra.mxu0 %v4884
    %5148 = vmatpush.bf16.msra.mxu0 %v4880
    %5149 = vmatpush.bf16.msra.mxu0 %v4876
    %5150 = vmatmul.bf16.gmra.mxu0 %v4127
    %v5151 = vpop.f32.mrf.mxu0
    %v5152 = vadd.f32 %v5138, %v5151
    %v5153 = vpop.f32.mrf.mxu0
    %v5154 = vadd.f32 %v5140, %v5153
    %5155 = vdwg.mxu0
    %5156 = vmatpush.bf16.msra.mxu0 %v4936
    %5157 = vmatpush.bf16.msra.mxu0 %v4932
    %5158 = vmatpush.bf16.msra.mxu0 %v4928
    %5159 = vmatpush.bf16.msra.mxu0 %v4924
    %5160 = vmatpush.bf16.msra.mxu0 %v4920
    %5161 = vmatpush.bf16.msra.mxu0 %v4916
    %5162 = vmatpush.bf16.msra.mxu0 %v4912
    %5163 = vmatpush.bf16.msra.mxu0 %v4908
    %5164 = vmatmul.bf16.gmra.mxu0 %v4128
    %v5165 = vpop.f32.mrf.mxu0
    %v5166 = vadd.f32 %v5152, %v5165
    %v5167 = vpop.f32.mrf.mxu0
    %v5168 = vadd.f32 %v5154, %v5167
    %5169 = vdwg.mxu0
    %5170 = vmatpush.bf16.msra.mxu0 %v4809
    %5171 = vmatpush.bf16.msra.mxu0 %v4805
    %5172 = vmatpush.bf16.msra.mxu0 %v4801
    %5173 = vmatpush.bf16.msra.mxu0 %v4797
    %5174 = vmatpush.bf16.msra.mxu0 %v4793
    %5175 = vmatpush.bf16.msra.mxu0 %v4789
    %5176 = vmatpush.bf16.msra.mxu0 %v4785
    %5177 = vmatpush.bf16.msra.mxu0 %v4781
    %5178 = vmatmul.bf16.gmra.mxu0 %v4124
    %v5179 = vpop.f32.mrf.mxu0
    %v5180 = vadd.f32 %v4293, %v5179
    %v5181 = vpop.f32.mrf.mxu0
    %v5182 = vadd.f32 %v4293, %v5181
    %5183 = vdwg.mxu0
    %5184 = vmatpush.bf16.msra.mxu0 %v4841
    %5185 = vmatpush.bf16.msra.mxu0 %v4837
    %5186 = vmatpush.bf16.msra.mxu0 %v4833
    %5187 = vmatpush.bf16.msra.mxu0 %v4829
    %5188 = vmatpush.bf16.msra.mxu0 %v4825
    %5189 = vmatpush.bf16.msra.mxu0 %v4821
    %5190 = vmatpush.bf16.msra.mxu0 %v4817
    %5191 = vmatpush.bf16.msra.mxu0 %v4813
    %5192 = vmatmul.bf16.gmra.mxu0 %v4125
    %v5193 = vpop.f32.mrf.mxu0
    %v5194 = vadd.f32 %v5180, %v5193
    %v5195 = vpop.f32.mrf.mxu0
    %v5196 = vadd.f32 %v5182, %v5195
    %5197 = vdwg.mxu0
    %5198 = vmatpush.bf16.msra.mxu0 %v4873
    %5199 = vmatpush.bf16.msra.mxu0 %v4869
    %5200 = vmatpush.bf16.msra.mxu0 %v4865
    %5201 = vmatpush.bf16.msra.mxu0 %v4861
    %5202 = vmatpush.bf16.msra.mxu0 %v4857
    %5203 = vmatpush.bf16.msra.mxu0 %v4853
    %5204 = vmatpush.bf16.msra.mxu0 %v4849
    %5205 = vmatpush.bf16.msra.mxu0 %v4845
    %5206 = vmatmul.bf16.gmra.mxu0 %v4126
    %v5207 = vpop.f32.mrf.mxu0
    %v5208 = vadd.f32 %v5194, %v5207
    %v5209 = vpop.f32.mrf.mxu0
    %v5210 = vadd.f32 %v5196, %v5209
    %5211 = vdwg.mxu0
    %5212 = vmatpush.bf16.msra.mxu0 %v4905
    %5213 = vmatpush.bf16.msra.mxu0 %v4901
    %5214 = vmatpush.bf16.msra.mxu0 %v4897
    %5215 = vmatpush.bf16.msra.mxu0 %v4893
    %5216 = vmatpush.bf16.msra.mxu0 %v4889
    %5217 = vmatpush.bf16.msra.mxu0 %v4885
    %5218 = vmatpush.bf16.msra.mxu0 %v4881
    %5219 = vmatpush.bf16.msra.mxu0 %v4877
    %5220 = vmatmul.bf16.gmra.mxu0 %v4127
    %v5221 = vpop.f32.mrf.mxu0
    %v5222 = vadd.f32 %v5208, %v5221
    %v5223 = vpop.f32.mrf.mxu0
    %v5224 = vadd.f32 %v5210, %v5223
    %5225 = vdwg.mxu0
    %5226 = vmatpush.bf16.msra.mxu0 %v4937
    %5227 = vmatpush.bf16.msra.mxu0 %v4933
    %5228 = vmatpush.bf16.msra.mxu0 %v4929
    %5229 = vmatpush.bf16.msra.mxu0 %v4925
    %5230 = vmatpush.bf16.msra.mxu0 %v4921
    %5231 = vmatpush.bf16.msra.mxu0 %v4917
    %5232 = vmatpush.bf16.msra.mxu0 %v4913
    %5233 = vmatpush.bf16.msra.mxu0 %v4909
    %5234 = vmatmul.bf16.gmra.mxu0 %v4128
    %v5235 = vpop.f32.mrf.mxu0
    %v5236 = vadd.f32 %v5222, %v5235
    %v5237 = vpop.f32.mrf.mxu0
    %v5238 = vadd.f32 %v5224, %v5237
    %5239 = vdwg.mxu0
    %5240 = vmatpush.bf16.msra.mxu0 %v4810
    %5241 = vmatpush.bf16.msra.mxu0 %v4806
    %5242 = vmatpush.bf16.msra.mxu0 %v4802
    %5243 = vmatpush.bf16.msra.mxu0 %v4798
    %5244 = vmatpush.bf16.msra.mxu0 %v4794
    %5245 = vmatpush.bf16.msra.mxu0 %v4790
    %5246 = vmatpush.bf16.msra.mxu0 %v4786
    %5247 = vmatpush.bf16.msra.mxu0 %v4782
    %5248 = vmatmul.bf16.gmra.mxu0 %v4124
    %v5249 = vpop.f32.mrf.mxu0
    %v5250 = vadd.f32 %v4294, %v5249
    %v5251 = vpop.f32.mrf.mxu0
    %v5252 = vadd.f32 %v4294, %v5251
    %5253 = vdwg.mxu0
    %5254 = vmatpush.bf16.msra.mxu0 %v4842
    %5255 = vmatpush.bf16.msra.mxu0 %v4838
    %5256 = vmatpush.bf16.msra.mxu0 %v4834
    %5257 = vmatpush.bf16.msra.mxu0 %v4830
    %5258 = vmatpush.bf16.msra.mxu0 %v4826
    %5259 = vmatpush.bf16.msra.mxu0 %v4822
    %5260 = vmatpush.bf16.msra.mxu0 %v4818
    %5261 = vmatpush.bf16.msra.mxu0 %v4814
    %5262 = vmatmul.bf16.gmra.mxu0 %v4125
    %v5263 = vpop.f32.mrf.mxu0
    %v5264 = vadd.f32 %v5250, %v5263
    %v5265 = vpop.f32.mrf.mxu0
    %v5266 = vadd.f32 %v5252, %v5265
    %5267 = vdwg.mxu0
    %5268 = vmatpush.bf16.msra.mxu0 %v4874
    %5269 = vmatpush.bf16.msra.mxu0 %v4870
    %5270 = vmatpush.bf16.msra.mxu0 %v4866
    %5271 = vmatpush.bf16.msra.mxu0 %v4862
    %5272 = vmatpush.bf16.msra.mxu0 %v4858
    %5273 = vmatpush.bf16.msra.mxu0 %v4854
    %5274 = vmatpush.bf16.msra.mxu0 %v4850
    %5275 = vmatpush.bf16.msra.mxu0 %v4846
    %5276 = vmatmul.bf16.gmra.mxu0 %v4126
    %v5277 = vpop.f32.mrf.mxu0
    %v5278 = vadd.f32 %v5264, %v5277
    %v5279 = vpop.f32.mrf.mxu0
    %v5280 = vadd.f32 %v5266, %v5279
    %5281 = vdwg.mxu0
    %5282 = vmatpush.bf16.msra.mxu0 %v4906
    %5283 = vmatpush.bf16.msra.mxu0 %v4902
    %5284 = vmatpush.bf16.msra.mxu0 %v4898
    %5285 = vmatpush.bf16.msra.mxu0 %v4894
    %5286 = vmatpush.bf16.msra.mxu0 %v4890
    %5287 = vmatpush.bf16.msra.mxu0 %v4886
    %5288 = vmatpush.bf16.msra.mxu0 %v4882
    %5289 = vmatpush.bf16.msra.mxu0 %v4878
    %5290 = vmatmul.bf16.gmra.mxu0 %v4127
    %v5291 = vpop.f32.mrf.mxu0
    %v5292 = vadd.f32 %v5278, %v5291
    %v5293 = vpop.f32.mrf.mxu0
    %v5294 = vadd.f32 %v5280, %v5293
    %5295 = vdwg.mxu0
    %5296 = vmatpush.bf16.msra.mxu0 %v4938
    %5297 = vmatpush.bf16.msra.mxu0 %v4934
    %5298 = vmatpush.bf16.msra.mxu0 %v4930
    %5299 = vmatpush.bf16.msra.mxu0 %v4926
    %5300 = vmatpush.bf16.msra.mxu0 %v4922
    %5301 = vmatpush.bf16.msra.mxu0 %v4918
    %5302 = vmatpush.bf16.msra.mxu0 %v4914
    %5303 = vmatpush.bf16.msra.mxu0 %v4910
    %5304 = vmatmul.bf16.gmra.mxu0 %v4128
    %v5305 = vpop.f32.mrf.mxu0
    %v5306 = vadd.f32 %v5292, %v5305
    %v5307 = vpop.f32.mrf.mxu0
    %v5308 = vadd.f32 %v5294, %v5307
    %5309 = vdwg.mxu0
    %5310 = vmatpush.bf16.msra.mxu0 %v4811
    %5311 = vmatpush.bf16.msra.mxu0 %v4807
    %5312 = vmatpush.bf16.msra.mxu0 %v4803
    %5313 = vmatpush.bf16.msra.mxu0 %v4799
    %5314 = vmatpush.bf16.msra.mxu0 %v4795
    %5315 = vmatpush.bf16.msra.mxu0 %v4791
    %5316 = vmatpush.bf16.msra.mxu0 %v4787
    %5317 = vmatpush.bf16.msra.mxu0 %v4783
    %5318 = vmatmul.bf16.gmra.mxu0 %v4124
    %v5319 = vpop.f32.mrf.mxu0
    %v5320 = vadd.f32 %v4295, %v5319
    %v5321 = vpop.f32.mrf.mxu0
    %v5322 = vadd.f32 %v4295, %v5321
    %5323 = vdwg.mxu0
    %5324 = vmatpush.bf16.msra.mxu0 %v4843
    %5325 = vmatpush.bf16.msra.mxu0 %v4839
    %5326 = vmatpush.bf16.msra.mxu0 %v4835
    %5327 = vmatpush.bf16.msra.mxu0 %v4831
    %5328 = vmatpush.bf16.msra.mxu0 %v4827
    %5329 = vmatpush.bf16.msra.mxu0 %v4823
    %5330 = vmatpush.bf16.msra.mxu0 %v4819
    %5331 = vmatpush.bf16.msra.mxu0 %v4815
    %5332 = vmatmul.bf16.gmra.mxu0 %v4125
    %v5333 = vpop.f32.mrf.mxu0
    %v5334 = vadd.f32 %v5320, %v5333
    %v5335 = vpop.f32.mrf.mxu0
    %v5336 = vadd.f32 %v5322, %v5335
    %5337 = vdwg.mxu0
    %5338 = vmatpush.bf16.msra.mxu0 %v4875
    %5339 = vmatpush.bf16.msra.mxu0 %v4871
    %5340 = vmatpush.bf16.msra.mxu0 %v4867
    %5341 = vmatpush.bf16.msra.mxu0 %v4863
    %5342 = vmatpush.bf16.msra.mxu0 %v4859
    %5343 = vmatpush.bf16.msra.mxu0 %v4855
    %5344 = vmatpush.bf16.msra.mxu0 %v4851
    %5345 = vmatpush.bf16.msra.mxu0 %v4847
    %5346 = vmatmul.bf16.gmra.mxu0 %v4126
    %v5347 = vpop.f32.mrf.mxu0
    %v5348 = vadd.f32 %v5334, %v5347
    %v5349 = vpop.f32.mrf.mxu0
    %v5350 = vadd.f32 %v5336, %v5349
    %5351 = vdwg.mxu0
    %5352 = vmatpush.bf16.msra.mxu0 %v4907
    %5353 = vmatpush.bf16.msra.mxu0 %v4903
    %5354 = vmatpush.bf16.msra.mxu0 %v4899
    %5355 = vmatpush.bf16.msra.mxu0 %v4895
    %5356 = vmatpush.bf16.msra.mxu0 %v4891
    %5357 = vmatpush.bf16.msra.mxu0 %v4887
    %5358 = vmatpush.bf16.msra.mxu0 %v4883
    %5359 = vmatpush.bf16.msra.mxu0 %v4879
    %5360 = vmatmul.bf16.gmra.mxu0 %v4127
    %v5361 = vpop.f32.mrf.mxu0
    %v5362 = vadd.f32 %v5348, %v5361
    %v5363 = vpop.f32.mrf.mxu0
    %v5364 = vadd.f32 %v5350, %v5363
    %5365 = vdwg.mxu0
    %5366 = vmatpush.bf16.msra.mxu0 %v4939
    %5367 = vmatpush.bf16.msra.mxu0 %v4935
    %5368 = vmatpush.bf16.msra.mxu0 %v4931
    %5369 = vmatpush.bf16.msra.mxu0 %v4927
    %5370 = vmatpush.bf16.msra.mxu0 %v4923
    %5371 = vmatpush.bf16.msra.mxu0 %v4919
    %5372 = vmatpush.bf16.msra.mxu0 %v4915
    %5373 = vmatpush.bf16.msra.mxu0 %v4911
    %5374 = vmatmul.bf16.gmra.mxu0 %v4128
    %v5375 = vpop.f32.mrf.mxu0
    %v5376 = vadd.f32 %v5362, %v5375
    %v5377 = vpop.f32.mrf.mxu0
    %v5378 = vadd.f32 %v5364, %v5377
    %5379 = vdwg.mxu0
    %v5380 = vmax.f32 %v5166, 0.0
    %v5381 = vmax.f32 %v5236, 0.0
    %v5382 = vmax.f32 %v5306, 0.0
    %v5383 = vmax.f32 %v5376, 0.0
    %v5384 = vmax.f32 %v5168, 0.0
    %v5385 = vmax.f32 %v5238, 0.0
    %v5386 = vmax.f32 %v5308, 0.0
    %v5387 = vmax.f32 %v5378, 0.0
    %v5388 = vpack.c.bf16 %v5384, %v5380
    %v5389 = vpack.c.bf16 %v5385, %v5381
    %v5390 = vpack.c.bf16 %v5386, %v5382
    %v5391 = vpack.c.bf16 %v5387, %v5383
    %v5392 = vld [vmem:[#allocation10] sm:$0xff]
    %v5393 = vld [vmem:[#allocation10 + $0x8] sm:$0xf]
    %v5394 = vld [vmem:[#allocation10 + $0xc] sm:$0xff]
    %v5395 = vld [vmem:[#allocation10 + $0x14] sm:$0xf]
    %v5396 = vld [vmem:[#allocation10 + $0x18] sm:$0xff]
    %v5397 = vld [vmem:[#allocation10 + $0x20] sm:$0xf]
    %v5398 = vld [vmem:[#allocation10 + $0x24] sm:$0xff]
    %v5399 = vld [vmem:[#allocation10 + $0x2c] sm:$0xf]
    %v5400 = vld [vmem:[#allocation10 + $0x30] sm:$0xff]
    %v5401 = vld [vmem:[#allocation10 + $0x38] sm:$0xf]
    %v5402 = vld [vmem:[#allocation10 + $0x3c] sm:$0xff]
    %v5403 = vld [vmem:[#allocation10 + $0x44] sm:$0xf]
    %v5404 = vld [vmem:[#allocation10 + $0x48] sm:$0xff]
    %v5405 = vld [vmem:[#allocation10 + $0x50] sm:$0xf]
    %v5406 = vld [vmem:[#allocation10 + $0x54] sm:$0xff]
    %v5407 = vld [vmem:[#allocation10 + $0x5c] sm:$0xf]
    %v5408 = vld [vmem:[#allocation10 + $0x60] sm:$0xff]
    %v5409 = vld [vmem:[#allocation10 + $0x68] sm:$0xf]
    %v5410 = vld [vmem:[#allocation10 + $0x6c] sm:$0xff]
    %v5411 = vld [vmem:[#allocation10 + $0x74] sm:$0xf]
    %v5412 = vld [vmem:[#allocation10 + $0x78] sm:$0xff]
    %v5413 = vld [vmem:[#allocation10 + $0x80] sm:$0xf]
    %v5414 = vld [vmem:[#allocation10 + $0x84] sm:$0xff]
    %v5415 = vld [vmem:[#allocation10 + $0x8c] sm:$0xf]
    %v5416 = vld [vmem:[#allocation10 + $0x90] sm:$0xff]
    %v5417 = vld [vmem:[#allocation10 + $0x98] sm:$0xf]
    %v5418 = vld [vmem:[#allocation10 + $0x9c] sm:$0xff]
    %v5419 = vld [vmem:[#allocation10 + $0xa4] sm:$0xf]
    %v5420 = vld [vmem:[#allocation10 + $0xa8] sm:$0xff]
    %v5421 = vld [vmem:[#allocation10 + $0xb0] sm:$0xf]
    %v5422 = vld [vmem:[#allocation10 + $0xb4] sm:$0xff]
    %v5423 = vld [vmem:[#allocation10 + $0xbc] sm:$0xf]
    %v5424 = vld [vmem:[#allocation10 + $0xc0] sm:$0xff]
    %v5425 = vld [vmem:[#allocation10 + $0xc8] sm:$0xf]
    %v5426 = vld [vmem:[#allocation10 + $0xcc] sm:$0xff]
    %v5427 = vld [vmem:[#allocation10 + $0xd4] sm:$0xf]
    %v5428 = vld [vmem:[#allocation10 + $0xd8] sm:$0xff]
    %v5429 = vld [vmem:[#allocation10 + $0xe0] sm:$0xf]
    %v5430 = vld [vmem:[#allocation10 + $0xe4] sm:$0xff]
    %v5431 = vld [vmem:[#allocation10 + $0xec] sm:$0xf]
    %v5432 = vld [vmem:[#allocation10 + $0xf0] sm:$0xff]
    %v5433 = vld [vmem:[#allocation10 + $0xf8] sm:$0xf]
    %v5434 = vld [vmem:[#allocation10 + $0xfc] sm:$0xff]
    %v5435 = vld [vmem:[#allocation10 + $0x104] sm:$0xf]
    %v5436 = vld [vmem:[#allocation10 + $0x108] sm:$0xff]
    %v5437 = vld [vmem:[#allocation10 + $0x110] sm:$0xf]
    %v5438 = vld [vmem:[#allocation10 + $0x114] sm:$0xff]
    %v5439 = vld [vmem:[#allocation10 + $0x11c] sm:$0xf]
    %v5440 = vld [vmem:[#allocation10 + $0x120] sm:$0xff]
    %v5441 = vld [vmem:[#allocation10 + $0x128] sm:$0xf]
    %v5442 = vld [vmem:[#allocation10 + $0x12c] sm:$0xff]
    %v5443 = vld [vmem:[#allocation10 + $0x134] sm:$0xf]
    %v5444 = vld [vmem:[#allocation10 + $0x138] sm:$0xff]
    %v5445 = vld [vmem:[#allocation10 + $0x140] sm:$0xf]
    %v5446 = vld [vmem:[#allocation10 + $0x144] sm:$0xff]
    %v5447 = vld [vmem:[#allocation10 + $0x14c] sm:$0xf]
    %v5448 = vld [vmem:[#allocation10 + $0x150] sm:$0xff]
    %v5449 = vld [vmem:[#allocation10 + $0x158] sm:$0xf]
    %v5450 = vld [vmem:[#allocation10 + $0x15c] sm:$0xff]
    %v5451 = vld [vmem:[#allocation10 + $0x164] sm:$0xf]
    %v5452 = vld [vmem:[#allocation10 + $0x168] sm:$0xff]
    %v5453 = vld [vmem:[#allocation10 + $0x170] sm:$0xf]
    %v5454 = vld [vmem:[#allocation10 + $0x174] sm:$0xff]
    %v5455 = vld [vmem:[#allocation10 + $0x17c] sm:$0xf]
    %v5456 = vld [vmem:[#allocation10 + $0x180] sm:$0xff]
    %v5457 = vld [vmem:[#allocation10 + $0x188] sm:$0xf]
    %v5458 = vld [vmem:[#allocation10 + $0x18c] sm:$0xff]
    %v5459 = vld [vmem:[#allocation10 + $0x194] sm:$0xf]
    %v5460 = vld [vmem:[#allocation10 + $0x198] sm:$0xff]
    %v5461 = vld [vmem:[#allocation10 + $0x1a0] sm:$0xf]
    %v5462 = vld [vmem:[#allocation10 + $0x1a4] sm:$0xff]
    %v5463 = vld [vmem:[#allocation10 + $0x1ac] sm:$0xf]
    %v5464 = vld [vmem:[#allocation10 + $0x1b0] sm:$0xff]
    %v5465 = vld [vmem:[#allocation10 + $0x1b8] sm:$0xf]
    %v5466 = vld [vmem:[#allocation10 + $0x1bc] sm:$0xff]
    %v5467 = vld [vmem:[#allocation10 + $0x1c4] sm:$0xf]
    %v5468 = vld [vmem:[#allocation10 + $0x1c8] sm:$0xff]
    %v5469 = vld [vmem:[#allocation10 + $0x1d0] sm:$0xf]
    %v5470 = vld [vmem:[#allocation10 + $0x1d4] sm:$0xff]
    %v5471 = vld [vmem:[#allocation10 + $0x1dc] sm:$0xf]
    %v5472 = vld [vmem:[#allocation10 + $0x1e0] sm:$0xff]
    %v5473 = vld [vmem:[#allocation10 + $0x1e8] sm:$0xf]
    %v5474 = vld [vmem:[#allocation10 + $0x1ec] sm:$0xff]
    %v5475 = vld [vmem:[#allocation10 + $0x1f4] sm:$0xf]
    %v5476 = vld [vmem:[#allocation10 + $0x1f8] sm:$0xff]
    %v5477 = vld [vmem:[#allocation10 + $0x200] sm:$0xf]
    %v5478 = vld [vmem:[#allocation10 + $0x204] sm:$0xff]
    %v5479 = vld [vmem:[#allocation10 + $0x20c] sm:$0xf]
    %v5480 = vld [vmem:[#allocation10 + $0x210] sm:$0xff]
    %v5481 = vld [vmem:[#allocation10 + $0x218] sm:$0xf]
    %v5482 = vld [vmem:[#allocation10 + $0x21c] sm:$0xff]
    %v5483 = vld [vmem:[#allocation10 + $0x224] sm:$0xf]
    %v5484 = vld [vmem:[#allocation10 + $0x228] sm:$0xff]
    %v5485 = vld [vmem:[#allocation10 + $0x230] sm:$0xf]
    %v5486 = vld [vmem:[#allocation10 + $0x234] sm:$0xff]
    %v5487 = vld [vmem:[#allocation10 + $0x23c] sm:$0xf]
    %v5488 = vld [vmem:[#allocation10 + $0x240] sm:$0xff]
    %v5489 = vld [vmem:[#allocation10 + $0x248] sm:$0xf]
    %v5490 = vld [vmem:[#allocation10 + $0x24c] sm:$0xff]
    %v5491 = vld [vmem:[#allocation10 + $0x254] sm:$0xf]
    %v5492 = vld [vmem:[#allocation10 + $0x258] sm:$0xff]
    %v5493 = vld [vmem:[#allocation10 + $0x260] sm:$0xf]
    %v5494 = vld [vmem:[#allocation10 + $0x264] sm:$0xff]
    %v5495 = vld [vmem:[#allocation10 + $0x26c] sm:$0xf]
    %v5496 = vld [vmem:[#allocation10 + $0x270] sm:$0xff]
    %v5497 = vld [vmem:[#allocation10 + $0x278] sm:$0xf]
    %v5498 = vld [vmem:[#allocation10 + $0x27c] sm:$0xff]
    %v5499 = vld [vmem:[#allocation10 + $0x284] sm:$0xf]
    %v5500 = vld [vmem:[#allocation10 + $0x288] sm:$0xff]
    %v5501 = vld [vmem:[#allocation10 + $0x290] sm:$0xf]
    %v5502 = vld [vmem:[#allocation10 + $0x294] sm:$0xff]
    %v5503 = vld [vmem:[#allocation10 + $0x29c] sm:$0xf]
    %v5504 = vld [vmem:[#allocation10 + $0x2a0] sm:$0xff]
    %v5505 = vld [vmem:[#allocation10 + $0x2a8] sm:$0xf]
    %v5506 = vld [vmem:[#allocation10 + $0x2ac] sm:$0xff]
    %v5507 = vld [vmem:[#allocation10 + $0x2b4] sm:$0xf]
    %v5508 = vld [vmem:[#allocation10 + $0x2b8] sm:$0xff]
    %v5509 = vld [vmem:[#allocation10 + $0x2c0] sm:$0xf]
    %v5510 = vld [vmem:[#allocation10 + $0x2c4] sm:$0xff]
    %v5511 = vld [vmem:[#allocation10 + $0x2cc] sm:$0xf]
    %v5512 = vld [vmem:[#allocation10 + $0x2d0] sm:$0xff]
    %v5513 = vld [vmem:[#allocation10 + $0x2d8] sm:$0xf]
    %v5514 = vld [vmem:[#allocation10 + $0x2dc] sm:$0xff]
    %v5515 = vld [vmem:[#allocation10 + $0x2e4] sm:$0xf]
    %v5516 = vld [vmem:[#allocation10 + $0x2e8] sm:$0xff]
    %v5517 = vld [vmem:[#allocation10 + $0x2f0] sm:$0xf]
    %v5518 = vld [vmem:[#allocation10 + $0x2f4] sm:$0xff]
    %v5519 = vld [vmem:[#allocation10 + $0x2fc] sm:$0xf]
    %s5520 = scalar_lea.vmem %s8, 5
    %v5521 = vld [vmem:[%s5520] ss:$8 sm:$0x7]
    %v5523 = vperm.slane %v5521, 0
    %v5524 = vperm.slane %v5521, 1
    %v5525 = vperm.slane %v5521, 2
    %v5657 = vunpack.c.l.b16 %v5392
    %v5658 = vunpack.c.h.b16 %v5392
    %v5659 = vunpack.c.l.b16 %v5393
    %v5660 = vunpack.c.l.b16 %v5394
    %v5661 = vunpack.c.h.b16 %v5394
    %v5662 = vunpack.c.l.b16 %v5395
    %v5663 = vunpack.c.l.b16 %v5396
    %v5664 = vunpack.c.h.b16 %v5396
    %v5665 = vunpack.c.l.b16 %v5397
    %v5666 = vunpack.c.l.b16 %v5398
    %v5667 = vunpack.c.h.b16 %v5398
    %v5668 = vunpack.c.l.b16 %v5399
    %v5669 = vunpack.c.l.b16 %v5400
    %v5670 = vunpack.c.h.b16 %v5400
    %v5671 = vunpack.c.l.b16 %v5401
    %v5672 = vunpack.c.l.b16 %v5402
    %v5673 = vunpack.c.h.b16 %v5402
    %v5674 = vunpack.c.l.b16 %v5403
    %v5675 = vunpack.c.l.b16 %v5404
    %v5676 = vunpack.c.h.b16 %v5404
    %v5677 = vunpack.c.l.b16 %v5405
    %v5678 = vunpack.c.l.b16 %v5406
    %v5679 = vunpack.c.h.b16 %v5406
    %v5680 = vunpack.c.l.b16 %v5407
    %v5681 = vunpack.c.l.b16 %v5408
    %v5682 = vunpack.c.h.b16 %v5408
    %v5683 = vunpack.c.l.b16 %v5409
    %v5684 = vunpack.c.l.b16 %v5410
    %v5685 = vunpack.c.h.b16 %v5410
    %v5686 = vunpack.c.l.b16 %v5411
    %v5687 = vunpack.c.l.b16 %v5412
    %v5688 = vunpack.c.h.b16 %v5412
    %v5689 = vunpack.c.l.b16 %v5413
    %v5690 = vunpack.c.l.b16 %v5414
    %v5691 = vunpack.c.h.b16 %v5414
    %v5692 = vunpack.c.l.b16 %v5415
    %v5693 = vunpack.c.l.b16 %v5416
    %v5694 = vunpack.c.h.b16 %v5416
    %v5695 = vunpack.c.l.b16 %v5417
    %v5696 = vunpack.c.l.b16 %v5418
    %v5697 = vunpack.c.h.b16 %v5418
    %v5698 = vunpack.c.l.b16 %v5419
    %v5699 = vunpack.c.l.b16 %v5420
    %v5700 = vunpack.c.h.b16 %v5420
    %v5701 = vunpack.c.l.b16 %v5421
    %v5702 = vunpack.c.l.b16 %v5422
    %v5703 = vunpack.c.h.b16 %v5422
    %v5704 = vunpack.c.l.b16 %v5423
    %v5705 = vunpack.c.l.b16 %v5424
    %v5706 = vunpack.c.h.b16 %v5424
    %v5707 = vunpack.c.l.b16 %v5425
    %v5708 = vunpack.c.l.b16 %v5426
    %v5709 = vunpack.c.h.b16 %v5426
    %v5710 = vunpack.c.l.b16 %v5427
    %v5711 = vunpack.c.l.b16 %v5428
    %v5712 = vunpack.c.h.b16 %v5428
    %v5713 = vunpack.c.l.b16 %v5429
    %v5714 = vunpack.c.l.b16 %v5430
    %v5715 = vunpack.c.h.b16 %v5430
    %v5716 = vunpack.c.l.b16 %v5431
    %v5717 = vunpack.c.l.b16 %v5432
    %v5718 = vunpack.c.h.b16 %v5432
    %v5719 = vunpack.c.l.b16 %v5433
    %v5720 = vunpack.c.l.b16 %v5434
    %v5721 = vunpack.c.h.b16 %v5434
    %v5722 = vunpack.c.l.b16 %v5435
    %v5723 = vunpack.c.l.b16 %v5436
    %v5724 = vunpack.c.h.b16 %v5436
    %v5725 = vunpack.c.l.b16 %v5437
    %v5726 = vunpack.c.l.b16 %v5438
    %v5727 = vunpack.c.h.b16 %v5438
    %v5728 = vunpack.c.l.b16 %v5439
    %v5729 = vunpack.c.l.b16 %v5440
    %v5730 = vunpack.c.h.b16 %v5440
    %v5731 = vunpack.c.l.b16 %v5441
    %v5732 = vunpack.c.l.b16 %v5442
    %v5733 = vunpack.c.h.b16 %v5442
    %v5734 = vunpack.c.l.b16 %v5443
    %v5735 = vunpack.c.l.b16 %v5444
    %v5736 = vunpack.c.h.b16 %v5444
    %v5737 = vunpack.c.l.b16 %v5445
    %v5738 = vunpack.c.l.b16 %v5446
    %v5739 = vunpack.c.h.b16 %v5446
    %v5740 = vunpack.c.l.b16 %v5447
    %v5741 = vunpack.c.l.b16 %v5448
    %v5742 = vunpack.c.h.b16 %v5448
    %v5743 = vunpack.c.l.b16 %v5449
    %v5744 = vunpack.c.l.b16 %v5450
    %v5745 = vunpack.c.h.b16 %v5450
    %v5746 = vunpack.c.l.b16 %v5451
    %v5747 = vunpack.c.l.b16 %v5452
    %v5748 = vunpack.c.h.b16 %v5452
    %v5749 = vunpack.c.l.b16 %v5453
    %v5750 = vunpack.c.l.b16 %v5454
    %v5751 = vunpack.c.h.b16 %v5454
    %v5752 = vunpack.c.l.b16 %v5455
    %v5753 = vunpack.c.l.b16 %v5456
    %v5754 = vunpack.c.h.b16 %v5456
    %v5755 = vunpack.c.l.b16 %v5457
    %v5756 = vunpack.c.l.b16 %v5458
    %v5757 = vunpack.c.h.b16 %v5458
    %v5758 = vunpack.c.l.b16 %v5459
    %v5759 = vunpack.c.l.b16 %v5460
    %v5760 = vunpack.c.h.b16 %v5460
    %v5761 = vunpack.c.l.b16 %v5461
    %v5762 = vunpack.c.l.b16 %v5462
    %v5763 = vunpack.c.h.b16 %v5462
    %v5764 = vunpack.c.l.b16 %v5463
    %v5765 = vunpack.c.l.b16 %v5464
    %v5766 = vunpack.c.h.b16 %v5464
    %v5767 = vunpack.c.l.b16 %v5465
    %v5768 = vunpack.c.l.b16 %v5466
    %v5769 = vunpack.c.h.b16 %v5466
    %v5770 = vunpack.c.l.b16 %v5467
    %v5771 = vunpack.c.l.b16 %v5468
    %v5772 = vunpack.c.h.b16 %v5468
    %v5773 = vunpack.c.l.b16 %v5469
    %v5774 = vunpack.c.l.b16 %v5470
    %v5775 = vunpack.c.h.b16 %v5470
    %v5776 = vunpack.c.l.b16 %v5471
    %v5777 = vunpack.c.l.b16 %v5472
    %v5778 = vunpack.c.h.b16 %v5472
    %v5779 = vunpack.c.l.b16 %v5473
    %v5780 = vunpack.c.l.b16 %v5474
    %v5781 = vunpack.c.h.b16 %v5474
    %v5782 = vunpack.c.l.b16 %v5475
    %v5783 = vunpack.c.l.b16 %v5476
    %v5784 = vunpack.c.h.b16 %v5476
    %v5785 = vunpack.c.l.b16 %v5477
    %v5786 = vunpack.c.l.b16 %v5478
    %v5787 = vunpack.c.h.b16 %v5478
    %v5788 = vunpack.c.l.b16 %v5479
    %v5789 = vunpack.c.l.b16 %v5480
    %v5790 = vunpack.c.h.b16 %v5480
    %v5791 = vunpack.c.l.b16 %v5481
    %v5792 = vunpack.c.l.b16 %v5482
    %v5793 = vunpack.c.h.b16 %v5482
    %v5794 = vunpack.c.l.b16 %v5483
    %v5795 = vunpack.c.l.b16 %v5484
    %v5796 = vunpack.c.h.b16 %v5484
    %v5797 = vunpack.c.l.b16 %v5485
    %v5798 = vunpack.c.l.b16 %v5486
    %v5799 = vunpack.c.h.b16 %v5486
    %v5800 = vunpack.c.l.b16 %v5487
    %v5801 = vunpack.c.l.b16 %v5488
    %v5802 = vunpack.c.h.b16 %v5488
    %v5803 = vunpack.c.l.b16 %v5489
    %v5804 = vunpack.c.l.b16 %v5490
    %v5805 = vunpack.c.h.b16 %v5490
    %v5806 = vunpack.c.l.b16 %v5491
    %v5807 = vunpack.c.l.b16 %v5492
    %v5808 = vunpack.c.h.b16 %v5492
    %v5809 = vunpack.c.l.b16 %v5493
    %v5810 = vunpack.c.l.b16 %v5494
    %v5811 = vunpack.c.h.b16 %v5494
    %v5812 = vunpack.c.l.b16 %v5495
    %v5813 = vunpack.c.l.b16 %v5496
    %v5814 = vunpack.c.h.b16 %v5496
    %v5815 = vunpack.c.l.b16 %v5497
    %v5816 = vunpack.c.l.b16 %v5498
    %v5817 = vunpack.c.h.b16 %v5498
    %v5818 = vunpack.c.l.b16 %v5499
    %v5819 = vunpack.c.l.b16 %v5500
    %v5820 = vunpack.c.h.b16 %v5500
    %v5821 = vunpack.c.l.b16 %v5501
    %v5822 = vunpack.c.l.b16 %v5502
    %v5823 = vunpack.c.h.b16 %v5502
    %v5824 = vunpack.c.l.b16 %v5503
    %v5825 = vunpack.c.l.b16 %v5504
    %v5826 = vunpack.c.h.b16 %v5504
    %v5827 = vunpack.c.l.b16 %v5505
    %v5828 = vunpack.c.l.b16 %v5506
    %v5829 = vunpack.c.h.b16 %v5506
    %v5830 = vunpack.c.l.b16 %v5507
    %v5831 = vunpack.c.l.b16 %v5508
    %v5832 = vunpack.c.h.b16 %v5508
    %v5833 = vunpack.c.l.b16 %v5509
    %v5834 = vunpack.c.l.b16 %v5510
    %v5835 = vunpack.c.h.b16 %v5510
    %v5836 = vunpack.c.l.b16 %v5511
    %v5837 = vunpack.c.l.b16 %v5512
    %v5838 = vunpack.c.h.b16 %v5512
    %v5839 = vunpack.c.l.b16 %v5513
    %v5840 = vunpack.c.l.b16 %v5514
    %v5841 = vunpack.c.h.b16 %v5514
    %v5842 = vunpack.c.l.b16 %v5515
    %v5843 = vunpack.c.l.b16 %v5516
    %v5844 = vunpack.c.h.b16 %v5516
    %v5845 = vunpack.c.l.b16 %v5517
    %v5846 = vunpack.c.l.b16 %v5518
    %v5847 = vunpack.c.h.b16 %v5518
    %v5848 = vunpack.c.l.b16 %v5519
    %v5849 = vpack.c.b16 %v5660, %v5657
    %v5850 = vpack.c.b16 %v5661, %v5658
    %v5851 = vpack.c.b16 %v5662, %v5659
    %v5852 = vpack.c.b16 %v5666, %v5663
    %v5853 = vpack.c.b16 %v5667, %v5664
    %v5854 = vpack.c.b16 %v5668, %v5665
    %v5855 = vpack.c.b16 %v5672, %v5669
    %v5856 = vpack.c.b16 %v5673, %v5670
    %v5857 = vpack.c.b16 %v5674, %v5671
    %v5858 = vpack.c.b16 %v5678, %v5675
    %v5859 = vpack.c.b16 %v5679, %v5676
    %v5860 = vpack.c.b16 %v5680, %v5677
    %v5861 = vpack.c.b16 %v5684, %v5681
    %v5862 = vpack.c.b16 %v5685, %v5682
    %v5863 = vpack.c.b16 %v5686, %v5683
    %v5864 = vpack.c.b16 %v5690, %v5687
    %v5865 = vpack.c.b16 %v5691, %v5688
    %v5866 = vpack.c.b16 %v5692, %v5689
    %v5867 = vpack.c.b16 %v5696, %v5693
    %v5868 = vpack.c.b16 %v5697, %v5694
    %v5869 = vpack.c.b16 %v5698, %v5695
    %v5870 = vpack.c.b16 %v5702, %v5699
    %v5871 = vpack.c.b16 %v5703, %v5700
    %v5872 = vpack.c.b16 %v5704, %v5701
    %v5873 = vpack.c.b16 %v5708, %v5705
    %v5874 = vpack.c.b16 %v5709, %v5706
    %v5875 = vpack.c.b16 %v5710, %v5707
    %v5876 = vpack.c.b16 %v5714, %v5711
    %v5877 = vpack.c.b16 %v5715, %v5712
    %v5878 = vpack.c.b16 %v5716, %v5713
    %v5879 = vpack.c.b16 %v5720, %v5717
    %v5880 = vpack.c.b16 %v5721, %v5718
    %v5881 = vpack.c.b16 %v5722, %v5719
    %v5882 = vpack.c.b16 %v5726, %v5723
    %v5883 = vpack.c.b16 %v5727, %v5724
    %v5884 = vpack.c.b16 %v5728, %v5725
    %v5885 = vpack.c.b16 %v5732, %v5729
    %v5886 = vpack.c.b16 %v5733, %v5730
    %v5887 = vpack.c.b16 %v5734, %v5731
    %v5888 = vpack.c.b16 %v5738, %v5735
    %v5889 = vpack.c.b16 %v5739, %v5736
    %v5890 = vpack.c.b16 %v5740, %v5737
    %v5891 = vpack.c.b16 %v5744, %v5741
    %v5892 = vpack.c.b16 %v5745, %v5742
    %v5893 = vpack.c.b16 %v5746, %v5743
    %v5894 = vpack.c.b16 %v5750, %v5747
    %v5895 = vpack.c.b16 %v5751, %v5748
    %v5896 = vpack.c.b16 %v5752, %v5749
    %v5897 = vpack.c.b16 %v5756, %v5753
    %v5898 = vpack.c.b16 %v5757, %v5754
    %v5899 = vpack.c.b16 %v5758, %v5755
    %v5900 = vpack.c.b16 %v5762, %v5759
    %v5901 = vpack.c.b16 %v5763, %v5760
    %v5902 = vpack.c.b16 %v5764, %v5761
    %v5903 = vpack.c.b16 %v5768, %v5765
    %v5904 = vpack.c.b16 %v5769, %v5766
    %v5905 = vpack.c.b16 %v5770, %v5767
    %v5906 = vpack.c.b16 %v5774, %v5771
    %v5907 = vpack.c.b16 %v5775, %v5772
    %v5908 = vpack.c.b16 %v5776, %v5773
    %v5909 = vpack.c.b16 %v5780, %v5777
    %v5910 = vpack.c.b16 %v5781, %v5778
    %v5911 = vpack.c.b16 %v5782, %v5779
    %v5912 = vpack.c.b16 %v5786, %v5783
    %v5913 = vpack.c.b16 %v5787, %v5784
    %v5914 = vpack.c.b16 %v5788, %v5785
    %v5915 = vpack.c.b16 %v5792, %v5789
    %v5916 = vpack.c.b16 %v5793, %v5790
    %v5917 = vpack.c.b16 %v5794, %v5791
    %v5918 = vpack.c.b16 %v5798, %v5795
    %v5919 = vpack.c.b16 %v5799, %v5796
    %v5920 = vpack.c.b16 %v5800, %v5797
    %v5921 = vpack.c.b16 %v5804, %v5801
    %v5922 = vpack.c.b16 %v5805, %v5802
    %v5923 = vpack.c.b16 %v5806, %v5803
    %v5924 = vpack.c.b16 %v5810, %v5807
    %v5925 = vpack.c.b16 %v5811, %v5808
    %v5926 = vpack.c.b16 %v5812, %v5809
    %v5927 = vpack.c.b16 %v5816, %v5813
    %v5928 = vpack.c.b16 %v5817, %v5814
    %v5929 = vpack.c.b16 %v5818, %v5815
    %v5930 = vpack.c.b16 %v5822, %v5819
    %v5931 = vpack.c.b16 %v5823, %v5820
    %v5932 = vpack.c.b16 %v5824, %v5821
    %v5933 = vpack.c.b16 %v5828, %v5825
    %v5934 = vpack.c.b16 %v5829, %v5826
    %v5935 = vpack.c.b16 %v5830, %v5827
    %v5936 = vpack.c.b16 %v5834, %v5831
    %v5937 = vpack.c.b16 %v5835, %v5832
    %v5938 = vpack.c.b16 %v5836, %v5833
    %v5939 = vpack.c.b16 %v5840, %v5837
    %v5940 = vpack.c.b16 %v5841, %v5838
    %v5941 = vpack.c.b16 %v5842, %v5839
    %v5942 = vpack.c.b16 %v5846, %v5843
    %v5943 = vpack.c.b16 %v5847, %v5844
    %v5944 = vpack.c.b16 %v5848, %v5845
    %6041 = vmatpush.bf16.msra.mxu0 %v5870
    %6042 = vmatpush.bf16.msra.mxu0 %v5867
    %6043 = vmatpush.bf16.msra.mxu0 %v5864
    %6044 = vmatpush.bf16.msra.mxu0 %v5861
    %6045 = vmatpush.bf16.msra.mxu0 %v5858
    %6046 = vmatpush.bf16.msra.mxu0 %v5855
    %6047 = vmatpush.bf16.msra.mxu0 %v5852
    %6048 = vmatpush.bf16.msra.mxu0 %v5849
    %6049 = vmatmul.bf16.gmra.mxu0 %v5388
    %v6050 = vpop.f32.mrf.mxu0
    %v6051 = vadd.f32 %v5523, %v6050
    %v6052 = vpop.f32.mrf.mxu0
    %v6053 = vadd.f32 %v5523, %v6052
    %6054 = vdwg.mxu0
    %6055 = vmatpush.bf16.msra.mxu0 %v5894
    %6056 = vmatpush.bf16.msra.mxu0 %v5891
    %6057 = vmatpush.bf16.msra.mxu0 %v5888
    %6058 = vmatpush.bf16.msra.mxu0 %v5885
    %6059 = vmatpush.bf16.msra.mxu0 %v5882
    %6060 = vmatpush.bf16.msra.mxu0 %v5879
    %6061 = vmatpush.bf16.msra.mxu0 %v5876
    %6062 = vmatpush.bf16.msra.mxu0 %v5873
    %6063 = vmatmul.bf16.gmra.mxu0 %v5389
    %v6064 = vpop.f32.mrf.mxu0
    %v6065 = vadd.f32 %v6051, %v6064
    %v6066 = vpop.f32.mrf.mxu0
    %v6067 = vadd.f32 %v6053, %v6066
    %6068 = vdwg.mxu0
    %6069 = vmatpush.bf16.msra.mxu0 %v5918
    %6070 = vmatpush.bf16.msra.mxu0 %v5915
    %6071 = vmatpush.bf16.msra.mxu0 %v5912
    %6072 = vmatpush.bf16.msra.mxu0 %v5909
    %6073 = vmatpush.bf16.msra.mxu0 %v5906
    %6074 = vmatpush.bf16.msra.mxu0 %v5903
    %6075 = vmatpush.bf16.msra.mxu0 %v5900
    %6076 = vmatpush.bf16.msra.mxu0 %v5897
    %6077 = vmatmul.bf16.gmra.mxu0 %v5390
    %v6078 = vpop.f32.mrf.mxu0
    %v6079 = vadd.f32 %v6065, %v6078
    %v6080 = vpop.f32.mrf.mxu0
    %v6081 = vadd.f32 %v6067, %v6080
    %6082 = vdwg.mxu0
    %6083 = vmatpush.bf16.msra.mxu0 %v5942
    %6084 = vmatpush.bf16.msra.mxu0 %v5939
    %6085 = vmatpush.bf16.msra.mxu0 %v5936
    %6086 = vmatpush.bf16.msra.mxu0 %v5933
    %6087 = vmatpush.bf16.msra.mxu0 %v5930
    %6088 = vmatpush.bf16.msra.mxu0 %v5927
    %6089 = vmatpush.bf16.msra.mxu0 %v5924
    %6090 = vmatpush.bf16.msra.mxu0 %v5921
    %6091 = vmatmul.bf16.gmra.mxu0 %v5391
    %v6092 = vpop.f32.mrf.mxu0
    %v6093 = vadd.f32 %v6079, %v6092
    %v6094 = vpop.f32.mrf.mxu0
    %v6095 = vadd.f32 %v6081, %v6094
    %6096 = vdwg.mxu0
    %6097 = vmatpush.bf16.msra.mxu0 %v5871
    %6098 = vmatpush.bf16.msra.mxu0 %v5868
    %6099 = vmatpush.bf16.msra.mxu0 %v5865
    %6100 = vmatpush.bf16.msra.mxu0 %v5862
    %6101 = vmatpush.bf16.msra.mxu0 %v5859
    %6102 = vmatpush.bf16.msra.mxu0 %v5856
    %6103 = vmatpush.bf16.msra.mxu0 %v5853
    %6104 = vmatpush.bf16.msra.mxu0 %v5850
    %6105 = vmatmul.bf16.gmra.mxu0 %v5388
    %v6106 = vpop.f32.mrf.mxu0
    %v6107 = vadd.f32 %v5524, %v6106
    %v6108 = vpop.f32.mrf.mxu0
    %v6109 = vadd.f32 %v5524, %v6108
    %6110 = vdwg.mxu0
    %6111 = vmatpush.bf16.msra.mxu0 %v5895
    %6112 = vmatpush.bf16.msra.mxu0 %v5892
    %6113 = vmatpush.bf16.msra.mxu0 %v5889
    %6114 = vmatpush.bf16.msra.mxu0 %v5886
    %6115 = vmatpush.bf16.msra.mxu0 %v5883
    %6116 = vmatpush.bf16.msra.mxu0 %v5880
    %6117 = vmatpush.bf16.msra.mxu0 %v5877
    %6118 = vmatpush.bf16.msra.mxu0 %v5874
    %6119 = vmatmul.bf16.gmra.mxu0 %v5389
    %v6120 = vpop.f32.mrf.mxu0
    %v6121 = vadd.f32 %v6107, %v6120
    %v6122 = vpop.f32.mrf.mxu0
    %v6123 = vadd.f32 %v6109, %v6122
    %6124 = vdwg.mxu0
    %6125 = vmatpush.bf16.msra.mxu0 %v5919
    %6126 = vmatpush.bf16.msra.mxu0 %v5916
    %6127 = vmatpush.bf16.msra.mxu0 %v5913
    %6128 = vmatpush.bf16.msra.mxu0 %v5910
    %6129 = vmatpush.bf16.msra.mxu0 %v5907
    %6130 = vmatpush.bf16.msra.mxu0 %v5904
    %6131 = vmatpush.bf16.msra.mxu0 %v5901
    %6132 = vmatpush.bf16.msra.mxu0 %v5898
    %6133 = vmatmul.bf16.gmra.mxu0 %v5390
    %v6134 = vpop.f32.mrf.mxu0
    %v6135 = vadd.f32 %v6121, %v6134
    %v6136 = vpop.f32.mrf.mxu0
    %v6137 = vadd.f32 %v6123, %v6136
    %6138 = vdwg.mxu0
    %6139 = vmatpush.bf16.msra.mxu0 %v5943
    %6140 = vmatpush.bf16.msra.mxu0 %v5940
    %6141 = vmatpush.bf16.msra.mxu0 %v5937
    %6142 = vmatpush.bf16.msra.mxu0 %v5934
    %6143 = vmatpush.bf16.msra.mxu0 %v5931
    %6144 = vmatpush.bf16.msra.mxu0 %v5928
    %6145 = vmatpush.bf16.msra.mxu0 %v5925
    %6146 = vmatpush.bf16.msra.mxu0 %v5922
    %6147 = vmatmul.bf16.gmra.mxu0 %v5391
    %v6148 = vpop.f32.mrf.mxu0
    %v6149 = vadd.f32 %v6135, %v6148
    %v6150 = vpop.f32.mrf.mxu0
    %v6151 = vadd.f32 %v6137, %v6150
    %6152 = vdwg.mxu0
    %6153 = vmatpush.bf16.msra.mxu0 %v5872
    %6154 = vmatpush.bf16.msra.mxu0 %v5869
    %6155 = vmatpush.bf16.msra.mxu0 %v5866
    %6156 = vmatpush.bf16.msra.mxu0 %v5863
    %6157 = vmatpush.bf16.msra.mxu0 %v5860
    %6158 = vmatpush.bf16.msra.mxu0 %v5857
    %6159 = vmatpush.bf16.msra.mxu0 %v5854
    %6160 = vmatpush.bf16.msra.mxu0 %v5851
    %6161 = vmatmul.bf16.gmra.mxu0 %v5388
    %v6162 = vpop.f32.mrf.mxu0
    %v6163 = vadd.f32 %v5525, %v6162
    %v6164 = vpop.f32.mrf.mxu0
    %v6165 = vadd.f32 %v5525, %v6164
    %6166 = vdwg.mxu0
    %6167 = vmatpush.bf16.msra.mxu0 %v5896
    %6168 = vmatpush.bf16.msra.mxu0 %v5893
    %6169 = vmatpush.bf16.msra.mxu0 %v5890
    %6170 = vmatpush.bf16.msra.mxu0 %v5887
    %6171 = vmatpush.bf16.msra.mxu0 %v5884
    %6172 = vmatpush.bf16.msra.mxu0 %v5881
    %6173 = vmatpush.bf16.msra.mxu0 %v5878
    %6174 = vmatpush.bf16.msra.mxu0 %v5875
    %6175 = vmatmul.bf16.gmra.mxu0 %v5389
    %v6176 = vpop.f32.mrf.mxu0
    %v6177 = vadd.f32 %v6163, %v6176
    %v6178 = vpop.f32.mrf.mxu0
    %v6179 = vadd.f32 %v6165, %v6178
    %6180 = vdwg.mxu0
    %6181 = vmatpush.bf16.msra.mxu0 %v5920
    %6182 = vmatpush.bf16.msra.mxu0 %v5917
    %6183 = vmatpush.bf16.msra.mxu0 %v5914
    %6184 = vmatpush.bf16.msra.mxu0 %v5911
    %6185 = vmatpush.bf16.msra.mxu0 %v5908
    %6186 = vmatpush.bf16.msra.mxu0 %v5905
    %6187 = vmatpush.bf16.msra.mxu0 %v5902
    %6188 = vmatpush.bf16.msra.mxu0 %v5899
    %6189 = vmatmul.bf16.gmra.mxu0 %v5390
    %v6190 = vpop.f32.mrf.mxu0
    %v6191 = vadd.f32 %v6177, %v6190
    %v6192 = vpop.f32.mrf.mxu0
    %v6193 = vadd.f32 %v6179, %v6192
    %6194 = vdwg.mxu0
    %6195 = vmatpush.bf16.msra.mxu0 %v5944
    %6196 = vmatpush.bf16.msra.mxu0 %v5941
    %6197 = vmatpush.bf16.msra.mxu0 %v5938
    %6198 = vmatpush.bf16.msra.mxu0 %v5935
    %6199 = vmatpush.bf16.msra.mxu0 %v5932
    %6200 = vmatpush.bf16.msra.mxu0 %v5929
    %6201 = vmatpush.bf16.msra.mxu0 %v5926
    %6202 = vmatpush.bf16.msra.mxu0 %v5923
    %6203 = vmatmul.bf16.gmra.mxu0 %v5391
    %v6204 = vpop.f32.mrf.mxu0
    %v6205 = vadd.f32 %v6191, %v6204
    %v6206 = vpop.f32.mrf.mxu0
    %v6207 = vadd.f32 %v6193, %v6206
    %6208 = vdwg.mxu0
    %v6209 = vmax.f32 %v6093, 0.0
    %v6210 = vmax.f32 %v6149, 0.0
    %v6211 = vmax.f32 %v6205, 0.0
    %v6212 = vmax.f32 %v6095, 0.0
    %v6213 = vmax.f32 %v6151, 0.0
    %v6214 = vmax.f32 %v6207, 0.0
    %v6215 = vpack.c.bf16 %v6212, %v6209
    %v6216 = vpack.c.bf16 %v6213, %v6210
    %v6217 = vpack.c.bf16 %v6214, %v6211
    %v6218 = vld [vmem:[#allocation12] sm:$0xf]
    %v6219 = vld [vmem:[#allocation12 + $0x4] sm:$0xf]
    %v6220 = vld [vmem:[#allocation12 + $0x8] sm:$0xf]
    %v6221 = vld [vmem:[#allocation12 + $0xc] sm:$0xf]
    %v6222 = vld [vmem:[#allocation12 + $0x10] sm:$0xf]
    %v6223 = vld [vmem:[#allocation12 + $0x14] sm:$0xf]
    %v6224 = vld [vmem:[#allocation12 + $0x18] sm:$0xf]
    %v6225 = vld [vmem:[#allocation12 + $0x1c] sm:$0xf]
    %v6226 = vld [vmem:[#allocation12 + $0x20] sm:$0xf]
    %v6227 = vld [vmem:[#allocation12 + $0x24] sm:$0xf]
    %v6228 = vld [vmem:[#allocation12 + $0x28] sm:$0xf]
    %v6229 = vld [vmem:[#allocation12 + $0x2c] sm:$0xf]
    %v6230 = vld [vmem:[#allocation12 + $0x30] sm:$0xf]
    %v6231 = vld [vmem:[#allocation12 + $0x34] sm:$0xf]
    %v6232 = vld [vmem:[#allocation12 + $0x38] sm:$0xf]
    %v6233 = vld [vmem:[#allocation12 + $0x3c] sm:$0xf]
    %v6234 = vld [vmem:[#allocation12 + $0x40] sm:$0xf]
    %v6235 = vld [vmem:[#allocation12 + $0x44] sm:$0xf]
    %v6236 = vld [vmem:[#allocation12 + $0x48] sm:$0xf]
    %v6237 = vld [vmem:[#allocation12 + $0x4c] sm:$0xf]
    %v6238 = vld [vmem:[#allocation12 + $0x50] sm:$0xf]
    %v6239 = vld [vmem:[#allocation12 + $0x54] sm:$0xf]
    %v6240 = vld [vmem:[#allocation12 + $0x58] sm:$0xf]
    %v6241 = vld [vmem:[#allocation12 + $0x5c] sm:$0xf]
    %v6242 = vld [vmem:[#allocation12 + $0x60] sm:$0xf]
    %v6243 = vld [vmem:[#allocation12 + $0x64] sm:$0xf]
    %v6244 = vld [vmem:[#allocation12 + $0x68] sm:$0xf]
    %v6245 = vld [vmem:[#allocation12 + $0x6c] sm:$0xf]
    %v6246 = vld [vmem:[#allocation12 + $0x70] sm:$0xf]
    %v6247 = vld [vmem:[#allocation12 + $0x74] sm:$0xf]
    %v6248 = vld [vmem:[#allocation12 + $0x78] sm:$0xf]
    %v6249 = vld [vmem:[#allocation12 + $0x7c] sm:$0xf]
    %v6250 = vld [vmem:[#allocation12 + $0x80] sm:$0xf]
    %v6251 = vld [vmem:[#allocation12 + $0x84] sm:$0xf]
    %v6252 = vld [vmem:[#allocation12 + $0x88] sm:$0xf]
    %v6253 = vld [vmem:[#allocation12 + $0x8c] sm:$0xf]
    %v6254 = vld [vmem:[#allocation12 + $0x90] sm:$0xf]
    %v6255 = vld [vmem:[#allocation12 + $0x94] sm:$0xf]
    %v6256 = vld [vmem:[#allocation12 + $0x98] sm:$0xf]
    %v6257 = vld [vmem:[#allocation12 + $0x9c] sm:$0xf]
    %v6258 = vld [vmem:[#allocation12 + $0xa0] sm:$0xf]
    %v6259 = vld [vmem:[#allocation12 + $0xa4] sm:$0xf]
    %v6260 = vld [vmem:[#allocation12 + $0xa8] sm:$0xf]
    %v6261 = vld [vmem:[#allocation12 + $0xac] sm:$0xf]
    %v6262 = vld [vmem:[#allocation12 + $0xb0] sm:$0xf]
    %v6263 = vld [vmem:[#allocation12 + $0xb4] sm:$0xf]
    %v6264 = vld [vmem:[#allocation12 + $0xb8] sm:$0xf]
    %v6265 = vld [vmem:[#allocation12 + $0xbc] sm:$0xf]
    %v6266 = vld [vmem:[%s8 + $0x6] ss:$0 sm:$0xff]
    %v6315 = vunpack.c.l.b16 %v6218
    %v6316 = vunpack.c.l.b16 %v6219
    %v6317 = vunpack.c.l.b16 %v6220
    %v6318 = vunpack.c.l.b16 %v6221
    %v6319 = vunpack.c.l.b16 %v6222
    %v6320 = vunpack.c.l.b16 %v6223
    %v6321 = vunpack.c.l.b16 %v6224
    %v6322 = vunpack.c.l.b16 %v6225
    %v6323 = vunpack.c.l.b16 %v6226
    %v6324 = vunpack.c.l.b16 %v6227
    %v6325 = vunpack.c.l.b16 %v6228
    %v6326 = vunpack.c.l.b16 %v6229
    %v6327 = vunpack.c.l.b16 %v6230
    %v6328 = vunpack.c.l.b16 %v6231
    %v6329 = vunpack.c.l.b16 %v6232
    %v6330 = vunpack.c.l.b16 %v6233
    %v6331 = vunpack.c.l.b16 %v6234
    %v6332 = vunpack.c.l.b16 %v6235
    %v6333 = vunpack.c.l.b16 %v6236
    %v6334 = vunpack.c.l.b16 %v6237
    %v6335 = vunpack.c.l.b16 %v6238
    %v6336 = vunpack.c.l.b16 %v6239
    %v6337 = vunpack.c.l.b16 %v6240
    %v6338 = vunpack.c.l.b16 %v6241
    %v6339 = vunpack.c.l.b16 %v6242
    %v6340 = vunpack.c.l.b16 %v6243
    %v6341 = vunpack.c.l.b16 %v6244
    %v6342 = vunpack.c.l.b16 %v6245
    %v6343 = vunpack.c.l.b16 %v6246
    %v6344 = vunpack.c.l.b16 %v6247
    %v6345 = vunpack.c.l.b16 %v6248
    %v6346 = vunpack.c.l.b16 %v6249
    %v6347 = vunpack.c.l.b16 %v6250
    %v6348 = vunpack.c.l.b16 %v6251
    %v6349 = vunpack.c.l.b16 %v6252
    %v6350 = vunpack.c.l.b16 %v6253
    %v6351 = vunpack.c.l.b16 %v6254
    %v6352 = vunpack.c.l.b16 %v6255
    %v6353 = vunpack.c.l.b16 %v6256
    %v6354 = vunpack.c.l.b16 %v6257
    %v6355 = vunpack.c.l.b16 %v6258
    %v6356 = vunpack.c.l.b16 %v6259
    %v6357 = vunpack.c.l.b16 %v6260
    %v6358 = vunpack.c.l.b16 %v6261
    %v6359 = vunpack.c.l.b16 %v6262
    %v6360 = vunpack.c.l.b16 %v6263
    %v6361 = vunpack.c.l.b16 %v6264
    %v6362 = vunpack.c.l.b16 %v6265
    %v6363 = vpack.c.b16 %v6316, %v6315
    %v6364 = vpack.c.b16 %v6318, %v6317
    %v6365 = vpack.c.b16 %v6320, %v6319
    %v6366 = vpack.c.b16 %v6322, %v6321
    %v6367 = vpack.c.b16 %v6324, %v6323
    %v6368 = vpack.c.b16 %v6326, %v6325
    %v6369 = vpack.c.b16 %v6328, %v6327
    %v6370 = vpack.c.b16 %v6330, %v6329
    %v6371 = vpack.c.b16 %v6332, %v6331
    %v6372 = vpack.c.b16 %v6334, %v6333
    %v6373 = vpack.c.b16 %v6336, %v6335
    %v6374 = vpack.c.b16 %v6338, %v6337
    %v6375 = vpack.c.b16 %v6340, %v6339
    %v6376 = vpack.c.b16 %v6342, %v6341
    %v6377 = vpack.c.b16 %v6344, %v6343
    %v6378 = vpack.c.b16 %v6346, %v6345
    %v6379 = vpack.c.b16 %v6348, %v6347
    %v6380 = vpack.c.b16 %v6350, %v6349
    %v6381 = vpack.c.b16 %v6352, %v6351
    %v6382 = vpack.c.b16 %v6354, %v6353
    %v6383 = vpack.c.b16 %v6356, %v6355
    %v6384 = vpack.c.b16 %v6358, %v6357
    %v6385 = vpack.c.b16 %v6360, %v6359
    %v6386 = vpack.c.b16 %v6362, %v6361
    %6411 = vmatpush.bf16.msra.mxu0 %v6370
    %6412 = vmatpush.bf16.msra.mxu0 %v6369
    %6413 = vmatpush.bf16.msra.mxu0 %v6368
    %6414 = vmatpush.bf16.msra.mxu0 %v6367
    %6415 = vmatpush.bf16.msra.mxu0 %v6366
    %6416 = vmatpush.bf16.msra.mxu0 %v6365
    %6417 = vmatpush.bf16.msra.mxu0 %v6364
    %6418 = vmatpush.bf16.msra.mxu0 %v6363
    %6419 = vmatmul.bf16.gmra.mxu0 %v6215
    %v6420 = vpop.f32.mrf.mxu0
    %v6421 = vadd.f32 %v6266, %v6420
    %v6422 = vpop.f32.mrf.mxu0
    %v6423 = vadd.f32 %v6266, %v6422
    %6424 = vdwg.mxu0
    %6425 = vmatpush.bf16.msra.mxu0 %v6378
    %6426 = vmatpush.bf16.msra.mxu0 %v6377
    %6427 = vmatpush.bf16.msra.mxu0 %v6376
    %6428 = vmatpush.bf16.msra.mxu0 %v6375
    %6429 = vmatpush.bf16.msra.mxu0 %v6374
    %6430 = vmatpush.bf16.msra.mxu0 %v6373
    %6431 = vmatpush.bf16.msra.mxu0 %v6372
    %6432 = vmatpush.bf16.msra.mxu0 %v6371
    %6433 = vmatmul.bf16.gmra.mxu0 %v6216
    %v6434 = vpop.f32.mrf.mxu0
    %v6435 = vadd.f32 %v6421, %v6434
    %v6436 = vpop.f32.mrf.mxu0
    %v6437 = vadd.f32 %v6423, %v6436
    %6438 = vdwg.mxu0
    %6439 = vmatpush.bf16.msra.mxu0 %v6386
    %6440 = vmatpush.bf16.msra.mxu0 %v6385
    %6441 = vmatpush.bf16.msra.mxu0 %v6384
    %6442 = vmatpush.bf16.msra.mxu0 %v6383
    %6443 = vmatpush.bf16.msra.mxu0 %v6382
    %6444 = vmatpush.bf16.msra.mxu0 %v6381
    %6445 = vmatpush.bf16.msra.mxu0 %v6380
    %6446 = vmatpush.bf16.msra.mxu0 %v6379
    %6447 = vmatmul.bf16.gmra.mxu0 %v6217
    %v6448 = vpop.f32.mrf.mxu0
    %v6449 = vadd.f32 %v6435, %v6448
    %v6450 = vpop.f32.mrf.mxu0
    %v6451 = vadd.f32 %v6437, %v6450
    %6452 = vdwg.mxu0
    %v6453 = vpack.c.bf16 %v6449, %v6449
    %v6454 = vpack.c.bf16 %v6451, %v6451
    %6455 = vst [vmem:[%s9] sm:$0xf] %v6453
    %6456 = vst [vmem:[%s9 + $0x4] sm:$0xf] %v6454
    // Predicated region
    $region66: #{qnetwork_forward.1} parent=1 // pred_check
      _
    $region67: #{qnetwork_forward.1} parent=1 // pred_check_branch
      %6458 = sbr.rel (0) target = $region69
    $region68: #{qnetwork_forward.1} parent=1 // pred_region
      _
    $region69: #{qnetwork_forward.1} parent=1 // pred_fallthru
      _
    // Predicated region
    $region70: #{qnetwork_forward.1} parent=1 // pred_check
      _
    $region71: #{qnetwork_forward.1} parent=1 // pred_check_branch
      %6460 = sbr.rel (0) target = $region73
    $region72: #{qnetwork_forward.1} parent=1 // pred_region
      _
    $region73: #{qnetwork_forward.1} parent=1 // pred_fallthru
      _
    %6461 = vsyncpa [#allocation3], 1
    %6462 = vsyncpa [#allocation5], 1
    %6463 = vsyncpa [#allocation8], 1
    %6464 = vsyncpa [#allocation11], 1

// kernel: qnetwork_forward.1
$region0: #{qnetwork_forward.1}
  #allocation0 [shape = 'u32[]', space=smem, size = 0x4, offset = 0x4, fixed_abs, tag = 'smem constant byte address 0x4 - core index']
  #allocation1 [shape = 'u32[72,128]{1,0:T(1,128)}', space=vmem, size = 0x9000, scoped, tag = 'internal scratch']
  %s0 = inlined_call_operand.vmem [shape: bf16[16,128], index: 0, kind: input, shape index: {}]
  %s1 = inlined_call_operand.hbm [shape: bf16[128,384], index: 1, kind: input, shape index: {}]
  %s2 = inlined_call_operand.hbm [shape: bf16[384,512], index: 2, kind: input, shape index: {}]
  %s3 = inlined_call_operand.hbm [shape: bf16[512,640], index: 3, kind: input, shape index: {}]
  %s4 = inlined_call_operand.hbm [shape: bf16[640,640], index: 4, kind: input, shape index: {}]
  %s5 = inlined_call_operand.hbm [shape: bf16[640,512], index: 5, kind: input, shape index: {}]
  %s6 = inlined_call_operand.hbm [shape: bf16[512,384], index: 6, kind: input, shape index: {}]
  %s7 = inlined_call_operand.hbm [shape: bf16[384,128], index: 7, kind: input, shape index: {}]
  %s8 = inlined_call_operand.vmem [shape: f32[8,640], index: 8, kind: input, shape index: {}]
  %s9 = inlined_call_operand.vmem [shape: bf16[16,128], index: 9, kind: output, shape index: {}]
  %s10 = sld [smem:[#allocation0]]
  $region74: #{qnetwork_forward.1} parent=0
    _
  %s12 = ssub.s32 1, %s10
  %s13 = scalar_select 0, %s12, %s10
  $region1: #{qnetwork_forward.1} parent=0
    #allocation2 [shape = 'u8[98304]{0}', space=vmem, size = 0x18000, scoped, tag = 'input window, operand 1, single buffered']
    #allocation3 [shape = 's32[1]{0}', space=sflag, size = 0x4, scoped, tag = 'scoped memory for qnetwork_forward.1']
    #allocation4 [shape = 'u8[393216]{0}', space=vmem, size = 0x60000, scoped, tag = 'input window, operand 2, single buffered']
    #allocation5 [shape = 's32[1]{0}', space=sflag, size = 0x4, scoped, tag = 'scoped memory for qnetwork_forward.1']
    #allocation6 [shape = 'u8[655360]{0}', space=vmem, size = 0xa0000, scoped, tag = 'input window, operand 3, single buffered']
    #allocation7 [shape = 'u8[819200]{0}', space=vmem, size = 0xc8000, scoped, tag = 'input window, operand 4, single buffered']
    #allocation8 [shape = 's32[1]{0}', space=sflag, size = 0x4, scoped, tag = 'scoped memory for qnetwork_forward.1']
    #allocation9 [shape = 'u8[655360]{0}', space=vmem, size = 0xa0000, scoped, tag = 'input window, operand 5, single buffered']
    #allocation10 [shape = 'u8[393216]{0}', space=vmem, size = 0x60000, scoped, tag = 'input window, operand 6, single buffered']
    #allocation11 [shape = 's32[1]{0}', space=sflag, size = 0x4, scoped, tag = 'scoped memory for qnetwork_forward.1']
    #allocation12 [shape = 'u8[98304]{0}', space=vmem, size = 0x18000, scoped, tag = 'input window, operand 7, single buffered']
    %14 = vsyncpa [#allocation3], 0
    %15 = vsyncpa [#allocation5], 0
    %16 = vsyncpa [#allocation8], 0
    %17 = vsyncpa [#allocation11], 0
    // Predicated region
    $region2: #{qnetwork_forward.1} parent=1 // pred_check
      _
    $region3: #{qnetwork_forward.1} parent=1 // pred_check_branch
      %19 = sbr.rel (0) target = $region5
    $region4: #{qnetwork_forward.1} parent=1 // pred_region
      _
    $region5: #{qnetwork_forward.1} parent=1 // pred_fallthru
      _
    // Predicated region
    $region6: #{qnetwork_forward.1} parent=1 // pred_check
      _
    $region7: #{qnetwork_forward.1} parent=1 // pred_check_branch
      %21 = sbr.rel (0) target = $region9
    $region8: #{qnetwork_forward.1} parent=1 // pred_region
      %23 = vsyncadd [#allocation3], 0
      %s24 = sshll.u32 %s1, 4
      %s25 = int_to_ptr.hbm [resolvable:$true] %s24
      %s26 = sshll.u32 [#allocation2], 4
      %s27 = int_to_ptr.vmem [resolvable:$true] %s26
      %32 = dma.hbm_to_vmem [thread:$0]  %s25, 3072, %s27, [#allocation3], 192, 192, 12
    $region9: #{qnetwork_forward.1} parent=1 // pred_fallthru
      _
    // Predicated region
    $region10: #{qnetwork_forward.1} parent=1 // pred_check
      _
    $region11: #{qnetwork_forward.1} parent=1 // pred_check_branch
      %34 = sbr.rel (0) target = $region13
    $region12: #{qnetwork_forward.1} parent=1 // pred_region
      %36 = vsyncadd [#allocation5], 0
      %s37 = sshll.u32 %s2, 4
      %s38 = int_to_ptr.hbm [resolvable:$true] %s37
      %s39 = sshll.u32 [#allocation4], 4
      %s40 = int_to_ptr.vmem [resolvable:$true] %s39
      %45 = dma.hbm_to_vmem [thread:$0]  %s38, 12288, %s40, [#allocation5], 256, 256, 16
    $region13: #{qnetwork_forward.1} parent=1 // pred_fallthru
      _
    // Predicated region
    $region14: #{qnetwork_forward.1} parent=1 // pred_check
      _
    $region15: #{qnetwork_forward.1} parent=1 // pred_check_branch
      %47 = sbr.rel (0) target = $region17
    $region16: #{qnetwork_forward.1} parent=1 // pred_region
      %49 = vsyncadd [#allocation5], 0
      %s50 = sshll.u32 %s3, 4
      %s51 = int_to_ptr.hbm [resolvable:$true] %s50
      %s52 = sshll.u32 [#allocation6], 4
      %s53 = int_to_ptr.vmem [resolvable:$true] %s52
      %58 = dma.hbm_to_vmem [thread:$0]  %s51, 20480, %s53, [#allocation5], 320, 320, 20
    $region17: #{qnetwork_forward.1} parent=1 // pred_fallthru
      _
    // Predicated region
    $region18: #{qnetwork_forward.1} parent=1 // pred_check
      _
    $region19: #{qnetwork_forward.1} parent=1 // pred_check_branch
      %60 = sbr.rel (0) target = $region21
    $region20: #{qnetwork_forward.1} parent=1 // pred_region
      %62 = vsyncadd [#allocation8], 0
      %s63 = sshll.u32 %s4, 4
      %s64 = int_to_ptr.hbm [resolvable:$true] %s63
      %s65 = sshll.u32 [#allocation7], 4
      %s66 = int_to_ptr.vmem [resolvable:$true] %s65
      %71 = dma.hbm_to_vmem [thread:$0]  %s64, 25600, %s66, [#allocation8], 320, 320, 20
    $region21: #{qnetwork_forward.1} parent=1 // pred_fallthru
      _
    // Predicated region
    $region22: #{qnetwork_forward.1} parent=1 // pred_check
      _
    $region23: #{qnetwork_forward.1} parent=1 // pred_check_branch
      %73 = sbr.rel (0) target = $region25
    $region24: #{qnetwork_forward.1} parent=1 // pred_region
      %75 = vsyncadd [#allocation8], 0
      %s76 = sshll.u32 %s5, 4
      %s77 = int_to_ptr.hbm [resolvable:$true] %s76
      %s78 = sshll.u32 [#allocation9], 4
      %s79 = int_to_ptr.vmem [resolvable:$true] %s78
      %84 = dma.hbm_to_vmem [thread:$0]  %s77, 20480, %s79, [#allocation8], 256, 256, 16
    $region25: #{qnetwork_forward.1} parent=1 // pred_fallthru
      _
    // Predicated region
    $region26: #{qnetwork_forward.1} parent=1 // pred_check
      _
    $region27: #{qnetwork_forward.1} parent=1 // pred_check_branch
      %86 = sbr.rel (0) target = $region29
    $region28: #{qnetwork_forward.1} parent=1 // pred_region
      %88 = vsyncadd [#allocation11], 0
      %s89 = sshll.u32 %s6, 4
      %s90 = int_to_ptr.hbm [resolvable:$true] %s89
      %s91 = sshll.u32 [#allocation10], 4
      %s92 = int_to_ptr.vmem [resolvable:$true] %s91
      %97 = dma.hbm_to_vmem [thread:$0]  %s90, 12288, %s92, [#allocation11], 192, 192, 12
    $region29: #{qnetwork_forward.1} parent=1 // pred_fallthru
      _
    // Predicated region
    $region30: #{qnetwork_forward.1} parent=1 // pred_check
      _
    $region31: #{qnetwork_forward.1} parent=1 // pred_check_branch
      %99 = sbr.rel (0) target = $region33
    $region32: #{qnetwork_forward.1} parent=1 // pred_region
      %101 = vsyncadd [#allocation11], 0
      %s102 = sshll.u32 %s7, 4
      %s103 = int_to_ptr.hbm [resolvable:$true] %s102
      %s104 = sshll.u32 [#allocation12], 4
      %s105 = int_to_ptr.vmem [resolvable:$true] %s104
      %110 = dma.hbm_to_vmem [thread:$0]  %s103, 3072, %s105, [#allocation11], 64, 64, 4
    $region33: #{qnetwork_forward.1} parent=1 // pred_fallthru
      _
    // Predicated region
    $region34: #{qnetwork_forward.1} parent=1 // pred_check
      _
    $region35: #{qnetwork_forward.1} parent=1 // pred_check_branch
      %112 = sbr.rel (0) target = $region37
    $region36: #{qnetwork_forward.1} parent=1 // pred_region
      _
    $region37: #{qnetwork_forward.1} parent=1 // pred_fallthru
      _
    // Predicated region
    $region38: #{qnetwork_forward.1} parent=1 // pred_check
      _
    $region39: #{qnetwork_forward.1} parent=1 // pred_check_branch
      %114 = sbr.rel (0) target = $region41
    $region40: #{qnetwork_forward.1} parent=1 // pred_region
      %116 = dma.done [#allocation3], 3072
    $region41: #{qnetwork_forward.1} parent=1 // pred_fallthru
      _
    // Predicated region
    $region42: #{qnetwork_forward.1} parent=1 // pred_check
      _
    $region43: #{qnetwork_forward.1} parent=1 // pred_check_branch
      %118 = sbr.rel (0) target = $region45
    $region44: #{qnetwork_forward.1} parent=1 // pred_region
      %120 = dma.done [#allocation5], 12288
    $region45: #{qnetwork_forward.1} parent=1 // pred_fallthru
      _
    // Predicated region
    $region46: #{qnetwork_forward.1} parent=1 // pred_check
      _
    $region47: #{qnetwork_forward.1} parent=1 // pred_check_branch
      %122 = sbr.rel (0) target = $region49
    $region48: #{qnetwork_forward.1} parent=1 // pred_region
      %124 = dma.done [#allocation5], 20480
    $region49: #{qnetwork_forward.1} parent=1 // pred_fallthru
      _
    // Predicated region
    $region50: #{qnetwork_forward.1} parent=1 // pred_check
      _
    $region51: #{qnetwork_forward.1} parent=1 // pred_check_branch
      %126 = sbr.rel (0) target = $region53
    $region52: #{qnetwork_forward.1} parent=1 // pred_region
      %128 = dma.done [#allocation8], 25600
    $region53: #{qnetwork_forward.1} parent=1 // pred_fallthru
      _
    // Predicated region
    $region54: #{qnetwork_forward.1} parent=1 // pred_check
      _
    $region55: #{qnetwork_forward.1} parent=1 // pred_check_branch
      %130 = sbr.rel (0) target = $region57
    $region56: #{qnetwork_forward.1} parent=1 // pred_region
      %132 = dma.done [#allocation8], 20480
    $region57: #{qnetwork_forward.1} parent=1 // pred_fallthru
      _
    // Predicated region
    $region58: #{qnetwork_forward.1} parent=1 // pred_check
      _
    $region59: #{qnetwork_forward.1} parent=1 // pred_check_branch
      %134 = sbr.rel (0) target = $region61
    $region60: #{qnetwork_forward.1} parent=1 // pred_region
      %136 = dma.done [#allocation11], 12288
    $region61: #{qnetwork_forward.1} parent=1 // pred_fallthru
      _
    // Predicated region
    $region62: #{qnetwork_forward.1} parent=1 // pred_check
      _
    $region63: #{qnetwork_forward.1} parent=1 // pred_check_branch
      %138 = sbr.rel (0) target = $region65
    $region64: #{qnetwork_forward.1} parent=1 // pred_region
      %140 = dma.done [#allocation11], 3072
    $region65: #{qnetwork_forward.1} parent=1 // pred_fallthru
      _
    %v141 = vld [vmem:[%s0] sm:$0xf]
    %v142 = vld [vmem:[%s0 + $0x4] sm:$0xf]
    %v143 = vld [vmem:[#allocation2] sm:$0xff]
    %v144 = vld [vmem:[#allocation2 + $0x8] sm:$0xf]
    %v145 = vld [vmem:[#allocation2 + $0xc] sm:$0xff]
    %v146 = vld [vmem:[#allocation2 + $0x14] sm:$0xf]
    %v147 = vld [vmem:[#allocation2 + $0x18] sm:$0xff]
    %v148 = vld [vmem:[#allocation2 + $0x20] sm:$0xf]
    %v149 = vld [vmem:[#allocation2 + $0x24] sm:$0xff]
    %v150 = vld [vmem:[#allocation2 + $0x2c] sm:$0xf]
    %v151 = vld [vmem:[#allocation2 + $0x30] sm:$0xff]
    %v152 = vld [vmem:[#allocation2 + $0x38] sm:$0xf]
    %v153 = vld [vmem:[#allocation2 + $0x3c] sm:$0xff]
    %v154 = vld [vmem:[#allocation2 + $0x44] sm:$0xf]
    %v155 = vld [vmem:[#allocation2 + $0x48] sm:$0xff]
    %v156 = vld [vmem:[#allocation2 + $0x50] sm:$0xf]
    %v157 = vld [vmem:[#allocation2 + $0x54] sm:$0xff]
    %v158 = vld [vmem:[#allocation2 + $0x5c] sm:$0xf]
    %v159 = vld [vmem:[#allocation2 + $0x60] sm:$0xff]
    %v160 = vld [vmem:[#allocation2 + $0x68] sm:$0xf]
    %v161 = vld [vmem:[#allocation2 + $0x6c] sm:$0xff]
    %v162 = vld [vmem:[#allocation2 + $0x74] sm:$0xf]
    %v163 = vld [vmem:[#allocation2 + $0x78] sm:$0xff]
    %v164 = vld [vmem:[#allocation2 + $0x80] sm:$0xf]
    %v165 = vld [vmem:[#allocation2 + $0x84] sm:$0xff]
    %v166 = vld [vmem:[#allocation2 + $0x8c] sm:$0xf]
    %v167 = vld [vmem:[#allocation2 + $0x90] sm:$0xff]
    %v168 = vld [vmem:[#allocation2 + $0x98] sm:$0xf]
    %v169 = vld [vmem:[#allocation2 + $0x9c] sm:$0xff]
    %v170 = vld [vmem:[#allocation2 + $0xa4] sm:$0xf]
    %v171 = vld [vmem:[#allocation2 + $0xa8] sm:$0xff]
    %v172 = vld [vmem:[#allocation2 + $0xb0] sm:$0xf]
    %v173 = vld [vmem:[#allocation2 + $0xb4] sm:$0xff]
    %v174 = vld [vmem:[#allocation2 + $0xbc] sm:$0xf]
    %v175 = vld [vmem:[%s8] ss:$8 sm:$0x7]
    %v177 = vperm.slane %v175, 0
    %v178 = vperm.slane %v175, 1
    %v179 = vperm.slane %v175, 2
    %v185 = vunpack.c.l.b16 %v141
    %v186 = vunpack.c.l.b16 %v142
    %v187 = vpack.c.b16 %v186, %v185
    %v221 = vunpack.c.l.b16 %v143
    %v222 = vunpack.c.h.b16 %v143
    %v223 = vunpack.c.l.b16 %v144
    %v224 = vunpack.c.l.b16 %v145
    %v225 = vunpack.c.h.b16 %v145
    %v226 = vunpack.c.l.b16 %v146
    %v227 = vunpack.c.l.b16 %v147
    %v228 = vunpack.c.h.b16 %v147
    %v229 = vunpack.c.l.b16 %v148
    %v230 = vunpack.c.l.b16 %v149
    %v231 = vunpack.c.h.b16 %v149
    %v232 = vunpack.c.l.b16 %v150
    %v233 = vunpack.c.l.b16 %v151
    %v234 = vunpack.c.h.b16 %v151
    %v235 = vunpack.c.l.b16 %v152
    %v236 = vunpack.c.l.b16 %v153
    %v237 = vunpack.c.h.b16 %v153
    %v238 = vunpack.c.l.b16 %v154
    %v239 = vunpack.c.l.b16 %v155
    %v240 = vunpack.c.h.b16 %v155
    %v241 = vunpack.c.l.b16 %v156
    %v242 = vunpack.c.l.b16 %v157
    %v243 = vunpack.c.h.b16 %v157
    %v244 = vunpack.c.l.b16 %v158
    %v245 = vunpack.c.l.b16 %v159
    %v246 = vunpack.c.h.b16 %v159
    %v247 = vunpack.c.l.b16 %v160
    %v248 = vunpack.c.l.b16 %v161
    %v249 = vunpack.c.h.b16 %v161
    %v250 = vunpack.c.l.b16 %v162
    %v251 = vunpack.c.l.b16 %v163
    %v252 = vunpack.c.h.b16 %v163
    %v253 = vunpack.c.l.b16 %v164
    %v254 = vunpack.c.l.b16 %v165
    %v255 = vunpack.c.h.b16 %v165
    %v256 = vunpack.c.l.b16 %v166
    %v257 = vunpack.c.l.b16 %v167
    %v258 = vunpack.c.h.b16 %v167
    %v259 = vunpack.c.l.b16 %v168
    %v260 = vunpack.c.l.b16 %v169
    %v261 = vunpack.c.h.b16 %v169
    %v262 = vunpack.c.l.b16 %v170
    %v263 = vunpack.c.l.b16 %v171
    %v264 = vunpack.c.h.b16 %v171
    %v265 = vunpack.c.l.b16 %v172
    %v266 = vunpack.c.l.b16 %v173
    %v267 = vunpack.c.h.b16 %v173
    %v268 = vunpack.c.l.b16 %v174
    %v269 = vpack.c.b16 %v224, %v221
    %v270 = vpack.c.b16 %v225, %v222
    %v271 = vpack.c.b16 %v226, %v223
    %v272 = vpack.c.b16 %v230, %v227
    %v273 = vpack.c.b16 %v231, %v228
    %v274 = vpack.c.b16 %v232, %v229
    %v275 = vpack.c.b16 %v236, %v233
    %v276 = vpack.c.b16 %v237, %v234
    %v277 = vpack.c.b16 %v238, %v235
    %v278 = vpack.c.b16 %v242, %v239
    %v279 = vpack.c.b16 %v243, %v240
    %v280 = vpack.c.b16 %v244, %v241
    %v281 = vpack.c.b16 %v248, %v245
    %v282 = vpack.c.b16 %v249, %v246
    %v283 = vpack.c.b16 %v250, %v247
    %v284 = vpack.c.b16 %v254, %v251
    %v285 = vpack.c.b16 %v255, %v252
    %v286 = vpack.c.b16 %v256, %v253
    %v287 = vpack.c.b16 %v260, %v257
    %v288 = vpack.c.b16 %v261, %v258
    %v289 = vpack.c.b16 %v262, %v259
    %v290 = vpack.c.b16 %v266, %v263
    %v291 = vpack.c.b16 %v267, %v264
    %v292 = vpack.c.b16 %v268, %v265
    %317 = vmatpush.bf16.msra.mxu0 %v290
    %318 = vmatpush.bf16.msra.mxu0 %v287
    %319 = vmatpush.bf16.msra.mxu0 %v284
    %320 = vmatpush.bf16.msra.mxu0 %v281
    %321 = vmatpush.bf16.msra.mxu0 %v278
    %322 = vmatpush.bf16.msra.mxu0 %v275
    %323 = vmatpush.bf16.msra.mxu0 %v272
    %324 = vmatpush.bf16.msra.mxu0 %v269
    %325 = vmatmul.bf16.gmra.mxu0 %v187
    %v326 = vpop.f32.mrf.mxu0
    %v327 = vadd.f32 %v177, %v326
    %v328 = vpop.f32.mrf.mxu0
    %v329 = vadd.f32 %v177, %v328
    %330 = vdwg.mxu0
    %331 = vmatpush.bf16.msra.mxu0 %v291
    %332 = vmatpush.bf16.msra.mxu0 %v288
    %333 = vmatpush.bf16.msra.mxu0 %v285
    %334 = vmatpush.bf16.msra.mxu0 %v282
    %335 = vmatpush.bf16.msra.mxu0 %v279
    %336 = vmatpush.bf16.msra.mxu0 %v276
    %337 = vmatpush.bf16.msra.mxu0 %v273
    %338 = vmatpush.bf16.msra.mxu0 %v270
    %339 = vmatmul.bf16.gmra.mxu0 %v187
    %v340 = vpop.f32.mrf.mxu0
    %v341 = vadd.f32 %v178, %v340
    %v342 = vpop.f32.mrf.mxu0
    %v343 = vadd.f32 %v178, %v342
    %344 = vdwg.mxu0
    %345 = vmatpush.bf16.msra.mxu0 %v292
    %346 = vmatpush.bf16.msra.mxu0 %v289
    %347 = vmatpush.bf16.msra.mxu0 %v286
    %348 = vmatpush.bf16.msra.mxu0 %v283
    %349 = vmatpush.bf16.msra.mxu0 %v280
    %350 = vmatpush.bf16.msra.mxu0 %v277
    %351 = vmatpush.bf16.msra.mxu0 %v274
    %352 = vmatpush.bf16.msra.mxu0 %v271
    %353 = vmatmul.bf16.gmra.mxu0 %v187
    %v354 = vpop.f32.mrf.mxu0
    %v355 = vadd.f32 %v179, %v354
    %v356 = vpop.f32.mrf.mxu0
    %v357 = vadd.f32 %v179, %v356
    %358 = vdwg.mxu0
    %v359 = vmax.f32 %v327, 0.0
    %v360 = vmax.f32 %v341, 0.0
    %v361 = vmax.f32 %v355, 0.0
    %v362 = vmax.f32 %v329, 0.0
    %v363 = vmax.f32 %v343, 0.0
    %v364 = vmax.f32 %v357, 0.0
    %v365 = vpack.c.bf16 %v362, %v359
    %v366 = vpack.c.bf16 %v363, %v360
    %v367 = vpack.c.bf16 %v364, %v361
    %v368 = vld [vmem:[#allocation4] sm:$0xff]
    %v369 = vld [vmem:[#allocation4 + $0x8] sm:$0xff]
    %v370 = vld [vmem:[#allocation4 + $0x10] sm:$0xff]
    %v371 = vld [vmem:[#allocation4 + $0x18] sm:$0xff]
    %v372 = vld [vmem:[#allocation4 + $0x20] sm:$0xff]
    %v373 = vld [vmem:[#allocation4 + $0x28] sm:$0xff]
    %v374 = vld [vmem:[#allocation4 + $0x30] sm:$0xff]
    %v375 = vld [vmem:[#allocation4 + $0x38] sm:$0xff]
    %v376 = vld [vmem:[#allocation4 + $0x40] sm:$0xff]
    %v377 = vld [vmem:[#allocation4 + $0x48] sm:$0xff]
    %v378 = vld [vmem:[#allocation4 + $0x50] sm:$0xff]
    %v379 = vld [vmem:[#allocation4 + $0x58] sm:$0xff]
    %v380 = vld [vmem:[#allocation4 + $0x60] sm:$0xff]
    %v381 = vld [vmem:[#allocation4 + $0x68] sm:$0xff]
    %v382 = vld [vmem:[#allocation4 + $0x70] sm:$0xff]
    %v383 = vld [vmem:[#allocation4 + $0x78] sm:$0xff]
    %v384 = vld [vmem:[#allocation4 + $0x80] sm:$0xff]
    %v385 = vld [vmem:[#allocation4 + $0x88] sm:$0xff]
    %v386 = vld [vmem:[#allocation4 + $0x90] sm:$0xff]
    %v387 = vld [vmem:[#allocation4 + $0x98] sm:$0xff]
    %v388 = vld [vmem:[#allocation4 + $0xa0] sm:$0xff]
    %v389 = vld [vmem:[#allocation4 + $0xa8] sm:$0xff]
    %v390 = vld [vmem:[#allocation4 + $0xb0] sm:$0xff]
    %v391 = vld [vmem:[#allocation4 + $0xb8] sm:$0xff]
    %v392 = vld [vmem:[#allocation4 + $0xc0] sm:$0xff]
    %v393 = vld [vmem:[#allocation4 + $0xc8] sm:$0xff]
    %v394 = vld [vmem:[#allocation4 + $0xd0] sm:$0xff]
    %v395 = vld [vmem:[#allocation4 + $0xd8] sm:$0xff]
    %v396 = vld [vmem:[#allocation4 + $0xe0] sm:$0xff]
    %v397 = vld [vmem:[#allocation4 + $0xe8] sm:$0xff]
    %v398 = vld [vmem:[#allocation4 + $0xf0] sm:$0xff]
    %v399 = vld [vmem:[#allocation4 + $0xf8] sm:$0xff]
    %v400 = vld [vmem:[#allocation4 + $0x100] sm:$0xff]
    %v401 = vld [vmem:[#allocation4 + $0x108] sm:$0xff]
    %v402 = vld [vmem:[#allocation4 + $0x110] sm:$0xff]
    %v403 = vld [vmem:[#allocation4 + $0x118] sm:$0xff]
    %v404 = vld [vmem:[#allocation4 + $0x120] sm:$0xff]
    %v405 = vld [vmem:[#allocation4 + $0x128] sm:$0xff]
    %v406 = vld [vmem:[#allocation4 + $0x130] sm:$0xff]
    %v407 = vld [vmem:[#allocation4 + $0x138] sm:$0xff]
    %v408 = vld [vmem:[#allocation4 + $0x140] sm:$0xff]
    %v409 = vld [vmem:[#allocation4 + $0x148] sm:$0xff]
    %v410 = vld [vmem:[#allocation4 + $0x150] sm:$0xff]
    %v411 = vld [vmem:[#allocation4 + $0x158] sm:$0xff]
    %v412 = vld [vmem:[#allocation4 + $0x160] sm:$0xff]
    %v413 = vld [vmem:[#allocation4 + $0x168] sm:$0xff]
    %v414 = vld [vmem:[#allocation4 + $0x170] sm:$0xff]
    %v415 = vld [vmem:[#allocation4 + $0x178] sm:$0xff]
    %v416 = vld [vmem:[#allocation4 + $0x180] sm:$0xff]
    %v417 = vld [vmem:[#allocation4 + $0x188] sm:$0xff]
    %v418 = vld [vmem:[#allocation4 + $0x190] sm:$0xff]
    %v419 = vld [vmem:[#allocation4 + $0x198] sm:$0xff]
    %v420 = vld [vmem:[#allocation4 + $0x1a0] sm:$0xff]
    %v421 = vld [vmem:[#allocation4 + $0x1a8] sm:$0xff]
    %v422 = vld [vmem:[#allocation4 + $0x1b0] sm:$0xff]
    %v423 = vld [vmem:[#allocation4 + $0x1b8] sm:$0xff]
    %v424 = vld [vmem:[#allocation4 + $0x1c0] sm:$0xff]
    %v425 = vld [vmem:[#allocation4 + $0x1c8] sm:$0xff]
    %v426 = vld [vmem:[#allocation4 + $0x1d0] sm:$0xff]
    %v427 = vld [vmem:[#allocation4 + $0x1d8] sm:$0xff]
    %v428 = vld [vmem:[#allocation4 + $0x1e0] sm:$0xff]
    %v429 = vld [vmem:[#allocation4 + $0x1e8] sm:$0xff]
    %v430 = vld [vmem:[#allocation4 + $0x1f0] sm:$0xff]
    %v431 = vld [vmem:[#allocation4 + $0x1f8] sm:$0xff]
    %v432 = vld [vmem:[#allocation4 + $0x200] sm:$0xff]
    %v433 = vld [vmem:[#allocation4 + $0x208] sm:$0xff]
    %v434 = vld [vmem:[#allocation4 + $0x210] sm:$0xff]
    %v435 = vld [vmem:[#allocation4 + $0x218] sm:$0xff]
    %v436 = vld [vmem:[#allocation4 + $0x220] sm:$0xff]
    %v437 = vld [vmem:[#allocation4 + $0x228] sm:$0xff]
    %v438 = vld [vmem:[#allocation4 + $0x230] sm:$0xff]
    %v439 = vld [vmem:[#allocation4 + $0x238] sm:$0xff]
    %v440 = vld [vmem:[#allocation4 + $0x240] sm:$0xff]
    %v441 = vld [vmem:[#allocation4 + $0x248] sm:$0xff]
    %v442 = vld [vmem:[#allocation4 + $0x250] sm:$0xff]
    %v443 = vld [vmem:[#allocation4 + $0x258] sm:$0xff]
    %v444 = vld [vmem:[#allocation4 + $0x260] sm:$0xff]
    %v445 = vld [vmem:[#allocation4 + $0x268] sm:$0xff]
    %v446 = vld [vmem:[#allocation4 + $0x270] sm:$0xff]
    %v447 = vld [vmem:[#allocation4 + $0x278] sm:$0xff]
    %v448 = vld [vmem:[#allocation4 + $0x280] sm:$0xff]
    %v449 = vld [vmem:[#allocation4 + $0x288] sm:$0xff]
    %v450 = vld [vmem:[#allocation4 + $0x290] sm:$0xff]
    %v451 = vld [vmem:[#allocation4 + $0x298] sm:$0xff]
    %v452 = vld [vmem:[#allocation4 + $0x2a0] sm:$0xff]
    %v453 = vld [vmem:[#allocation4 + $0x2a8] sm:$0xff]
    %v454 = vld [vmem:[#allocation4 + $0x2b0] sm:$0xff]
    %v455 = vld [vmem:[#allocation4 + $0x2b8] sm:$0xff]
    %v456 = vld [vmem:[#allocation4 + $0x2c0] sm:$0xff]
    %v457 = vld [vmem:[#allocation4 + $0x2c8] sm:$0xff]
    %v458 = vld [vmem:[#allocation4 + $0x2d0] sm:$0xff]
    %v459 = vld [vmem:[#allocation4 + $0x2d8] sm:$0xff]
    %v460 = vld [vmem:[#allocation4 + $0x2e0] sm:$0xff]
    %v461 = vld [vmem:[#allocation4 + $0x2e8] sm:$0xff]
    %v462 = vld [vmem:[#allocation4 + $0x2f0] sm:$0xff]
    %v463 = vld [vmem:[#allocation4 + $0x2f8] sm:$0xff]
    %s464 = scalar_lea.vmem %s8, 1
    %v465 = vld [vmem:[%s464] ss:$8 sm:$0xf]
    %v467 = vperm.slane %v465, 0
    %v468 = vperm.slane %v465, 1
    %v469 = vperm.slane %v465, 2
    %v470 = vperm.slane %v465, 3
    %v571 = vunpack.c.l.b16 %v368
    %v572 = vunpack.c.h.b16 %v368
    %v573 = vunpack.c.l.b16 %v369
    %v574 = vunpack.c.h.b16 %v369
    %v575 = vunpack.c.l.b16 %v370
    %v576 = vunpack.c.h.b16 %v370
    %v577 = vunpack.c.l.b16 %v371
    %v578 = vunpack.c.h.b16 %v371
    %v579 = vunpack.c.l.b16 %v372
    %v580 = vunpack.c.h.b16 %v372
    %v581 = vunpack.c.l.b16 %v373
    %v582 = vunpack.c.h.b16 %v373
    %v583 = vunpack.c.l.b16 %v374
    %v584 = vunpack.c.h.b16 %v374
    %v585 = vunpack.c.l.b16 %v375
    %v586 = vunpack.c.h.b16 %v375
    %v587 = vunpack.c.l.b16 %v376
    %v588 = vunpack.c.h.b16 %v376
    %v589 = vunpack.c.l.b16 %v377
    %v590 = vunpack.c.h.b16 %v377
    %v591 = vunpack.c.l.b16 %v378
    %v592 = vunpack.c.h.b16 %v378
    %v593 = vunpack.c.l.b16 %v379
    %v594 = vunpack.c.h.b16 %v379
    %v595 = vunpack.c.l.b16 %v380
    %v596 = vunpack.c.h.b16 %v380
    %v597 = vunpack.c.l.b16 %v381
    %v598 = vunpack.c.h.b16 %v381
    %v599 = vunpack.c.l.b16 %v382
    %v600 = vunpack.c.h.b16 %v382
    %v601 = vunpack.c.l.b16 %v383
    %v602 = vunpack.c.h.b16 %v383
    %v603 = vunpack.c.l.b16 %v384
    %v604 = vunpack.c.h.b16 %v384
    %v605 = vunpack.c.l.b16 %v385
    %v606 = vunpack.c.h.b16 %v385
    %v607 = vunpack.c.l.b16 %v386
    %v608 = vunpack.c.h.b16 %v386
    %v609 = vunpack.c.l.b16 %v387
    %v610 = vunpack.c.h.b16 %v387
    %v611 = vunpack.c.l.b16 %v388
    %v612 = vunpack.c.h.b16 %v388
    %v613 = vunpack.c.l.b16 %v389
    %v614 = vunpack.c.h.b16 %v389
    %v615 = vunpack.c.l.b16 %v390
    %v616 = vunpack.c.h.b16 %v390
    %v617 = vunpack.c.l.b16 %v391
    %v618 = vunpack.c.h.b16 %v391
    %v619 = vunpack.c.l.b16 %v392
    %v620 = vunpack.c.h.b16 %v392
    %v621 = vunpack.c.l.b16 %v393
    %v622 = vunpack.c.h.b16 %v393
    %v623 = vunpack.c.l.b16 %v394
    %v624 = vunpack.c.h.b16 %v394
    %v625 = vunpack.c.l.b16 %v395
    %v626 = vunpack.c.h.b16 %v395
    %v627 = vunpack.c.l.b16 %v396
    %v628 = vunpack.c.h.b16 %v396
    %v629 = vunpack.c.l.b16 %v397
    %v630 = vunpack.c.h.b16 %v397
    %v631 = vunpack.c.l.b16 %v398
    %v632 = vunpack.c.h.b16 %v398
    %v633 = vunpack.c.l.b16 %v399
    %v634 = vunpack.c.h.b16 %v399
    %v635 = vunpack.c.l.b16 %v400
    %v636 = vunpack.c.h.b16 %v400
    %v637 = vunpack.c.l.b16 %v401
    %v638 = vunpack.c.h.b16 %v401
    %v639 = vunpack.c.l.b16 %v402
    %v640 = vunpack.c.h.b16 %v402
    %v641 = vunpack.c.l.b16 %v403
    %v642 = vunpack.c.h.b16 %v403
    %v643 = vunpack.c.l.b16 %v404
    %v644 = vunpack.c.h.b16 %v404
    %v645 = vunpack.c.l.b16 %v405
    %v646 = vunpack.c.h.b16 %v405
    %v647 = vunpack.c.l.b16 %v406
    %v648 = vunpack.c.h.b16 %v406
    %v649 = vunpack.c.l.b16 %v407
    %v650 = vunpack.c.h.b16 %v407
    %v651 = vunpack.c.l.b16 %v408
    %v652 = vunpack.c.h.b16 %v408
    %v653 = vunpack.c.l.b16 %v409
    %v654 = vunpack.c.h.b16 %v409
    %v655 = vunpack.c.l.b16 %v410
    %v656 = vunpack.c.h.b16 %v410
    %v657 = vunpack.c.l.b16 %v411
    %v658 = vunpack.c.h.b16 %v411
    %v659 = vunpack.c.l.b16 %v412
    %v660 = vunpack.c.h.b16 %v412
    %v661 = vunpack.c.l.b16 %v413
    %v662 = vunpack.c.h.b16 %v413
    %v663 = vunpack.c.l.b16 %v414
    %v664 = vunpack.c.h.b16 %v414
    %v665 = vunpack.c.l.b16 %v415
    %v666 = vunpack.c.h.b16 %v415
    %v667 = vunpack.c.l.b16 %v416
    %v668 = vunpack.c.h.b16 %v416
    %v669 = vunpack.c.l.b16 %v417
    %v670 = vunpack.c.h.b16 %v417
    %v671 = vunpack.c.l.b16 %v418
    %v672 = vunpack.c.h.b16 %v418
    %v673 = vunpack.c.l.b16 %v419
    %v674 = vunpack.c.h.b16 %v419
    %v675 = vunpack.c.l.b16 %v420
    %v676 = vunpack.c.h.b16 %v420
    %v677 = vunpack.c.l.b16 %v421
    %v678 = vunpack.c.h.b16 %v421
    %v679 = vunpack.c.l.b16 %v422
    %v680 = vunpack.c.h.b16 %v422
    %v681 = vunpack.c.l.b16 %v423
    %v682 = vunpack.c.h.b16 %v423
    %v683 = vunpack.c.l.b16 %v424
    %v684 = vunpack.c.h.b16 %v424
    %v685 = vunpack.c.l.b16 %v425
    %v686 = vunpack.c.h.b16 %v425
    %v687 = vunpack.c.l.b16 %v426
    %v688 = vunpack.c.h.b16 %v426
    %v689 = vunpack.c.l.b16 %v427
    %v690 = vunpack.c.h.b16 %v427
    %v691 = vunpack.c.l.b16 %v428
    %v692 = vunpack.c.h.b16 %v428
    %v693 = vunpack.c.l.b16 %v429
    %v694 = vunpack.c.h.b16 %v429
    %v695 = vunpack.c.l.b16 %v430
    %v696 = vunpack.c.h.b16 %v430
    %v697 = vunpack.c.l.b16 %v431
    %v698 = vunpack.c.h.b16 %v431
    %v699 = vunpack.c.l.b16 %v432
    %v700 = vunpack.c.h.b16 %v432
    %v701 = vunpack.c.l.b16 %v433
    %v702 = vunpack.c.h.b16 %v433
    %v703 = vunpack.c.l.b16 %v434
    %v704 = vunpack.c.h.b16 %v434
    %v705 = vunpack.c.l.b16 %v435
    %v706 = vunpack.c.h.b16 %v435
    %v707 = vunpack.c.l.b16 %v436
    %v708 = vunpack.c.h.b16 %v436
    %v709 = vunpack.c.l.b16 %v437
    %v710 = vunpack.c.h.b16 %v437
    %v711 = vunpack.c.l.b16 %v438
    %v712 = vunpack.c.h.b16 %v438
    %v713 = vunpack.c.l.b16 %v439
    %v714 = vunpack.c.h.b16 %v439
    %v715 = vunpack.c.l.b16 %v440
    %v716 = vunpack.c.h.b16 %v440
    %v717 = vunpack.c.l.b16 %v441
    %v718 = vunpack.c.h.b16 %v441
    %v719 = vunpack.c.l.b16 %v442
    %v720 = vunpack.c.h.b16 %v442
    %v721 = vunpack.c.l.b16 %v443
    %v722 = vunpack.c.h.b16 %v443
    %v723 = vunpack.c.l.b16 %v444
    %v724 = vunpack.c.h.b16 %v444
    %v725 = vunpack.c.l.b16 %v445
    %v726 = vunpack.c.h.b16 %v445
    %v727 = vunpack.c.l.b16 %v446
    %v728 = vunpack.c.h.b16 %v446
    %v729 = vunpack.c.l.b16 %v447
    %v730 = vunpack.c.h.b16 %v447
    %v731 = vunpack.c.l.b16 %v448
    %v732 = vunpack.c.h.b16 %v448
    %v733 = vunpack.c.l.b16 %v449
    %v734 = vunpack.c.h.b16 %v449
    %v735 = vunpack.c.l.b16 %v450
    %v736 = vunpack.c.h.b16 %v450
    %v737 = vunpack.c.l.b16 %v451
    %v738 = vunpack.c.h.b16 %v451
    %v739 = vunpack.c.l.b16 %v452
    %v740 = vunpack.c.h.b16 %v452
    %v741 = vunpack.c.l.b16 %v453
    %v742 = vunpack.c.h.b16 %v453
    %v743 = vunpack.c.l.b16 %v454
    %v744 = vunpack.c.h.b16 %v454
    %v745 = vunpack.c.l.b16 %v455
    %v746 = vunpack.c.h.b16 %v455
    %v747 = vunpack.c.l.b16 %v456
    %v748 = vunpack.c.h.b16 %v456
    %v749 = vunpack.c.l.b16 %v457
    %v750 = vunpack.c.h.b16 %v457
    %v751 = vunpack.c.l.b16 %v458
    %v752 = vunpack.c.h.b16 %v458
    %v753 = vunpack.c.l.b16 %v459
    %v754 = vunpack.c.h.b16 %v459
    %v755 = vunpack.c.l.b16 %v460
    %v756 = vunpack.c.h.b16 %v460
    %v757 = vunpack.c.l.b16 %v461
    %v758 = vunpack.c.h.b16 %v461
    %v759 = vunpack.c.l.b16 %v462
    %v760 = vunpack.c.h.b16 %v462
    %v761 = vunpack.c.l.b16 %v463
    %v762 = vunpack.c.h.b16 %v463
    %v763 = vpack.c.b16 %v575, %v571
    %v764 = vpack.c.b16 %v576, %v572
    %v765 = vpack.c.b16 %v577, %v573
    %v766 = vpack.c.b16 %v578, %v574
    %v767 = vpack.c.b16 %v583, %v579
    %v768 = vpack.c.b16 %v584, %v580
    %v769 = vpack.c.b16 %v585, %v581
    %v770 = vpack.c.b16 %v586, %v582
    %v771 = vpack.c.b16 %v591, %v587
    %v772 = vpack.c.b16 %v592, %v588
    %v773 = vpack.c.b16 %v593, %v589
    %v774 = vpack.c.b16 %v594, %v590
    %v775 = vpack.c.b16 %v599, %v595
    %v776 = vpack.c.b16 %v600, %v596
    %v777 = vpack.c.b16 %v601, %v597
    %v778 = vpack.c.b16 %v602, %v598
    %v779 = vpack.c.b16 %v607, %v603
    %v780 = vpack.c.b16 %v608, %v604
    %v781 = vpack.c.b16 %v609, %v605
    %v782 = vpack.c.b16 %v610, %v606
    %v783 = vpack.c.b16 %v615, %v611
    %v784 = vpack.c.b16 %v616, %v612
    %v785 = vpack.c.b16 %v617, %v613
    %v786 = vpack.c.b16 %v618, %v614
    %v787 = vpack.c.b16 %v623, %v619
    %v788 = vpack.c.b16 %v624, %v620
    %v789 = vpack.c.b16 %v625, %v621
    %v790 = vpack.c.b16 %v626, %v622
    %v791 = vpack.c.b16 %v631, %v627
    %v792 = vpack.c.b16 %v632, %v628
    %v793 = vpack.c.b16 %v633, %v629
    %v794 = vpack.c.b16 %v634, %v630
    %v795 = vpack.c.b16 %v639, %v635
    %v796 = vpack.c.b16 %v640, %v636
    %v797 = vpack.c.b16 %v641, %v637
    %v798 = vpack.c.b16 %v642, %v638
    %v799 = vpack.c.b16 %v647, %v643
    %v800 = vpack.c.b16 %v648, %v644
    %v801 = vpack.c.b16 %v649, %v645
    %v802 = vpack.c.b16 %v650, %v646
    %v803 = vpack.c.b16 %v655, %v651
    %v804 = vpack.c.b16 %v656, %v652
    %v805 = vpack.c.b16 %v657, %v653
    %v806 = vpack.c.b16 %v658, %v654
    %v807 = vpack.c.b16 %v663, %v659
    %v808 = vpack.c.b16 %v664, %v660
    %v809 = vpack.c.b16 %v665, %v661
    %v810 = vpack.c.b16 %v666, %v662
    %v811 = vpack.c.b16 %v671, %v667
    %v812 = vpack.c.b16 %v672, %v668
    %v813 = vpack.c.b16 %v673, %v669
    %v814 = vpack.c.b16 %v674, %v670
    %v815 = vpack.c.b16 %v679, %v675
    %v816 = vpack.c.b16 %v680, %v676
    %v817 = vpack.c.b16 %v681, %v677
    %v818 = vpack.c.b16 %v682, %v678
    %v819 = vpack.c.b16 %v687, %v683
    %v820 = vpack.c.b16 %v688, %v684
    %v821 = vpack.c.b16 %v689, %v685
    %v822 = vpack.c.b16 %v690, %v686
    %v823 = vpack.c.b16 %v695, %v691
    %v824 = vpack.c.b16 %v696, %v692
    %v825 = vpack.c.b16 %v697, %v693
    %v826 = vpack.c.b16 %v698, %v694
    %v827 = vpack.c.b16 %v703, %v699
    %v828 = vpack.c.b16 %v704, %v700
    %v829 = vpack.c.b16 %v705, %v701
    %v830 = vpack.c.b16 %v706, %v702
    %v831 = vpack.c.b16 %v711, %v707
    %v832 = vpack.c.b16 %v712, %v708
    %v833 = vpack.c.b16 %v713, %v709
    %v834 = vpack.c.b16 %v714, %v710
    %v835 = vpack.c.b16 %v719, %v715
    %v836 = vpack.c.b16 %v720, %v716
    %v837 = vpack.c.b16 %v721, %v717
    %v838 = vpack.c.b16 %v722, %v718
    %v839 = vpack.c.b16 %v727, %v723
    %v840 = vpack.c.b16 %v728, %v724
    %v841 = vpack.c.b16 %v729, %v725
    %v842 = vpack.c.b16 %v730, %v726
    %v843 = vpack.c.b16 %v735, %v731
    %v844 = vpack.c.b16 %v736, %v732
    %v845 = vpack.c.b16 %v737, %v733
    %v846 = vpack.c.b16 %v738, %v734
    %v847 = vpack.c.b16 %v743, %v739
    %v848 = vpack.c.b16 %v744, %v740
    %v849 = vpack.c.b16 %v745, %v741
    %v850 = vpack.c.b16 %v746, %v742
    %v851 = vpack.c.b16 %v751, %v747
    %v852 = vpack.c.b16 %v752, %v748
    %v853 = vpack.c.b16 %v753, %v749
    %v854 = vpack.c.b16 %v754, %v750
    %v855 = vpack.c.b16 %v759, %v755
    %v856 = vpack.c.b16 %v760, %v756
    %v857 = vpack.c.b16 %v761, %v757
    %v858 = vpack.c.b16 %v762, %v758
    %955 = vmatpush.bf16.msra.mxu0 %v791
    %956 = vmatpush.bf16.msra.mxu0 %v787
    %957 = vmatpush.bf16.msra.mxu0 %v783
    %958 = vmatpush.bf16.msra.mxu0 %v779
    %959 = vmatpush.bf16.msra.mxu0 %v775
    %960 = vmatpush.bf16.msra.mxu0 %v771
    %961 = vmatpush.bf16.msra.mxu0 %v767
    %962 = vmatpush.bf16.msra.mxu0 %v763
    %963 = vmatmul.bf16.gmra.mxu0 %v365
    %v964 = vpop.f32.mrf.mxu0
    %v965 = vadd.f32 %v467, %v964
    %v966 = vpop.f32.mrf.mxu0
    %v967 = vadd.f32 %v467, %v966
    %968 = vdwg.mxu0
    %969 = vmatpush.bf16.msra.mxu0 %v823
    %970 = vmatpush.bf16.msra.mxu0 %v819
    %971 = vmatpush.bf16.msra.mxu0 %v815
    %972 = vmatpush.bf16.msra.mxu0 %v811
    %973 = vmatpush.bf16.msra.mxu0 %v807
    %974 = vmatpush.bf16.msra.mxu0 %v803
    %975 = vmatpush.bf16.msra.mxu0 %v799
    %976 = vmatpush.bf16.msra.mxu0 %v795
    %977 = vmatmul.bf16.gmra.mxu0 %v366
    %v978 = vpop.f32.mrf.mxu0
    %v979 = vadd.f32 %v965, %v978
    %v980 = vpop.f32.mrf.mxu0
    %v981 = vadd.f32 %v967, %v980
    %982 = vdwg.mxu0
    %983 = vmatpush.bf16.msra.mxu0 %v855
    %984 = vmatpush.bf16.msra.mxu0 %v851
    %985 = vmatpush.bf16.msra.mxu0 %v847
    %986 = vmatpush.bf16.msra.mxu0 %v843
    %987 = vmatpush.bf16.msra.mxu0 %v839
    %988 = vmatpush.bf16.msra.mxu0 %v835
    %989 = vmatpush.bf16.msra.mxu0 %v831
    %990 = vmatpush.bf16.msra.mxu0 %v827
    %991 = vmatmul.bf16.gmra.mxu0 %v367
    %v992 = vpop.f32.mrf.mxu0
    %v993 = vadd.f32 %v979, %v992
    %v994 = vpop.f32.mrf.mxu0
    %v995 = vadd.f32 %v981, %v994
    %996 = vdwg.mxu0
    %997 = vmatpush.bf16.msra.mxu0 %v792
    %998 = vmatpush.bf16.msra.mxu0 %v788
    %999 = vmatpush.bf16.msra.mxu0 %v784
    %1000 = vmatpush.bf16.msra.mxu0 %v780
    %1001 = vmatpush.bf16.msra.mxu0 %v776
    %1002 = vmatpush.bf16.msra.mxu0 %v772
    %1003 = vmatpush.bf16.msra.mxu0 %v768
    %1004 = vmatpush.bf16.msra.mxu0 %v764
    %1005 = vmatmul.bf16.gmra.mxu0 %v365
    %v1006 = vpop.f32.mrf.mxu0
    %v1007 = vadd.f32 %v468, %v1006
    %v1008 = vpop.f32.mrf.mxu0
    %v1009 = vadd.f32 %v468, %v1008
    %1010 = vdwg.mxu0
    %1011 = vmatpush.bf16.msra.mxu0 %v824
    %1012 = vmatpush.bf16.msra.mxu0 %v820
    %1013 = vmatpush.bf16.msra.mxu0 %v816
    %1014 = vmatpush.bf16.msra.mxu0 %v812
    %1015 = vmatpush.bf16.msra.mxu0 %v808
    %1016 = vmatpush.bf16.msra.mxu0 %v804
    %1017 = vmatpush.bf16.msra.mxu0 %v800
    %1018 = vmatpush.bf16.msra.mxu0 %v796
    %1019 = vmatmul.bf16.gmra.mxu0 %v366
    %v1020 = vpop.f32.mrf.mxu0
    %v1021 = vadd.f32 %v1007, %v1020
    %v1022 = vpop.f32.mrf.mxu0
    %v1023 = vadd.f32 %v1009, %v1022
    %1024 = vdwg.mxu0
    %1025 = vmatpush.bf16.msra.mxu0 %v856
    %1026 = vmatpush.bf16.msra.mxu0 %v852
    %1027 = vmatpush.bf16.msra.mxu0 %v848
    %1028 = vmatpush.bf16.msra.mxu0 %v844
    %1029 = vmatpush.bf16.msra.mxu0 %v840
    %1030 = vmatpush.bf16.msra.mxu0 %v836
    %1031 = vmatpush.bf16.msra.mxu0 %v832
    %1032 = vmatpush.bf16.msra.mxu0 %v828
    %1033 = vmatmul.bf16.gmra.mxu0 %v367
    %v1034 = vpop.f32.mrf.mxu0
    %v1035 = vadd.f32 %v1021, %v1034
    %v1036 = vpop.f32.mrf.mxu0
    %v1037 = vadd.f32 %v1023, %v1036
    %1038 = vdwg.mxu0
    %1039 = vmatpush.bf16.msra.mxu0 %v793
    %1040 = vmatpush.bf16.msra.mxu0 %v789
    %1041 = vmatpush.bf16.msra.mxu0 %v785
    %1042 = vmatpush.bf16.msra.mxu0 %v781
    %1043 = vmatpush.bf16.msra.mxu0 %v777
    %1044 = vmatpush.bf16.msra.mxu0 %v773
    %1045 = vmatpush.bf16.msra.mxu0 %v769
    %1046 = vmatpush.bf16.msra.mxu0 %v765
    %1047 = vmatmul.bf16.gmra.mxu0 %v365
    %v1048 = vpop.f32.mrf.mxu0
    %v1049 = vadd.f32 %v469, %v1048
    %v1050 = vpop.f32.mrf.mxu0
    %v1051 = vadd.f32 %v469, %v1050
    %1052 = vdwg.mxu0
    %1053 = vmatpush.bf16.msra.mxu0 %v825
    %1054 = vmatpush.bf16.msra.mxu0 %v821
    %1055 = vmatpush.bf16.msra.mxu0 %v817
    %1056 = vmatpush.bf16.msra.mxu0 %v813
    %1057 = vmatpush.bf16.msra.mxu0 %v809
    %1058 = vmatpush.bf16.msra.mxu0 %v805
    %1059 = vmatpush.bf16.msra.mxu0 %v801
    %1060 = vmatpush.bf16.msra.mxu0 %v797
    %1061 = vmatmul.bf16.gmra.mxu0 %v366
    %v1062 = vpop.f32.mrf.mxu0
    %v1063 = vadd.f32 %v1049, %v1062
    %v1064 = vpop.f32.mrf.mxu0
    %v1065 = vadd.f32 %v1051, %v1064
    %1066 = vdwg.mxu0
    %1067 = vmatpush.bf16.msra.mxu0 %v857
    %1068 = vmatpush.bf16.msra.mxu0 %v853
    %1069 = vmatpush.bf16.msra.mxu0 %v849
    %1070 = vmatpush.bf16.msra.mxu0 %v845
    %1071 = vmatpush.bf16.msra.mxu0 %v841
    %1072 = vmatpush.bf16.msra.mxu0 %v837
    %1073 = vmatpush.bf16.msra.mxu0 %v833
    %1074 = vmatpush.bf16.msra.mxu0 %v829
    %1075 = vmatmul.bf16.gmra.mxu0 %v367
    %v1076 = vpop.f32.mrf.mxu0
    %v1077 = vadd.f32 %v1063, %v1076
    %v1078 = vpop.f32.mrf.mxu0
    %v1079 = vadd.f32 %v1065, %v1078
    %1080 = vdwg.mxu0
    %1081 = vmatpush.bf16.msra.mxu0 %v794
    %1082 = vmatpush.bf16.msra.mxu0 %v790
    %1083 = vmatpush.bf16.msra.mxu0 %v786
    %1084 = vmatpush.bf16.msra.mxu0 %v782
    %1085 = vmatpush.bf16.msra.mxu0 %v778
    %1086 = vmatpush.bf16.msra.mxu0 %v774
    %1087 = vmatpush.bf16.msra.mxu0 %v770
    %1088 = vmatpush.bf16.msra.mxu0 %v766
    %1089 = vmatmul.bf16.gmra.mxu0 %v365
    %v1090 = vpop.f32.mrf.mxu0
    %v1091 = vadd.f32 %v470, %v1090
    %v1092 = vpop.f32.mrf.mxu0
    %v1093 = vadd.f32 %v470, %v1092
    %1094 = vdwg.mxu0
    %1095 = vmatpush.bf16.msra.mxu0 %v826
    %1096 = vmatpush.bf16.msra.mxu0 %v822
    %1097 = vmatpush.bf16.msra.mxu0 %v818
    %1098 = vmatpush.bf16.msra.mxu0 %v814
    %1099 = vmatpush.bf16.msra.mxu0 %v810
    %1100 = vmatpush.bf16.msra.mxu0 %v806
    %1101 = vmatpush.bf16.msra.mxu0 %v802
    %1102 = vmatpush.bf16.msra.mxu0 %v798
    %1103 = vmatmul.bf16.gmra.mxu0 %v366
    %v1104 = vpop.f32.mrf.mxu0
    %v1105 = vadd.f32 %v1091, %v1104
    %v1106 = vpop.f32.mrf.mxu0
    %v1107 = vadd.f32 %v1093, %v1106
    %1108 = vdwg.mxu0
    %1109 = vmatpush.bf16.msra.mxu0 %v858
    %1110 = vmatpush.bf16.msra.mxu0 %v854
    %1111 = vmatpush.bf16.msra.mxu0 %v850
    %1112 = vmatpush.bf16.msra.mxu0 %v846
    %1113 = vmatpush.bf16.msra.mxu0 %v842
    %1114 = vmatpush.bf16.msra.mxu0 %v838
    %1115 = vmatpush.bf16.msra.mxu0 %v834
    %1116 = vmatpush.bf16.msra.mxu0 %v830
    %1117 = vmatmul.bf16.gmra.mxu0 %v367
    %v1118 = vpop.f32.mrf.mxu0
    %v1119 = vadd.f32 %v1105, %v1118
    %v1120 = vpop.f32.mrf.mxu0
    %v1121 = vadd.f32 %v1107, %v1120
    %1122 = vdwg.mxu0
    %v1123 = vmax.f32 %v993, 0.0
    %v1124 = vmax.f32 %v1035, 0.0
    %v1125 = vmax.f32 %v1077, 0.0
    %v1126 = vmax.f32 %v1119, 0.0
    %v1127 = vmax.f32 %v995, 0.0
    %v1128 = vmax.f32 %v1037, 0.0
    %v1129 = vmax.f32 %v1079, 0.0
    %v1130 = vmax.f32 %v1121, 0.0
    %v1131 = vpack.c.bf16 %v1127, %v1123
    %v1132 = vpack.c.bf16 %v1128, %v1124
    %v1133 = vpack.c.bf16 %v1129, %v1125
    %v1134 = vpack.c.bf16 %v1130, %v1126
    %v1135 = vld [vmem:[#allocation6] sm:$0xff]
    %v1136 = vld [vmem:[#allocation6 + $0x8] sm:$0xff]
    %v1137 = vld [vmem:[#allocation6 + $0x10] sm:$0xf]
    %v1138 = vld [vmem:[#allocation6 + $0x14] sm:$0xff]
    %v1139 = vld [vmem:[#allocation6 + $0x1c] sm:$0xff]
    %v1140 = vld [vmem:[#allocation6 + $0x24] sm:$0xf]
    %v1141 = vld [vmem:[#allocation6 + $0x28] sm:$0xff]
    %v1142 = vld [vmem:[#allocation6 + $0x30] sm:$0xff]
    %v1143 = vld [vmem:[#allocation6 + $0x38] sm:$0xf]
    %v1144 = vld [vmem:[#allocation6 + $0x3c] sm:$0xff]
    %v1145 = vld [vmem:[#allocation6 + $0x44] sm:$0xff]
    %v1146 = vld [vmem:[#allocation6 + $0x4c] sm:$0xf]
    %v1147 = vld [vmem:[#allocation6 + $0x50] sm:$0xff]
    %v1148 = vld [vmem:[#allocation6 + $0x58] sm:$0xff]
    %v1149 = vld [vmem:[#allocation6 + $0x60] sm:$0xf]
    %v1150 = vld [vmem:[#allocation6 + $0x64] sm:$0xff]
    %v1151 = vld [vmem:[#allocation6 + $0x6c] sm:$0xff]
    %v1152 = vld [vmem:[#allocation6 + $0x74] sm:$0xf]
    %v1153 = vld [vmem:[#allocation6 + $0x78] sm:$0xff]
    %v1154 = vld [vmem:[#allocation6 + $0x80] sm:$0xff]
    %v1155 = vld [vmem:[#allocation6 + $0x88] sm:$0xf]
    %v1156 = vld [vmem:[#allocation6 + $0x8c] sm:$0xff]
    %v1157 = vld [vmem:[#allocation6 + $0x94] sm:$0xff]
    %v1158 = vld [vmem:[#allocation6 + $0x9c] sm:$0xf]
    %v1159 = vld [vmem:[#allocation6 + $0xa0] sm:$0xff]
    %v1160 = vld [vmem:[#allocation6 + $0xa8] sm:$0xff]
    %v1161 = vld [vmem:[#allocation6 + $0xb0] sm:$0xf]
    %v1162 = vld [vmem:[#allocation6 + $0xb4] sm:$0xff]
    %v1163 = vld [vmem:[#allocation6 + $0xbc] sm:$0xff]
    %v1164 = vld [vmem:[#allocation6 + $0xc4] sm:$0xf]
    %v1165 = vld [vmem:[#allocation6 + $0xc8] sm:$0xff]
    %v1166 = vld [vmem:[#allocation6 + $0xd0] sm:$0xff]
    %v1167 = vld [vmem:[#allocation6 + $0xd8] sm:$0xf]
    %v1168 = vld [vmem:[#allocation6 + $0xdc] sm:$0xff]
    %v1169 = vld [vmem:[#allocation6 + $0xe4] sm:$0xff]
    %v1170 = vld [vmem:[#allocation6 + $0xec] sm:$0xf]
    %v1171 = vld [vmem:[#allocation6 + $0xf0] sm:$0xff]
    %v1172 = vld [vmem:[#allocation6 + $0xf8] sm:$0xff]
    %v1173 = vld [vmem:[#allocation6 + $0x100] sm:$0xf]
    %v1174 = vld [vmem:[#allocation6 + $0x104] sm:$0xff]
    %v1175 = vld [vmem:[#allocation6 + $0x10c] sm:$0xff]
    %v1176 = vld [vmem:[#allocation6 + $0x114] sm:$0xf]
    %v1177 = vld [vmem:[#allocation6 + $0x118] sm:$0xff]
    %v1178 = vld [vmem:[#allocation6 + $0x120] sm:$0xff]
    %v1179 = vld [vmem:[#allocation6 + $0x128] sm:$0xf]
    %v1180 = vld [vmem:[#allocation6 + $0x12c] sm:$0xff]
    %v1181 = vld [vmem:[#allocation6 + $0x134] sm:$0xff]
    %v1182 = vld [vmem:[#allocation6 + $0x13c] sm:$0xf]
    %v1183 = vld [vmem:[#allocation6 + $0x140] sm:$0xff]
    %v1184 = vld [vmem:[#allocation6 + $0x148] sm:$0xff]
    %v1185 = vld [vmem:[#allocation6 + $0x150] sm:$0xf]
    %v1186 = vld [vmem:[#allocation6 + $0x154] sm:$0xff]
    %v1187 = vld [vmem:[#allocation6 + $0x15c] sm:$0xff]
    %v1188 = vld [vmem:[#allocation6 + $0x164] sm:$0xf]
    %v1189 = vld [vmem:[#allocation6 + $0x168] sm:$0xff]
    %v1190 = vld [vmem:[#allocation6 + $0x170] sm:$0xff]
    %v1191 = vld [vmem:[#allocation6 + $0x178] sm:$0xf]
    %v1192 = vld [vmem:[#allocation6 + $0x17c] sm:$0xff]
    %v1193 = vld [vmem:[#allocation6 + $0x184] sm:$0xff]
    %v1194 = vld [vmem:[#allocation6 + $0x18c] sm:$0xf]
    %v1195 = vld [vmem:[#allocation6 + $0x190] sm:$0xff]
    %v1196 = vld [vmem:[#allocation6 + $0x198] sm:$0xff]
    %v1197 = vld [vmem:[#allocation6 + $0x1a0] sm:$0xf]
    %v1198 = vld [vmem:[#allocation6 + $0x1a4] sm:$0xff]
    %v1199 = vld [vmem:[#allocation6 + $0x1ac] sm:$0xff]
    %v1200 = vld [vmem:[#allocation6 + $0x1b4] sm:$0xf]
    %v1201 = vld [vmem:[#allocation6 + $0x1b8] sm:$0xff]
    %v1202 = vld [vmem:[#allocation6 + $0x1c0] sm:$0xff]
    %v1203 = vld [vmem:[#allocation6 + $0x1c8] sm:$0xf]
    %v1204 = vld [vmem:[#allocation6 + $0x1cc] sm:$0xff]
    %v1205 = vld [vmem:[#allocation6 + $0x1d4] sm:$0xff]
    %v1206 = vld [vmem:[#allocation6 + $0x1dc] sm:$0xf]
    %v1207 = vld [vmem:[#allocation6 + $0x1e0] sm:$0xff]
    %v1208 = vld [vmem:[#allocation6 + $0x1e8] sm:$0xff]
    %v1209 = vld [vmem:[#allocation6 + $0x1f0] sm:$0xf]
    %v1210 = vld [vmem:[#allocation6 + $0x1f4] sm:$0xff]
    %v1211 = vld [vmem:[#allocation6 + $0x1fc] sm:$0xff]
    %v1212 = vld [vmem:[#allocation6 + $0x204] sm:$0xf]
    %v1213 = vld [vmem:[#allocation6 + $0x208] sm:$0xff]
    %v1214 = vld [vmem:[#allocation6 + $0x210] sm:$0xff]
    %v1215 = vld [vmem:[#allocation6 + $0x218] sm:$0xf]
    %v1216 = vld [vmem:[#allocation6 + $0x21c] sm:$0xff]
    %v1217 = vld [vmem:[#allocation6 + $0x224] sm:$0xff]
    %v1218 = vld [vmem:[#allocation6 + $0x22c] sm:$0xf]
    %v1219 = vld [vmem:[#allocation6 + $0x230] sm:$0xff]
    %v1220 = vld [vmem:[#allocation6 + $0x238] sm:$0xff]
    %v1221 = vld [vmem:[#allocation6 + $0x240] sm:$0xf]
    %v1222 = vld [vmem:[#allocation6 + $0x244] sm:$0xff]
    %v1223 = vld [vmem:[#allocation6 + $0x24c] sm:$0xff]
    %v1224 = vld [vmem:[#allocation6 + $0x254] sm:$0xf]
    %v1225 = vld [vmem:[#allocation6 + $0x258] sm:$0xff]
    %v1226 = vld [vmem:[#allocation6 + $0x260] sm:$0xff]
    %v1227 = vld [vmem:[#allocation6 + $0x268] sm:$0xf]
    %v1228 = vld [vmem:[#allocation6 + $0x26c] sm:$0xff]
    %v1229 = vld [vmem:[#allocation6 + $0x274] sm:$0xff]
    %v1230 = vld [vmem:[#allocation6 + $0x27c] sm:$0xf]
    %v1231 = vld [vmem:[#allocation6 + $0x280] sm:$0xff]
    %v1232 = vld [vmem:[#allocation6 + $0x288] sm:$0xff]
    %v1233 = vld [vmem:[#allocation6 + $0x290] sm:$0xf]
    %v1234 = vld [vmem:[#allocation6 + $0x294] sm:$0xff]
    %v1235 = vld [vmem:[#allocation6 + $0x29c] sm:$0xff]
    %v1236 = vld [vmem:[#allocation6 + $0x2a4] sm:$0xf]
    %v1237 = vld [vmem:[#allocation6 + $0x2a8] sm:$0xff]
    %v1238 = vld [vmem:[#allocation6 + $0x2b0] sm:$0xff]
    %v1239 = vld [vmem:[#allocation6 + $0x2b8] sm:$0xf]
    %v1240 = vld [vmem:[#allocation6 + $0x2bc] sm:$0xff]
    %v1241 = vld [vmem:[#allocation6 + $0x2c4] sm:$0xff]
    %v1242 = vld [vmem:[#allocation6 + $0x2cc] sm:$0xf]
    %v1243 = vld [vmem:[#allocation6 + $0x2d0] sm:$0xff]
    %v1244 = vld [vmem:[#allocation6 + $0x2d8] sm:$0xff]
    %v1245 = vld [vmem:[#allocation6 + $0x2e0] sm:$0xf]
    %v1246 = vld [vmem:[#allocation6 + $0x2e4] sm:$0xff]
    %v1247 = vld [vmem:[#allocation6 + $0x2ec] sm:$0xff]
    %v1248 = vld [vmem:[#allocation6 + $0x2f4] sm:$0xf]
    %v1249 = vld [vmem:[#allocation6 + $0x2f8] sm:$0xff]
    %v1250 = vld [vmem:[#allocation6 + $0x300] sm:$0xff]
    %v1251 = vld [vmem:[#allocation6 + $0x308] sm:$0xf]
    %v1252 = vld [vmem:[#allocation6 + $0x30c] sm:$0xff]
    %v1253 = vld [vmem:[#allocation6 + $0x314] sm:$0xff]
    %v1254 = vld [vmem:[#allocation6 + $0x31c] sm:$0xf]
    %v1255 = vld [vmem:[#allocation6 + $0x320] sm:$0xff]
    %v1256 = vld [vmem:[#allocation6 + $0x328] sm:$0xff]
    %v1257 = vld [vmem:[#allocation6 + $0x330] sm:$0xf]
    %v1258 = vld [vmem:[#allocation6 + $0x334] sm:$0xff]
    %v1259 = vld [vmem:[#allocation6 + $0x33c] sm:$0xff]
    %v1260 = vld [vmem:[#allocation6 + $0x344] sm:$0xf]
    %v1261 = vld [vmem:[#allocation6 + $0x348] sm:$0xff]
    %v1262 = vld [vmem:[#allocation6 + $0x350] sm:$0xff]
    %v1263 = vld [vmem:[#allocation6 + $0x358] sm:$0xf]
    %v1264 = vld [vmem:[#allocation6 + $0x35c] sm:$0xff]
    %v1265 = vld [vmem:[#allocation6 + $0x364] sm:$0xff]
    %v1266 = vld [vmem:[#allocation6 + $0x36c] sm:$0xf]
    %v1267 = vld [vmem:[#allocation6 + $0x370] sm:$0xff]
    %v1268 = vld [vmem:[#allocation6 + $0x378] sm:$0xff]
    %v1269 = vld [vmem:[#allocation6 + $0x380] sm:$0xf]
    %v1270 = vld [vmem:[#allocation6 + $0x384] sm:$0xff]
    %v1271 = vld [vmem:[#allocation6 + $0x38c] sm:$0xff]
    %v1272 = vld [vmem:[#allocation6 + $0x394] sm:$0xf]
    %v1273 = vld [vmem:[#allocation6 + $0x398] sm:$0xff]
    %v1274 = vld [vmem:[#allocation6 + $0x3a0] sm:$0xff]
    %v1275 = vld [vmem:[#allocation6 + $0x3a8] sm:$0xf]
    %v1276 = vld [vmem:[#allocation6 + $0x3ac] sm:$0xff]
    %v1277 = vld [vmem:[#allocation6 + $0x3b4] sm:$0xff]
    %v1278 = vld [vmem:[#allocation6 + $0x3bc] sm:$0xf]
    %v1279 = vld [vmem:[#allocation6 + $0x3c0] sm:$0xff]
    %v1280 = vld [vmem:[#allocation6 + $0x3c8] sm:$0xff]
    %v1281 = vld [vmem:[#allocation6 + $0x3d0] sm:$0xf]
    %v1282 = vld [vmem:[#allocation6 + $0x3d4] sm:$0xff]
    %v1283 = vld [vmem:[#allocation6 + $0x3dc] sm:$0xff]
    %v1284 = vld [vmem:[#allocation6 + $0x3e4] sm:$0xf]
    %v1285 = vld [vmem:[#allocation6 + $0x3e8] sm:$0xff]
    %v1286 = vld [vmem:[#allocation6 + $0x3f0] sm:$0xff]
    %v1287 = vld [vmem:[#allocation6 + $0x3f8] sm:$0xf]
    %v1288 = vld [vmem:[#allocation6 + $0x3fc] sm:$0xff]
    %v1289 = vld [vmem:[#allocation6 + $0x404] sm:$0xff]
    %v1290 = vld [vmem:[#allocation6 + $0x40c] sm:$0xf]
    %v1291 = vld [vmem:[#allocation6 + $0x410] sm:$0xff]
    %v1292 = vld [vmem:[#allocation6 + $0x418] sm:$0xff]
    %v1293 = vld [vmem:[#allocation6 + $0x420] sm:$0xf]
    %v1294 = vld [vmem:[#allocation6 + $0x424] sm:$0xff]
    %v1295 = vld [vmem:[#allocation6 + $0x42c] sm:$0xff]
    %v1296 = vld [vmem:[#allocation6 + $0x434] sm:$0xf]
    %v1297 = vld [vmem:[#allocation6 + $0x438] sm:$0xff]
    %v1298 = vld [vmem:[#allocation6 + $0x440] sm:$0xff]
    %v1299 = vld [vmem:[#allocation6 + $0x448] sm:$0xf]
    %v1300 = vld [vmem:[#allocation6 + $0x44c] sm:$0xff]
    %v1301 = vld [vmem:[#allocation6 + $0x454] sm:$0xff]
    %v1302 = vld [vmem:[#allocation6 + $0x45c] sm:$0xf]
    %v1303 = vld [vmem:[#allocation6 + $0x460] sm:$0xff]
    %v1304 = vld [vmem:[#allocation6 + $0x468] sm:$0xff]
    %v1305 = vld [vmem:[#allocation6 + $0x470] sm:$0xf]
    %v1306 = vld [vmem:[#allocation6 + $0x474] sm:$0xff]
    %v1307 = vld [vmem:[#allocation6 + $0x47c] sm:$0xff]
    %v1308 = vld [vmem:[#allocation6 + $0x484] sm:$0xf]
    %v1309 = vld [vmem:[#allocation6 + $0x488] sm:$0xff]
    %v1310 = vld [vmem:[#allocation6 + $0x490] sm:$0xff]
    %v1311 = vld [vmem:[#allocation6 + $0x498] sm:$0xf]
    %v1312 = vld [vmem:[#allocation6 + $0x49c] sm:$0xff]
    %v1313 = vld [vmem:[#allocation6 + $0x4a4] sm:$0xff]
    %v1314 = vld [vmem:[#allocation6 + $0x4ac] sm:$0xf]
    %v1315 = vld [vmem:[#allocation6 + $0x4b0] sm:$0xff]
    %v1316 = vld [vmem:[#allocation6 + $0x4b8] sm:$0xff]
    %v1317 = vld [vmem:[#allocation6 + $0x4c0] sm:$0xf]
    %v1318 = vld [vmem:[#allocation6 + $0x4c4] sm:$0xff]
    %v1319 = vld [vmem:[#allocation6 + $0x4cc] sm:$0xff]
    %v1320 = vld [vmem:[#allocation6 + $0x4d4] sm:$0xf]
    %v1321 = vld [vmem:[#allocation6 + $0x4d8] sm:$0xff]
    %v1322 = vld [vmem:[#allocation6 + $0x4e0] sm:$0xff]
    %v1323 = vld [vmem:[#allocation6 + $0x4e8] sm:$0xf]
    %v1324 = vld [vmem:[#allocation6 + $0x4ec] sm:$0xff]
    %v1325 = vld [vmem:[#allocation6 + $0x4f4] sm:$0xff]
    %v1326 = vld [vmem:[#allocation6 + $0x4fc] sm:$0xf]
    %s1327 = scalar_lea.vmem %s8, 2
    %v1328 = vld [vmem:[%s1327] ss:$8 sm:$0xf]
    %v1329 = vld [vmem:[%s1327] ss:$8 sm:$0x10]
    %v1330 = vor.u32 %v1328, %v1329
    %v1332 = vperm.slane %v1330, 0
    %v1333 = vperm.slane %v1330, 1
    %v1334 = vperm.slane %v1330, 2
    %v1335 = vperm.slane %v1330, 3
    %v1336 = vperm.slane %v1330, 4
    %v1534 = vunpack.c.l.b16 %v1135
    %v1535 = vunpack.c.h.b16 %v1135
    %v1536 = vunpack.c.l.b16 %v1136
    %v1537 = vunpack.c.h.b16 %v1136
    %v1538 = vunpack.c.l.b16 %v1137
    %v1539 = vunpack.c.l.b16 %v1138
    %v1540 = vunpack.c.h.b16 %v1138
    %v1541 = vunpack.c.l.b16 %v1139
    %v1542 = vunpack.c.h.b16 %v1139
    %v1543 = vunpack.c.l.b16 %v1140
    %v1544 = vunpack.c.l.b16 %v1141
    %v1545 = vunpack.c.h.b16 %v1141
    %v1546 = vunpack.c.l.b16 %v1142
    %v1547 = vunpack.c.h.b16 %v1142
    %v1548 = vunpack.c.l.b16 %v1143
    %v1549 = vunpack.c.l.b16 %v1144
    %v1550 = vunpack.c.h.b16 %v1144
    %v1551 = vunpack.c.l.b16 %v1145
    %v1552 = vunpack.c.h.b16 %v1145
    %v1553 = vunpack.c.l.b16 %v1146
    %v1554 = vunpack.c.l.b16 %v1147
    %v1555 = vunpack.c.h.b16 %v1147
    %v1556 = vunpack.c.l.b16 %v1148
    %v1557 = vunpack.c.h.b16 %v1148
    %v1558 = vunpack.c.l.b16 %v1149
    %v1559 = vunpack.c.l.b16 %v1150
    %v1560 = vunpack.c.h.b16 %v1150
    %v1561 = vunpack.c.l.b16 %v1151
    %v1562 = vunpack.c.h.b16 %v1151
    %v1563 = vunpack.c.l.b16 %v1152
    %v1564 = vunpack.c.l.b16 %v1153
    %v1565 = vunpack.c.h.b16 %v1153
    %v1566 = vunpack.c.l.b16 %v1154
    %v1567 = vunpack.c.h.b16 %v1154
    %v1568 = vunpack.c.l.b16 %v1155
    %v1569 = vunpack.c.l.b16 %v1156
    %v1570 = vunpack.c.h.b16 %v1156
    %v1571 = vunpack.c.l.b16 %v1157
    %v1572 = vunpack.c.h.b16 %v1157
    %v1573 = vunpack.c.l.b16 %v1158
    %v1574 = vunpack.c.l.b16 %v1159
    %v1575 = vunpack.c.h.b16 %v1159
    %v1576 = vunpack.c.l.b16 %v1160
    %v1577 = vunpack.c.h.b16 %v1160
    %v1578 = vunpack.c.l.b16 %v1161
    %v1579 = vunpack.c.l.b16 %v1162
    %v1580 = vunpack.c.h.b16 %v1162
    %v1581 = vunpack.c.l.b16 %v1163
    %v1582 = vunpack.c.h.b16 %v1163
    %v1583 = vunpack.c.l.b16 %v1164
    %v1584 = vunpack.c.l.b16 %v1165
    %v1585 = vunpack.c.h.b16 %v1165
    %v1586 = vunpack.c.l.b16 %v1166
    %v1587 = vunpack.c.h.b16 %v1166
    %v1588 = vunpack.c.l.b16 %v1167
    %v1589 = vunpack.c.l.b16 %v1168
    %v1590 = vunpack.c.h.b16 %v1168
    %v1591 = vunpack.c.l.b16 %v1169
    %v1592 = vunpack.c.h.b16 %v1169
    %v1593 = vunpack.c.l.b16 %v1170
    %v1594 = vunpack.c.l.b16 %v1171
    %v1595 = vunpack.c.h.b16 %v1171
    %v1596 = vunpack.c.l.b16 %v1172
    %v1597 = vunpack.c.h.b16 %v1172
    %v1598 = vunpack.c.l.b16 %v1173
    %v1599 = vunpack.c.l.b16 %v1174
    %v1600 = vunpack.c.h.b16 %v1174
    %v1601 = vunpack.c.l.b16 %v1175
    %v1602 = vunpack.c.h.b16 %v1175
    %v1603 = vunpack.c.l.b16 %v1176
    %v1604 = vunpack.c.l.b16 %v1177
    %v1605 = vunpack.c.h.b16 %v1177
    %v1606 = vunpack.c.l.b16 %v1178
    %v1607 = vunpack.c.h.b16 %v1178
    %v1608 = vunpack.c.l.b16 %v1179
    %v1609 = vunpack.c.l.b16 %v1180
    %v1610 = vunpack.c.h.b16 %v1180
    %v1611 = vunpack.c.l.b16 %v1181
    %v1612 = vunpack.c.h.b16 %v1181
    %v1613 = vunpack.c.l.b16 %v1182
    %v1614 = vunpack.c.l.b16 %v1183
    %v1615 = vunpack.c.h.b16 %v1183
    %v1616 = vunpack.c.l.b16 %v1184
    %v1617 = vunpack.c.h.b16 %v1184
    %v1618 = vunpack.c.l.b16 %v1185
    %v1619 = vunpack.c.l.b16 %v1186
    %v1620 = vunpack.c.h.b16 %v1186
    %v1621 = vunpack.c.l.b16 %v1187
    %v1622 = vunpack.c.h.b16 %v1187
    %v1623 = vunpack.c.l.b16 %v1188
    %v1624 = vunpack.c.l.b16 %v1189
    %v1625 = vunpack.c.h.b16 %v1189
    %v1626 = vunpack.c.l.b16 %v1190
    %v1627 = vunpack.c.h.b16 %v1190
    %v1628 = vunpack.c.l.b16 %v1191
    %v1629 = vunpack.c.l.b16 %v1192
    %v1630 = vunpack.c.h.b16 %v1192
    %v1631 = vunpack.c.l.b16 %v1193
    %v1632 = vunpack.c.h.b16 %v1193
    %v1633 = vunpack.c.l.b16 %v1194
    %v1634 = vunpack.c.l.b16 %v1195
    %v1635 = vunpack.c.h.b16 %v1195
    %v1636 = vunpack.c.l.b16 %v1196
    %v1637 = vunpack.c.h.b16 %v1196
    %v1638 = vunpack.c.l.b16 %v1197
    %v1639 = vunpack.c.l.b16 %v1198
    %v1640 = vunpack.c.h.b16 %v1198
    %v1641 = vunpack.c.l.b16 %v1199
    %v1642 = vunpack.c.h.b16 %v1199
    %v1643 = vunpack.c.l.b16 %v1200
    %v1644 = vunpack.c.l.b16 %v1201
    %v1645 = vunpack.c.h.b16 %v1201
    %v1646 = vunpack.c.l.b16 %v1202
    %v1647 = vunpack.c.h.b16 %v1202
    %v1648 = vunpack.c.l.b16 %v1203
    %v1649 = vunpack.c.l.b16 %v1204
    %v1650 = vunpack.c.h.b16 %v1204
    %v1651 = vunpack.c.l.b16 %v1205
    %v1652 = vunpack.c.h.b16 %v1205
    %v1653 = vunpack.c.l.b16 %v1206
    %v1654 = vunpack.c.l.b16 %v1207
    %v1655 = vunpack.c.h.b16 %v1207
    %v1656 = vunpack.c.l.b16 %v1208
    %v1657 = vunpack.c.h.b16 %v1208
    %v1658 = vunpack.c.l.b16 %v1209
    %v1659 = vunpack.c.l.b16 %v1210
    %v1660 = vunpack.c.h.b16 %v1210
    %v1661 = vunpack.c.l.b16 %v1211
    %v1662 = vunpack.c.h.b16 %v1211
    %v1663 = vunpack.c.l.b16 %v1212
    %v1664 = vunpack.c.l.b16 %v1213
    %v1665 = vunpack.c.h.b16 %v1213
    %v1666 = vunpack.c.l.b16 %v1214
    %v1667 = vunpack.c.h.b16 %v1214
    %v1668 = vunpack.c.l.b16 %v1215
    %v1669 = vunpack.c.l.b16 %v1216
    %v1670 = vunpack.c.h.b16 %v1216
    %v1671 = vunpack.c.l.b16 %v1217
    %v1672 = vunpack.c.h.b16 %v1217
    %v1673 = vunpack.c.l.b16 %v1218
    %v1674 = vunpack.c.l.b16 %v1219
    %v1675 = vunpack.c.h.b16 %v1219
    %v1676 = vunpack.c.l.b16 %v1220
    %v1677 = vunpack.c.h.b16 %v1220
    %v1678 = vunpack.c.l.b16 %v1221
    %v1679 = vunpack.c.l.b16 %v1222
    %v1680 = vunpack.c.h.b16 %v1222
    %v1681 = vunpack.c.l.b16 %v1223
    %v1682 = vunpack.c.h.b16 %v1223
    %v1683 = vunpack.c.l.b16 %v1224
    %v1684 = vunpack.c.l.b16 %v1225
    %v1685 = vunpack.c.h.b16 %v1225
    %v1686 = vunpack.c.l.b16 %v1226
    %v1687 = vunpack.c.h.b16 %v1226
    %v1688 = vunpack.c.l.b16 %v1227
    %v1689 = vunpack.c.l.b16 %v1228
    %v1690 = vunpack.c.h.b16 %v1228
    %v1691 = vunpack.c.l.b16 %v1229
    %v1692 = vunpack.c.h.b16 %v1229
    %v1693 = vunpack.c.l.b16 %v1230
    %v1694 = vunpack.c.l.b16 %v1231
    %v1695 = vunpack.c.h.b16 %v1231
    %v1696 = vunpack.c.l.b16 %v1232
    %v1697 = vunpack.c.h.b16 %v1232
    %v1698 = vunpack.c.l.b16 %v1233
    %v1699 = vunpack.c.l.b16 %v1234
    %v1700 = vunpack.c.h.b16 %v1234
    %v1701 = vunpack.c.l.b16 %v1235
    %v1702 = vunpack.c.h.b16 %v1235
    %v1703 = vunpack.c.l.b16 %v1236
    %v1704 = vunpack.c.l.b16 %v1237
    %v1705 = vunpack.c.h.b16 %v1237
    %v1706 = vunpack.c.l.b16 %v1238
    %v1707 = vunpack.c.h.b16 %v1238
    %v1708 = vunpack.c.l.b16 %v1239
    %v1709 = vunpack.c.l.b16 %v1240
    %v1710 = vunpack.c.h.b16 %v1240
    %v1711 = vunpack.c.l.b16 %v1241
    %v1712 = vunpack.c.h.b16 %v1241
    %v1713 = vunpack.c.l.b16 %v1242
    %v1714 = vunpack.c.l.b16 %v1243
    %v1715 = vunpack.c.h.b16 %v1243
    %v1716 = vunpack.c.l.b16 %v1244
    %v1717 = vunpack.c.h.b16 %v1244
    %v1718 = vunpack.c.l.b16 %v1245
    %v1719 = vunpack.c.l.b16 %v1246
    %v1720 = vunpack.c.h.b16 %v1246
    %v1721 = vunpack.c.l.b16 %v1247
    %v1722 = vunpack.c.h.b16 %v1247
    %v1723 = vunpack.c.l.b16 %v1248
    %v1724 = vunpack.c.l.b16 %v1249
    %v1725 = vunpack.c.h.b16 %v1249
    %v1726 = vunpack.c.l.b16 %v1250
    %v1727 = vunpack.c.h.b16 %v1250
    %v1728 = vunpack.c.l.b16 %v1251
    %v1729 = vunpack.c.l.b16 %v1252
    %v1730 = vunpack.c.h.b16 %v1252
    %v1731 = vunpack.c.l.b16 %v1253
    %v1732 = vunpack.c.h.b16 %v1253
    %v1733 = vunpack.c.l.b16 %v1254
    %v1734 = vunpack.c.l.b16 %v1255
    %v1735 = vunpack.c.h.b16 %v1255
    %v1736 = vunpack.c.l.b16 %v1256
    %v1737 = vunpack.c.h.b16 %v1256
    %v1738 = vunpack.c.l.b16 %v1257
    %v1739 = vunpack.c.l.b16 %v1258
    %v1740 = vunpack.c.h.b16 %v1258
    %v1741 = vunpack.c.l.b16 %v1259
    %v1742 = vunpack.c.h.b16 %v1259
    %v1743 = vunpack.c.l.b16 %v1260
    %v1744 = vunpack.c.l.b16 %v1261
    %v1745 = vunpack.c.h.b16 %v1261
    %v1746 = vunpack.c.l.b16 %v1262
    %v1747 = vunpack.c.h.b16 %v1262
    %v1748 = vunpack.c.l.b16 %v1263
    %v1749 = vunpack.c.l.b16 %v1264
    %v1750 = vunpack.c.h.b16 %v1264
    %v1751 = vunpack.c.l.b16 %v1265
    %v1752 = vunpack.c.h.b16 %v1265
    %v1753 = vunpack.c.l.b16 %v1266
    %v1754 = vunpack.c.l.b16 %v1267
    %v1755 = vunpack.c.h.b16 %v1267
    %v1756 = vunpack.c.l.b16 %v1268
    %v1757 = vunpack.c.h.b16 %v1268
    %v1758 = vunpack.c.l.b16 %v1269
    %v1759 = vunpack.c.l.b16 %v1270
    %v1760 = vunpack.c.h.b16 %v1270
    %v1761 = vunpack.c.l.b16 %v1271
    %v1762 = vunpack.c.h.b16 %v1271
    %v1763 = vunpack.c.l.b16 %v1272
    %v1764 = vunpack.c.l.b16 %v1273
    %v1765 = vunpack.c.h.b16 %v1273
    %v1766 = vunpack.c.l.b16 %v1274
    %v1767 = vunpack.c.h.b16 %v1274
    %v1768 = vunpack.c.l.b16 %v1275
    %v1769 = vunpack.c.l.b16 %v1276
    %v1770 = vunpack.c.h.b16 %v1276
    %v1771 = vunpack.c.l.b16 %v1277
    %v1772 = vunpack.c.h.b16 %v1277
    %v1773 = vunpack.c.l.b16 %v1278
    %v1774 = vunpack.c.l.b16 %v1279
    %v1775 = vunpack.c.h.b16 %v1279
    %v1776 = vunpack.c.l.b16 %v1280
    %v1777 = vunpack.c.h.b16 %v1280
    %v1778 = vunpack.c.l.b16 %v1281
    %v1779 = vunpack.c.l.b16 %v1282
    %v1780 = vunpack.c.h.b16 %v1282
    %v1781 = vunpack.c.l.b16 %v1283
    %v1782 = vunpack.c.h.b16 %v1283
    %v1783 = vunpack.c.l.b16 %v1284
    %v1784 = vunpack.c.l.b16 %v1285
    %v1785 = vunpack.c.h.b16 %v1285
    %v1786 = vunpack.c.l.b16 %v1286
    %v1787 = vunpack.c.h.b16 %v1286
    %v1788 = vunpack.c.l.b16 %v1287
    %v1789 = vunpack.c.l.b16 %v1288
    %v1790 = vunpack.c.h.b16 %v1288
    %v1791 = vunpack.c.l.b16 %v1289
    %v1792 = vunpack.c.h.b16 %v1289
    %v1793 = vunpack.c.l.b16 %v1290
    %v1794 = vunpack.c.l.b16 %v1291
    %v1795 = vunpack.c.h.b16 %v1291
    %v1796 = vunpack.c.l.b16 %v1292
    %v1797 = vunpack.c.h.b16 %v1292
    %v1798 = vunpack.c.l.b16 %v1293
    %v1799 = vunpack.c.l.b16 %v1294
    %v1800 = vunpack.c.h.b16 %v1294
    %v1801 = vunpack.c.l.b16 %v1295
    %v1802 = vunpack.c.h.b16 %v1295
    %v1803 = vunpack.c.l.b16 %v1296
    %v1804 = vunpack.c.l.b16 %v1297
    %v1805 = vunpack.c.h.b16 %v1297
    %v1806 = vunpack.c.l.b16 %v1298
    %v1807 = vunpack.c.h.b16 %v1298
    %v1808 = vunpack.c.l.b16 %v1299
    %v1809 = vunpack.c.l.b16 %v1300
    %v1810 = vunpack.c.h.b16 %v1300
    %v1811 = vunpack.c.l.b16 %v1301
    %v1812 = vunpack.c.h.b16 %v1301
    %v1813 = vunpack.c.l.b16 %v1302
    %v1814 = vunpack.c.l.b16 %v1303
    %v1815 = vunpack.c.h.b16 %v1303
    %v1816 = vunpack.c.l.b16 %v1304
    %v1817 = vunpack.c.h.b16 %v1304
    %v1818 = vunpack.c.l.b16 %v1305
    %v1819 = vunpack.c.l.b16 %v1306
    %v1820 = vunpack.c.h.b16 %v1306
    %v1821 = vunpack.c.l.b16 %v1307
    %v1822 = vunpack.c.h.b16 %v1307
    %v1823 = vunpack.c.l.b16 %v1308
    %v1824 = vunpack.c.l.b16 %v1309
    %v1825 = vunpack.c.h.b16 %v1309
    %v1826 = vunpack.c.l.b16 %v1310
    %v1827 = vunpack.c.h.b16 %v1310
    %v1828 = vunpack.c.l.b16 %v1311
    %v1829 = vunpack.c.l.b16 %v1312
    %v1830 = vunpack.c.h.b16 %v1312
    %v1831 = vunpack.c.l.b16 %v1313
    %v1832 = vunpack.c.h.b16 %v1313
    %v1833 = vunpack.c.l.b16 %v1314
    %v1834 = vunpack.c.l.b16 %v1315
    %v1835 = vunpack.c.h.b16 %v1315
    %v1836 = vunpack.c.l.b16 %v1316
    %v1837 = vunpack.c.h.b16 %v1316
    %v1838 = vunpack.c.l.b16 %v1317
    %v1839 = vunpack.c.l.b16 %v1318
    %v1840 = vunpack.c.h.b16 %v1318
    %v1841 = vunpack.c.l.b16 %v1319
    %v1842 = vunpack.c.h.b16 %v1319
    %v1843 = vunpack.c.l.b16 %v1320
    %v1844 = vunpack.c.l.b16 %v1321
    %v1845 = vunpack.c.h.b16 %v1321
    %v1846 = vunpack.c.l.b16 %v1322
    %v1847 = vunpack.c.h.b16 %v1322
    %v1848 = vunpack.c.l.b16 %v1323
    %v1849 = vunpack.c.l.b16 %v1324
    %v1850 = vunpack.c.h.b16 %v1324
    %v1851 = vunpack.c.l.b16 %v1325
    %v1852 = vunpack.c.h.b16 %v1325
    %v1853 = vunpack.c.l.b16 %v1326
    %v1854 = vpack.c.b16 %v1539, %v1534
    %v1855 = vpack.c.b16 %v1540, %v1535
    %v1856 = vpack.c.b16 %v1541, %v1536
    %v1857 = vpack.c.b16 %v1542, %v1537
    %v1858 = vpack.c.b16 %v1543, %v1538
    %v1859 = vpack.c.b16 %v1549, %v1544
    %v1860 = vpack.c.b16 %v1550, %v1545
    %v1861 = vpack.c.b16 %v1551, %v1546
    %v1862 = vpack.c.b16 %v1552, %v1547
    %v1863 = vpack.c.b16 %v1553, %v1548
    %v1864 = vpack.c.b16 %v1559, %v1554
    %v1865 = vpack.c.b16 %v1560, %v1555
    %v1866 = vpack.c.b16 %v1561, %v1556
    %v1867 = vpack.c.b16 %v1562, %v1557
    %v1868 = vpack.c.b16 %v1563, %v1558
    %v1869 = vpack.c.b16 %v1569, %v1564
    %v1870 = vpack.c.b16 %v1570, %v1565
    %v1871 = vpack.c.b16 %v1571, %v1566
    %v1872 = vpack.c.b16 %v1572, %v1567
    %v1873 = vpack.c.b16 %v1573, %v1568
    %v1874 = vpack.c.b16 %v1579, %v1574
    %v1875 = vpack.c.b16 %v1580, %v1575
    %v1876 = vpack.c.b16 %v1581, %v1576
    %v1877 = vpack.c.b16 %v1582, %v1577
    %v1878 = vpack.c.b16 %v1583, %v1578
    %v1879 = vpack.c.b16 %v1589, %v1584
    %v1880 = vpack.c.b16 %v1590, %v1585
    %v1881 = vpack.c.b16 %v1591, %v1586
    %v1882 = vpack.c.b16 %v1592, %v1587
    %v1883 = vpack.c.b16 %v1593, %v1588
    %v1884 = vpack.c.b16 %v1599, %v1594
    %v1885 = vpack.c.b16 %v1600, %v1595
    %v1886 = vpack.c.b16 %v1601, %v1596
    %v1887 = vpack.c.b16 %v1602, %v1597
    %v1888 = vpack.c.b16 %v1603, %v1598
    %v1889 = vpack.c.b16 %v1609, %v1604
    %v1890 = vpack.c.b16 %v1610, %v1605
    %v1891 = vpack.c.b16 %v1611, %v1606
    %v1892 = vpack.c.b16 %v1612, %v1607
    %v1893 = vpack.c.b16 %v1613, %v1608
    %v1894 = vpack.c.b16 %v1619, %v1614
    %v1895 = vpack.c.b16 %v1620, %v1615
    %v1896 = vpack.c.b16 %v1621, %v1616
    %v1897 = vpack.c.b16 %v1622, %v1617
    %v1898 = vpack.c.b16 %v1623, %v1618
    %v1899 = vpack.c.b16 %v1629, %v1624
    %v1900 = vpack.c.b16 %v1630, %v1625
    %v1901 = vpack.c.b16 %v1631, %v1626
    %v1902 = vpack.c.b16 %v1632, %v1627
    %v1903 = vpack.c.b16 %v1633, %v1628
    %v1904 = vpack.c.b16 %v1639, %v1634
    %v1905 = vpack.c.b16 %v1640, %v1635
    %v1906 = vpack.c.b16 %v1641, %v1636
    %v1907 = vpack.c.b16 %v1642, %v1637
    %v1908 = vpack.c.b16 %v1643, %v1638
    %v1909 = vpack.c.b16 %v1649, %v1644
    %v1910 = vpack.c.b16 %v1650, %v1645
    %v1911 = vpack.c.b16 %v1651, %v1646
    %v1912 = vpack.c.b16 %v1652, %v1647
    %v1913 = vpack.c.b16 %v1653, %v1648
    %v1914 = vpack.c.b16 %v1659, %v1654
    %v1915 = vpack.c.b16 %v1660, %v1655
    %v1916 = vpack.c.b16 %v1661, %v1656
    %v1917 = vpack.c.b16 %v1662, %v1657
    %v1918 = vpack.c.b16 %v1663, %v1658
    %v1919 = vpack.c.b16 %v1669, %v1664
    %v1920 = vpack.c.b16 %v1670, %v1665
    %v1921 = vpack.c.b16 %v1671, %v1666
    %v1922 = vpack.c.b16 %v1672, %v1667
    %v1923 = vpack.c.b16 %v1673, %v1668
    %v1924 = vpack.c.b16 %v1679, %v1674
    %v1925 = vpack.c.b16 %v1680, %v1675
    %v1926 = vpack.c.b16 %v1681, %v1676
    %v1927 = vpack.c.b16 %v1682, %v1677
    %v1928 = vpack.c.b16 %v1683, %v1678
    %v1929 = vpack.c.b16 %v1689, %v1684
    %v1930 = vpack.c.b16 %v1690, %v1685
    %v1931 = vpack.c.b16 %v1691, %v1686
    %v1932 = vpack.c.b16 %v1692, %v1687
    %v1933 = vpack.c.b16 %v1693, %v1688
    %v1934 = vpack.c.b16 %v1699, %v1694
    %v1935 = vpack.c.b16 %v1700, %v1695
    %v1936 = vpack.c.b16 %v1701, %v1696
    %v1937 = vpack.c.b16 %v1702, %v1697
    %v1938 = vpack.c.b16 %v1703, %v1698
    %v1939 = vpack.c.b16 %v1709, %v1704
    %v1940 = vpack.c.b16 %v1710, %v1705
    %v1941 = vpack.c.b16 %v1711, %v1706
    %v1942 = vpack.c.b16 %v1712, %v1707
    %v1943 = vpack.c.b16 %v1713, %v1708
    %v1944 = vpack.c.b16 %v1719, %v1714
    %v1945 = vpack.c.b16 %v1720, %v1715
    %v1946 = vpack.c.b16 %v1721, %v1716
    %v1947 = vpack.c.b16 %v1722, %v1717
    %v1948 = vpack.c.b16 %v1723, %v1718
    %v1949 = vpack.c.b16 %v1729, %v1724
    %v1950 = vpack.c.b16 %v1730, %v1725
    %v1951 = vpack.c.b16 %v1731, %v1726
    %v1952 = vpack.c.b16 %v1732, %v1727
    %v1953 = vpack.c.b16 %v1733, %v1728
    %v1954 = vpack.c.b16 %v1739, %v1734
    %v1955 = vpack.c.b16 %v1740, %v1735
    %v1956 = vpack.c.b16 %v1741, %v1736
    %v1957 = vpack.c.b16 %v1742, %v1737
    %v1958 = vpack.c.b16 %v1743, %v1738
    %v1959 = vpack.c.b16 %v1749, %v1744
    %v1960 = vpack.c.b16 %v1750, %v1745
    %v1961 = vpack.c.b16 %v1751, %v1746
    %v1962 = vpack.c.b16 %v1752, %v1747
    %v1963 = vpack.c.b16 %v1753, %v1748
    %v1964 = vpack.c.b16 %v1759, %v1754
    %v1965 = vpack.c.b16 %v1760, %v1755
    %v1966 = vpack.c.b16 %v1761, %v1756
    %v1967 = vpack.c.b16 %v1762, %v1757
    %v1968 = vpack.c.b16 %v1763, %v1758
    %v1969 = vpack.c.b16 %v1769, %v1764
    %v1970 = vpack.c.b16 %v1770, %v1765
    %v1971 = vpack.c.b16 %v1771, %v1766
    %v1972 = vpack.c.b16 %v1772, %v1767
    %v1973 = vpack.c.b16 %v1773, %v1768
    %v1974 = vpack.c.b16 %v1779, %v1774
    %v1975 = vpack.c.b16 %v1780, %v1775
    %v1976 = vpack.c.b16 %v1781, %v1776
    %v1977 = vpack.c.b16 %v1782, %v1777
    %v1978 = vpack.c.b16 %v1783, %v1778
    %v1979 = vpack.c.b16 %v1789, %v1784
    %v1980 = vpack.c.b16 %v1790, %v1785
    %v1981 = vpack.c.b16 %v1791, %v1786
    %v1982 = vpack.c.b16 %v1792, %v1787
    %v1983 = vpack.c.b16 %v1793, %v1788
    %v1984 = vpack.c.b16 %v1799, %v1794
    %v1985 = vpack.c.b16 %v1800, %v1795
    %v1986 = vpack.c.b16 %v1801, %v1796
    %v1987 = vpack.c.b16 %v1802, %v1797
    %v1988 = vpack.c.b16 %v1803, %v1798
    %v1989 = vpack.c.b16 %v1809, %v1804
    %v1990 = vpack.c.b16 %v1810, %v1805
    %v1991 = vpack.c.b16 %v1811, %v1806
    %v1992 = vpack.c.b16 %v1812, %v1807
    %v1993 = vpack.c.b16 %v1813, %v1808
    %v1994 = vpack.c.b16 %v1819, %v1814
    %v1995 = vpack.c.b16 %v1820, %v1815
    %v1996 = vpack.c.b16 %v1821, %v1816
    %v1997 = vpack.c.b16 %v1822, %v1817
    %v1998 = vpack.c.b16 %v1823, %v1818
    %v1999 = vpack.c.b16 %v1829, %v1824
    %v2000 = vpack.c.b16 %v1830, %v1825
    %v2001 = vpack.c.b16 %v1831, %v1826
    %v2002 = vpack.c.b16 %v1832, %v1827
    %v2003 = vpack.c.b16 %v1833, %v1828
    %v2004 = vpack.c.b16 %v1839, %v1834
    %v2005 = vpack.c.b16 %v1840, %v1835
    %v2006 = vpack.c.b16 %v1841, %v1836
    %v2007 = vpack.c.b16 %v1842, %v1837
    %v2008 = vpack.c.b16 %v1843, %v1838
    %v2009 = vpack.c.b16 %v1849, %v1844
    %v2010 = vpack.c.b16 %v1850, %v1845
    %v2011 = vpack.c.b16 %v1851, %v1846
    %v2012 = vpack.c.b16 %v1852, %v1847
    %v2013 = vpack.c.b16 %v1853, %v1848
    %2174 = vmatpush.bf16.msra.mxu0 %v1889
    %2175 = vmatpush.bf16.msra.mxu0 %v1884
    %2176 = vmatpush.bf16.msra.mxu0 %v1879
    %2177 = vmatpush.bf16.msra.mxu0 %v1874
    %2178 = vmatpush.bf16.msra.mxu0 %v1869
    %2179 = vmatpush.bf16.msra.mxu0 %v1864
    %2180 = vmatpush.bf16.msra.mxu0 %v1859
    %2181 = vmatpush.bf16.msra.mxu0 %v1854
    %2182 = vmatmul.bf16.gmra.mxu0 %v1131
    %v2183 = vpop.f32.mrf.mxu0
    %v2184 = vadd.f32 %v1332, %v2183
    %v2185 = vpop.f32.mrf.mxu0
    %v2186 = vadd.f32 %v1332, %v2185
    %2187 = vdwg.mxu0
    %2188 = vmatpush.bf16.msra.mxu0 %v1929
    %2189 = vmatpush.bf16.msra.mxu0 %v1924
    %2190 = vmatpush.bf16.msra.mxu0 %v1919
    %2191 = vmatpush.bf16.msra.mxu0 %v1914
    %2192 = vmatpush.bf16.msra.mxu0 %v1909
    %2193 = vmatpush.bf16.msra.mxu0 %v1904
    %2194 = vmatpush.bf16.msra.mxu0 %v1899
    %2195 = vmatpush.bf16.msra.mxu0 %v1894
    %2196 = vmatmul.bf16.gmra.mxu0 %v1132
    %v2197 = vpop.f32.mrf.mxu0
    %v2198 = vadd.f32 %v2184, %v2197
    %v2199 = vpop.f32.mrf.mxu0
    %v2200 = vadd.f32 %v2186, %v2199
    %2201 = vdwg.mxu0
    %2202 = vmatpush.bf16.msra.mxu0 %v1969
    %2203 = vmatpush.bf16.msra.mxu0 %v1964
    %2204 = vmatpush.bf16.msra.mxu0 %v1959
    %2205 = vmatpush.bf16.msra.mxu0 %v1954
    %2206 = vmatpush.bf16.msra.mxu0 %v1949
    %2207 = vmatpush.bf16.msra.mxu0 %v1944
    %2208 = vmatpush.bf16.msra.mxu0 %v1939
    %2209 = vmatpush.bf16.msra.mxu0 %v1934
    %2210 = vmatmul.bf16.gmra.mxu0 %v1133
    %v2211 = vpop.f32.mrf.mxu0
    %v2212 = vadd.f32 %v2198, %v2211
    %v2213 = vpop.f32.mrf.mxu0
    %v2214 = vadd.f32 %v2200, %v2213
    %2215 = vdwg.mxu0
    %2216 = vmatpush.bf16.msra.mxu0 %v2009
    %2217 = vmatpush.bf16.msra.mxu0 %v2004
    %2218 = vmatpush.bf16.msra.mxu0 %v1999
    %2219 = vmatpush.bf16.msra.mxu0 %v1994
    %2220 = vmatpush.bf16.msra.mxu0 %v1989
    %2221 = vmatpush.bf16.msra.mxu0 %v1984
    %2222 = vmatpush.bf16.msra.mxu0 %v1979
    %2223 = vmatpush.bf16.msra.mxu0 %v1974
    %2224 = vmatmul.bf16.gmra.mxu0 %v1134
    %v2225 = vpop.f32.mrf.mxu0
    %v2226 = vadd.f32 %v2212, %v2225
    %v2227 = vpop.f32.mrf.mxu0
    %v2228 = vadd.f32 %v2214, %v2227
    %2229 = vdwg.mxu0
    %2230 = vmatpush.bf16.msra.mxu0 %v1890
    %2231 = vmatpush.bf16.msra.mxu0 %v1885
    %2232 = vmatpush.bf16.msra.mxu0 %v1880
    %2233 = vmatpush.bf16.msra.mxu0 %v1875
    %2234 = vmatpush.bf16.msra.mxu0 %v1870
    %2235 = vmatpush.bf16.msra.mxu0 %v1865
    %2236 = vmatpush.bf16.msra.mxu0 %v1860
    %2237 = vmatpush.bf16.msra.mxu0 %v1855
    %2238 = vmatmul.bf16.gmra.mxu0 %v1131
    %v2239 = vpop.f32.mrf.mxu0
    %v2240 = vadd.f32 %v1333, %v2239
    %v2241 = vpop.f32.mrf.mxu0
    %v2242 = vadd.f32 %v1333, %v2241
    %2243 = vdwg.mxu0
    %2244 = vmatpush.bf16.msra.mxu0 %v1930
    %2245 = vmatpush.bf16.msra.mxu0 %v1925
    %2246 = vmatpush.bf16.msra.mxu0 %v1920
    %2247 = vmatpush.bf16.msra.mxu0 %v1915
    %2248 = vmatpush.bf16.msra.mxu0 %v1910
    %2249 = vmatpush.bf16.msra.mxu0 %v1905
    %2250 = vmatpush.bf16.msra.mxu0 %v1900
    %2251 = vmatpush.bf16.msra.mxu0 %v1895
    %2252 = vmatmul.bf16.gmra.mxu0 %v1132
    %v2253 = vpop.f32.mrf.mxu0
    %v2254 = vadd.f32 %v2240, %v2253
    %v2255 = vpop.f32.mrf.mxu0
    %v2256 = vadd.f32 %v2242, %v2255
    %2257 = vdwg.mxu0
    %2258 = vmatpush.bf16.msra.mxu0 %v1970
    %2259 = vmatpush.bf16.msra.mxu0 %v1965
    %2260 = vmatpush.bf16.msra.mxu0 %v1960
    %2261 = vmatpush.bf16.msra.mxu0 %v1955
    %2262 = vmatpush.bf16.msra.mxu0 %v1950
    %2263 = vmatpush.bf16.msra.mxu0 %v1945
    %2264 = vmatpush.bf16.msra.mxu0 %v1940
    %2265 = vmatpush.bf16.msra.mxu0 %v1935
    %2266 = vmatmul.bf16.gmra.mxu0 %v1133
    %v2267 = vpop.f32.mrf.mxu0
    %v2268 = vadd.f32 %v2254, %v2267
    %v2269 = vpop.f32.mrf.mxu0
    %v2270 = vadd.f32 %v2256, %v2269
    %2271 = vdwg.mxu0
    %2272 = vmatpush.bf16.msra.mxu0 %v2010
    %2273 = vmatpush.bf16.msra.mxu0 %v2005
    %2274 = vmatpush.bf16.msra.mxu0 %v2000
    %2275 = vmatpush.bf16.msra.mxu0 %v1995
    %2276 = vmatpush.bf16.msra.mxu0 %v1990
    %2277 = vmatpush.bf16.msra.mxu0 %v1985
    %2278 = vmatpush.bf16.msra.mxu0 %v1980
    %2279 = vmatpush.bf16.msra.mxu0 %v1975
    %2280 = vmatmul.bf16.gmra.mxu0 %v1134
    %v2281 = vpop.f32.mrf.mxu0
    %v2282 = vadd.f32 %v2268, %v2281
    %v2283 = vpop.f32.mrf.mxu0
    %v2284 = vadd.f32 %v2270, %v2283
    %2285 = vdwg.mxu0
    %2286 = vmatpush.bf16.msra.mxu0 %v1891
    %2287 = vmatpush.bf16.msra.mxu0 %v1886
    %2288 = vmatpush.bf16.msra.mxu0 %v1881
    %2289 = vmatpush.bf16.msra.mxu0 %v1876
    %2290 = vmatpush.bf16.msra.mxu0 %v1871
    %2291 = vmatpush.bf16.msra.mxu0 %v1866
    %2292 = vmatpush.bf16.msra.mxu0 %v1861
    %2293 = vmatpush.bf16.msra.mxu0 %v1856
    %2294 = vmatmul.bf16.gmra.mxu0 %v1131
    %v2295 = vpop.f32.mrf.mxu0
    %v2296 = vadd.f32 %v1334, %v2295
    %v2297 = vpop.f32.mrf.mxu0
    %v2298 = vadd.f32 %v1334, %v2297
    %2299 = vdwg.mxu0
    %2300 = vmatpush.bf16.msra.mxu0 %v1931
    %2301 = vmatpush.bf16.msra.mxu0 %v1926
    %2302 = vmatpush.bf16.msra.mxu0 %v1921
    %2303 = vmatpush.bf16.msra.mxu0 %v1916
    %2304 = vmatpush.bf16.msra.mxu0 %v1911
    %2305 = vmatpush.bf16.msra.mxu0 %v1906
    %2306 = vmatpush.bf16.msra.mxu0 %v1901
    %2307 = vmatpush.bf16.msra.mxu0 %v1896
    %2308 = vmatmul.bf16.gmra.mxu0 %v1132
    %v2309 = vpop.f32.mrf.mxu0
    %v2310 = vadd.f32 %v2296, %v2309
    %v2311 = vpop.f32.mrf.mxu0
    %v2312 = vadd.f32 %v2298, %v2311
    %2313 = vdwg.mxu0
    %2314 = vmatpush.bf16.msra.mxu0 %v1971
    %2315 = vmatpush.bf16.msra.mxu0 %v1966
    %2316 = vmatpush.bf16.msra.mxu0 %v1961
    %2317 = vmatpush.bf16.msra.mxu0 %v1956
    %2318 = vmatpush.bf16.msra.mxu0 %v1951
    %2319 = vmatpush.bf16.msra.mxu0 %v1946
    %2320 = vmatpush.bf16.msra.mxu0 %v1941
    %2321 = vmatpush.bf16.msra.mxu0 %v1936
    %2322 = vmatmul.bf16.gmra.mxu0 %v1133
    %v2323 = vpop.f32.mrf.mxu0
    %v2324 = vadd.f32 %v2310, %v2323
    %v2325 = vpop.f32.mrf.mxu0
    %v2326 = vadd.f32 %v2312, %v2325
    %2327 = vdwg.mxu0
    %2328 = vmatpush.bf16.msra.mxu0 %v2011
    %2329 = vmatpush.bf16.msra.mxu0 %v2006
    %2330 = vmatpush.bf16.msra.mxu0 %v2001
    %2331 = vmatpush.bf16.msra.mxu0 %v1996
    %2332 = vmatpush.bf16.msra.mxu0 %v1991
    %2333 = vmatpush.bf16.msra.mxu0 %v1986
    %2334 = vmatpush.bf16.msra.mxu0 %v1981
    %2335 = vmatpush.bf16.msra.mxu0 %v1976
    %2336 = vmatmul.bf16.gmra.mxu0 %v1134
    %v2337 = vpop.f32.mrf.mxu0
    %v2338 = vadd.f32 %v2324, %v2337
    %v2339 = vpop.f32.mrf.mxu0
    %v2340 = vadd.f32 %v2326, %v2339
    %2341 = vdwg.mxu0
    %2342 = vmatpush.bf16.msra.mxu0 %v1892
    %2343 = vmatpush.bf16.msra.mxu0 %v1887
    %2344 = vmatpush.bf16.msra.mxu0 %v1882
    %2345 = vmatpush.bf16.msra.mxu0 %v1877
    %2346 = vmatpush.bf16.msra.mxu0 %v1872
    %2347 = vmatpush.bf16.msra.mxu0 %v1867
    %2348 = vmatpush.bf16.msra.mxu0 %v1862
    %2349 = vmatpush.bf16.msra.mxu0 %v1857
    %2350 = vmatmul.bf16.gmra.mxu0 %v1131
    %v2351 = vpop.f32.mrf.mxu0
    %v2352 = vadd.f32 %v1335, %v2351
    %v2353 = vpop.f32.mrf.mxu0
    %v2354 = vadd.f32 %v1335, %v2353
    %2355 = vdwg.mxu0
    %2356 = vmatpush.bf16.msra.mxu0 %v1932
    %2357 = vmatpush.bf16.msra.mxu0 %v1927
    %2358 = vmatpush.bf16.msra.mxu0 %v1922
    %2359 = vmatpush.bf16.msra.mxu0 %v1917
    %2360 = vmatpush.bf16.msra.mxu0 %v1912
    %2361 = vmatpush.bf16.msra.mxu0 %v1907
    %2362 = vmatpush.bf16.msra.mxu0 %v1902
    %2363 = vmatpush.bf16.msra.mxu0 %v1897
    %2364 = vmatmul.bf16.gmra.mxu0 %v1132
    %v2365 = vpop.f32.mrf.mxu0
    %v2366 = vadd.f32 %v2352, %v2365
    %v2367 = vpop.f32.mrf.mxu0
    %v2368 = vadd.f32 %v2354, %v2367
    %2369 = vdwg.mxu0
    %2370 = vmatpush.bf16.msra.mxu0 %v1972
    %2371 = vmatpush.bf16.msra.mxu0 %v1967
    %2372 = vmatpush.bf16.msra.mxu0 %v1962
    %2373 = vmatpush.bf16.msra.mxu0 %v1957
    %2374 = vmatpush.bf16.msra.mxu0 %v1952
    %2375 = vmatpush.bf16.msra.mxu0 %v1947
    %2376 = vmatpush.bf16.msra.mxu0 %v1942
    %2377 = vmatpush.bf16.msra.mxu0 %v1937
    %2378 = vmatmul.bf16.gmra.mxu0 %v1133
    %v2379 = vpop.f32.mrf.mxu0
    %v2380 = vadd.f32 %v2366, %v2379
    %v2381 = vpop.f32.mrf.mxu0
    %v2382 = vadd.f32 %v2368, %v2381
    %2383 = vdwg.mxu0
    %2384 = vmatpush.bf16.msra.mxu0 %v2012
    %2385 = vmatpush.bf16.msra.mxu0 %v2007
    %2386 = vmatpush.bf16.msra.mxu0 %v2002
    %2387 = vmatpush.bf16.msra.mxu0 %v1997
    %2388 = vmatpush.bf16.msra.mxu0 %v1992
    %2389 = vmatpush.bf16.msra.mxu0 %v1987
    %2390 = vmatpush.bf16.msra.mxu0 %v1982
    %2391 = vmatpush.bf16.msra.mxu0 %v1977
    %2392 = vmatmul.bf16.gmra.mxu0 %v1134
    %v2393 = vpop.f32.mrf.mxu0
    %v2394 = vadd.f32 %v2380, %v2393
    %v2395 = vpop.f32.mrf.mxu0
    %v2396 = vadd.f32 %v2382, %v2395
    %2397 = vdwg.mxu0
    %2398 = vmatpush.bf16.msra.mxu0 %v1893
    %2399 = vmatpush.bf16.msra.mxu0 %v1888
    %2400 = vmatpush.bf16.msra.mxu0 %v1883
    %2401 = vmatpush.bf16.msra.mxu0 %v1878
    %2402 = vmatpush.bf16.msra.mxu0 %v1873
    %2403 = vmatpush.bf16.msra.mxu0 %v1868
    %2404 = vmatpush.bf16.msra.mxu0 %v1863
    %2405 = vmatpush.bf16.msra.mxu0 %v1858
    %2406 = vmatmul.bf16.gmra.mxu0 %v1131
    %v2407 = vpop.f32.mrf.mxu0
    %v2408 = vadd.f32 %v1336, %v2407
    %v2409 = vpop.f32.mrf.mxu0
    %v2410 = vadd.f32 %v1336, %v2409
    %2411 = vdwg.mxu0
    %2412 = vmatpush.bf16.msra.mxu0 %v1933
    %2413 = vmatpush.bf16.msra.mxu0 %v1928
    %2414 = vmatpush.bf16.msra.mxu0 %v1923
    %2415 = vmatpush.bf16.msra.mxu0 %v1918
    %2416 = vmatpush.bf16.msra.mxu0 %v1913
    %2417 = vmatpush.bf16.msra.mxu0 %v1908
    %2418 = vmatpush.bf16.msra.mxu0 %v1903
    %2419 = vmatpush.bf16.msra.mxu0 %v1898
    %2420 = vmatmul.bf16.gmra.mxu0 %v1132
    %v2421 = vpop.f32.mrf.mxu0
    %v2422 = vadd.f32 %v2408, %v2421
    %v2423 = vpop.f32.mrf.mxu0
    %v2424 = vadd.f32 %v2410, %v2423
    %2425 = vdwg.mxu0
    %2426 = vmatpush.bf16.msra.mxu0 %v1973
    %2427 = vmatpush.bf16.msra.mxu0 %v1968
    %2428 = vmatpush.bf16.msra.mxu0 %v1963
    %2429 = vmatpush.bf16.msra.mxu0 %v1958
    %2430 = vmatpush.bf16.msra.mxu0 %v1953
    %2431 = vmatpush.bf16.msra.mxu0 %v1948
    %2432 = vmatpush.bf16.msra.mxu0 %v1943
    %2433 = vmatpush.bf16.msra.mxu0 %v1938
    %2434 = vmatmul.bf16.gmra.mxu0 %v1133
    %v2435 = vpop.f32.mrf.mxu0
    %v2436 = vadd.f32 %v2422, %v2435
    %v2437 = vpop.f32.mrf.mxu0
    %v2438 = vadd.f32 %v2424, %v2437
    %2439 = vdwg.mxu0
    %2440 = vmatpush.bf16.msra.mxu0 %v2013
    %2441 = vmatpush.bf16.msra.mxu0 %v2008
    %2442 = vmatpush.bf16.msra.mxu0 %v2003
    %2443 = vmatpush.bf16.msra.mxu0 %v1998
    %2444 = vmatpush.bf16.msra.mxu0 %v1993
    %2445 = vmatpush.bf16.msra.mxu0 %v1988
    %2446 = vmatpush.bf16.msra.mxu0 %v1983
    %2447 = vmatpush.bf16.msra.mxu0 %v1978
    %2448 = vmatmul.bf16.gmra.mxu0 %v1134
    %v2449 = vpop.f32.mrf.mxu0
    %v2450 = vadd.f32 %v2436, %v2449
    %v2451 = vpop.f32.mrf.mxu0
    %v2452 = vadd.f32 %v2438, %v2451
    %2453 = vdwg.mxu0
    %v2454 = vmax.f32 %v2226, 0.0
    %v2455 = vmax.f32 %v2282, 0.0
    %v2456 = vmax.f32 %v2338, 0.0
    %v2457 = vmax.f32 %v2394, 0.0
    %v2458 = vmax.f32 %v2450, 0.0
    %v2459 = vmax.f32 %v2228, 0.0
    %v2460 = vmax.f32 %v2284, 0.0
    %v2461 = vmax.f32 %v2340, 0.0
    %v2462 = vmax.f32 %v2396, 0.0
    %v2463 = vmax.f32 %v2452, 0.0
    %v2464 = vpack.c.bf16 %v2459, %v2454
    %v2465 = vpack.c.bf16 %v2460, %v2455
    %v2466 = vpack.c.bf16 %v2461, %v2456
    %v2467 = vpack.c.bf16 %v2462, %v2457
    %v2468 = vpack.c.bf16 %v2463, %v2458
    %v2469 = vld [vmem:[#allocation7] sm:$0xff]
    %v2470 = vld [vmem:[#allocation7 + $0x8] sm:$0xff]
    %v2471 = vld [vmem:[#allocation7 + $0x10] sm:$0xf]
    %v2472 = vld [vmem:[#allocation7 + $0x14] sm:$0xff]
    %v2473 = vld [vmem:[#allocation7 + $0x1c] sm:$0xff]
    %v2474 = vld [vmem:[#allocation7 + $0x24] sm:$0xf]
    %v2475 = vld [vmem:[#allocation7 + $0x28] sm:$0xff]
    %v2476 = vld [vmem:[#allocation7 + $0x30] sm:$0xff]
    %v2477 = vld [vmem:[#allocation7 + $0x38] sm:$0xf]
    %v2478 = vld [vmem:[#allocation7 + $0x3c] sm:$0xff]
    %v2479 = vld [vmem:[#allocation7 + $0x44] sm:$0xff]
    %v2480 = vld [vmem:[#allocation7 + $0x4c] sm:$0xf]
    %v2481 = vld [vmem:[#allocation7 + $0x50] sm:$0xff]
    %v2482 = vld [vmem:[#allocation7 + $0x58] sm:$0xff]
    %v2483 = vld [vmem:[#allocation7 + $0x60] sm:$0xf]
    %v2484 = vld [vmem:[#allocation7 + $0x64] sm:$0xff]
    %v2485 = vld [vmem:[#allocation7 + $0x6c] sm:$0xff]
    %v2486 = vld [vmem:[#allocation7 + $0x74] sm:$0xf]
    %v2487 = vld [vmem:[#allocation7 + $0x78] sm:$0xff]
    %v2488 = vld [vmem:[#allocation7 + $0x80] sm:$0xff]
    %v2489 = vld [vmem:[#allocation7 + $0x88] sm:$0xf]
    %v2490 = vld [vmem:[#allocation7 + $0x8c] sm:$0xff]
    %v2491 = vld [vmem:[#allocation7 + $0x94] sm:$0xff]
    %v2492 = vld [vmem:[#allocation7 + $0x9c] sm:$0xf]
    %v2493 = vld [vmem:[#allocation7 + $0xa0] sm:$0xff]
    %v2494 = vld [vmem:[#allocation7 + $0xa8] sm:$0xff]
    %v2495 = vld [vmem:[#allocation7 + $0xb0] sm:$0xf]
    %v2496 = vld [vmem:[#allocation7 + $0xb4] sm:$0xff]
    %v2497 = vld [vmem:[#allocation7 + $0xbc] sm:$0xff]
    %v2498 = vld [vmem:[#allocation7 + $0xc4] sm:$0xf]
    %v2499 = vld [vmem:[#allocation7 + $0xc8] sm:$0xff]
    %v2500 = vld [vmem:[#allocation7 + $0xd0] sm:$0xff]
    %v2501 = vld [vmem:[#allocation7 + $0xd8] sm:$0xf]
    %v2502 = vld [vmem:[#allocation7 + $0xdc] sm:$0xff]
    %v2503 = vld [vmem:[#allocation7 + $0xe4] sm:$0xff]
    %v2504 = vld [vmem:[#allocation7 + $0xec] sm:$0xf]
    %v2505 = vld [vmem:[#allocation7 + $0xf0] sm:$0xff]
    %v2506 = vld [vmem:[#allocation7 + $0xf8] sm:$0xff]
    %v2507 = vld [vmem:[#allocation7 + $0x100] sm:$0xf]
    %v2508 = vld [vmem:[#allocation7 + $0x104] sm:$0xff]
    %v2509 = vld [vmem:[#allocation7 + $0x10c] sm:$0xff]
    %v2510 = vld [vmem:[#allocation7 + $0x114] sm:$0xf]
    %v2511 = vld [vmem:[#allocation7 + $0x118] sm:$0xff]
    %v2512 = vld [vmem:[#allocation7 + $0x120] sm:$0xff]
    %v2513 = vld [vmem:[#allocation7 + $0x128] sm:$0xf]
    %v2514 = vld [vmem:[#allocation7 + $0x12c] sm:$0xff]
    %v2515 = vld [vmem:[#allocation7 + $0x134] sm:$0xff]
    %v2516 = vld [vmem:[#allocation7 + $0x13c] sm:$0xf]
    %v2517 = vld [vmem:[#allocation7 + $0x140] sm:$0xff]
    %v2518 = vld [vmem:[#allocation7 + $0x148] sm:$0xff]
    %v2519 = vld [vmem:[#allocation7 + $0x150] sm:$0xf]
    %v2520 = vld [vmem:[#allocation7 + $0x154] sm:$0xff]
    %v2521 = vld [vmem:[#allocation7 + $0x15c] sm:$0xff]
    %v2522 = vld [vmem:[#allocation7 + $0x164] sm:$0xf]
    %v2523 = vld [vmem:[#allocation7 + $0x168] sm:$0xff]
    %v2524 = vld [vmem:[#allocation7 + $0x170] sm:$0xff]
    %v2525 = vld [vmem:[#allocation7 + $0x178] sm:$0xf]
    %v2526 = vld [vmem:[#allocation7 + $0x17c] sm:$0xff]
    %v2527 = vld [vmem:[#allocation7 + $0x184] sm:$0xff]
    %v2528 = vld [vmem:[#allocation7 + $0x18c] sm:$0xf]
    %v2529 = vld [vmem:[#allocation7 + $0x190] sm:$0xff]
    %v2530 = vld [vmem:[#allocation7 + $0x198] sm:$0xff]
    %v2531 = vld [vmem:[#allocation7 + $0x1a0] sm:$0xf]
    %v2532 = vld [vmem:[#allocation7 + $0x1a4] sm:$0xff]
    %v2533 = vld [vmem:[#allocation7 + $0x1ac] sm:$0xff]
    %v2534 = vld [vmem:[#allocation7 + $0x1b4] sm:$0xf]
    %v2535 = vld [vmem:[#allocation7 + $0x1b8] sm:$0xff]
    %v2536 = vld [vmem:[#allocation7 + $0x1c0] sm:$0xff]
    %v2537 = vld [vmem:[#allocation7 + $0x1c8] sm:$0xf]
    %v2538 = vld [vmem:[#allocation7 + $0x1cc] sm:$0xff]
    %v2539 = vld [vmem:[#allocation7 + $0x1d4] sm:$0xff]
    %v2540 = vld [vmem:[#allocation7 + $0x1dc] sm:$0xf]
    %v2541 = vld [vmem:[#allocation7 + $0x1e0] sm:$0xff]
    %v2542 = vld [vmem:[#allocation7 + $0x1e8] sm:$0xff]
    %v2543 = vld [vmem:[#allocation7 + $0x1f0] sm:$0xf]
    %v2544 = vld [vmem:[#allocation7 + $0x1f4] sm:$0xff]
    %v2545 = vld [vmem:[#allocation7 + $0x1fc] sm:$0xff]
    %v2546 = vld [vmem:[#allocation7 + $0x204] sm:$0xf]
    %v2547 = vld [vmem:[#allocation7 + $0x208] sm:$0xff]
    %v2548 = vld [vmem:[#allocation7 + $0x210] sm:$0xff]
    %v2549 = vld [vmem:[#allocation7 + $0x218] sm:$0xf]
    %v2550 = vld [vmem:[#allocation7 + $0x21c] sm:$0xff]
    %v2551 = vld [vmem:[#allocation7 + $0x224] sm:$0xff]
    %v2552 = vld [vmem:[#allocation7 + $0x22c] sm:$0xf]
    %v2553 = vld [vmem:[#allocation7 + $0x230] sm:$0xff]
    %v2554 = vld [vmem:[#allocation7 + $0x238] sm:$0xff]
    %v2555 = vld [vmem:[#allocation7 + $0x240] sm:$0xf]
    %v2556 = vld [vmem:[#allocation7 + $0x244] sm:$0xff]
    %v2557 = vld [vmem:[#allocation7 + $0x24c] sm:$0xff]
    %v2558 = vld [vmem:[#allocation7 + $0x254] sm:$0xf]
    %v2559 = vld [vmem:[#allocation7 + $0x258] sm:$0xff]
    %v2560 = vld [vmem:[#allocation7 + $0x260] sm:$0xff]
    %v2561 = vld [vmem:[#allocation7 + $0x268] sm:$0xf]
    %v2562 = vld [vmem:[#allocation7 + $0x26c] sm:$0xff]
    %v2563 = vld [vmem:[#allocation7 + $0x274] sm:$0xff]
    %v2564 = vld [vmem:[#allocation7 + $0x27c] sm:$0xf]
    %v2565 = vld [vmem:[#allocation7 + $0x280] sm:$0xff]
    %v2566 = vld [vmem:[#allocation7 + $0x288] sm:$0xff]
    %v2567 = vld [vmem:[#allocation7 + $0x290] sm:$0xf]
    %v2568 = vld [vmem:[#allocation7 + $0x294] sm:$0xff]
    %v2569 = vld [vmem:[#allocation7 + $0x29c] sm:$0xff]
    %v2570 = vld [vmem:[#allocation7 + $0x2a4] sm:$0xf]
    %v2571 = vld [vmem:[#allocation7 + $0x2a8] sm:$0xff]
    %v2572 = vld [vmem:[#allocation7 + $0x2b0] sm:$0xff]
    %v2573 = vld [vmem:[#allocation7 + $0x2b8] sm:$0xf]
    %v2574 = vld [vmem:[#allocation7 + $0x2bc] sm:$0xff]
    %v2575 = vld [vmem:[#allocation7 + $0x2c4] sm:$0xff]
    %v2576 = vld [vmem:[#allocation7 + $0x2cc] sm:$0xf]
    %v2577 = vld [vmem:[#allocation7 + $0x2d0] sm:$0xff]
    %v2578 = vld [vmem:[#allocation7 + $0x2d8] sm:$0xff]
    %v2579 = vld [vmem:[#allocation7 + $0x2e0] sm:$0xf]
    %v2580 = vld [vmem:[#allocation7 + $0x2e4] sm:$0xff]
    %v2581 = vld [vmem:[#allocation7 + $0x2ec] sm:$0xff]
    %v2582 = vld [vmem:[#allocation7 + $0x2f4] sm:$0xf]
    %v2583 = vld [vmem:[#allocation7 + $0x2f8] sm:$0xff]
    %v2584 = vld [vmem:[#allocation7 + $0x300] sm:$0xff]
    %v2585 = vld [vmem:[#allocation7 + $0x308] sm:$0xf]
    %v2586 = vld [vmem:[#allocation7 + $0x30c] sm:$0xff]
    %v2587 = vld [vmem:[#allocation7 + $0x314] sm:$0xff]
    %v2588 = vld [vmem:[#allocation7 + $0x31c] sm:$0xf]
    %v2589 = vld [vmem:[#allocation7 + $0x320] sm:$0xff]
    %v2590 = vld [vmem:[#allocation7 + $0x328] sm:$0xff]
    %v2591 = vld [vmem:[#allocation7 + $0x330] sm:$0xf]
    %v2592 = vld [vmem:[#allocation7 + $0x334] sm:$0xff]
    %v2593 = vld [vmem:[#allocation7 + $0x33c] sm:$0xff]
    %v2594 = vld [vmem:[#allocation7 + $0x344] sm:$0xf]
    %v2595 = vld [vmem:[#allocation7 + $0x348] sm:$0xff]
    %v2596 = vld [vmem:[#allocation7 + $0x350] sm:$0xff]
    %v2597 = vld [vmem:[#allocation7 + $0x358] sm:$0xf]
    %v2598 = vld [vmem:[#allocation7 + $0x35c] sm:$0xff]
    %v2599 = vld [vmem:[#allocation7 + $0x364] sm:$0xff]
    %v2600 = vld [vmem:[#allocation7 + $0x36c] sm:$0xf]
    %v2601 = vld [vmem:[#allocation7 + $0x370] sm:$0xff]
    %v2602 = vld [vmem:[#allocation7 + $0x378] sm:$0xff]
    %v2603 = vld [vmem:[#allocation7 + $0x380] sm:$0xf]
    %v2604 = vld [vmem:[#allocation7 + $0x384] sm:$0xff]
    %v2605 = vld [vmem:[#allocation7 + $0x38c] sm:$0xff]
    %v2606 = vld [vmem:[#allocation7 + $0x394] sm:$0xf]
    %v2607 = vld [vmem:[#allocation7 + $0x398] sm:$0xff]
    %v2608 = vld [vmem:[#allocation7 + $0x3a0] sm:$0xff]
    %v2609 = vld [vmem:[#allocation7 + $0x3a8] sm:$0xf]
    %v2610 = vld [vmem:[#allocation7 + $0x3ac] sm:$0xff]
    %v2611 = vld [vmem:[#allocation7 + $0x3b4] sm:$0xff]
    %v2612 = vld [vmem:[#allocation7 + $0x3bc] sm:$0xf]
    %v2613 = vld [vmem:[#allocation7 + $0x3c0] sm:$0xff]
    %v2614 = vld [vmem:[#allocation7 + $0x3c8] sm:$0xff]
    %v2615 = vld [vmem:[#allocation7 + $0x3d0] sm:$0xf]
    %v2616 = vld [vmem:[#allocation7 + $0x3d4] sm:$0xff]
    %v2617 = vld [vmem:[#allocation7 + $0x3dc] sm:$0xff]
    %v2618 = vld [vmem:[#allocation7 + $0x3e4] sm:$0xf]
    %v2619 = vld [vmem:[#allocation7 + $0x3e8] sm:$0xff]
    %v2620 = vld [vmem:[#allocation7 + $0x3f0] sm:$0xff]
    %v2621 = vld [vmem:[#allocation7 + $0x3f8] sm:$0xf]
    %v2622 = vld [vmem:[#allocation7 + $0x3fc] sm:$0xff]
    %v2623 = vld [vmem:[#allocation7 + $0x404] sm:$0xff]
    %v2624 = vld [vmem:[#allocation7 + $0x40c] sm:$0xf]
    %v2625 = vld [vmem:[#allocation7 + $0x410] sm:$0xff]
    %v2626 = vld [vmem:[#allocation7 + $0x418] sm:$0xff]
    %v2627 = vld [vmem:[#allocation7 + $0x420] sm:$0xf]
    %v2628 = vld [vmem:[#allocation7 + $0x424] sm:$0xff]
    %v2629 = vld [vmem:[#allocation7 + $0x42c] sm:$0xff]
    %v2630 = vld [vmem:[#allocation7 + $0x434] sm:$0xf]
    %v2631 = vld [vmem:[#allocation7 + $0x438] sm:$0xff]
    %v2632 = vld [vmem:[#allocation7 + $0x440] sm:$0xff]
    %v2633 = vld [vmem:[#allocation7 + $0x448] sm:$0xf]
    %v2634 = vld [vmem:[#allocation7 + $0x44c] sm:$0xff]
    %v2635 = vld [vmem:[#allocation7 + $0x454] sm:$0xff]
    %v2636 = vld [vmem:[#allocation7 + $0x45c] sm:$0xf]
    %v2637 = vld [vmem:[#allocation7 + $0x460] sm:$0xff]
    %v2638 = vld [vmem:[#allocation7 + $0x468] sm:$0xff]
    %v2639 = vld [vmem:[#allocation7 + $0x470] sm:$0xf]
    %v2640 = vld [vmem:[#allocation7 + $0x474] sm:$0xff]
    %v2641 = vld [vmem:[#allocation7 + $0x47c] sm:$0xff]
    %v2642 = vld [vmem:[#allocation7 + $0x484] sm:$0xf]
    %v2643 = vld [vmem:[#allocation7 + $0x488] sm:$0xff]
    %v2644 = vld [vmem:[#allocation7 + $0x490] sm:$0xff]
    %v2645 = vld [vmem:[#allocation7 + $0x498] sm:$0xf]
    %v2646 = vld [vmem:[#allocation7 + $0x49c] sm:$0xff]
    %v2647 = vld [vmem:[#allocation7 + $0x4a4] sm:$0xff]
    %v2648 = vld [vmem:[#allocation7 + $0x4ac] sm:$0xf]
    %v2649 = vld [vmem:[#allocation7 + $0x4b0] sm:$0xff]
    %v2650 = vld [vmem:[#allocation7 + $0x4b8] sm:$0xff]
    %v2651 = vld [vmem:[#allocation7 + $0x4c0] sm:$0xf]
    %v2652 = vld [vmem:[#allocation7 + $0x4c4] sm:$0xff]
    %v2653 = vld [vmem:[#allocation7 + $0x4cc] sm:$0xff]
    %v2654 = vld [vmem:[#allocation7 + $0x4d4] sm:$0xf]
    %v2655 = vld [vmem:[#allocation7 + $0x4d8] sm:$0xff]
    %v2656 = vld [vmem:[#allocation7 + $0x4e0] sm:$0xff]
    %v2657 = vld [vmem:[#allocation7 + $0x4e8] sm:$0xf]
    %v2658 = vld [vmem:[#allocation7 + $0x4ec] sm:$0xff]
    %v2659 = vld [vmem:[#allocation7 + $0x4f4] sm:$0xff]
    %v2660 = vld [vmem:[#allocation7 + $0x4fc] sm:$0xf]
    %v2661 = vld [vmem:[#allocation7 + $0x500] sm:$0xff]
    %v2662 = vld [vmem:[#allocation7 + $0x508] sm:$0xff]
    %v2663 = vld [vmem:[#allocation7 + $0x510] sm:$0xf]
    %v2664 = vld [vmem:[#allocation7 + $0x514] sm:$0xff]
    %v2665 = vld [vmem:[#allocation7 + $0x51c] sm:$0xff]
    %v2666 = vld [vmem:[#allocation7 + $0x524] sm:$0xf]
    %v2667 = vld [vmem:[#allocation7 + $0x528] sm:$0xff]
    %v2668 = vld [vmem:[#allocation7 + $0x530] sm:$0xff]
    %v2669 = vld [vmem:[#allocation7 + $0x538] sm:$0xf]
    %v2670 = vld [vmem:[#allocation7 + $0x53c] sm:$0xff]
    %v2671 = vld [vmem:[#allocation7 + $0x544] sm:$0xff]
    %v2672 = vld [vmem:[#allocation7 + $0x54c] sm:$0xf]
    %v2673 = vld [vmem:[#allocation7 + $0x550] sm:$0xff]
    %v2674 = vld [vmem:[#allocation7 + $0x558] sm:$0xff]
    %v2675 = vld [vmem:[#allocation7 + $0x560] sm:$0xf]
    %v2676 = vld [vmem:[#allocation7 + $0x564] sm:$0xff]
    %v2677 = vld [vmem:[#allocation7 + $0x56c] sm:$0xff]
    %v2678 = vld [vmem:[#allocation7 + $0x574] sm:$0xf]
    %v2679 = vld [vmem:[#allocation7 + $0x578] sm:$0xff]
    %v2680 = vld [vmem:[#allocation7 + $0x580] sm:$0xff]
    %v2681 = vld [vmem:[#allocation7 + $0x588] sm:$0xf]
    %v2682 = vld [vmem:[#allocation7 + $0x58c] sm:$0xff]
    %v2683 = vld [vmem:[#allocation7 + $0x594] sm:$0xff]
    %v2684 = vld [vmem:[#allocation7 + $0x59c] sm:$0xf]
    %v2685 = vld [vmem:[#allocation7 + $0x5a0] sm:$0xff]
    %v2686 = vld [vmem:[#allocation7 + $0x5a8] sm:$0xff]
    %v2687 = vld [vmem:[#allocation7 + $0x5b0] sm:$0xf]
    %v2688 = vld [vmem:[#allocation7 + $0x5b4] sm:$0xff]
    %v2689 = vld [vmem:[#allocation7 + $0x5bc] sm:$0xff]
    %v2690 = vld [vmem:[#allocation7 + $0x5c4] sm:$0xf]
    %v2691 = vld [vmem:[#allocation7 + $0x5c8] sm:$0xff]
    %v2692 = vld [vmem:[#allocation7 + $0x5d0] sm:$0xff]
    %v2693 = vld [vmem:[#allocation7 + $0x5d8] sm:$0xf]
    %v2694 = vld [vmem:[#allocation7 + $0x5dc] sm:$0xff]
    %v2695 = vld [vmem:[#allocation7 + $0x5e4] sm:$0xff]
    %v2696 = vld [vmem:[#allocation7 + $0x5ec] sm:$0xf]
    %v2697 = vld [vmem:[#allocation7 + $0x5f0] sm:$0xff]
    %v2698 = vld [vmem:[#allocation7 + $0x5f8] sm:$0xff]
    %v2699 = vld [vmem:[#allocation7 + $0x600] sm:$0xf]
    %v2700 = vld [vmem:[#allocation7 + $0x604] sm:$0xff]
    %v2701 = vld [vmem:[#allocation7 + $0x60c] sm:$0xff]
    %v2702 = vld [vmem:[#allocation7 + $0x614] sm:$0xf]
    %v2703 = vld [vmem:[#allocation7 + $0x618] sm:$0xff]
    %v2704 = vld [vmem:[#allocation7 + $0x620] sm:$0xff]
    %v2705 = vld [vmem:[#allocation7 + $0x628] sm:$0xf]
    %v2706 = vld [vmem:[#allocation7 + $0x62c] sm:$0xff]
    %v2707 = vld [vmem:[#allocation7 + $0x634] sm:$0xff]
    %v2708 = vld [vmem:[#allocation7 + $0x63c] sm:$0xf]
    %s2709 = scalar_lea.vmem %s8, 3
    %v2710 = vld [vmem:[%s2709] ss:$8 sm:$0xf]
    %v2711 = vld [vmem:[%s2709] ss:$8 sm:$0x10]
    %v2712 = vor.u32 %v2710, %v2711
    %v2714 = vperm.slane %v2712, 0
    %v2715 = vperm.slane %v2712, 1
    %v2716 = vperm.slane %v2712, 2
    %v2717 = vperm.slane %v2712, 3
    %v2718 = vperm.slane %v2712, 4
    %v2964 = vunpack.c.l.b16 %v2469
    %v2965 = vunpack.c.h.b16 %v2469
    %v2966 = vunpack.c.l.b16 %v2470
    %v2967 = vunpack.c.h.b16 %v2470
    %v2968 = vunpack.c.l.b16 %v2471
    %v2969 = vunpack.c.l.b16 %v2472
    %v2970 = vunpack.c.h.b16 %v2472
    %v2971 = vunpack.c.l.b16 %v2473
    %v2972 = vunpack.c.h.b16 %v2473
    %v2973 = vunpack.c.l.b16 %v2474
    %v2974 = vunpack.c.l.b16 %v2475
    %v2975 = vunpack.c.h.b16 %v2475
    %v2976 = vunpack.c.l.b16 %v2476
    %v2977 = vunpack.c.h.b16 %v2476
    %v2978 = vunpack.c.l.b16 %v2477
    %v2979 = vunpack.c.l.b16 %v2478
    %v2980 = vunpack.c.h.b16 %v2478
    %v2981 = vunpack.c.l.b16 %v2479
    %v2982 = vunpack.c.h.b16 %v2479
    %v2983 = vunpack.c.l.b16 %v2480
    %v2984 = vunpack.c.l.b16 %v2481
    %v2985 = vunpack.c.h.b16 %v2481
    %v2986 = vunpack.c.l.b16 %v2482
    %v2987 = vunpack.c.h.b16 %v2482
    %v2988 = vunpack.c.l.b16 %v2483
    %v2989 = vunpack.c.l.b16 %v2484
    %v2990 = vunpack.c.h.b16 %v2484
    %v2991 = vunpack.c.l.b16 %v2485
    %v2992 = vunpack.c.h.b16 %v2485
    %v2993 = vunpack.c.l.b16 %v2486
    %v2994 = vunpack.c.l.b16 %v2487
    %v2995 = vunpack.c.h.b16 %v2487
    %v2996 = vunpack.c.l.b16 %v2488
    %v2997 = vunpack.c.h.b16 %v2488
    %v2998 = vunpack.c.l.b16 %v2489
    %v2999 = vunpack.c.l.b16 %v2490
    %v3000 = vunpack.c.h.b16 %v2490
    %v3001 = vunpack.c.l.b16 %v2491
    %v3002 = vunpack.c.h.b16 %v2491
    %v3003 = vunpack.c.l.b16 %v2492
    %v3004 = vunpack.c.l.b16 %v2493
    %v3005 = vunpack.c.h.b16 %v2493
    %v3006 = vunpack.c.l.b16 %v2494
    %v3007 = vunpack.c.h.b16 %v2494
    %v3008 = vunpack.c.l.b16 %v2495
    %v3009 = vunpack.c.l.b16 %v2496
    %v3010 = vunpack.c.h.b16 %v2496
    %v3011 = vunpack.c.l.b16 %v2497
    %v3012 = vunpack.c.h.b16 %v2497
    %v3013 = vunpack.c.l.b16 %v2498
    %v3014 = vunpack.c.l.b16 %v2499
    %v3015 = vunpack.c.h.b16 %v2499
    %v3016 = vunpack.c.l.b16 %v2500
    %v3017 = vunpack.c.h.b16 %v2500
    %v3018 = vunpack.c.l.b16 %v2501
    %v3019 = vunpack.c.l.b16 %v2502
    %v3020 = vunpack.c.h.b16 %v2502
    %v3021 = vunpack.c.l.b16 %v2503
    %v3022 = vunpack.c.h.b16 %v2503
    %v3023 = vunpack.c.l.b16 %v2504
    %v3024 = vunpack.c.l.b16 %v2505
    %v3025 = vunpack.c.h.b16 %v2505
    %v3026 = vunpack.c.l.b16 %v2506
    %v3027 = vunpack.c.h.b16 %v2506
    %v3028 = vunpack.c.l.b16 %v2507
    %v3029 = vunpack.c.l.b16 %v2508
    %v3030 = vunpack.c.h.b16 %v2508
    %v3031 = vunpack.c.l.b16 %v2509
    %v3032 = vunpack.c.h.b16 %v2509
    %v3033 = vunpack.c.l.b16 %v2510
    %v3034 = vunpack.c.l.b16 %v2511
    %v3035 = vunpack.c.h.b16 %v2511
    %v3036 = vunpack.c.l.b16 %v2512
    %v3037 = vunpack.c.h.b16 %v2512
    %v3038 = vunpack.c.l.b16 %v2513
    %v3039 = vunpack.c.l.b16 %v2514
    %v3040 = vunpack.c.h.b16 %v2514
    %v3041 = vunpack.c.l.b16 %v2515
    %v3042 = vunpack.c.h.b16 %v2515
    %v3043 = vunpack.c.l.b16 %v2516
    %v3044 = vunpack.c.l.b16 %v2517
    %v3045 = vunpack.c.h.b16 %v2517
    %v3046 = vunpack.c.l.b16 %v2518
    %v3047 = vunpack.c.h.b16 %v2518
    %v3048 = vunpack.c.l.b16 %v2519
    %v3049 = vunpack.c.l.b16 %v2520
    %v3050 = vunpack.c.h.b16 %v2520
    %v3051 = vunpack.c.l.b16 %v2521
    %v3052 = vunpack.c.h.b16 %v2521
    %v3053 = vunpack.c.l.b16 %v2522
    %v3054 = vunpack.c.l.b16 %v2523
    %v3055 = vunpack.c.h.b16 %v2523
    %v3056 = vunpack.c.l.b16 %v2524
    %v3057 = vunpack.c.h.b16 %v2524
    %v3058 = vunpack.c.l.b16 %v2525
    %v3059 = vunpack.c.l.b16 %v2526
    %v3060 = vunpack.c.h.b16 %v2526
    %v3061 = vunpack.c.l.b16 %v2527
    %v3062 = vunpack.c.h.b16 %v2527
    %v3063 = vunpack.c.l.b16 %v2528
    %v3064 = vunpack.c.l.b16 %v2529
    %v3065 = vunpack.c.h.b16 %v2529
    %v3066 = vunpack.c.l.b16 %v2530
    %v3067 = vunpack.c.h.b16 %v2530
    %v3068 = vunpack.c.l.b16 %v2531
    %v3069 = vunpack.c.l.b16 %v2532
    %v3070 = vunpack.c.h.b16 %v2532
    %v3071 = vunpack.c.l.b16 %v2533
    %v3072 = vunpack.c.h.b16 %v2533
    %v3073 = vunpack.c.l.b16 %v2534
    %v3074 = vunpack.c.l.b16 %v2535
    %v3075 = vunpack.c.h.b16 %v2535
    %v3076 = vunpack.c.l.b16 %v2536
    %v3077 = vunpack.c.h.b16 %v2536
    %v3078 = vunpack.c.l.b16 %v2537
    %v3079 = vunpack.c.l.b16 %v2538
    %v3080 = vunpack.c.h.b16 %v2538
    %v3081 = vunpack.c.l.b16 %v2539
    %v3082 = vunpack.c.h.b16 %v2539
    %v3083 = vunpack.c.l.b16 %v2540
    %v3084 = vunpack.c.l.b16 %v2541
    %v3085 = vunpack.c.h.b16 %v2541
    %v3086 = vunpack.c.l.b16 %v2542
    %v3087 = vunpack.c.h.b16 %v2542
    %v3088 = vunpack.c.l.b16 %v2543
    %v3089 = vunpack.c.l.b16 %v2544
    %v3090 = vunpack.c.h.b16 %v2544
    %v3091 = vunpack.c.l.b16 %v2545
    %v3092 = vunpack.c.h.b16 %v2545
    %v3093 = vunpack.c.l.b16 %v2546
    %v3094 = vunpack.c.l.b16 %v2547
    %v3095 = vunpack.c.h.b16 %v2547
    %v3096 = vunpack.c.l.b16 %v2548
    %v3097 = vunpack.c.h.b16 %v2548
    %v3098 = vunpack.c.l.b16 %v2549
    %v3099 = vunpack.c.l.b16 %v2550
    %v3100 = vunpack.c.h.b16 %v2550
    %v3101 = vunpack.c.l.b16 %v2551
    %v3102 = vunpack.c.h.b16 %v2551
    %v3103 = vunpack.c.l.b16 %v2552
    %v3104 = vunpack.c.l.b16 %v2553
    %v3105 = vunpack.c.h.b16 %v2553
    %v3106 = vunpack.c.l.b16 %v2554
    %v3107 = vunpack.c.h.b16 %v2554
    %v3108 = vunpack.c.l.b16 %v2555
    %v3109 = vunpack.c.l.b16 %v2556
    %v3110 = vunpack.c.h.b16 %v2556
    %v3111 = vunpack.c.l.b16 %v2557
    %v3112 = vunpack.c.h.b16 %v2557
    %v3113 = vunpack.c.l.b16 %v2558
    %v3114 = vunpack.c.l.b16 %v2559
    %v3115 = vunpack.c.h.b16 %v2559
    %v3116 = vunpack.c.l.b16 %v2560
    %v3117 = vunpack.c.h.b16 %v2560
    %v3118 = vunpack.c.l.b16 %v2561
    %v3119 = vunpack.c.l.b16 %v2562
    %v3120 = vunpack.c.h.b16 %v2562
    %v3121 = vunpack.c.l.b16 %v2563
    %v3122 = vunpack.c.h.b16 %v2563
    %v3123 = vunpack.c.l.b16 %v2564
    %v3124 = vunpack.c.l.b16 %v2565
    %v3125 = vunpack.c.h.b16 %v2565
    %v3126 = vunpack.c.l.b16 %v2566
    %v3127 = vunpack.c.h.b16 %v2566
    %v3128 = vunpack.c.l.b16 %v2567
    %v3129 = vunpack.c.l.b16 %v2568
    %v3130 = vunpack.c.h.b16 %v2568
    %v3131 = vunpack.c.l.b16 %v2569
    %v3132 = vunpack.c.h.b16 %v2569
    %v3133 = vunpack.c.l.b16 %v2570
    %v3134 = vunpack.c.l.b16 %v2571
    %v3135 = vunpack.c.h.b16 %v2571
    %v3136 = vunpack.c.l.b16 %v2572
    %v3137 = vunpack.c.h.b16 %v2572
    %v3138 = vunpack.c.l.b16 %v2573
    %v3139 = vunpack.c.l.b16 %v2574
    %v3140 = vunpack.c.h.b16 %v2574
    %v3141 = vunpack.c.l.b16 %v2575
    %v3142 = vunpack.c.h.b16 %v2575
    %v3143 = vunpack.c.l.b16 %v2576
    %v3144 = vunpack.c.l.b16 %v2577
    %v3145 = vunpack.c.h.b16 %v2577
    %v3146 = vunpack.c.l.b16 %v2578
    %v3147 = vunpack.c.h.b16 %v2578
    %v3148 = vunpack.c.l.b16 %v2579
    %v3149 = vunpack.c.l.b16 %v2580
    %v3150 = vunpack.c.h.b16 %v2580
    %v3151 = vunpack.c.l.b16 %v2581
    %v3152 = vunpack.c.h.b16 %v2581
    %v3153 = vunpack.c.l.b16 %v2582
    %v3154 = vunpack.c.l.b16 %v2583
    %v3155 = vunpack.c.h.b16 %v2583
    %v3156 = vunpack.c.l.b16 %v2584
    %v3157 = vunpack.c.h.b16 %v2584
    %v3158 = vunpack.c.l.b16 %v2585
    %v3159 = vunpack.c.l.b16 %v2586
    %v3160 = vunpack.c.h.b16 %v2586
    %v3161 = vunpack.c.l.b16 %v2587
    %v3162 = vunpack.c.h.b16 %v2587
    %v3163 = vunpack.c.l.b16 %v2588
    %v3164 = vunpack.c.l.b16 %v2589
    %v3165 = vunpack.c.h.b16 %v2589
    %v3166 = vunpack.c.l.b16 %v2590
    %v3167 = vunpack.c.h.b16 %v2590
    %v3168 = vunpack.c.l.b16 %v2591
    %v3169 = vunpack.c.l.b16 %v2592
    %v3170 = vunpack.c.h.b16 %v2592
    %v3171 = vunpack.c.l.b16 %v2593
    %v3172 = vunpack.c.h.b16 %v2593
    %v3173 = vunpack.c.l.b16 %v2594
    %v3174 = vunpack.c.l.b16 %v2595
    %v3175 = vunpack.c.h.b16 %v2595
    %v3176 = vunpack.c.l.b16 %v2596
    %v3177 = vunpack.c.h.b16 %v2596
    %v3178 = vunpack.c.l.b16 %v2597
    %v3179 = vunpack.c.l.b16 %v2598
    %v3180 = vunpack.c.h.b16 %v2598
    %v3181 = vunpack.c.l.b16 %v2599
    %v3182 = vunpack.c.h.b16 %v2599
    %v3183 = vunpack.c.l.b16 %v2600
    %v3184 = vunpack.c.l.b16 %v2601
    %v3185 = vunpack.c.h.b16 %v2601
    %v3186 = vunpack.c.l.b16 %v2602
    %v3187 = vunpack.c.h.b16 %v2602
    %v3188 = vunpack.c.l.b16 %v2603
    %v3189 = vunpack.c.l.b16 %v2604
    %v3190 = vunpack.c.h.b16 %v2604
    %v3191 = vunpack.c.l.b16 %v2605
    %v3192 = vunpack.c.h.b16 %v2605
    %v3193 = vunpack.c.l.b16 %v2606
    %v3194 = vunpack.c.l.b16 %v2607
    %v3195 = vunpack.c.h.b16 %v2607
    %v3196 = vunpack.c.l.b16 %v2608
    %v3197 = vunpack.c.h.b16 %v2608
    %v3198 = vunpack.c.l.b16 %v2609
    %v3199 = vunpack.c.l.b16 %v2610
    %v3200 = vunpack.c.h.b16 %v2610
    %v3201 = vunpack.c.l.b16 %v2611
    %v3202 = vunpack.c.h.b16 %v2611
    %v3203 = vunpack.c.l.b16 %v2612
    %v3204 = vunpack.c.l.b16 %v2613
    %v3205 = vunpack.c.h.b16 %v2613
    %v3206 = vunpack.c.l.b16 %v2614
    %v3207 = vunpack.c.h.b16 %v2614
    %v3208 = vunpack.c.l.b16 %v2615
    %v3209 = vunpack.c.l.b16 %v2616
    %v3210 = vunpack.c.h.b16 %v2616
    %v3211 = vunpack.c.l.b16 %v2617
    %v3212 = vunpack.c.h.b16 %v2617
    %v3213 = vunpack.c.l.b16 %v2618
    %v3214 = vunpack.c.l.b16 %v2619
    %v3215 = vunpack.c.h.b16 %v2619
    %v3216 = vunpack.c.l.b16 %v2620
    %v3217 = vunpack.c.h.b16 %v2620
    %v3218 = vunpack.c.l.b16 %v2621
    %v3219 = vunpack.c.l.b16 %v2622
    %v3220 = vunpack.c.h.b16 %v2622
    %v3221 = vunpack.c.l.b16 %v2623
    %v3222 = vunpack.c.h.b16 %v2623
    %v3223 = vunpack.c.l.b16 %v2624
    %v3224 = vunpack.c.l.b16 %v2625
    %v3225 = vunpack.c.h.b16 %v2625
    %v3226 = vunpack.c.l.b16 %v2626
    %v3227 = vunpack.c.h.b16 %v2626
    %v3228 = vunpack.c.l.b16 %v2627
    %v3229 = vunpack.c.l.b16 %v2628
    %v3230 = vunpack.c.h.b16 %v2628
    %v3231 = vunpack.c.l.b16 %v2629
    %v3232 = vunpack.c.h.b16 %v2629
    %v3233 = vunpack.c.l.b16 %v2630
    %v3234 = vunpack.c.l.b16 %v2631
    %v3235 = vunpack.c.h.b16 %v2631
    %v3236 = vunpack.c.l.b16 %v2632
    %v3237 = vunpack.c.h.b16 %v2632
    %v3238 = vunpack.c.l.b16 %v2633
    %v3239 = vunpack.c.l.b16 %v2634
    %v3240 = vunpack.c.h.b16 %v2634
    %v3241 = vunpack.c.l.b16 %v2635
    %v3242 = vunpack.c.h.b16 %v2635
    %v3243 = vunpack.c.l.b16 %v2636
    %v3244 = vunpack.c.l.b16 %v2637
    %v3245 = vunpack.c.h.b16 %v2637
    %v3246 = vunpack.c.l.b16 %v2638
    %v3247 = vunpack.c.h.b16 %v2638
    %v3248 = vunpack.c.l.b16 %v2639
    %v3249 = vunpack.c.l.b16 %v2640
    %v3250 = vunpack.c.h.b16 %v2640
    %v3251 = vunpack.c.l.b16 %v2641
    %v3252 = vunpack.c.h.b16 %v2641
    %v3253 = vunpack.c.l.b16 %v2642
    %v3254 = vunpack.c.l.b16 %v2643
    %v3255 = vunpack.c.h.b16 %v2643
    %v3256 = vunpack.c.l.b16 %v2644
    %v3257 = vunpack.c.h.b16 %v2644
    %v3258 = vunpack.c.l.b16 %v2645
    %v3259 = vunpack.c.l.b16 %v2646
    %v3260 = vunpack.c.h.b16 %v2646
    %v3261 = vunpack.c.l.b16 %v2647
    %v3262 = vunpack.c.h.b16 %v2647
    %v3263 = vunpack.c.l.b16 %v2648
    %v3264 = vunpack.c.l.b16 %v2649
    %v3265 = vunpack.c.h.b16 %v2649
    %v3266 = vunpack.c.l.b16 %v2650
    %v3267 = vunpack.c.h.b16 %v2650
    %v3268 = vunpack.c.l.b16 %v2651
    %v3269 = vunpack.c.l.b16 %v2652
    %v3270 = vunpack.c.h.b16 %v2652
    %v3271 = vunpack.c.l.b16 %v2653
    %v3272 = vunpack.c.h.b16 %v2653
    %v3273 = vunpack.c.l.b16 %v2654
    %v3274 = vunpack.c.l.b16 %v2655
    %v3275 = vunpack.c.h.b16 %v2655
    %v3276 = vunpack.c.l.b16 %v2656
    %v3277 = vunpack.c.h.b16 %v2656
    %v3278 = vunpack.c.l.b16 %v2657
    %v3279 = vunpack.c.l.b16 %v2658
    %v3280 = vunpack.c.h.b16 %v2658
    %v3281 = vunpack.c.l.b16 %v2659
    %v3282 = vunpack.c.h.b16 %v2659
    %v3283 = vunpack.c.l.b16 %v2660
    %v3284 = vunpack.c.l.b16 %v2661
    %v3285 = vunpack.c.h.b16 %v2661
    %v3286 = vunpack.c.l.b16 %v2662
    %v3287 = vunpack.c.h.b16 %v2662
    %v3288 = vunpack.c.l.b16 %v2663
    %v3289 = vunpack.c.l.b16 %v2664
    %v3290 = vunpack.c.h.b16 %v2664
    %v3291 = vunpack.c.l.b16 %v2665
    %v3292 = vunpack.c.h.b16 %v2665
    %v3293 = vunpack.c.l.b16 %v2666
    %v3294 = vunpack.c.l.b16 %v2667
    %v3295 = vunpack.c.h.b16 %v2667
    %v3296 = vunpack.c.l.b16 %v2668
    %v3297 = vunpack.c.h.b16 %v2668
    %v3298 = vunpack.c.l.b16 %v2669
    %v3299 = vunpack.c.l.b16 %v2670
    %v3300 = vunpack.c.h.b16 %v2670
    %v3301 = vunpack.c.l.b16 %v2671
    %v3302 = vunpack.c.h.b16 %v2671
    %v3303 = vunpack.c.l.b16 %v2672
    %v3304 = vunpack.c.l.b16 %v2673
    %v3305 = vunpack.c.h.b16 %v2673
    %v3306 = vunpack.c.l.b16 %v2674
    %v3307 = vunpack.c.h.b16 %v2674
    %v3308 = vunpack.c.l.b16 %v2675
    %v3309 = vunpack.c.l.b16 %v2676
    %v3310 = vunpack.c.h.b16 %v2676
    %v3311 = vunpack.c.l.b16 %v2677
    %v3312 = vunpack.c.h.b16 %v2677
    %v3313 = vunpack.c.l.b16 %v2678
    %v3314 = vunpack.c.l.b16 %v2679
    %v3315 = vunpack.c.h.b16 %v2679
    %v3316 = vunpack.c.l.b16 %v2680
    %v3317 = vunpack.c.h.b16 %v2680
    %v3318 = vunpack.c.l.b16 %v2681
    %v3319 = vunpack.c.l.b16 %v2682
    %v3320 = vunpack.c.h.b16 %v2682
    %v3321 = vunpack.c.l.b16 %v2683
    %v3322 = vunpack.c.h.b16 %v2683
    %v3323 = vunpack.c.l.b16 %v2684
    %v3324 = vunpack.c.l.b16 %v2685
    %v3325 = vunpack.c.h.b16 %v2685
    %v3326 = vunpack.c.l.b16 %v2686
    %v3327 = vunpack.c.h.b16 %v2686
    %v3328 = vunpack.c.l.b16 %v2687
    %v3329 = vunpack.c.l.b16 %v2688
    %v3330 = vunpack.c.h.b16 %v2688
    %v3331 = vunpack.c.l.b16 %v2689
    %v3332 = vunpack.c.h.b16 %v2689
    %v3333 = vunpack.c.l.b16 %v2690
    %v3334 = vunpack.c.l.b16 %v2691
    %v3335 = vunpack.c.h.b16 %v2691
    %v3336 = vunpack.c.l.b16 %v2692
    %v3337 = vunpack.c.h.b16 %v2692
    %v3338 = vunpack.c.l.b16 %v2693
    %v3339 = vunpack.c.l.b16 %v2694
    %v3340 = vunpack.c.h.b16 %v2694
    %v3341 = vunpack.c.l.b16 %v2695
    %v3342 = vunpack.c.h.b16 %v2695
    %v3343 = vunpack.c.l.b16 %v2696
    %v3344 = vunpack.c.l.b16 %v2697
    %v3345 = vunpack.c.h.b16 %v2697
    %v3346 = vunpack.c.l.b16 %v2698
    %v3347 = vunpack.c.h.b16 %v2698
    %v3348 = vunpack.c.l.b16 %v2699
    %v3349 = vunpack.c.l.b16 %v2700
    %v3350 = vunpack.c.h.b16 %v2700
    %v3351 = vunpack.c.l.b16 %v2701
    %v3352 = vunpack.c.h.b16 %v2701
    %v3353 = vunpack.c.l.b16 %v2702
    %v3354 = vunpack.c.l.b16 %v2703
    %v3355 = vunpack.c.h.b16 %v2703
    %v3356 = vunpack.c.l.b16 %v2704
    %v3357 = vunpack.c.h.b16 %v2704
    %v3358 = vunpack.c.l.b16 %v2705
    %v3359 = vunpack.c.l.b16 %v2706
    %v3360 = vunpack.c.h.b16 %v2706
    %v3361 = vunpack.c.l.b16 %v2707
    %v3362 = vunpack.c.h.b16 %v2707
    %v3363 = vunpack.c.l.b16 %v2708
    %v3364 = vpack.c.b16 %v2969, %v2964
    %v3365 = vpack.c.b16 %v2970, %v2965
    %v3366 = vpack.c.b16 %v2971, %v2966
    %v3367 = vpack.c.b16 %v2972, %v2967
    %v3368 = vpack.c.b16 %v2973, %v2968
    %v3369 = vpack.c.b16 %v2979, %v2974
    %v3370 = vpack.c.b16 %v2980, %v2975
    %v3371 = vpack.c.b16 %v2981, %v2976
    %v3372 = vpack.c.b16 %v2982, %v2977
    %v3373 = vpack.c.b16 %v2983, %v2978
    %v3374 = vpack.c.b16 %v2989, %v2984
    %v3375 = vpack.c.b16 %v2990, %v2985
    %v3376 = vpack.c.b16 %v2991, %v2986
    %v3377 = vpack.c.b16 %v2992, %v2987
    %v3378 = vpack.c.b16 %v2993, %v2988
    %v3379 = vpack.c.b16 %v2999, %v2994
    %v3380 = vpack.c.b16 %v3000, %v2995
    %v3381 = vpack.c.b16 %v3001, %v2996
    %v3382 = vpack.c.b16 %v3002, %v2997
    %v3383 = vpack.c.b16 %v3003, %v2998
    %v3384 = vpack.c.b16 %v3009, %v3004
    %v3385 = vpack.c.b16 %v3010, %v3005
    %v3386 = vpack.c.b16 %v3011, %v3006
    %v3387 = vpack.c.b16 %v3012, %v3007
    %v3388 = vpack.c.b16 %v3013, %v3008
    %v3389 = vpack.c.b16 %v3019, %v3014
    %v3390 = vpack.c.b16 %v3020, %v3015
    %v3391 = vpack.c.b16 %v3021, %v3016
    %v3392 = vpack.c.b16 %v3022, %v3017
    %v3393 = vpack.c.b16 %v3023, %v3018
    %v3394 = vpack.c.b16 %v3029, %v3024
    %v3395 = vpack.c.b16 %v3030, %v3025
    %v3396 = vpack.c.b16 %v3031, %v3026
    %v3397 = vpack.c.b16 %v3032, %v3027
    %v3398 = vpack.c.b16 %v3033, %v3028
    %v3399 = vpack.c.b16 %v3039, %v3034
    %v3400 = vpack.c.b16 %v3040, %v3035
    %v3401 = vpack.c.b16 %v3041, %v3036
    %v3402 = vpack.c.b16 %v3042, %v3037
    %v3403 = vpack.c.b16 %v3043, %v3038
    %v3404 = vpack.c.b16 %v3049, %v3044
    %v3405 = vpack.c.b16 %v3050, %v3045
    %v3406 = vpack.c.b16 %v3051, %v3046
    %v3407 = vpack.c.b16 %v3052, %v3047
    %v3408 = vpack.c.b16 %v3053, %v3048
    %v3409 = vpack.c.b16 %v3059, %v3054
    %v3410 = vpack.c.b16 %v3060, %v3055
    %v3411 = vpack.c.b16 %v3061, %v3056
    %v3412 = vpack.c.b16 %v3062, %v3057
    %v3413 = vpack.c.b16 %v3063, %v3058
    %v3414 = vpack.c.b16 %v3069, %v3064
    %v3415 = vpack.c.b16 %v3070, %v3065
    %v3416 = vpack.c.b16 %v3071, %v3066
    %v3417 = vpack.c.b16 %v3072, %v3067
    %v3418 = vpack.c.b16 %v3073, %v3068
    %v3419 = vpack.c.b16 %v3079, %v3074
    %v3420 = vpack.c.b16 %v3080, %v3075
    %v3421 = vpack.c.b16 %v3081, %v3076
    %v3422 = vpack.c.b16 %v3082, %v3077
    %v3423 = vpack.c.b16 %v3083, %v3078
    %v3424 = vpack.c.b16 %v3089, %v3084
    %v3425 = vpack.c.b16 %v3090, %v3085
    %v3426 = vpack.c.b16 %v3091, %v3086
    %v3427 = vpack.c.b16 %v3092, %v3087
    %v3428 = vpack.c.b16 %v3093, %v3088
    %v3429 = vpack.c.b16 %v3099, %v3094
    %v3430 = vpack.c.b16 %v3100, %v3095
    %v3431 = vpack.c.b16 %v3101, %v3096
    %v3432 = vpack.c.b16 %v3102, %v3097
    %v3433 = vpack.c.b16 %v3103, %v3098
    %v3434 = vpack.c.b16 %v3109, %v3104
    %v3435 = vpack.c.b16 %v3110, %v3105
    %v3436 = vpack.c.b16 %v3111, %v3106
    %v3437 = vpack.c.b16 %v3112, %v3107
    %v3438 = vpack.c.b16 %v3113, %v3108
    %v3439 = vpack.c.b16 %v3119, %v3114
    %v3440 = vpack.c.b16 %v3120, %v3115
    %v3441 = vpack.c.b16 %v3121, %v3116
    %v3442 = vpack.c.b16 %v3122, %v3117
    %v3443 = vpack.c.b16 %v3123, %v3118
    %v3444 = vpack.c.b16 %v3129, %v3124
    %v3445 = vpack.c.b16 %v3130, %v3125
    %v3446 = vpack.c.b16 %v3131, %v3126
    %v3447 = vpack.c.b16 %v3132, %v3127
    %v3448 = vpack.c.b16 %v3133, %v3128
    %v3449 = vpack.c.b16 %v3139, %v3134
    %v3450 = vpack.c.b16 %v3140, %v3135
    %v3451 = vpack.c.b16 %v3141, %v3136
    %v3452 = vpack.c.b16 %v3142, %v3137
    %v3453 = vpack.c.b16 %v3143, %v3138
    %v3454 = vpack.c.b16 %v3149, %v3144
    %v3455 = vpack.c.b16 %v3150, %v3145
    %v3456 = vpack.c.b16 %v3151, %v3146
    %v3457 = vpack.c.b16 %v3152, %v3147
    %v3458 = vpack.c.b16 %v3153, %v3148
    %v3459 = vpack.c.b16 %v3159, %v3154
    %v3460 = vpack.c.b16 %v3160, %v3155
    %v3461 = vpack.c.b16 %v3161, %v3156
    %v3462 = vpack.c.b16 %v3162, %v3157
    %v3463 = vpack.c.b16 %v3163, %v3158
    %v3464 = vpack.c.b16 %v3169, %v3164
    %v3465 = vpack.c.b16 %v3170, %v3165
    %v3466 = vpack.c.b16 %v3171, %v3166
    %v3467 = vpack.c.b16 %v3172, %v3167
    %v3468 = vpack.c.b16 %v3173, %v3168
    %v3469 = vpack.c.b16 %v3179, %v3174
    %v3470 = vpack.c.b16 %v3180, %v3175
    %v3471 = vpack.c.b16 %v3181, %v3176
    %v3472 = vpack.c.b16 %v3182, %v3177
    %v3473 = vpack.c.b16 %v3183, %v3178
    %v3474 = vpack.c.b16 %v3189, %v3184
    %v3475 = vpack.c.b16 %v3190, %v3185
    %v3476 = vpack.c.b16 %v3191, %v3186
    %v3477 = vpack.c.b16 %v3192, %v3187
    %v3478 = vpack.c.b16 %v3193, %v3188
    %v3479 = vpack.c.b16 %v3199, %v3194
    %v3480 = vpack.c.b16 %v3200, %v3195
    %v3481 = vpack.c.b16 %v3201, %v3196
    %v3482 = vpack.c.b16 %v3202, %v3197
    %v3483 = vpack.c.b16 %v3203, %v3198
    %v3484 = vpack.c.b16 %v3209, %v3204
    %v3485 = vpack.c.b16 %v3210, %v3205
    %v3486 = vpack.c.b16 %v3211, %v3206
    %v3487 = vpack.c.b16 %v3212, %v3207
    %v3488 = vpack.c.b16 %v3213, %v3208
    %v3489 = vpack.c.b16 %v3219, %v3214
    %v3490 = vpack.c.b16 %v3220, %v3215
    %v3491 = vpack.c.b16 %v3221, %v3216
    %v3492 = vpack.c.b16 %v3222, %v3217
    %v3493 = vpack.c.b16 %v3223, %v3218
    %v3494 = vpack.c.b16 %v3229, %v3224
    %v3495 = vpack.c.b16 %v3230, %v3225
    %v3496 = vpack.c.b16 %v3231, %v3226
    %v3497 = vpack.c.b16 %v3232, %v3227
    %v3498 = vpack.c.b16 %v3233, %v3228
    %v3499 = vpack.c.b16 %v3239, %v3234
    %v3500 = vpack.c.b16 %v3240, %v3235
    %v3501 = vpack.c.b16 %v3241, %v3236
    %v3502 = vpack.c.b16 %v3242, %v3237
    %v3503 = vpack.c.b16 %v3243, %v3238
    %v3504 = vpack.c.b16 %v3249, %v3244
    %v3505 = vpack.c.b16 %v3250, %v3245
    %v3506 = vpack.c.b16 %v3251, %v3246
    %v3507 = vpack.c.b16 %v3252, %v3247
    %v3508 = vpack.c.b16 %v3253, %v3248
    %v3509 = vpack.c.b16 %v3259, %v3254
    %v3510 = vpack.c.b16 %v3260, %v3255
    %v3511 = vpack.c.b16 %v3261, %v3256
    %v3512 = vpack.c.b16 %v3262, %v3257
    %v3513 = vpack.c.b16 %v3263, %v3258
    %v3514 = vpack.c.b16 %v3269, %v3264
    %v3515 = vpack.c.b16 %v3270, %v3265
    %v3516 = vpack.c.b16 %v3271, %v3266
    %v3517 = vpack.c.b16 %v3272, %v3267
    %v3518 = vpack.c.b16 %v3273, %v3268
    %v3519 = vpack.c.b16 %v3279, %v3274
    %v3520 = vpack.c.b16 %v3280, %v3275
    %v3521 = vpack.c.b16 %v3281, %v3276
    %v3522 = vpack.c.b16 %v3282, %v3277
    %v3523 = vpack.c.b16 %v3283, %v3278
    %v3524 = vpack.c.b16 %v3289, %v3284
    %v3525 = vpack.c.b16 %v3290, %v3285
    %v3526 = vpack.c.b16 %v3291, %v3286
    %v3527 = vpack.c.b16 %v3292, %v3287
    %v3528 = vpack.c.b16 %v3293, %v3288
    %v3529 = vpack.c.b16 %v3299, %v3294
    %v3530 = vpack.c.b16 %v3300, %v3295
    %v3531 = vpack.c.b16 %v3301, %v3296
    %v3532 = vpack.c.b16 %v3302, %v3297
    %v3533 = vpack.c.b16 %v3303, %v3298
    %v3534 = vpack.c.b16 %v3309, %v3304
    %v3535 = vpack.c.b16 %v3310, %v3305
    %v3536 = vpack.c.b16 %v3311, %v3306
    %v3537 = vpack.c.b16 %v3312, %v3307
    %v3538 = vpack.c.b16 %v3313, %v3308
    %v3539 = vpack.c.b16 %v3319, %v3314
    %v3540 = vpack.c.b16 %v3320, %v3315
    %v3541 = vpack.c.b16 %v3321, %v3316
    %v3542 = vpack.c.b16 %v3322, %v3317
    %v3543 = vpack.c.b16 %v3323, %v3318
    %v3544 = vpack.c.b16 %v3329, %v3324
    %v3545 = vpack.c.b16 %v3330, %v3325
    %v3546 = vpack.c.b16 %v3331, %v3326
    %v3547 = vpack.c.b16 %v3332, %v3327
    %v3548 = vpack.c.b16 %v3333, %v3328
    %v3549 = vpack.c.b16 %v3339, %v3334
    %v3550 = vpack.c.b16 %v3340, %v3335
    %v3551 = vpack.c.b16 %v3341, %v3336
    %v3552 = vpack.c.b16 %v3342, %v3337
    %v3553 = vpack.c.b16 %v3343, %v3338
    %v3554 = vpack.c.b16 %v3349, %v3344
    %v3555 = vpack.c.b16 %v3350, %v3345
    %v3556 = vpack.c.b16 %v3351, %v3346
    %v3557 = vpack.c.b16 %v3352, %v3347
    %v3558 = vpack.c.b16 %v3353, %v3348
    %v3559 = vpack.c.b16 %v3359, %v3354
    %v3560 = vpack.c.b16 %v3360, %v3355
    %v3561 = vpack.c.b16 %v3361, %v3356
    %v3562 = vpack.c.b16 %v3362, %v3357
    %v3563 = vpack.c.b16 %v3363, %v3358
    %3764 = vmatpush.bf16.msra.mxu0 %v3399
    %3765 = vmatpush.bf16.msra.mxu0 %v3394
    %3766 = vmatpush.bf16.msra.mxu0 %v3389
    %3767 = vmatpush.bf16.msra.mxu0 %v3384
    %3768 = vmatpush.bf16.msra.mxu0 %v3379
    %3769 = vmatpush.bf16.msra.mxu0 %v3374
    %3770 = vmatpush.bf16.msra.mxu0 %v3369
    %3771 = vmatpush.bf16.msra.mxu0 %v3364
    %3772 = vmatmul.bf16.gmra.mxu0 %v2464
    %v3773 = vpop.f32.mrf.mxu0
    %v3774 = vadd.f32 %v2714, %v3773
    %v3775 = vpop.f32.mrf.mxu0
    %v3776 = vadd.f32 %v2714, %v3775
    %3777 = vdwg.mxu0
    %3778 = vmatpush.bf16.msra.mxu0 %v3439
    %3779 = vmatpush.bf16.msra.mxu0 %v3434
    %3780 = vmatpush.bf16.msra.mxu0 %v3429
    %3781 = vmatpush.bf16.msra.mxu0 %v3424
    %3782 = vmatpush.bf16.msra.mxu0 %v3419
    %3783 = vmatpush.bf16.msra.mxu0 %v3414
    %3784 = vmatpush.bf16.msra.mxu0 %v3409
    %3785 = vmatpush.bf16.msra.mxu0 %v3404
    %3786 = vmatmul.bf16.gmra.mxu0 %v2465
    %v3787 = vpop.f32.mrf.mxu0
    %v3788 = vadd.f32 %v3774, %v3787
    %v3789 = vpop.f32.mrf.mxu0
    %v3790 = vadd.f32 %v3776, %v3789
    %3791 = vdwg.mxu0
    %3792 = vmatpush.bf16.msra.mxu0 %v3479
    %3793 = vmatpush.bf16.msra.mxu0 %v3474
    %3794 = vmatpush.bf16.msra.mxu0 %v3469
    %3795 = vmatpush.bf16.msra.mxu0 %v3464
    %3796 = vmatpush.bf16.msra.mxu0 %v3459
    %3797 = vmatpush.bf16.msra.mxu0 %v3454
    %3798 = vmatpush.bf16.msra.mxu0 %v3449
    %3799 = vmatpush.bf16.msra.mxu0 %v3444
    %3800 = vmatmul.bf16.gmra.mxu0 %v2466
    %v3801 = vpop.f32.mrf.mxu0
    %v3802 = vadd.f32 %v3788, %v3801
    %v3803 = vpop.f32.mrf.mxu0
    %v3804 = vadd.f32 %v3790, %v3803
    %3805 = vdwg.mxu0
    %3806 = vmatpush.bf16.msra.mxu0 %v3519
    %3807 = vmatpush.bf16.msra.mxu0 %v3514
    %3808 = vmatpush.bf16.msra.mxu0 %v3509
    %3809 = vmatpush.bf16.msra.mxu0 %v3504
    %3810 = vmatpush.bf16.msra.mxu0 %v3499
    %3811 = vmatpush.bf16.msra.mxu0 %v3494
    %3812 = vmatpush.bf16.msra.mxu0 %v3489
    %3813 = vmatpush.bf16.msra.mxu0 %v3484
    %3814 = vmatmul.bf16.gmra.mxu0 %v2467
    %v3815 = vpop.f32.mrf.mxu0
    %v3816 = vadd.f32 %v3802, %v3815
    %v3817 = vpop.f32.mrf.mxu0
    %v3818 = vadd.f32 %v3804, %v3817
    %3819 = vdwg.mxu0
    %3820 = vmatpush.bf16.msra.mxu0 %v3559
    %3821 = vmatpush.bf16.msra.mxu0 %v3554
    %3822 = vmatpush.bf16.msra.mxu0 %v3549
    %3823 = vmatpush.bf16.msra.mxu0 %v3544
    %3824 = vmatpush.bf16.msra.mxu0 %v3539
    %3825 = vmatpush.bf16.msra.mxu0 %v3534
    %3826 = vmatpush.bf16.msra.mxu0 %v3529
    %3827 = vmatpush.bf16.msra.mxu0 %v3524
    %3828 = vmatmul.bf16.gmra.mxu0 %v2468
    %v3829 = vpop.f32.mrf.mxu0
    %v3830 = vadd.f32 %v3816, %v3829
    %v3831 = vpop.f32.mrf.mxu0
    %v3832 = vadd.f32 %v3818, %v3831
    %3833 = vdwg.mxu0
    %3834 = vmatpush.bf16.msra.mxu0 %v3400
    %3835 = vmatpush.bf16.msra.mxu0 %v3395
    %3836 = vmatpush.bf16.msra.mxu0 %v3390
    %3837 = vmatpush.bf16.msra.mxu0 %v3385
    %3838 = vmatpush.bf16.msra.mxu0 %v3380
    %3839 = vmatpush.bf16.msra.mxu0 %v3375
    %3840 = vmatpush.bf16.msra.mxu0 %v3370
    %3841 = vmatpush.bf16.msra.mxu0 %v3365
    %3842 = vmatmul.bf16.gmra.mxu0 %v2464
    %v3843 = vpop.f32.mrf.mxu0
    %v3844 = vadd.f32 %v2715, %v3843
    %v3845 = vpop.f32.mrf.mxu0
    %v3846 = vadd.f32 %v2715, %v3845
    %3847 = vdwg.mxu0
    %3848 = vmatpush.bf16.msra.mxu0 %v3440
    %3849 = vmatpush.bf16.msra.mxu0 %v3435
    %3850 = vmatpush.bf16.msra.mxu0 %v3430
    %3851 = vmatpush.bf16.msra.mxu0 %v3425
    %3852 = vmatpush.bf16.msra.mxu0 %v3420
    %3853 = vmatpush.bf16.msra.mxu0 %v3415
    %3854 = vmatpush.bf16.msra.mxu0 %v3410
    %3855 = vmatpush.bf16.msra.mxu0 %v3405
    %3856 = vmatmul.bf16.gmra.mxu0 %v2465
    %v3857 = vpop.f32.mrf.mxu0
    %v3858 = vadd.f32 %v3844, %v3857
    %v3859 = vpop.f32.mrf.mxu0
    %v3860 = vadd.f32 %v3846, %v3859
    %3861 = vdwg.mxu0
    %3862 = vmatpush.bf16.msra.mxu0 %v3480
    %3863 = vmatpush.bf16.msra.mxu0 %v3475
    %3864 = vmatpush.bf16.msra.mxu0 %v3470
    %3865 = vmatpush.bf16.msra.mxu0 %v3465
    %3866 = vmatpush.bf16.msra.mxu0 %v3460
    %3867 = vmatpush.bf16.msra.mxu0 %v3455
    %3868 = vmatpush.bf16.msra.mxu0 %v3450
    %3869 = vmatpush.bf16.msra.mxu0 %v3445
    %3870 = vmatmul.bf16.gmra.mxu0 %v2466
    %v3871 = vpop.f32.mrf.mxu0
    %v3872 = vadd.f32 %v3858, %v3871
    %v3873 = vpop.f32.mrf.mxu0
    %v3874 = vadd.f32 %v3860, %v3873
    %3875 = vdwg.mxu0
    %3876 = vmatpush.bf16.msra.mxu0 %v3520
    %3877 = vmatpush.bf16.msra.mxu0 %v3515
    %3878 = vmatpush.bf16.msra.mxu0 %v3510
    %3879 = vmatpush.bf16.msra.mxu0 %v3505
    %3880 = vmatpush.bf16.msra.mxu0 %v3500
    %3881 = vmatpush.bf16.msra.mxu0 %v3495
    %3882 = vmatpush.bf16.msra.mxu0 %v3490
    %3883 = vmatpush.bf16.msra.mxu0 %v3485
    %3884 = vmatmul.bf16.gmra.mxu0 %v2467
    %v3885 = vpop.f32.mrf.mxu0
    %v3886 = vadd.f32 %v3872, %v3885
    %v3887 = vpop.f32.mrf.mxu0
    %v3888 = vadd.f32 %v3874, %v3887
    %3889 = vdwg.mxu0
    %3890 = vmatpush.bf16.msra.mxu0 %v3560
    %3891 = vmatpush.bf16.msra.mxu0 %v3555
    %3892 = vmatpush.bf16.msra.mxu0 %v3550
    %3893 = vmatpush.bf16.msra.mxu0 %v3545
    %3894 = vmatpush.bf16.msra.mxu0 %v3540
    %3895 = vmatpush.bf16.msra.mxu0 %v3535
    %3896 = vmatpush.bf16.msra.mxu0 %v3530
    %3897 = vmatpush.bf16.msra.mxu0 %v3525
    %3898 = vmatmul.bf16.gmra.mxu0 %v2468
    %v3899 = vpop.f32.mrf.mxu0
    %v3900 = vadd.f32 %v3886, %v3899
    %v3901 = vpop.f32.mrf.mxu0
    %v3902 = vadd.f32 %v3888, %v3901
    %3903 = vdwg.mxu0
    %3904 = vmatpush.bf16.msra.mxu0 %v3401
    %3905 = vmatpush.bf16.msra.mxu0 %v3396
    %3906 = vmatpush.bf16.msra.mxu0 %v3391
    %3907 = vmatpush.bf16.msra.mxu0 %v3386
    %3908 = vmatpush.bf16.msra.mxu0 %v3381
    %3909 = vmatpush.bf16.msra.mxu0 %v3376
    %3910 = vmatpush.bf16.msra.mxu0 %v3371
    %3911 = vmatpush.bf16.msra.mxu0 %v3366
    %3912 = vmatmul.bf16.gmra.mxu0 %v2464
    %v3913 = vpop.f32.mrf.mxu0
    %v3914 = vadd.f32 %v2716, %v3913
    %v3915 = vpop.f32.mrf.mxu0
    %v3916 = vadd.f32 %v2716, %v3915
    %3917 = vdwg.mxu0
    %3918 = vmatpush.bf16.msra.mxu0 %v3441
    %3919 = vmatpush.bf16.msra.mxu0 %v3436
    %3920 = vmatpush.bf16.msra.mxu0 %v3431
    %3921 = vmatpush.bf16.msra.mxu0 %v3426
    %3922 = vmatpush.bf16.msra.mxu0 %v3421
    %3923 = vmatpush.bf16.msra.mxu0 %v3416
    %3924 = vmatpush.bf16.msra.mxu0 %v3411
    %3925 = vmatpush.bf16.msra.mxu0 %v3406
    %3926 = vmatmul.bf16.gmra.mxu0 %v2465
    %v3927 = vpop.f32.mrf.mxu0
    %v3928 = vadd.f32 %v3914, %v3927
    %v3929 = vpop.f32.mrf.mxu0
    %v3930 = vadd.f32 %v3916, %v3929
    %3931 = vdwg.mxu0
    %3932 = vmatpush.bf16.msra.mxu0 %v3481
    %3933 = vmatpush.bf16.msra.mxu0 %v3476
    %3934 = vmatpush.bf16.msra.mxu0 %v3471
    %3935 = vmatpush.bf16.msra.mxu0 %v3466
    %3936 = vmatpush.bf16.msra.mxu0 %v3461
    %3937 = vmatpush.bf16.msra.mxu0 %v3456
    %3938 = vmatpush.bf16.msra.mxu0 %v3451
    %3939 = vmatpush.bf16.msra.mxu0 %v3446
    %3940 = vmatmul.bf16.gmra.mxu0 %v2466
    %v3941 = vpop.f32.mrf.mxu0
    %v3942 = vadd.f32 %v3928, %v3941
    %v3943 = vpop.f32.mrf.mxu0
    %v3944 = vadd.f32 %v3930, %v3943
    %3945 = vdwg.mxu0
    %3946 = vmatpush.bf16.msra.mxu0 %v3521
    %3947 = vmatpush.bf16.msra.mxu0 %v3516
    %3948 = vmatpush.bf16.msra.mxu0 %v3511
    %3949 = vmatpush.bf16.msra.mxu0 %v3506
    %3950 = vmatpush.bf16.msra.mxu0 %v3501
    %3951 = vmatpush.bf16.msra.mxu0 %v3496
    %3952 = vmatpush.bf16.msra.mxu0 %v3491
    %3953 = vmatpush.bf16.msra.mxu0 %v3486
    %3954 = vmatmul.bf16.gmra.mxu0 %v2467
    %v3955 = vpop.f32.mrf.mxu0
    %v3956 = vadd.f32 %v3942, %v3955
    %v3957 = vpop.f32.mrf.mxu0
    %v3958 = vadd.f32 %v3944, %v3957
    %3959 = vdwg.mxu0
    %3960 = vmatpush.bf16.msra.mxu0 %v3561
    %3961 = vmatpush.bf16.msra.mxu0 %v3556
    %3962 = vmatpush.bf16.msra.mxu0 %v3551
    %3963 = vmatpush.bf16.msra.mxu0 %v3546
    %3964 = vmatpush.bf16.msra.mxu0 %v3541
    %3965 = vmatpush.bf16.msra.mxu0 %v3536
    %3966 = vmatpush.bf16.msra.mxu0 %v3531
    %3967 = vmatpush.bf16.msra.mxu0 %v3526
    %3968 = vmatmul.bf16.gmra.mxu0 %v2468
    %v3969 = vpop.f32.mrf.mxu0
    %v3970 = vadd.f32 %v3956, %v3969
    %v3971 = vpop.f32.mrf.mxu0
    %v3972 = vadd.f32 %v3958, %v3971
    %3973 = vdwg.mxu0
    %3974 = vmatpush.bf16.msra.mxu0 %v3402
    %3975 = vmatpush.bf16.msra.mxu0 %v3397
    %3976 = vmatpush.bf16.msra.mxu0 %v3392
    %3977 = vmatpush.bf16.msra.mxu0 %v3387
    %3978 = vmatpush.bf16.msra.mxu0 %v3382
    %3979 = vmatpush.bf16.msra.mxu0 %v3377
    %3980 = vmatpush.bf16.msra.mxu0 %v3372
    %3981 = vmatpush.bf16.msra.mxu0 %v3367
    %3982 = vmatmul.bf16.gmra.mxu0 %v2464
    %v3983 = vpop.f32.mrf.mxu0
    %v3984 = vadd.f32 %v2717, %v3983
    %v3985 = vpop.f32.mrf.mxu0
    %v3986 = vadd.f32 %v2717, %v3985
    %3987 = vdwg.mxu0
    %3988 = vmatpush.bf16.msra.mxu0 %v3442
    %3989 = vmatpush.bf16.msra.mxu0 %v3437
    %3990 = vmatpush.bf16.msra.mxu0 %v3432
    %3991 = vmatpush.bf16.msra.mxu0 %v3427
    %3992 = vmatpush.bf16.msra.mxu0 %v3422
    %3993 = vmatpush.bf16.msra.mxu0 %v3417
    %3994 = vmatpush.bf16.msra.mxu0 %v3412
    %3995 = vmatpush.bf16.msra.mxu0 %v3407
    %3996 = vmatmul.bf16.gmra.mxu0 %v2465
    %v3997 = vpop.f32.mrf.mxu0
    %v3998 = vadd.f32 %v3984, %v3997
    %v3999 = vpop.f32.mrf.mxu0
    %v4000 = vadd.f32 %v3986, %v3999
    %4001 = vdwg.mxu0
    %4002 = vmatpush.bf16.msra.mxu0 %v3482
    %4003 = vmatpush.bf16.msra.mxu0 %v3477
    %4004 = vmatpush.bf16.msra.mxu0 %v3472
    %4005 = vmatpush.bf16.msra.mxu0 %v3467
    %4006 = vmatpush.bf16.msra.mxu0 %v3462
    %4007 = vmatpush.bf16.msra.mxu0 %v3457
    %4008 = vmatpush.bf16.msra.mxu0 %v3452
    %4009 = vmatpush.bf16.msra.mxu0 %v3447
    %4010 = vmatmul.bf16.gmra.mxu0 %v2466
    %v4011 = vpop.f32.mrf.mxu0
    %v4012 = vadd.f32 %v3998, %v4011
    %v4013 = vpop.f32.mrf.mxu0
    %v4014 = vadd.f32 %v4000, %v4013
    %4015 = vdwg.mxu0
    %4016 = vmatpush.bf16.msra.mxu0 %v3522
    %4017 = vmatpush.bf16.msra.mxu0 %v3517
    %4018 = vmatpush.bf16.msra.mxu0 %v3512
    %4019 = vmatpush.bf16.msra.mxu0 %v3507
    %4020 = vmatpush.bf16.msra.mxu0 %v3502
    %4021 = vmatpush.bf16.msra.mxu0 %v3497
    %4022 = vmatpush.bf16.msra.mxu0 %v3492
    %4023 = vmatpush.bf16.msra.mxu0 %v3487
    %4024 = vmatmul.bf16.gmra.mxu0 %v2467
    %v4025 = vpop.f32.mrf.mxu0
    %v4026 = vadd.f32 %v4012, %v4025
    %v4027 = vpop.f32.mrf.mxu0
    %v4028 = vadd.f32 %v4014, %v4027
    %4029 = vdwg.mxu0
    %4030 = vmatpush.bf16.msra.mxu0 %v3562
    %4031 = vmatpush.bf16.msra.mxu0 %v3557
    %4032 = vmatpush.bf16.msra.mxu0 %v3552
    %4033 = vmatpush.bf16.msra.mxu0 %v3547
    %4034 = vmatpush.bf16.msra.mxu0 %v3542
    %4035 = vmatpush.bf16.msra.mxu0 %v3537
    %4036 = vmatpush.bf16.msra.mxu0 %v3532
    %4037 = vmatpush.bf16.msra.mxu0 %v3527
    %4038 = vmatmul.bf16.gmra.mxu0 %v2468
    %v4039 = vpop.f32.mrf.mxu0
    %v4040 = vadd.f32 %v4026, %v4039
    %v4041 = vpop.f32.mrf.mxu0
    %v4042 = vadd.f32 %v4028, %v4041
    %4043 = vdwg.mxu0
    %4044 = vmatpush.bf16.msra.mxu0 %v3403
    %4045 = vmatpush.bf16.msra.mxu0 %v3398
    %4046 = vmatpush.bf16.msra.mxu0 %v3393
    %4047 = vmatpush.bf16.msra.mxu0 %v3388
    %4048 = vmatpush.bf16.msra.mxu0 %v3383
    %4049 = vmatpush.bf16.msra.mxu0 %v3378
    %4050 = vmatpush.bf16.msra.mxu0 %v3373
    %4051 = vmatpush.bf16.msra.mxu0 %v3368
    %4052 = vmatmul.bf16.gmra.mxu0 %v2464
    %v4053 = vpop.f32.mrf.mxu0
    %v4054 = vadd.f32 %v2718, %v4053
    %v4055 = vpop.f32.mrf.mxu0
    %v4056 = vadd.f32 %v2718, %v4055
    %4057 = vdwg.mxu0
    %4058 = vmatpush.bf16.msra.mxu0 %v3443
    %4059 = vmatpush.bf16.msra.mxu0 %v3438
    %4060 = vmatpush.bf16.msra.mxu0 %v3433
    %4061 = vmatpush.bf16.msra.mxu0 %v3428
    %4062 = vmatpush.bf16.msra.mxu0 %v3423
    %4063 = vmatpush.bf16.msra.mxu0 %v3418
    %4064 = vmatpush.bf16.msra.mxu0 %v3413
    %4065 = vmatpush.bf16.msra.mxu0 %v3408
    %4066 = vmatmul.bf16.gmra.mxu0 %v2465
    %v4067 = vpop.f32.mrf.mxu0
    %v4068 = vadd.f32 %v4054, %v4067
    %v4069 = vpop.f32.mrf.mxu0
    %v4070 = vadd.f32 %v4056, %v4069
    %4071 = vdwg.mxu0
    %4072 = vmatpush.bf16.msra.mxu0 %v3483
    %4073 = vmatpush.bf16.msra.mxu0 %v3478
    %4074 = vmatpush.bf16.msra.mxu0 %v3473
    %4075 = vmatpush.bf16.msra.mxu0 %v3468
    %4076 = vmatpush.bf16.msra.mxu0 %v3463
    %4077 = vmatpush.bf16.msra.mxu0 %v3458
    %4078 = vmatpush.bf16.msra.mxu0 %v3453
    %4079 = vmatpush.bf16.msra.mxu0 %v3448
    %4080 = vmatmul.bf16.gmra.mxu0 %v2466
    %v4081 = vpop.f32.mrf.mxu0
    %v4082 = vadd.f32 %v4068, %v4081
    %v4083 = vpop.f32.mrf.mxu0
    %v4084 = vadd.f32 %v4070, %v4083
    %4085 = vdwg.mxu0
    %4086 = vmatpush.bf16.msra.mxu0 %v3523
    %4087 = vmatpush.bf16.msra.mxu0 %v3518
    %4088 = vmatpush.bf16.msra.mxu0 %v3513
    %4089 = vmatpush.bf16.msra.mxu0 %v3508
    %4090 = vmatpush.bf16.msra.mxu0 %v3503
    %4091 = vmatpush.bf16.msra.mxu0 %v3498
    %4092 = vmatpush.bf16.msra.mxu0 %v3493
    %4093 = vmatpush.bf16.msra.mxu0 %v3488
    %4094 = vmatmul.bf16.gmra.mxu0 %v2467
    %v4095 = vpop.f32.mrf.mxu0
    %v4096 = vadd.f32 %v4082, %v4095
    %v4097 = vpop.f32.mrf.mxu0
    %v4098 = vadd.f32 %v4084, %v4097
    %4099 = vdwg.mxu0
    %4100 = vmatpush.bf16.msra.mxu0 %v3563
    %4101 = vmatpush.bf16.msra.mxu0 %v3558
    %4102 = vmatpush.bf16.msra.mxu0 %v3553
    %4103 = vmatpush.bf16.msra.mxu0 %v3548
    %4104 = vmatpush.bf16.msra.mxu0 %v3543
    %4105 = vmatpush.bf16.msra.mxu0 %v3538
    %4106 = vmatpush.bf16.msra.mxu0 %v3533
    %4107 = vmatpush.bf16.msra.mxu0 %v3528
    %4108 = vmatmul.bf16.gmra.mxu0 %v2468
    %v4109 = vpop.f32.mrf.mxu0
    %v4110 = vadd.f32 %v4096, %v4109
    %v4111 = vpop.f32.mrf.mxu0
    %v4112 = vadd.f32 %v4098, %v4111
    %4113 = vdwg.mxu0
    %v4114 = vmax.f32 %v3830, 0.0
    %v4115 = vmax.f32 %v3900, 0.0
    %v4116 = vmax.f32 %v3970, 0.0
    %v4117 = vmax.f32 %v4040, 0.0
    %v4118 = vmax.f32 %v4110, 0.0
    %v4119 = vmax.f32 %v3832, 0.0
    %v4120 = vmax.f32 %v3902, 0.0
    %v4121 = vmax.f32 %v3972, 0.0
    %v4122 = vmax.f32 %v4042, 0.0
    %v4123 = vmax.f32 %v4112, 0.0
    %v4124 = vpack.c.bf16 %v4119, %v4114
    %v4125 = vpack.c.bf16 %v4120, %v4115
    %v4126 = vpack.c.bf16 %v4121, %v4116
    %v4127 = vpack.c.bf16 %v4122, %v4117
    %v4128 = vpack.c.bf16 %v4123, %v4118
    %v4129 = vld [vmem:[#allocation9] sm:$0xff]
    %v4130 = vld [vmem:[#allocation9 + $0x8] sm:$0xff]
    %v4131 = vld [vmem:[#allocation9 + $0x10] sm:$0xff]
    %v4132 = vld [vmem:[#allocation9 + $0x18] sm:$0xff]
    %v4133 = vld [vmem:[#allocation9 + $0x20] sm:$0xff]
    %v4134 = vld [vmem:[#allocation9 + $0x28] sm:$0xff]
    %v4135 = vld [vmem:[#allocation9 + $0x30] sm:$0xff]
    %v4136 = vld [vmem:[#allocation9 + $0x38] sm:$0xff]
    %v4137 = vld [vmem:[#allocation9 + $0x40] sm:$0xff]
    %v4138 = vld [vmem:[#allocation9 + $0x48] sm:$0xff]
    %v4139 = vld [vmem:[#allocation9 + $0x50] sm:$0xff]
    %v4140 = vld [vmem:[#allocation9 + $0x58] sm:$0xff]
    %v4141 = vld [vmem:[#allocation9 + $0x60] sm:$0xff]
    %v4142 = vld [vmem:[#allocation9 + $0x68] sm:$0xff]
    %v4143 = vld [vmem:[#allocation9 + $0x70] sm:$0xff]
    %v4144 = vld [vmem:[#allocation9 + $0x78] sm:$0xff]
    %v4145 = vld [vmem:[#allocation9 + $0x80] sm:$0xff]
    %v4146 = vld [vmem:[#allocation9 + $0x88] sm:$0xff]
    %v4147 = vld [vmem:[#allocation9 + $0x90] sm:$0xff]
    %v4148 = vld [vmem:[#allocation9 + $0x98] sm:$0xff]
    %v4149 = vld [vmem:[#allocation9 + $0xa0] sm:$0xff]
    %v4150 = vld [vmem:[#allocation9 + $0xa8] sm:$0xff]
    %v4151 = vld [vmem:[#allocation9 + $0xb0] sm:$0xff]
    %v4152 = vld [vmem:[#allocation9 + $0xb8] sm:$0xff]
    %v4153 = vld [vmem:[#allocation9 + $0xc0] sm:$0xff]
    %v4154 = vld [vmem:[#allocation9 + $0xc8] sm:$0xff]
    %v4155 = vld [vmem:[#allocation9 + $0xd0] sm:$0xff]
    %v4156 = vld [vmem:[#allocation9 + $0xd8] sm:$0xff]
    %v4157 = vld [vmem:[#allocation9 + $0xe0] sm:$0xff]
    %v4158 = vld [vmem:[#allocation9 + $0xe8] sm:$0xff]
    %v4159 = vld [vmem:[#allocation9 + $0xf0] sm:$0xff]
    %v4160 = vld [vmem:[#allocation9 + $0xf8] sm:$0xff]
    %v4161 = vld [vmem:[#allocation9 + $0x100] sm:$0xff]
    %v4162 = vld [vmem:[#allocation9 + $0x108] sm:$0xff]
    %v4163 = vld [vmem:[#allocation9 + $0x110] sm:$0xff]
    %v4164 = vld [vmem:[#allocation9 + $0x118] sm:$0xff]
    %v4165 = vld [vmem:[#allocation9 + $0x120] sm:$0xff]
    %v4166 = vld [vmem:[#allocation9 + $0x128] sm:$0xff]
    %v4167 = vld [vmem:[#allocation9 + $0x130] sm:$0xff]
    %v4168 = vld [vmem:[#allocation9 + $0x138] sm:$0xff]
    %v4169 = vld [vmem:[#allocation9 + $0x140] sm:$0xff]
    %v4170 = vld [vmem:[#allocation9 + $0x148] sm:$0xff]
    %v4171 = vld [vmem:[#allocation9 + $0x150] sm:$0xff]
    %v4172 = vld [vmem:[#allocation9 + $0x158] sm:$0xff]
    %v4173 = vld [vmem:[#allocation9 + $0x160] sm:$0xff]
    %v4174 = vld [vmem:[#allocation9 + $0x168] sm:$0xff]
    %v4175 = vld [vmem:[#allocation9 + $0x170] sm:$0xff]
    %v4176 = vld [vmem:[#allocation9 + $0x178] sm:$0xff]
    %v4177 = vld [vmem:[#allocation9 + $0x180] sm:$0xff]
    %v4178 = vld [vmem:[#allocation9 + $0x188] sm:$0xff]
    %v4179 = vld [vmem:[#allocation9 + $0x190] sm:$0xff]
    %v4180 = vld [vmem:[#allocation9 + $0x198] sm:$0xff]
    %v4181 = vld [vmem:[#allocation9 + $0x1a0] sm:$0xff]
    %v4182 = vld [vmem:[#allocation9 + $0x1a8] sm:$0xff]
    %v4183 = vld [vmem:[#allocation9 + $0x1b0] sm:$0xff]
    %v4184 = vld [vmem:[#allocation9 + $0x1b8] sm:$0xff]
    %v4185 = vld [vmem:[#allocation9 + $0x1c0] sm:$0xff]
    %v4186 = vld [vmem:[#allocation9 + $0x1c8] sm:$0xff]
    %v4187 = vld [vmem:[#allocation9 + $0x1d0] sm:$0xff]
    %v4188 = vld [vmem:[#allocation9 + $0x1d8] sm:$0xff]
    %v4189 = vld [vmem:[#allocation9 + $0x1e0] sm:$0xff]
    %v4190 = vld [vmem:[#allocation9 + $0x1e8] sm:$0xff]
    %v4191 = vld [vmem:[#allocation9 + $0x1f0] sm:$0xff]
    %v4192 = vld [vmem:[#allocation9 + $0x1f8] sm:$0xff]
    %v4193 = vld [vmem:[#allocation9 + $0x200] sm:$0xff]
    %v4194 = vld [vmem:[#allocation9 + $0x208] sm:$0xff]
    %v4195 = vld [vmem:[#allocation9 + $0x210] sm:$0xff]
    %v4196 = vld [vmem:[#allocation9 + $0x218] sm:$0xff]
    %v4197 = vld [vmem:[#allocation9 + $0x220] sm:$0xff]
    %v4198 = vld [vmem:[#allocation9 + $0x228] sm:$0xff]
    %v4199 = vld [vmem:[#allocation9 + $0x230] sm:$0xff]
    %v4200 = vld [vmem:[#allocation9 + $0x238] sm:$0xff]
    %v4201 = vld [vmem:[#allocation9 + $0x240] sm:$0xff]
    %v4202 = vld [vmem:[#allocation9 + $0x248] sm:$0xff]
    %v4203 = vld [vmem:[#allocation9 + $0x250] sm:$0xff]
    %v4204 = vld [vmem:[#allocation9 + $0x258] sm:$0xff]
    %v4205 = vld [vmem:[#allocation9 + $0x260] sm:$0xff]
    %v4206 = vld [vmem:[#allocation9 + $0x268] sm:$0xff]
    %v4207 = vld [vmem:[#allocation9 + $0x270] sm:$0xff]
    %v4208 = vld [vmem:[#allocation9 + $0x278] sm:$0xff]
    %v4209 = vld [vmem:[#allocation9 + $0x280] sm:$0xff]
    %v4210 = vld [vmem:[#allocation9 + $0x288] sm:$0xff]
    %v4211 = vld [vmem:[#allocation9 + $0x290] sm:$0xff]
    %v4212 = vld [vmem:[#allocation9 + $0x298] sm:$0xff]
    %v4213 = vld [vmem:[#allocation9 + $0x2a0] sm:$0xff]
    %v4214 = vld [vmem:[#allocation9 + $0x2a8] sm:$0xff]
    %v4215 = vld [vmem:[#allocation9 + $0x2b0] sm:$0xff]
    %v4216 = vld [vmem:[#allocation9 + $0x2b8] sm:$0xff]
    %v4217 = vld [vmem:[#allocation9 + $0x2c0] sm:$0xff]
    %v4218 = vld [vmem:[#allocation9 + $0x2c8] sm:$0xff]
    %v4219 = vld [vmem:[#allocation9 + $0x2d0] sm:$0xff]
    %v4220 = vld [vmem:[#allocation9 + $0x2d8] sm:$0xff]
    %v4221 = vld [vmem:[#allocation9 + $0x2e0] sm:$0xff]
    %v4222 = vld [vmem:[#allocation9 + $0x2e8] sm:$0xff]
    %v4223 = vld [vmem:[#allocation9 + $0x2f0] sm:$0xff]
    %v4224 = vld [vmem:[#allocation9 + $0x2f8] sm:$0xff]
    %v4225 = vld [vmem:[#allocation9 + $0x300] sm:$0xff]
    %v4226 = vld [vmem:[#allocation9 + $0x308] sm:$0xff]
    %v4227 = vld [vmem:[#allocation9 + $0x310] sm:$0xff]
    %v4228 = vld [vmem:[#allocation9 + $0x318] sm:$0xff]
    %v4229 = vld [vmem:[#allocation9 + $0x320] sm:$0xff]
    %v4230 = vld [vmem:[#allocation9 + $0x328] sm:$0xff]
    %v4231 = vld [vmem:[#allocation9 + $0x330] sm:$0xff]
    %v4232 = vld [vmem:[#allocation9 + $0x338] sm:$0xff]
    %v4233 = vld [vmem:[#allocation9 + $0x340] sm:$0xff]
    %v4234 = vld [vmem:[#allocation9 + $0x348] sm:$0xff]
    %v4235 = vld [vmem:[#allocation9 + $0x350] sm:$0xff]
    %v4236 = vld [vmem:[#allocation9 + $0x358] sm:$0xff]
    %v4237 = vld [vmem:[#allocation9 + $0x360] sm:$0xff]
    %v4238 = vld [vmem:[#allocation9 + $0x368] sm:$0xff]
    %v4239 = vld [vmem:[#allocation9 + $0x370] sm:$0xff]
    %v4240 = vld [vmem:[#allocation9 + $0x378] sm:$0xff]
    %v4241 = vld [vmem:[#allocation9 + $0x380] sm:$0xff]
    %v4242 = vld [vmem:[#allocation9 + $0x388] sm:$0xff]
    %v4243 = vld [vmem:[#allocation9 + $0x390] sm:$0xff]
    %v4244 = vld [vmem:[#allocation9 + $0x398] sm:$0xff]
    %v4245 = vld [vmem:[#allocation9 + $0x3a0] sm:$0xff]
    %v4246 = vld [vmem:[#allocation9 + $0x3a8] sm:$0xff]
    %v4247 = vld [vmem:[#allocation9 + $0x3b0] sm:$0xff]
    %v4248 = vld [vmem:[#allocation9 + $0x3b8] sm:$0xff]
    %v4249 = vld [vmem:[#allocation9 + $0x3c0] sm:$0xff]
    %v4250 = vld [vmem:[#allocation9 + $0x3c8] sm:$0xff]
    %v4251 = vld [vmem:[#allocation9 + $0x3d0] sm:$0xff]
    %v4252 = vld [vmem:[#allocation9 + $0x3d8] sm:$0xff]
    %v4253 = vld [vmem:[#allocation9 + $0x3e0] sm:$0xff]
    %v4254 = vld [vmem:[#allocation9 + $0x3e8] sm:$0xff]
    %v4255 = vld [vmem:[#allocation9 + $0x3f0] sm:$0xff]
    %v4256 = vld [vmem:[#allocation9 + $0x3f8] sm:$0xff]
    %v4257 = vld [vmem:[#allocation9 + $0x400] sm:$0xff]
    %v4258 = vld [vmem:[#allocation9 + $0x408] sm:$0xff]
    %v4259 = vld [vmem:[#allocation9 + $0x410] sm:$0xff]
    %v4260 = vld [vmem:[#allocation9 + $0x418] sm:$0xff]
    %v4261 = vld [vmem:[#allocation9 + $0x420] sm:$0xff]
    %v4262 = vld [vmem:[#allocation9 + $0x428] sm:$0xff]
    %v4263 = vld [vmem:[#allocation9 + $0x430] sm:$0xff]
    %v4264 = vld [vmem:[#allocation9 + $0x438] sm:$0xff]
    %v4265 = vld [vmem:[#allocation9 + $0x440] sm:$0xff]
    %v4266 = vld [vmem:[#allocation9 + $0x448] sm:$0xff]
    %v4267 = vld [vmem:[#allocation9 + $0x450] sm:$0xff]
    %v4268 = vld [vmem:[#allocation9 + $0x458] sm:$0xff]
    %v4269 = vld [vmem:[#allocation9 + $0x460] sm:$0xff]
    %v4270 = vld [vmem:[#allocation9 + $0x468] sm:$0xff]
    %v4271 = vld [vmem:[#allocation9 + $0x470] sm:$0xff]
    %v4272 = vld [vmem:[#allocation9 + $0x478] sm:$0xff]
    %v4273 = vld [vmem:[#allocation9 + $0x480] sm:$0xff]
    %v4274 = vld [vmem:[#allocation9 + $0x488] sm:$0xff]
    %v4275 = vld [vmem:[#allocation9 + $0x490] sm:$0xff]
    %v4276 = vld [vmem:[#allocation9 + $0x498] sm:$0xff]
    %v4277 = vld [vmem:[#allocation9 + $0x4a0] sm:$0xff]
    %v4278 = vld [vmem:[#allocation9 + $0x4a8] sm:$0xff]
    %v4279 = vld [vmem:[#allocation9 + $0x4b0] sm:$0xff]
    %v4280 = vld [vmem:[#allocation9 + $0x4b8] sm:$0xff]
    %v4281 = vld [vmem:[#allocation9 + $0x4c0] sm:$0xff]
    %v4282 = vld [vmem:[#allocation9 + $0x4c8] sm:$0xff]
    %v4283 = vld [vmem:[#allocation9 + $0x4d0] sm:$0xff]
    %v4284 = vld [vmem:[#allocation9 + $0x4d8] sm:$0xff]
    %v4285 = vld [vmem:[#allocation9 + $0x4e0] sm:$0xff]
    %v4286 = vld [vmem:[#allocation9 + $0x4e8] sm:$0xff]
    %v4287 = vld [vmem:[#allocation9 + $0x4f0] sm:$0xff]
    %v4288 = vld [vmem:[#allocation9 + $0x4f8] sm:$0xff]
    %s4289 = scalar_lea.vmem %s8, 4
    %v4290 = vld [vmem:[%s4289] ss:$8 sm:$0xf]
    %v4292 = vperm.slane %v4290, 0
    %v4293 = vperm.slane %v4290, 1
    %v4294 = vperm.slane %v4290, 2
    %v4295 = vperm.slane %v4290, 3
    %v4460 = vunpack.c.l.b16 %v4129
    %v4461 = vunpack.c.h.b16 %v4129
    %v4462 = vunpack.c.l.b16 %v4130
    %v4463 = vunpack.c.h.b16 %v4130
    %v4464 = vunpack.c.l.b16 %v4131
    %v4465 = vunpack.c.h.b16 %v4131
    %v4466 = vunpack.c.l.b16 %v4132
    %v4467 = vunpack.c.h.b16 %v4132
    %v4468 = vunpack.c.l.b16 %v4133
    %v4469 = vunpack.c.h.b16 %v4133
    %v4470 = vunpack.c.l.b16 %v4134
    %v4471 = vunpack.c.h.b16 %v4134
    %v4472 = vunpack.c.l.b16 %v4135
    %v4473 = vunpack.c.h.b16 %v4135
    %v4474 = vunpack.c.l.b16 %v4136
    %v4475 = vunpack.c.h.b16 %v4136
    %v4476 = vunpack.c.l.b16 %v4137
    %v4477 = vunpack.c.h.b16 %v4137
    %v4478 = vunpack.c.l.b16 %v4138
    %v4479 = vunpack.c.h.b16 %v4138
    %v4480 = vunpack.c.l.b16 %v4139
    %v4481 = vunpack.c.h.b16 %v4139
    %v4482 = vunpack.c.l.b16 %v4140
    %v4483 = vunpack.c.h.b16 %v4140
    %v4484 = vunpack.c.l.b16 %v4141
    %v4485 = vunpack.c.h.b16 %v4141
    %v4486 = vunpack.c.l.b16 %v4142
    %v4487 = vunpack.c.h.b16 %v4142
    %v4488 = vunpack.c.l.b16 %v4143
    %v4489 = vunpack.c.h.b16 %v4143
    %v4490 = vunpack.c.l.b16 %v4144
    %v4491 = vunpack.c.h.b16 %v4144
    %v4492 = vunpack.c.l.b16 %v4145
    %v4493 = vunpack.c.h.b16 %v4145
    %v4494 = vunpack.c.l.b16 %v4146
    %v4495 = vunpack.c.h.b16 %v4146
    %v4496 = vunpack.c.l.b16 %v4147
    %v4497 = vunpack.c.h.b16 %v4147
    %v4498 = vunpack.c.l.b16 %v4148
    %v4499 = vunpack.c.h.b16 %v4148
    %v4500 = vunpack.c.l.b16 %v4149
    %v4501 = vunpack.c.h.b16 %v4149
    %v4502 = vunpack.c.l.b16 %v4150
    %v4503 = vunpack.c.h.b16 %v4150
    %v4504 = vunpack.c.l.b16 %v4151
    %v4505 = vunpack.c.h.b16 %v4151
    %v4506 = vunpack.c.l.b16 %v4152
    %v4507 = vunpack.c.h.b16 %v4152
    %v4508 = vunpack.c.l.b16 %v4153
    %v4509 = vunpack.c.h.b16 %v4153
    %v4510 = vunpack.c.l.b16 %v4154
    %v4511 = vunpack.c.h.b16 %v4154
    %v4512 = vunpack.c.l.b16 %v4155
    %v4513 = vunpack.c.h.b16 %v4155
    %v4514 = vunpack.c.l.b16 %v4156
    %v4515 = vunpack.c.h.b16 %v4156
    %v4516 = vunpack.c.l.b16 %v4157
    %v4517 = vunpack.c.h.b16 %v4157
    %v4518 = vunpack.c.l.b16 %v4158
    %v4519 = vunpack.c.h.b16 %v4158
    %v4520 = vunpack.c.l.b16 %v4159
    %v4521 = vunpack.c.h.b16 %v4159
    %v4522 = vunpack.c.l.b16 %v4160
    %v4523 = vunpack.c.h.b16 %v4160
    %v4524 = vunpack.c.l.b16 %v4161
    %v4525 = vunpack.c.h.b16 %v4161
    %v4526 = vunpack.c.l.b16 %v4162
    %v4527 = vunpack.c.h.b16 %v4162
    %v4528 = vunpack.c.l.b16 %v4163
    %v4529 = vunpack.c.h.b16 %v4163
    %v4530 = vunpack.c.l.b16 %v4164
    %v4531 = vunpack.c.h.b16 %v4164
    %v4532 = vunpack.c.l.b16 %v4165
    %v4533 = vunpack.c.h.b16 %v4165
    %v4534 = vunpack.c.l.b16 %v4166
    %v4535 = vunpack.c.h.b16 %v4166
    %v4536 = vunpack.c.l.b16 %v4167
    %v4537 = vunpack.c.h.b16 %v4167
    %v4538 = vunpack.c.l.b16 %v4168
    %v4539 = vunpack.c.h.b16 %v4168
    %v4540 = vunpack.c.l.b16 %v4169
    %v4541 = vunpack.c.h.b16 %v4169
    %v4542 = vunpack.c.l.b16 %v4170
    %v4543 = vunpack.c.h.b16 %v4170
    %v4544 = vunpack.c.l.b16 %v4171
    %v4545 = vunpack.c.h.b16 %v4171
    %v4546 = vunpack.c.l.b16 %v4172
    %v4547 = vunpack.c.h.b16 %v4172
    %v4548 = vunpack.c.l.b16 %v4173
    %v4549 = vunpack.c.h.b16 %v4173
    %v4550 = vunpack.c.l.b16 %v4174
    %v4551 = vunpack.c.h.b16 %v4174
    %v4552 = vunpack.c.l.b16 %v4175
    %v4553 = vunpack.c.h.b16 %v4175
    %v4554 = vunpack.c.l.b16 %v4176
    %v4555 = vunpack.c.h.b16 %v4176
    %v4556 = vunpack.c.l.b16 %v4177
    %v4557 = vunpack.c.h.b16 %v4177
    %v4558 = vunpack.c.l.b16 %v4178
    %v4559 = vunpack.c.h.b16 %v4178
    %v4560 = vunpack.c.l.b16 %v4179
    %v4561 = vunpack.c.h.b16 %v4179
    %v4562 = vunpack.c.l.b16 %v4180
    %v4563 = vunpack.c.h.b16 %v4180
    %v4564 = vunpack.c.l.b16 %v4181
    %v4565 = vunpack.c.h.b16 %v4181
    %v4566 = vunpack.c.l.b16 %v4182
    %v4567 = vunpack.c.h.b16 %v4182
    %v4568 = vunpack.c.l.b16 %v4183
    %v4569 = vunpack.c.h.b16 %v4183
    %v4570 = vunpack.c.l.b16 %v4184
    %v4571 = vunpack.c.h.b16 %v4184
    %v4572 = vunpack.c.l.b16 %v4185
    %v4573 = vunpack.c.h.b16 %v4185
    %v4574 = vunpack.c.l.b16 %v4186
    %v4575 = vunpack.c.h.b16 %v4186
    %v4576 = vunpack.c.l.b16 %v4187
    %v4577 = vunpack.c.h.b16 %v4187
    %v4578 = vunpack.c.l.b16 %v4188
    %v4579 = vunpack.c.h.b16 %v4188
    %v4580 = vunpack.c.l.b16 %v4189
    %v4581 = vunpack.c.h.b16 %v4189
    %v4582 = vunpack.c.l.b16 %v4190
    %v4583 = vunpack.c.h.b16 %v4190
    %v4584 = vunpack.c.l.b16 %v4191
    %v4585 = vunpack.c.h.b16 %v4191
    %v4586 = vunpack.c.l.b16 %v4192
    %v4587 = vunpack.c.h.b16 %v4192
    %v4588 = vunpack.c.l.b16 %v4193
    %v4589 = vunpack.c.h.b16 %v4193
    %v4590 = vunpack.c.l.b16 %v4194
    %v4591 = vunpack.c.h.b16 %v4194
    %v4592 = vunpack.c.l.b16 %v4195
    %v4593 = vunpack.c.h.b16 %v4195
    %v4594 = vunpack.c.l.b16 %v4196
    %v4595 = vunpack.c.h.b16 %v4196
    %v4596 = vunpack.c.l.b16 %v4197
    %v4597 = vunpack.c.h.b16 %v4197
    %v4598 = vunpack.c.l.b16 %v4198
    %v4599 = vunpack.c.h.b16 %v4198
    %v4600 = vunpack.c.l.b16 %v4199
    %v4601 = vunpack.c.h.b16 %v4199
    %v4602 = vunpack.c.l.b16 %v4200
    %v4603 = vunpack.c.h.b16 %v4200
    %v4604 = vunpack.c.l.b16 %v4201
    %v4605 = vunpack.c.h.b16 %v4201
    %v4606 = vunpack.c.l.b16 %v4202
    %v4607 = vunpack.c.h.b16 %v4202
    %v4608 = vunpack.c.l.b16 %v4203
    %v4609 = vunpack.c.h.b16 %v4203
    %v4610 = vunpack.c.l.b16 %v4204
    %v4611 = vunpack.c.h.b16 %v4204
    %v4612 = vunpack.c.l.b16 %v4205
    %v4613 = vunpack.c.h.b16 %v4205
    %v4614 = vunpack.c.l.b16 %v4206
    %v4615 = vunpack.c.h.b16 %v4206
    %v4616 = vunpack.c.l.b16 %v4207
    %v4617 = vunpack.c.h.b16 %v4207
    %v4618 = vunpack.c.l.b16 %v4208
    %v4619 = vunpack.c.h.b16 %v4208
    %v4620 = vunpack.c.l.b16 %v4209
    %v4621 = vunpack.c.h.b16 %v4209
    %v4622 = vunpack.c.l.b16 %v4210
    %v4623 = vunpack.c.h.b16 %v4210
    %v4624 = vunpack.c.l.b16 %v4211
    %v4625 = vunpack.c.h.b16 %v4211
    %v4626 = vunpack.c.l.b16 %v4212
    %v4627 = vunpack.c.h.b16 %v4212
    %v4628 = vunpack.c.l.b16 %v4213
    %v4629 = vunpack.c.h.b16 %v4213
    %v4630 = vunpack.c.l.b16 %v4214
    %v4631 = vunpack.c.h.b16 %v4214
    %v4632 = vunpack.c.l.b16 %v4215
    %v4633 = vunpack.c.h.b16 %v4215
    %v4634 = vunpack.c.l.b16 %v4216
    %v4635 = vunpack.c.h.b16 %v4216
    %v4636 = vunpack.c.l.b16 %v4217
    %v4637 = vunpack.c.h.b16 %v4217
    %v4638 = vunpack.c.l.b16 %v4218
    %v4639 = vunpack.c.h.b16 %v4218
    %v4640 = vunpack.c.l.b16 %v4219
    %v4641 = vunpack.c.h.b16 %v4219
    %v4642 = vunpack.c.l.b16 %v4220
    %v4643 = vunpack.c.h.b16 %v4220
    %v4644 = vunpack.c.l.b16 %v4221
    %v4645 = vunpack.c.h.b16 %v4221
    %v4646 = vunpack.c.l.b16 %v4222
    %v4647 = vunpack.c.h.b16 %v4222
    %v4648 = vunpack.c.l.b16 %v4223
    %v4649 = vunpack.c.h.b16 %v4223
    %v4650 = vunpack.c.l.b16 %v4224
    %v4651 = vunpack.c.h.b16 %v4224
    %v4652 = vunpack.c.l.b16 %v4225
    %v4653 = vunpack.c.h.b16 %v4225
    %v4654 = vunpack.c.l.b16 %v4226
    %v4655 = vunpack.c.h.b16 %v4226
    %v4656 = vunpack.c.l.b16 %v4227
    %v4657 = vunpack.c.h.b16 %v4227
    %v4658 = vunpack.c.l.b16 %v4228
    %v4659 = vunpack.c.h.b16 %v4228
    %v4660 = vunpack.c.l.b16 %v4229
    %v4661 = vunpack.c.h.b16 %v4229
    %v4662 = vunpack.c.l.b16 %v4230
    %v4663 = vunpack.c.h.b16 %v4230
    %v4664 = vunpack.c.l.b16 %v4231
    %v4665 = vunpack.c.h.b16 %v4231
    %v4666 = vunpack.c.l.b16 %v4232
    %v4667 = vunpack.c.h.b16 %v4232
    %v4668 = vunpack.c.l.b16 %v4233
    %v4669 = vunpack.c.h.b16 %v4233
    %v4670 = vunpack.c.l.b16 %v4234
    %v4671 = vunpack.c.h.b16 %v4234
    %v4672 = vunpack.c.l.b16 %v4235
    %v4673 = vunpack.c.h.b16 %v4235
    %v4674 = vunpack.c.l.b16 %v4236
    %v4675 = vunpack.c.h.b16 %v4236
    %v4676 = vunpack.c.l.b16 %v4237
    %v4677 = vunpack.c.h.b16 %v4237
    %v4678 = vunpack.c.l.b16 %v4238
    %v4679 = vunpack.c.h.b16 %v4238
    %v4680 = vunpack.c.l.b16 %v4239
    %v4681 = vunpack.c.h.b16 %v4239
    %v4682 = vunpack.c.l.b16 %v4240
    %v4683 = vunpack.c.h.b16 %v4240
    %v4684 = vunpack.c.l.b16 %v4241
    %v4685 = vunpack.c.h.b16 %v4241
    %v4686 = vunpack.c.l.b16 %v4242
    %v4687 = vunpack.c.h.b16 %v4242
    %v4688 = vunpack.c.l.b16 %v4243
    %v4689 = vunpack.c.h.b16 %v4243
    %v4690 = vunpack.c.l.b16 %v4244
    %v4691 = vunpack.c.h.b16 %v4244
    %v4692 = vunpack.c.l.b16 %v4245
    %v4693 = vunpack.c.h.b16 %v4245
    %v4694 = vunpack.c.l.b16 %v4246
    %v4695 = vunpack.c.h.b16 %v4246
    %v4696 = vunpack.c.l.b16 %v4247
    %v4697 = vunpack.c.h.b16 %v4247
    %v4698 = vunpack.c.l.b16 %v4248
    %v4699 = vunpack.c.h.b16 %v4248
    %v4700 = vunpack.c.l.b16 %v4249
    %v4701 = vunpack.c.h.b16 %v4249
    %v4702 = vunpack.c.l.b16 %v4250
    %v4703 = vunpack.c.h.b16 %v4250
    %v4704 = vunpack.c.l.b16 %v4251
    %v4705 = vunpack.c.h.b16 %v4251
    %v4706 = vunpack.c.l.b16 %v4252
    %v4707 = vunpack.c.h.b16 %v4252
    %v4708 = vunpack.c.l.b16 %v4253
    %v4709 = vunpack.c.h.b16 %v4253
    %v4710 = vunpack.c.l.b16 %v4254
    %v4711 = vunpack.c.h.b16 %v4254
    %v4712 = vunpack.c.l.b16 %v4255
    %v4713 = vunpack.c.h.b16 %v4255
    %v4714 = vunpack.c.l.b16 %v4256
    %v4715 = vunpack.c.h.b16 %v4256
    %v4716 = vunpack.c.l.b16 %v4257
    %v4717 = vunpack.c.h.b16 %v4257
    %v4718 = vunpack.c.l.b16 %v4258
    %v4719 = vunpack.c.h.b16 %v4258
    %v4720 = vunpack.c.l.b16 %v4259
    %v4721 = vunpack.c.h.b16 %v4259
    %v4722 = vunpack.c.l.b16 %v4260
    %v4723 = vunpack.c.h.b16 %v4260
    %v4724 = vunpack.c.l.b16 %v4261
    %v4725 = vunpack.c.h.b16 %v4261
    %v4726 = vunpack.c.l.b16 %v4262
    %v4727 = vunpack.c.h.b16 %v4262
    %v4728 = vunpack.c.l.b16 %v4263
    %v4729 = vunpack.c.h.b16 %v4263
    %v4730 = vunpack.c.l.b16 %v4264
    %v4731 = vunpack.c.h.b16 %v4264
    %v4732 = vunpack.c.l.b16 %v4265
    %v4733 = vunpack.c.h.b16 %v4265
    %v4734 = vunpack.c.l.b16 %v4266
    %v4735 = vunpack.c.h.b16 %v4266
    %v4736 = vunpack.c.l.b16 %v4267
    %v4737 = vunpack.c.h.b16 %v4267
    %v4738 = vunpack.c.l.b16 %v4268
    %v4739 = vunpack.c.h.b16 %v4268
    %v4740 = vunpack.c.l.b16 %v4269
    %v4741 = vunpack.c.h.b16 %v4269
    %v4742 = vunpack.c.l.b16 %v4270
    %v4743 = vunpack.c.h.b16 %v4270
    %v4744 = vunpack.c.l.b16 %v4271
    %v4745 = vunpack.c.h.b16 %v4271
    %v4746 = vunpack.c.l.b16 %v4272
    %v4747 = vunpack.c.h.b16 %v4272
    %v4748 = vunpack.c.l.b16 %v4273
    %v4749 = vunpack.c.h.b16 %v4273
    %v4750 = vunpack.c.l.b16 %v4274
    %v4751 = vunpack.c.h.b16 %v4274
    %v4752 = vunpack.c.l.b16 %v4275
    %v4753 = vunpack.c.h.b16 %v4275
    %v4754 = vunpack.c.l.b16 %v4276
    %v4755 = vunpack.c.h.b16 %v4276
    %v4756 = vunpack.c.l.b16 %v4277
    %v4757 = vunpack.c.h.b16 %v4277
    %v4758 = vunpack.c.l.b16 %v4278
    %v4759 = vunpack.c.h.b16 %v4278
    %v4760 = vunpack.c.l.b16 %v4279
    %v4761 = vunpack.c.h.b16 %v4279
    %v4762 = vunpack.c.l.b16 %v4280
    %v4763 = vunpack.c.h.b16 %v4280
    %v4764 = vunpack.c.l.b16 %v4281
    %v4765 = vunpack.c.h.b16 %v4281
    %v4766 = vunpack.c.l.b16 %v4282
    %v4767 = vunpack.c.h.b16 %v4282
    %v4768 = vunpack.c.l.b16 %v4283
    %v4769 = vunpack.c.h.b16 %v4283
    %v4770 = vunpack.c.l.b16 %v4284
    %v4771 = vunpack.c.h.b16 %v4284
    %v4772 = vunpack.c.l.b16 %v4285
    %v4773 = vunpack.c.h.b16 %v4285
    %v4774 = vunpack.c.l.b16 %v4286
    %v4775 = vunpack.c.h.b16 %v4286
    %v4776 = vunpack.c.l.b16 %v4287
    %v4777 = vunpack.c.h.b16 %v4287
    %v4778 = vunpack.c.l.b16 %v4288
    %v4779 = vunpack.c.h.b16 %v4288
    %v4780 = vpack.c.b16 %v4464, %v4460
    %v4781 = vpack.c.b16 %v4465, %v4461
    %v4782 = vpack.c.b16 %v4466, %v4462
    %v4783 = vpack.c.b16 %v4467, %v4463
    %v4784 = vpack.c.b16 %v4472, %v4468
    %v4785 = vpack.c.b16 %v4473, %v4469
    %v4786 = vpack.c.b16 %v4474, %v4470
    %v4787 = vpack.c.b16 %v4475, %v4471
    %v4788 = vpack.c.b16 %v4480, %v4476
    %v4789 = vpack.c.b16 %v4481, %v4477
    %v4790 = vpack.c.b16 %v4482, %v4478
    %v4791 = vpack.c.b16 %v4483, %v4479
    %v4792 = vpack.c.b16 %v4488, %v4484
    %v4793 = vpack.c.b16 %v4489, %v4485
    %v4794 = vpack.c.b16 %v4490, %v4486
    %v4795 = vpack.c.b16 %v4491, %v4487
    %v4796 = vpack.c.b16 %v4496, %v4492
    %v4797 = vpack.c.b16 %v4497, %v4493
    %v4798 = vpack.c.b16 %v4498, %v4494
    %v4799 = vpack.c.b16 %v4499, %v4495
    %v4800 = vpack.c.b16 %v4504, %v4500
    %v4801 = vpack.c.b16 %v4505, %v4501
    %v4802 = vpack.c.b16 %v4506, %v4502
    %v4803 = vpack.c.b16 %v4507, %v4503
    %v4804 = vpack.c.b16 %v4512, %v4508
    %v4805 = vpack.c.b16 %v4513, %v4509
    %v4806 = vpack.c.b16 %v4514, %v4510
    %v4807 = vpack.c.b16 %v4515, %v4511
    %v4808 = vpack.c.b16 %v4520, %v4516
    %v4809 = vpack.c.b16 %v4521, %v4517
    %v4810 = vpack.c.b16 %v4522, %v4518
    %v4811 = vpack.c.b16 %v4523, %v4519
    %v4812 = vpack.c.b16 %v4528, %v4524
    %v4813 = vpack.c.b16 %v4529, %v4525
    %v4814 = vpack.c.b16 %v4530, %v4526
    %v4815 = vpack.c.b16 %v4531, %v4527
    %v4816 = vpack.c.b16 %v4536, %v4532
    %v4817 = vpack.c.b16 %v4537, %v4533
    %v4818 = vpack.c.b16 %v4538, %v4534
    %v4819 = vpack.c.b16 %v4539, %v4535
    %v4820 = vpack.c.b16 %v4544, %v4540
    %v4821 = vpack.c.b16 %v4545, %v4541
    %v4822 = vpack.c.b16 %v4546, %v4542
    %v4823 = vpack.c.b16 %v4547, %v4543
    %v4824 = vpack.c.b16 %v4552, %v4548
    %v4825 = vpack.c.b16 %v4553, %v4549
    %v4826 = vpack.c.b16 %v4554, %v4550
    %v4827 = vpack.c.b16 %v4555, %v4551
    %v4828 = vpack.c.b16 %v4560, %v4556
    %v4829 = vpack.c.b16 %v4561, %v4557
    %v4830 = vpack.c.b16 %v4562, %v4558
    %v4831 = vpack.c.b16 %v4563, %v4559
    %v4832 = vpack.c.b16 %v4568, %v4564
    %v4833 = vpack.c.b16 %v4569, %v4565
    %v4834 = vpack.c.b16 %v4570, %v4566
    %v4835 = vpack.c.b16 %v4571, %v4567
    %v4836 = vpack.c.b16 %v4576, %v4572
    %v4837 = vpack.c.b16 %v4577, %v4573
    %v4838 = vpack.c.b16 %v4578, %v4574
    %v4839 = vpack.c.b16 %v4579, %v4575
    %v4840 = vpack.c.b16 %v4584, %v4580
    %v4841 = vpack.c.b16 %v4585, %v4581
    %v4842 = vpack.c.b16 %v4586, %v4582
    %v4843 = vpack.c.b16 %v4587, %v4583
    %v4844 = vpack.c.b16 %v4592, %v4588
    %v4845 = vpack.c.b16 %v4593, %v4589
    %v4846 = vpack.c.b16 %v4594, %v4590
    %v4847 = vpack.c.b16 %v4595, %v4591
    %v4848 = vpack.c.b16 %v4600, %v4596
    %v4849 = vpack.c.b16 %v4601, %v4597
    %v4850 = vpack.c.b16 %v4602, %v4598
    %v4851 = vpack.c.b16 %v4603, %v4599
    %v4852 = vpack.c.b16 %v4608, %v4604
    %v4853 = vpack.c.b16 %v4609, %v4605
    %v4854 = vpack.c.b16 %v4610, %v4606
    %v4855 = vpack.c.b16 %v4611, %v4607
    %v4856 = vpack.c.b16 %v4616, %v4612
    %v4857 = vpack.c.b16 %v4617, %v4613
    %v4858 = vpack.c.b16 %v4618, %v4614
    %v4859 = vpack.c.b16 %v4619, %v4615
    %v4860 = vpack.c.b16 %v4624, %v4620
    %v4861 = vpack.c.b16 %v4625, %v4621
    %v4862 = vpack.c.b16 %v4626, %v4622
    %v4863 = vpack.c.b16 %v4627, %v4623
    %v4864 = vpack.c.b16 %v4632, %v4628
    %v4865 = vpack.c.b16 %v4633, %v4629
    %v4866 = vpack.c.b16 %v4634, %v4630
    %v4867 = vpack.c.b16 %v4635, %v4631
    %v4868 = vpack.c.b16 %v4640, %v4636
    %v4869 = vpack.c.b16 %v4641, %v4637
    %v4870 = vpack.c.b16 %v4642, %v4638
    %v4871 = vpack.c.b16 %v4643, %v4639
    %v4872 = vpack.c.b16 %v4648, %v4644
    %v4873 = vpack.c.b16 %v4649, %v4645
    %v4874 = vpack.c.b16 %v4650, %v4646
    %v4875 = vpack.c.b16 %v4651, %v4647
    %v4876 = vpack.c.b16 %v4656, %v4652
    %v4877 = vpack.c.b16 %v4657, %v4653
    %v4878 = vpack.c.b16 %v4658, %v4654
    %v4879 = vpack.c.b16 %v4659, %v4655
    %v4880 = vpack.c.b16 %v4664, %v4660
    %v4881 = vpack.c.b16 %v4665, %v4661
    %v4882 = vpack.c.b16 %v4666, %v4662
    %v4883 = vpack.c.b16 %v4667, %v4663
    %v4884 = vpack.c.b16 %v4672, %v4668
    %v4885 = vpack.c.b16 %v4673, %v4669
    %v4886 = vpack.c.b16 %v4674, %v4670
    %v4887 = vpack.c.b16 %v4675, %v4671
    %v4888 = vpack.c.b16 %v4680, %v4676
    %v4889 = vpack.c.b16 %v4681, %v4677
    %v4890 = vpack.c.b16 %v4682, %v4678
    %v4891 = vpack.c.b16 %v4683, %v4679
    %v4892 = vpack.c.b16 %v4688, %v4684
    %v4893 = vpack.c.b16 %v4689, %v4685
    %v4894 = vpack.c.b16 %v4690, %v4686
    %v4895 = vpack.c.b16 %v4691, %v4687
    %v4896 = vpack.c.b16 %v4696, %v4692
    %v4897 = vpack.c.b16 %v4697, %v4693
    %v4898 = vpack.c.b16 %v4698, %v4694
    %v4899 = vpack.c.b16 %v4699, %v4695
    %v4900 = vpack.c.b16 %v4704, %v4700
    %v4901 = vpack.c.b16 %v4705, %v4701
    %v4902 = vpack.c.b16 %v4706, %v4702
    %v4903 = vpack.c.b16 %v4707, %v4703
    %v4904 = vpack.c.b16 %v4712, %v4708
    %v4905 = vpack.c.b16 %v4713, %v4709
    %v4906 = vpack.c.b16 %v4714, %v4710
    %v4907 = vpack.c.b16 %v4715, %v4711
    %v4908 = vpack.c.b16 %v4720, %v4716
    %v4909 = vpack.c.b16 %v4721, %v4717
    %v4910 = vpack.c.b16 %v4722, %v4718
    %v4911 = vpack.c.b16 %v4723, %v4719
    %v4912 = vpack.c.b16 %v4728, %v4724
    %v4913 = vpack.c.b16 %v4729, %v4725
    %v4914 = vpack.c.b16 %v4730, %v4726
    %v4915 = vpack.c.b16 %v4731, %v4727
    %v4916 = vpack.c.b16 %v4736, %v4732
    %v4917 = vpack.c.b16 %v4737, %v4733
    %v4918 = vpack.c.b16 %v4738, %v4734
    %v4919 = vpack.c.b16 %v4739, %v4735
    %v4920 = vpack.c.b16 %v4744, %v4740
    %v4921 = vpack.c.b16 %v4745, %v4741
    %v4922 = vpack.c.b16 %v4746, %v4742
    %v4923 = vpack.c.b16 %v4747, %v4743
    %v4924 = vpack.c.b16 %v4752, %v4748
    %v4925 = vpack.c.b16 %v4753, %v4749
    %v4926 = vpack.c.b16 %v4754, %v4750
    %v4927 = vpack.c.b16 %v4755, %v4751
    %v4928 = vpack.c.b16 %v4760, %v4756
    %v4929 = vpack.c.b16 %v4761, %v4757
    %v4930 = vpack.c.b16 %v4762, %v4758
    %v4931 = vpack.c.b16 %v4763, %v4759
    %v4932 = vpack.c.b16 %v4768, %v4764
    %v4933 = vpack.c.b16 %v4769, %v4765
    %v4934 = vpack.c.b16 %v4770, %v4766
    %v4935 = vpack.c.b16 %v4771, %v4767
    %v4936 = vpack.c.b16 %v4776, %v4772
    %v4937 = vpack.c.b16 %v4777, %v4773
    %v4938 = vpack.c.b16 %v4778, %v4774
    %v4939 = vpack.c.b16 %v4779, %v4775
    %5100 = vmatpush.bf16.msra.mxu0 %v4808
    %5101 = vmatpush.bf16.msra.mxu0 %v4804
    %5102 = vmatpush.bf16.msra.mxu0 %v4800
    %5103 = vmatpush.bf16.msra.mxu0 %v4796
    %5104 = vmatpush.bf16.msra.mxu0 %v4792
    %5105 = vmatpush.bf16.msra.mxu0 %v4788
    %5106 = vmatpush.bf16.msra.mxu0 %v4784
    %5107 = vmatpush.bf16.msra.mxu0 %v4780
    %5108 = vmatmul.bf16.gmra.mxu0 %v4124
    %v5109 = vpop.f32.mrf.mxu0
    %v5110 = vadd.f32 %v4292, %v5109
    %v5111 = vpop.f32.mrf.mxu0
    %v5112 = vadd.f32 %v4292, %v5111
    %5113 = vdwg.mxu0
    %5114 = vmatpush.bf16.msra.mxu0 %v4840
    %5115 = vmatpush.bf16.msra.mxu0 %v4836
    %5116 = vmatpush.bf16.msra.mxu0 %v4832
    %5117 = vmatpush.bf16.msra.mxu0 %v4828
    %5118 = vmatpush.bf16.msra.mxu0 %v4824
    %5119 = vmatpush.bf16.msra.mxu0 %v4820
    %5120 = vmatpush.bf16.msra.mxu0 %v4816
    %5121 = vmatpush.bf16.msra.mxu0 %v4812
    %5122 = vmatmul.bf16.gmra.mxu0 %v4125
    %v5123 = vpop.f32.mrf.mxu0
    %v5124 = vadd.f32 %v5110, %v5123
    %v5125 = vpop.f32.mrf.mxu0
    %v5126 = vadd.f32 %v5112, %v5125
    %5127 = vdwg.mxu0
    %5128 = vmatpush.bf16.msra.mxu0 %v4872
    %5129 = vmatpush.bf16.msra.mxu0 %v4868
    %5130 = vmatpush.bf16.msra.mxu0 %v4864
    %5131 = vmatpush.bf16.msra.mxu0 %v4860
    %5132 = vmatpush.bf16.msra.mxu0 %v4856
    %5133 = vmatpush.bf16.msra.mxu0 %v4852
    %5134 = vmatpush.bf16.msra.mxu0 %v4848
    %5135 = vmatpush.bf16.msra.mxu0 %v4844
    %5136 = vmatmul.bf16.gmra.mxu0 %v4126
    %v5137 = vpop.f32.mrf.mxu0
    %v5138 = vadd.f32 %v5124, %v5137
    %v5139 = vpop.f32.mrf.mxu0
    %v5140 = vadd.f32 %v5126, %v5139
    %5141 = vdwg.mxu0
    %5142 = vmatpush.bf16.msra.mxu0 %v4904
    %5143 = vmatpush.bf16.msra.mxu0 %v4900
    %5144 = vmatpush.bf16.msra.mxu0 %v4896
    %5145 = vmatpush.bf16.msra.mxu0 %v4892
    %5146 = vmatpush.bf16.msra.mxu0 %v4888
    %5147 = vmatpush.bf16.msra.mxu0 %v4884
    %5148 = vmatpush.bf16.msra.mxu0 %v4880
    %5149 = vmatpush.bf16.msra.mxu0 %v4876
    %5150 = vmatmul.bf16.gmra.mxu0 %v4127
    %v5151 = vpop.f32.mrf.mxu0
    %v5152 = vadd.f32 %v5138, %v5151
    %v5153 = vpop.f32.mrf.mxu0
    %v5154 = vadd.f32 %v5140, %v5153
    %5155 = vdwg.mxu0
    %5156 = vmatpush.bf16.msra.mxu0 %v4936
    %5157 = vmatpush.bf16.msra.mxu0 %v4932
    %5158 = vmatpush.bf16.msra.mxu0 %v4928
    %5159 = vmatpush.bf16.msra.mxu0 %v4924
    %5160 = vmatpush.bf16.msra.mxu0 %v4920
    %5161 = vmatpush.bf16.msra.mxu0 %v4916
    %5162 = vmatpush.bf16.msra.mxu0 %v4912
    %5163 = vmatpush.bf16.msra.mxu0 %v4908
    %5164 = vmatmul.bf16.gmra.mxu0 %v4128
    %v5165 = vpop.f32.mrf.mxu0
    %v5166 = vadd.f32 %v5152, %v5165
    %v5167 = vpop.f32.mrf.mxu0
    %v5168 = vadd.f32 %v5154, %v5167
    %5169 = vdwg.mxu0
    %5170 = vmatpush.bf16.msra.mxu0 %v4809
    %5171 = vmatpush.bf16.msra.mxu0 %v4805
    %5172 = vmatpush.bf16.msra.mxu0 %v4801
    %5173 = vmatpush.bf16.msra.mxu0 %v4797
    %5174 = vmatpush.bf16.msra.mxu0 %v4793
    %5175 = vmatpush.bf16.msra.mxu0 %v4789
    %5176 = vmatpush.bf16.msra.mxu0 %v4785
    %5177 = vmatpush.bf16.msra.mxu0 %v4781
    %5178 = vmatmul.bf16.gmra.mxu0 %v4124
    %v5179 = vpop.f32.mrf.mxu0
    %v5180 = vadd.f32 %v4293, %v5179
    %v5181 = vpop.f32.mrf.mxu0
    %v5182 = vadd.f32 %v4293, %v5181
    %5183 = vdwg.mxu0
    %5184 = vmatpush.bf16.msra.mxu0 %v4841
    %5185 = vmatpush.bf16.msra.mxu0 %v4837
    %5186 = vmatpush.bf16.msra.mxu0 %v4833
    %5187 = vmatpush.bf16.msra.mxu0 %v4829
    %5188 = vmatpush.bf16.msra.mxu0 %v4825
    %5189 = vmatpush.bf16.msra.mxu0 %v4821
    %5190 = vmatpush.bf16.msra.mxu0 %v4817
    %5191 = vmatpush.bf16.msra.mxu0 %v4813
    %5192 = vmatmul.bf16.gmra.mxu0 %v4125
    %v5193 = vpop.f32.mrf.mxu0
    %v5194 = vadd.f32 %v5180, %v5193
    %v5195 = vpop.f32.mrf.mxu0
    %v5196 = vadd.f32 %v5182, %v5195
    %5197 = vdwg.mxu0
    %5198 = vmatpush.bf16.msra.mxu0 %v4873
    %5199 = vmatpush.bf16.msra.mxu0 %v4869
    %5200 = vmatpush.bf16.msra.mxu0 %v4865
    %5201 = vmatpush.bf16.msra.mxu0 %v4861
    %5202 = vmatpush.bf16.msra.mxu0 %v4857
    %5203 = vmatpush.bf16.msra.mxu0 %v4853
    %5204 = vmatpush.bf16.msra.mxu0 %v4849
    %5205 = vmatpush.bf16.msra.mxu0 %v4845
    %5206 = vmatmul.bf16.gmra.mxu0 %v4126
    %v5207 = vpop.f32.mrf.mxu0
    %v5208 = vadd.f32 %v5194, %v5207
    %v5209 = vpop.f32.mrf.mxu0
    %v5210 = vadd.f32 %v5196, %v5209
    %5211 = vdwg.mxu0
    %5212 = vmatpush.bf16.msra.mxu0 %v4905
    %5213 = vmatpush.bf16.msra.mxu0 %v4901
    %5214 = vmatpush.bf16.msra.mxu0 %v4897
    %5215 = vmatpush.bf16.msra.mxu0 %v4893
    %5216 = vmatpush.bf16.msra.mxu0 %v4889
    %5217 = vmatpush.bf16.msra.mxu0 %v4885
    %5218 = vmatpush.bf16.msra.mxu0 %v4881
    %5219 = vmatpush.bf16.msra.mxu0 %v4877
    %5220 = vmatmul.bf16.gmra.mxu0 %v4127
    %v5221 = vpop.f32.mrf.mxu0
    %v5222 = vadd.f32 %v5208, %v5221
    %v5223 = vpop.f32.mrf.mxu0
    %v5224 = vadd.f32 %v5210, %v5223
    %5225 = vdwg.mxu0
    %5226 = vmatpush.bf16.msra.mxu0 %v4937
    %5227 = vmatpush.bf16.msra.mxu0 %v4933
    %5228 = vmatpush.bf16.msra.mxu0 %v4929
    %5229 = vmatpush.bf16.msra.mxu0 %v4925
    %5230 = vmatpush.bf16.msra.mxu0 %v4921
    %5231 = vmatpush.bf16.msra.mxu0 %v4917
    %5232 = vmatpush.bf16.msra.mxu0 %v4913
    %5233 = vmatpush.bf16.msra.mxu0 %v4909
    %5234 = vmatmul.bf16.gmra.mxu0 %v4128
    %v5235 = vpop.f32.mrf.mxu0
    %v5236 = vadd.f32 %v5222, %v5235
    %v5237 = vpop.f32.mrf.mxu0
    %v5238 = vadd.f32 %v5224, %v5237
    %5239 = vdwg.mxu0
    %5240 = vmatpush.bf16.msra.mxu0 %v4810
    %5241 = vmatpush.bf16.msra.mxu0 %v4806
    %5242 = vmatpush.bf16.msra.mxu0 %v4802
    %5243 = vmatpush.bf16.msra.mxu0 %v4798
    %5244 = vmatpush.bf16.msra.mxu0 %v4794
    %5245 = vmatpush.bf16.msra.mxu0 %v4790
    %5246 = vmatpush.bf16.msra.mxu0 %v4786
    %5247 = vmatpush.bf16.msra.mxu0 %v4782
    %5248 = vmatmul.bf16.gmra.mxu0 %v4124
    %v5249 = vpop.f32.mrf.mxu0
    %v5250 = vadd.f32 %v4294, %v5249
    %v5251 = vpop.f32.mrf.mxu0
    %v5252 = vadd.f32 %v4294, %v5251
    %5253 = vdwg.mxu0
    %5254 = vmatpush.bf16.msra.mxu0 %v4842
    %5255 = vmatpush.bf16.msra.mxu0 %v4838
    %5256 = vmatpush.bf16.msra.mxu0 %v4834
    %5257 = vmatpush.bf16.msra.mxu0 %v4830
    %5258 = vmatpush.bf16.msra.mxu0 %v4826
    %5259 = vmatpush.bf16.msra.mxu0 %v4822
    %5260 = vmatpush.bf16.msra.mxu0 %v4818
    %5261 = vmatpush.bf16.msra.mxu0 %v4814
    %5262 = vmatmul.bf16.gmra.mxu0 %v4125
    %v5263 = vpop.f32.mrf.mxu0
    %v5264 = vadd.f32 %v5250, %v5263
    %v5265 = vpop.f32.mrf.mxu0
    %v5266 = vadd.f32 %v5252, %v5265
    %5267 = vdwg.mxu0
    %5268 = vmatpush.bf16.msra.mxu0 %v4874
    %5269 = vmatpush.bf16.msra.mxu0 %v4870
    %5270 = vmatpush.bf16.msra.mxu0 %v4866
    %5271 = vmatpush.bf16.msra.mxu0 %v4862
    %5272 = vmatpush.bf16.msra.mxu0 %v4858
    %5273 = vmatpush.bf16.msra.mxu0 %v4854
    %5274 = vmatpush.bf16.msra.mxu0 %v4850
    %5275 = vmatpush.bf16.msra.mxu0 %v4846
    %5276 = vmatmul.bf16.gmra.mxu0 %v4126
    %v5277 = vpop.f32.mrf.mxu0
    %v5278 = vadd.f32 %v5264, %v5277
    %v5279 = vpop.f32.mrf.mxu0
    %v5280 = vadd.f32 %v5266, %v5279
    %5281 = vdwg.mxu0
    %5282 = vmatpush.bf16.msra.mxu0 %v4906
    %5283 = vmatpush.bf16.msra.mxu0 %v4902
    %5284 = vmatpush.bf16.msra.mxu0 %v4898
    %5285 = vmatpush.bf16.msra.mxu0 %v4894
    %5286 = vmatpush.bf16.msra.mxu0 %v4890
    %5287 = vmatpush.bf16.msra.mxu0 %v4886
    %5288 = vmatpush.bf16.msra.mxu0 %v4882
    %5289 = vmatpush.bf16.msra.mxu0 %v4878
    %5290 = vmatmul.bf16.gmra.mxu0 %v4127
    %v5291 = vpop.f32.mrf.mxu0
    %v5292 = vadd.f32 %v5278, %v5291
    %v5293 = vpop.f32.mrf.mxu0
    %v5294 = vadd.f32 %v5280, %v5293
    %5295 = vdwg.mxu0
    %5296 = vmatpush.bf16.msra.mxu0 %v4938
    %5297 = vmatpush.bf16.msra.mxu0 %v4934
    %5298 = vmatpush.bf16.msra.mxu0 %v4930
    %5299 = vmatpush.bf16.msra.mxu0 %v4926
    %5300 = vmatpush.bf16.msra.mxu0 %v4922
    %5301 = vmatpush.bf16.msra.mxu0 %v4918
    %5302 = vmatpush.bf16.msra.mxu0 %v4914
    %5303 = vmatpush.bf16.msra.mxu0 %v4910
    %5304 = vmatmul.bf16.gmra.mxu0 %v4128
    %v5305 = vpop.f32.mrf.mxu0
    %v5306 = vadd.f32 %v5292, %v5305
    %v5307 = vpop.f32.mrf.mxu0
    %v5308 = vadd.f32 %v5294, %v5307
    %5309 = vdwg.mxu0
    %5310 = vmatpush.bf16.msra.mxu0 %v4811
    %5311 = vmatpush.bf16.msra.mxu0 %v4807
    %5312 = vmatpush.bf16.msra.mxu0 %v4803
    %5313 = vmatpush.bf16.msra.mxu0 %v4799
    %5314 = vmatpush.bf16.msra.mxu0 %v4795
    %5315 = vmatpush.bf16.msra.mxu0 %v4791
    %5316 = vmatpush.bf16.msra.mxu0 %v4787
    %5317 = vmatpush.bf16.msra.mxu0 %v4783
    %5318 = vmatmul.bf16.gmra.mxu0 %v4124
    %v5319 = vpop.f32.mrf.mxu0
    %v5320 = vadd.f32 %v4295, %v5319
    %v5321 = vpop.f32.mrf.mxu0
    %v5322 = vadd.f32 %v4295, %v5321
    %5323 = vdwg.mxu0
    %5324 = vmatpush.bf16.msra.mxu0 %v4843
    %5325 = vmatpush.bf16.msra.mxu0 %v4839
    %5326 = vmatpush.bf16.msra.mxu0 %v4835
    %5327 = vmatpush.bf16.msra.mxu0 %v4831
    %5328 = vmatpush.bf16.msra.mxu0 %v4827
    %5329 = vmatpush.bf16.msra.mxu0 %v4823
    %5330 = vmatpush.bf16.msra.mxu0 %v4819
    %5331 = vmatpush.bf16.msra.mxu0 %v4815
    %5332 = vmatmul.bf16.gmra.mxu0 %v4125
    %v5333 = vpop.f32.mrf.mxu0
    %v5334 = vadd.f32 %v5320, %v5333
    %v5335 = vpop.f32.mrf.mxu0
    %v5336 = vadd.f32 %v5322, %v5335
    %5337 = vdwg.mxu0
    %5338 = vmatpush.bf16.msra.mxu0 %v4875
    %5339 = vmatpush.bf16.msra.mxu0 %v4871
    %5340 = vmatpush.bf16.msra.mxu0 %v4867
    %5341 = vmatpush.bf16.msra.mxu0 %v4863
    %5342 = vmatpush.bf16.msra.mxu0 %v4859
    %5343 = vmatpush.bf16.msra.mxu0 %v4855
    %5344 = vmatpush.bf16.msra.mxu0 %v4851
    %5345 = vmatpush.bf16.msra.mxu0 %v4847
    %5346 = vmatmul.bf16.gmra.mxu0 %v4126
    %v5347 = vpop.f32.mrf.mxu0
    %v5348 = vadd.f32 %v5334, %v5347
    %v5349 = vpop.f32.mrf.mxu0
    %v5350 = vadd.f32 %v5336, %v5349
    %5351 = vdwg.mxu0
    %5352 = vmatpush.bf16.msra.mxu0 %v4907
    %5353 = vmatpush.bf16.msra.mxu0 %v4903
    %5354 = vmatpush.bf16.msra.mxu0 %v4899
    %5355 = vmatpush.bf16.msra.mxu0 %v4895
    %5356 = vmatpush.bf16.msra.mxu0 %v4891
    %5357 = vmatpush.bf16.msra.mxu0 %v4887
    %5358 = vmatpush.bf16.msra.mxu0 %v4883
    %5359 = vmatpush.bf16.msra.mxu0 %v4879
    %5360 = vmatmul.bf16.gmra.mxu0 %v4127
    %v5361 = vpop.f32.mrf.mxu0
    %v5362 = vadd.f32 %v5348, %v5361
    %v5363 = vpop.f32.mrf.mxu0
    %v5364 = vadd.f32 %v5350, %v5363
    %5365 = vdwg.mxu0
    %5366 = vmatpush.bf16.msra.mxu0 %v4939
    %5367 = vmatpush.bf16.msra.mxu0 %v4935
    %5368 = vmatpush.bf16.msra.mxu0 %v4931
    %5369 = vmatpush.bf16.msra.mxu0 %v4927
    %5370 = vmatpush.bf16.msra.mxu0 %v4923
    %5371 = vmatpush.bf16.msra.mxu0 %v4919
    %5372 = vmatpush.bf16.msra.mxu0 %v4915
    %5373 = vmatpush.bf16.msra.mxu0 %v4911
    %5374 = vmatmul.bf16.gmra.mxu0 %v4128
    %v5375 = vpop.f32.mrf.mxu0
    %v5376 = vadd.f32 %v5362, %v5375
    %v5377 = vpop.f32.mrf.mxu0
    %v5378 = vadd.f32 %v5364, %v5377
    %5379 = vdwg.mxu0
    %v5380 = vmax.f32 %v5166, 0.0
    %v5381 = vmax.f32 %v5236, 0.0
    %v5382 = vmax.f32 %v5306, 0.0
    %v5383 = vmax.f32 %v5376, 0.0
    %v5384 = vmax.f32 %v5168, 0.0
    %v5385 = vmax.f32 %v5238, 0.0
    %v5386 = vmax.f32 %v5308, 0.0
    %v5387 = vmax.f32 %v5378, 0.0
    %v5388 = vpack.c.bf16 %v5384, %v5380
    %v5389 = vpack.c.bf16 %v5385, %v5381
    %v5390 = vpack.c.bf16 %v5386, %v5382
    %v5391 = vpack.c.bf16 %v5387, %v5383
    %v5392 = vld [vmem:[#allocation10] sm:$0xff]
    %v5393 = vld [vmem:[#allocation10 + $0x8] sm:$0xf]
    %v5394 = vld [vmem:[#allocation10 + $0xc] sm:$0xff]
    %v5395 = vld [vmem:[#allocation10 + $0x14] sm:$0xf]
    %v5396 = vld [vmem:[#allocation10 + $0x18] sm:$0xff]
    %v5397 = vld [vmem:[#allocation10 + $0x20] sm:$0xf]
    %v5398 = vld [vmem:[#allocation10 + $0x24] sm:$0xff]
    %v5399 = vld [vmem:[#allocation10 + $0x2c] sm:$0xf]
    %v5400 = vld [vmem:[#allocation10 + $0x30] sm:$0xff]
    %v5401 = vld [vmem:[#allocation10 + $0x38] sm:$0xf]
    %v5402 = vld [vmem:[#allocation10 + $0x3c] sm:$0xff]
    %v5403 = vld [vmem:[#allocation10 + $0x44] sm:$0xf]
    %v5404 = vld [vmem:[#allocation10 + $0x48] sm:$0xff]
    %v5405 = vld [vmem:[#allocation10 + $0x50] sm:$0xf]
    %v5406 = vld [vmem:[#allocation10 + $0x54] sm:$0xff]
    %v5407 = vld [vmem:[#allocation10 + $0x5c] sm:$0xf]
    %v5408 = vld [vmem:[#allocation10 + $0x60] sm:$0xff]
    %v5409 = vld [vmem:[#allocation10 + $0x68] sm:$0xf]
    %v5410 = vld [vmem:[#allocation10 + $0x6c] sm:$0xff]
    %v5411 = vld [vmem:[#allocation10 + $0x74] sm:$0xf]
    %v5412 = vld [vmem:[#allocation10 + $0x78] sm:$0xff]
    %v5413 = vld [vmem:[#allocation10 + $0x80] sm:$0xf]
    %v5414 = vld [vmem:[#allocation10 + $0x84] sm:$0xff]
    %v5415 = vld [vmem:[#allocation10 + $0x8c] sm:$0xf]
    %v5416 = vld [vmem:[#allocation10 + $0x90] sm:$0xff]
    %v5417 = vld [vmem:[#allocation10 + $0x98] sm:$0xf]
    %v5418 = vld [vmem:[#allocation10 + $0x9c] sm:$0xff]
    %v5419 = vld [vmem:[#allocation10 + $0xa4] sm:$0xf]
    %v5420 = vld [vmem:[#allocation10 + $0xa8] sm:$0xff]
    %v5421 = vld [vmem:[#allocation10 + $0xb0] sm:$0xf]
    %v5422 = vld [vmem:[#allocation10 + $0xb4] sm:$0xff]
    %v5423 = vld [vmem:[#allocation10 + $0xbc] sm:$0xf]
    %v5424 = vld [vmem:[#allocation10 + $0xc0] sm:$0xff]
    %v5425 = vld [vmem:[#allocation10 + $0xc8] sm:$0xf]
    %v5426 = vld [vmem:[#allocation10 + $0xcc] sm:$0xff]
    %v5427 = vld [vmem:[#allocation10 + $0xd4] sm:$0xf]
    %v5428 = vld [vmem:[#allocation10 + $0xd8] sm:$0xff]
    %v5429 = vld [vmem:[#allocation10 + $0xe0] sm:$0xf]
    %v5430 = vld [vmem:[#allocation10 + $0xe4] sm:$0xff]
    %v5431 = vld [vmem:[#allocation10 + $0xec] sm:$0xf]
    %v5432 = vld [vmem:[#allocation10 + $0xf0] sm:$0xff]
    %v5433 = vld [vmem:[#allocation10 + $0xf8] sm:$0xf]
    %v5434 = vld [vmem:[#allocation10 + $0xfc] sm:$0xff]
    %v5435 = vld [vmem:[#allocation10 + $0x104] sm:$0xf]
    %v5436 = vld [vmem:[#allocation10 + $0x108] sm:$0xff]
    %v5437 = vld [vmem:[#allocation10 + $0x110] sm:$0xf]
    %v5438 = vld [vmem:[#allocation10 + $0x114] sm:$0xff]
    %v5439 = vld [vmem:[#allocation10 + $0x11c] sm:$0xf]
    %v5440 = vld [vmem:[#allocation10 + $0x120] sm:$0xff]
    %v5441 = vld [vmem:[#allocation10 + $0x128] sm:$0xf]
    %v5442 = vld [vmem:[#allocation10 + $0x12c] sm:$0xff]
    %v5443 = vld [vmem:[#allocation10 + $0x134] sm:$0xf]
    %v5444 = vld [vmem:[#allocation10 + $0x138] sm:$0xff]
    %v5445 = vld [vmem:[#allocation10 + $0x140] sm:$0xf]
    %v5446 = vld [vmem:[#allocation10 + $0x144] sm:$0xff]
    %v5447 = vld [vmem:[#allocation10 + $0x14c] sm:$0xf]
    %v5448 = vld [vmem:[#allocation10 + $0x150] sm:$0xff]
    %v5449 = vld [vmem:[#allocation10 + $0x158] sm:$0xf]
    %v5450 = vld [vmem:[#allocation10 + $0x15c] sm:$0xff]
    %v5451 = vld [vmem:[#allocation10 + $0x164] sm:$0xf]
    %v5452 = vld [vmem:[#allocation10 + $0x168] sm:$0xff]
    %v5453 = vld [vmem:[#allocation10 + $0x170] sm:$0xf]
    %v5454 = vld [vmem:[#allocation10 + $0x174] sm:$0xff]
    %v5455 = vld [vmem:[#allocation10 + $0x17c] sm:$0xf]
    %v5456 = vld [vmem:[#allocation10 + $0x180] sm:$0xff]
    %v5457 = vld [vmem:[#allocation10 + $0x188] sm:$0xf]
    %v5458 = vld [vmem:[#allocation10 + $0x18c] sm:$0xff]
    %v5459 = vld [vmem:[#allocation10 + $0x194] sm:$0xf]
    %v5460 = vld [vmem:[#allocation10 + $0x198] sm:$0xff]
    %v5461 = vld [vmem:[#allocation10 + $0x1a0] sm:$0xf]
    %v5462 = vld [vmem:[#allocation10 + $0x1a4] sm:$0xff]
    %v5463 = vld [vmem:[#allocation10 + $0x1ac] sm:$0xf]
    %v5464 = vld [vmem:[#allocation10 + $0x1b0] sm:$0xff]
    %v5465 = vld [vmem:[#allocation10 + $0x1b8] sm:$0xf]
    %v5466 = vld [vmem:[#allocation10 + $0x1bc] sm:$0xff]
    %v5467 = vld [vmem:[#allocation10 + $0x1c4] sm:$0xf]
    %v5468 = vld [vmem:[#allocation10 + $0x1c8] sm:$0xff]
    %v5469 = vld [vmem:[#allocation10 + $0x1d0] sm:$0xf]
    %v5470 = vld [vmem:[#allocation10 + $0x1d4] sm:$0xff]
    %v5471 = vld [vmem:[#allocation10 + $0x1dc] sm:$0xf]
    %v5472 = vld [vmem:[#allocation10 + $0x1e0] sm:$0xff]
    %v5473 = vld [vmem:[#allocation10 + $0x1e8] sm:$0xf]
    %v5474 = vld [vmem:[#allocation10 + $0x1ec] sm:$0xff]
    %v5475 = vld [vmem:[#allocation10 + $0x1f4] sm:$0xf]
    %v5476 = vld [vmem:[#allocation10 + $0x1f8] sm:$0xff]
    %v5477 = vld [vmem:[#allocation10 + $0x200] sm:$0xf]
    %v5478 = vld [vmem:[#allocation10 + $0x204] sm:$0xff]
    %v5479 = vld [vmem:[#allocation10 + $0x20c] sm:$0xf]
    %v5480 = vld [vmem:[#allocation10 + $0x210] sm:$0xff]
    %v5481 = vld [vmem:[#allocation10 + $0x218] sm:$0xf]
    %v5482 = vld [vmem:[#allocation10 + $0x21c] sm:$0xff]
    %v5483 = vld [vmem:[#allocation10 + $0x224] sm:$0xf]
    %v5484 = vld [vmem:[#allocation10 + $0x228] sm:$0xff]
    %v5485 = vld [vmem:[#allocation10 + $0x230] sm:$0xf]
    %v5486 = vld [vmem:[#allocation10 + $0x234] sm:$0xff]
    %v5487 = vld [vmem:[#allocation10 + $0x23c] sm:$0xf]
    %v5488 = vld [vmem:[#allocation10 + $0x240] sm:$0xff]
    %v5489 = vld [vmem:[#allocation10 + $0x248] sm:$0xf]
    %v5490 = vld [vmem:[#allocation10 + $0x24c] sm:$0xff]
    %v5491 = vld [vmem:[#allocation10 + $0x254] sm:$0xf]
    %v5492 = vld [vmem:[#allocation10 + $0x258] sm:$0xff]
    %v5493 = vld [vmem:[#allocation10 + $0x260] sm:$0xf]
    %v5494 = vld [vmem:[#allocation10 + $0x264] sm:$0xff]
    %v5495 = vld [vmem:[#allocation10 + $0x26c] sm:$0xf]
    %v5496 = vld [vmem:[#allocation10 + $0x270] sm:$0xff]
    %v5497 = vld [vmem:[#allocation10 + $0x278] sm:$0xf]
    %v5498 = vld [vmem:[#allocation10 + $0x27c] sm:$0xff]
    %v5499 = vld [vmem:[#allocation10 + $0x284] sm:$0xf]
    %v5500 = vld [vmem:[#allocation10 + $0x288] sm:$0xff]
    %v5501 = vld [vmem:[#allocation10 + $0x290] sm:$0xf]
    %v5502 = vld [vmem:[#allocation10 + $0x294] sm:$0xff]
    %v5503 = vld [vmem:[#allocation10 + $0x29c] sm:$0xf]
    %v5504 = vld [vmem:[#allocation10 + $0x2a0] sm:$0xff]
    %v5505 = vld [vmem:[#allocation10 + $0x2a8] sm:$0xf]
    %v5506 = vld [vmem:[#allocation10 + $0x2ac] sm:$0xff]
    %v5507 = vld [vmem:[#allocation10 + $0x2b4] sm:$0xf]
    %v5508 = vld [vmem:[#allocation10 + $0x2b8] sm:$0xff]
    %v5509 = vld [vmem:[#allocation10 + $0x2c0] sm:$0xf]
    %v5510 = vld [vmem:[#allocation10 + $0x2c4] sm:$0xff]
    %v5511 = vld [vmem:[#allocation10 + $0x2cc] sm:$0xf]
    %v5512 = vld [vmem:[#allocation10 + $0x2d0] sm:$0xff]
    %v5513 = vld [vmem:[#allocation10 + $0x2d8] sm:$0xf]
    %v5514 = vld [vmem:[#allocation10 + $0x2dc] sm:$0xff]
    %v5515 = vld [vmem:[#allocation10 + $0x2e4] sm:$0xf]
    %v5516 = vld [vmem:[#allocation10 + $0x2e8] sm:$0xff]
    %v5517 = vld [vmem:[#allocation10 + $0x2f0] sm:$0xf]
    %v5518 = vld [vmem:[#allocation10 + $0x2f4] sm:$0xff]
    %v5519 = vld [vmem:[#allocation10 + $0x2fc] sm:$0xf]
    %s5520 = scalar_lea.vmem %s8, 5
    %v5521 = vld [vmem:[%s5520] ss:$8 sm:$0x7]
    %v5523 = vperm.slane %v5521, 0
    %v5524 = vperm.slane %v5521, 1
    %v5525 = vperm.slane %v5521, 2
    %v5657 = vunpack.c.l.b16 %v5392
    %v5658 = vunpack.c.h.b16 %v5392
    %v5659 = vunpack.c.l.b16 %v5393
    %v5660 = vunpack.c.l.b16 %v5394
    %v5661 = vunpack.c.h.b16 %v5394
    %v5662 = vunpack.c.l.b16 %v5395
    %v5663 = vunpack.c.l.b16 %v5396
    %v5664 = vunpack.c.h.b16 %v5396
    %v5665 = vunpack.c.l.b16 %v5397
    %v5666 = vunpack.c.l.b16 %v5398
    %v5667 = vunpack.c.h.b16 %v5398
    %v5668 = vunpack.c.l.b16 %v5399
    %v5669 = vunpack.c.l.b16 %v5400
    %v5670 = vunpack.c.h.b16 %v5400
    %v5671 = vunpack.c.l.b16 %v5401
    %v5672 = vunpack.c.l.b16 %v5402
    %v5673 = vunpack.c.h.b16 %v5402
    %v5674 = vunpack.c.l.b16 %v5403
    %v5675 = vunpack.c.l.b16 %v5404
    %v5676 = vunpack.c.h.b16 %v5404
    %v5677 = vunpack.c.l.b16 %v5405
    %v5678 = vunpack.c.l.b16 %v5406
    %v5679 = vunpack.c.h.b16 %v5406
    %v5680 = vunpack.c.l.b16 %v5407
    %v5681 = vunpack.c.l.b16 %v5408
    %v5682 = vunpack.c.h.b16 %v5408
    %v5683 = vunpack.c.l.b16 %v5409
    %v5684 = vunpack.c.l.b16 %v5410
    %v5685 = vunpack.c.h.b16 %v5410
    %v5686 = vunpack.c.l.b16 %v5411
    %v5687 = vunpack.c.l.b16 %v5412
    %v5688 = vunpack.c.h.b16 %v5412
    %v5689 = vunpack.c.l.b16 %v5413
    %v5690 = vunpack.c.l.b16 %v5414
    %v5691 = vunpack.c.h.b16 %v5414
    %v5692 = vunpack.c.l.b16 %v5415
    %v5693 = vunpack.c.l.b16 %v5416
    %v5694 = vunpack.c.h.b16 %v5416
    %v5695 = vunpack.c.l.b16 %v5417
    %v5696 = vunpack.c.l.b16 %v5418
    %v5697 = vunpack.c.h.b16 %v5418
    %v5698 = vunpack.c.l.b16 %v5419
    %v5699 = vunpack.c.l.b16 %v5420
    %v5700 = vunpack.c.h.b16 %v5420
    %v5701 = vunpack.c.l.b16 %v5421
    %v5702 = vunpack.c.l.b16 %v5422
    %v5703 = vunpack.c.h.b16 %v5422
    %v5704 = vunpack.c.l.b16 %v5423
    %v5705 = vunpack.c.l.b16 %v5424
    %v5706 = vunpack.c.h.b16 %v5424
    %v5707 = vunpack.c.l.b16 %v5425
    %v5708 = vunpack.c.l.b16 %v5426
    %v5709 = vunpack.c.h.b16 %v5426
    %v5710 = vunpack.c.l.b16 %v5427
    %v5711 = vunpack.c.l.b16 %v5428
    %v5712 = vunpack.c.h.b16 %v5428
    %v5713 = vunpack.c.l.b16 %v5429
    %v5714 = vunpack.c.l.b16 %v5430
    %v5715 = vunpack.c.h.b16 %v5430
    %v5716 = vunpack.c.l.b16 %v5431
    %v5717 = vunpack.c.l.b16 %v5432
    %v5718 = vunpack.c.h.b16 %v5432
    %v5719 = vunpack.c.l.b16 %v5433
    %v5720 = vunpack.c.l.b16 %v5434
    %v5721 = vunpack.c.h.b16 %v5434
    %v5722 = vunpack.c.l.b16 %v5435
    %v5723 = vunpack.c.l.b16 %v5436
    %v5724 = vunpack.c.h.b16 %v5436
    %v5725 = vunpack.c.l.b16 %v5437
    %v5726 = vunpack.c.l.b16 %v5438
    %v5727 = vunpack.c.h.b16 %v5438
    %v5728 = vunpack.c.l.b16 %v5439
    %v5729 = vunpack.c.l.b16 %v5440
    %v5730 = vunpack.c.h.b16 %v5440
    %v5731 = vunpack.c.l.b16 %v5441
    %v5732 = vunpack.c.l.b16 %v5442
    %v5733 = vunpack.c.h.b16 %v5442
    %v5734 = vunpack.c.l.b16 %v5443
    %v5735 = vunpack.c.l.b16 %v5444
    %v5736 = vunpack.c.h.b16 %v5444
    %v5737 = vunpack.c.l.b16 %v5445
    %v5738 = vunpack.c.l.b16 %v5446
    %v5739 = vunpack.c.h.b16 %v5446
    %v5740 = vunpack.c.l.b16 %v5447
    %v5741 = vunpack.c.l.b16 %v5448
    %v5742 = vunpack.c.h.b16 %v5448
    %v5743 = vunpack.c.l.b16 %v5449
    %v5744 = vunpack.c.l.b16 %v5450
    %v5745 = vunpack.c.h.b16 %v5450
    %v5746 = vunpack.c.l.b16 %v5451
    %v5747 = vunpack.c.l.b16 %v5452
    %v5748 = vunpack.c.h.b16 %v5452
    %v5749 = vunpack.c.l.b16 %v5453
    %v5750 = vunpack.c.l.b16 %v5454
    %v5751 = vunpack.c.h.b16 %v5454
    %v5752 = vunpack.c.l.b16 %v5455
    %v5753 = vunpack.c.l.b16 %v5456
    %v5754 = vunpack.c.h.b16 %v5456
    %v5755 = vunpack.c.l.b16 %v5457
    %v5756 = vunpack.c.l.b16 %v5458
    %v5757 = vunpack.c.h.b16 %v5458
    %v5758 = vunpack.c.l.b16 %v5459
    %v5759 = vunpack.c.l.b16 %v5460
    %v5760 = vunpack.c.h.b16 %v5460
    %v5761 = vunpack.c.l.b16 %v5461
    %v5762 = vunpack.c.l.b16 %v5462
    %v5763 = vunpack.c.h.b16 %v5462
    %v5764 = vunpack.c.l.b16 %v5463
    %v5765 = vunpack.c.l.b16 %v5464
    %v5766 = vunpack.c.h.b16 %v5464
    %v5767 = vunpack.c.l.b16 %v5465
    %v5768 = vunpack.c.l.b16 %v5466
    %v5769 = vunpack.c.h.b16 %v5466
    %v5770 = vunpack.c.l.b16 %v5467
    %v5771 = vunpack.c.l.b16 %v5468
    %v5772 = vunpack.c.h.b16 %v5468
    %v5773 = vunpack.c.l.b16 %v5469
    %v5774 = vunpack.c.l.b16 %v5470
    %v5775 = vunpack.c.h.b16 %v5470
    %v5776 = vunpack.c.l.b16 %v5471
    %v5777 = vunpack.c.l.b16 %v5472
    %v5778 = vunpack.c.h.b16 %v5472
    %v5779 = vunpack.c.l.b16 %v5473
    %v5780 = vunpack.c.l.b16 %v5474
    %v5781 = vunpack.c.h.b16 %v5474
    %v5782 = vunpack.c.l.b16 %v5475
    %v5783 = vunpack.c.l.b16 %v5476
    %v5784 = vunpack.c.h.b16 %v5476
    %v5785 = vunpack.c.l.b16 %v5477
    %v5786 = vunpack.c.l.b16 %v5478
    %v5787 = vunpack.c.h.b16 %v5478
    %v5788 = vunpack.c.l.b16 %v5479
    %v5789 = vunpack.c.l.b16 %v5480
    %v5790 = vunpack.c.h.b16 %v5480
    %v5791 = vunpack.c.l.b16 %v5481
    %v5792 = vunpack.c.l.b16 %v5482
    %v5793 = vunpack.c.h.b16 %v5482
    %v5794 = vunpack.c.l.b16 %v5483
    %v5795 = vunpack.c.l.b16 %v5484
    %v5796 = vunpack.c.h.b16 %v5484
    %v5797 = vunpack.c.l.b16 %v5485
    %v5798 = vunpack.c.l.b16 %v5486
    %v5799 = vunpack.c.h.b16 %v5486
    %v5800 = vunpack.c.l.b16 %v5487
    %v5801 = vunpack.c.l.b16 %v5488
    %v5802 = vunpack.c.h.b16 %v5488
    %v5803 = vunpack.c.l.b16 %v5489
    %v5804 = vunpack.c.l.b16 %v5490
    %v5805 = vunpack.c.h.b16 %v5490
    %v5806 = vunpack.c.l.b16 %v5491
    %v5807 = vunpack.c.l.b16 %v5492
    %v5808 = vunpack.c.h.b16 %v5492
    %v5809 = vunpack.c.l.b16 %v5493
    %v5810 = vunpack.c.l.b16 %v5494
    %v5811 = vunpack.c.h.b16 %v5494
    %v5812 = vunpack.c.l.b16 %v5495
    %v5813 = vunpack.c.l.b16 %v5496
    %v5814 = vunpack.c.h.b16 %v5496
    %v5815 = vunpack.c.l.b16 %v5497
    %v5816 = vunpack.c.l.b16 %v5498
    %v5817 = vunpack.c.h.b16 %v5498
    %v5818 = vunpack.c.l.b16 %v5499
    %v5819 = vunpack.c.l.b16 %v5500
    %v5820 = vunpack.c.h.b16 %v5500
    %v5821 = vunpack.c.l.b16 %v5501
    %v5822 = vunpack.c.l.b16 %v5502
    %v5823 = vunpack.c.h.b16 %v5502
    %v5824 = vunpack.c.l.b16 %v5503
    %v5825 = vunpack.c.l.b16 %v5504
    %v5826 = vunpack.c.h.b16 %v5504
    %v5827 = vunpack.c.l.b16 %v5505
    %v5828 = vunpack.c.l.b16 %v5506
    %v5829 = vunpack.c.h.b16 %v5506
    %v5830 = vunpack.c.l.b16 %v5507
    %v5831 = vunpack.c.l.b16 %v5508
    %v5832 = vunpack.c.h.b16 %v5508
    %v5833 = vunpack.c.l.b16 %v5509
    %v5834 = vunpack.c.l.b16 %v5510
    %v5835 = vunpack.c.h.b16 %v5510
    %v5836 = vunpack.c.l.b16 %v5511
    %v5837 = vunpack.c.l.b16 %v5512
    %v5838 = vunpack.c.h.b16 %v5512
    %v5839 = vunpack.c.l.b16 %v5513
    %v5840 = vunpack.c.l.b16 %v5514
    %v5841 = vunpack.c.h.b16 %v5514
    %v5842 = vunpack.c.l.b16 %v5515
    %v5843 = vunpack.c.l.b16 %v5516
    %v5844 = vunpack.c.h.b16 %v5516
    %v5845 = vunpack.c.l.b16 %v5517
    %v5846 = vunpack.c.l.b16 %v5518
    %v5847 = vunpack.c.h.b16 %v5518
    %v5848 = vunpack.c.l.b16 %v5519
    %v5849 = vpack.c.b16 %v5660, %v5657
    %v5850 = vpack.c.b16 %v5661, %v5658
    %v5851 = vpack.c.b16 %v5662, %v5659
    %v5852 = vpack.c.b16 %v5666, %v5663
    %v5853 = vpack.c.b16 %v5667, %v5664
    %v5854 = vpack.c.b16 %v5668, %v5665
    %v5855 = vpack.c.b16 %v5672, %v5669
    %v5856 = vpack.c.b16 %v5673, %v5670
    %v5857 = vpack.c.b16 %v5674, %v5671
    %v5858 = vpack.c.b16 %v5678, %v5675
    %v5859 = vpack.c.b16 %v5679, %v5676
    %v5860 = vpack.c.b16 %v5680, %v5677
    %v5861 = vpack.c.b16 %v5684, %v5681
    %v5862 = vpack.c.b16 %v5685, %v5682
    %v5863 = vpack.c.b16 %v5686, %v5683
    %v5864 = vpack.c.b16 %v5690, %v5687
    %v5865 = vpack.c.b16 %v5691, %v5688
    %v5866 = vpack.c.b16 %v5692, %v5689
    %v5867 = vpack.c.b16 %v5696, %v5693
    %v5868 = vpack.c.b16 %v5697, %v5694
    %v5869 = vpack.c.b16 %v5698, %v5695
    %v5870 = vpack.c.b16 %v5702, %v5699
    %v5871 = vpack.c.b16 %v5703, %v5700
    %v5872 = vpack.c.b16 %v5704, %v5701
    %v5873 = vpack.c.b16 %v5708, %v5705
    %v5874 = vpack.c.b16 %v5709, %v5706
    %v5875 = vpack.c.b16 %v5710, %v5707
    %v5876 = vpack.c.b16 %v5714, %v5711
    %v5877 = vpack.c.b16 %v5715, %v5712
    %v5878 = vpack.c.b16 %v5716, %v5713
    %v5879 = vpack.c.b16 %v5720, %v5717
    %v5880 = vpack.c.b16 %v5721, %v5718
    %v5881 = vpack.c.b16 %v5722, %v5719
    %v5882 = vpack.c.b16 %v5726, %v5723
    %v5883 = vpack.c.b16 %v5727, %v5724
    %v5884 = vpack.c.b16 %v5728, %v5725
    %v5885 = vpack.c.b16 %v5732, %v5729
    %v5886 = vpack.c.b16 %v5733, %v5730
    %v5887 = vpack.c.b16 %v5734, %v5731
    %v5888 = vpack.c.b16 %v5738, %v5735
    %v5889 = vpack.c.b16 %v5739, %v5736
    %v5890 = vpack.c.b16 %v5740, %v5737
    %v5891 = vpack.c.b16 %v5744, %v5741
    %v5892 = vpack.c.b16 %v5745, %v5742
    %v5893 = vpack.c.b16 %v5746, %v5743
    %v5894 = vpack.c.b16 %v5750, %v5747
    %v5895 = vpack.c.b16 %v5751, %v5748
    %v5896 = vpack.c.b16 %v5752, %v5749
    %v5897 = vpack.c.b16 %v5756, %v5753
    %v5898 = vpack.c.b16 %v5757, %v5754
    %v5899 = vpack.c.b16 %v5758, %v5755
    %v5900 = vpack.c.b16 %v5762, %v5759
    %v5901 = vpack.c.b16 %v5763, %v5760
    %v5902 = vpack.c.b16 %v5764, %v5761
    %v5903 = vpack.c.b16 %v5768, %v5765
    %v5904 = vpack.c.b16 %v5769, %v5766
    %v5905 = vpack.c.b16 %v5770, %v5767
    %v5906 = vpack.c.b16 %v5774, %v5771
    %v5907 = vpack.c.b16 %v5775, %v5772
    %v5908 = vpack.c.b16 %v5776, %v5773
    %v5909 = vpack.c.b16 %v5780, %v5777
    %v5910 = vpack.c.b16 %v5781, %v5778
    %v5911 = vpack.c.b16 %v5782, %v5779
    %v5912 = vpack.c.b16 %v5786, %v5783
    %v5913 = vpack.c.b16 %v5787, %v5784
    %v5914 = vpack.c.b16 %v5788, %v5785
    %v5915 = vpack.c.b16 %v5792, %v5789
    %v5916 = vpack.c.b16 %v5793, %v5790
    %v5917 = vpack.c.b16 %v5794, %v5791
    %v5918 = vpack.c.b16 %v5798, %v5795
    %v5919 = vpack.c.b16 %v5799, %v5796
    %v5920 = vpack.c.b16 %v5800, %v5797
    %v5921 = vpack.c.b16 %v5804, %v5801
    %v5922 = vpack.c.b16 %v5805, %v5802
    %v5923 = vpack.c.b16 %v5806, %v5803
    %v5924 = vpack.c.b16 %v5810, %v5807
    %v5925 = vpack.c.b16 %v5811, %v5808
    %v5926 = vpack.c.b16 %v5812, %v5809
    %v5927 = vpack.c.b16 %v5816, %v5813
    %v5928 = vpack.c.b16 %v5817, %v5814
    %v5929 = vpack.c.b16 %v5818, %v5815
    %v5930 = vpack.c.b16 %v5822, %v5819
    %v5931 = vpack.c.b16 %v5823, %v5820
    %v5932 = vpack.c.b16 %v5824, %v5821
    %v5933 = vpack.c.b16 %v5828, %v5825
    %v5934 = vpack.c.b16 %v5829, %v5826
    %v5935 = vpack.c.b16 %v5830, %v5827
    %v5936 = vpack.c.b16 %v5834, %v5831
    %v5937 = vpack.c.b16 %v5835, %v5832
    %v5938 = vpack.c.b16 %v5836, %v5833
    %v5939 = vpack.c.b16 %v5840, %v5837
    %v5940 = vpack.c.b16 %v5841, %v5838
    %v5941 = vpack.c.b16 %v5842, %v5839
    %v5942 = vpack.c.b16 %v5846, %v5843
    %v5943 = vpack.c.b16 %v5847, %v5844
    %v5944 = vpack.c.b16 %v5848, %v5845
    %6041 = vmatpush.bf16.msra.mxu0 %v5870
    %6042 = vmatpush.bf16.msra.mxu0 %v5867
    %6043 = vmatpush.bf16.msra.mxu0 %v5864
    %6044 = vmatpush.bf16.msra.mxu0 %v5861
    %6045 = vmatpush.bf16.msra.mxu0 %v5858
    %6046 = vmatpush.bf16.msra.mxu0 %v5855
    %6047 = vmatpush.bf16.msra.mxu0 %v5852
    %6048 = vmatpush.bf16.msra.mxu0 %v5849
    %6049 = vmatmul.bf16.gmra.mxu0 %v5388
    %v6050 = vpop.f32.mrf.mxu0
    %v6051 = vadd.f32 %v5523, %v6050
    %v6052 = vpop.f32.mrf.mxu0
    %v6053 = vadd.f32 %v5523, %v6052
    %6054 = vdwg.mxu0
    %6055 = vmatpush.bf16.msra.mxu0 %v5894
    %6056 = vmatpush.bf16.msra.mxu0 %v5891
    %6057 = vmatpush.bf16.msra.mxu0 %v5888
    %6058 = vmatpush.bf16.msra.mxu0 %v5885
    %6059 = vmatpush.bf16.msra.mxu0 %v5882
    %6060 = vmatpush.bf16.msra.mxu0 %v5879
    %6061 = vmatpush.bf16.msra.mxu0 %v5876
    %6062 = vmatpush.bf16.msra.mxu0 %v5873
    %6063 = vmatmul.bf16.gmra.mxu0 %v5389
    %v6064 = vpop.f32.mrf.mxu0
    %v6065 = vadd.f32 %v6051, %v6064
    %v6066 = vpop.f32.mrf.mxu0
    %v6067 = vadd.f32 %v6053, %v6066
    %6068 = vdwg.mxu0
    %6069 = vmatpush.bf16.msra.mxu0 %v5918
    %6070 = vmatpush.bf16.msra.mxu0 %v5915
    %6071 = vmatpush.bf16.msra.mxu0 %v5912
    %6072 = vmatpush.bf16.msra.mxu0 %v5909
    %6073 = vmatpush.bf16.msra.mxu0 %v5906
    %6074 = vmatpush.bf16.msra.mxu0 %v5903
    %6075 = vmatpush.bf16.msra.mxu0 %v5900
    %6076 = vmatpush.bf16.msra.mxu0 %v5897
    %6077 = vmatmul.bf16.gmra.mxu0 %v5390
    %v6078 = vpop.f32.mrf.mxu0
    %v6079 = vadd.f32 %v6065, %v6078
    %v6080 = vpop.f32.mrf.mxu0
    %v6081 = vadd.f32 %v6067, %v6080
    %6082 = vdwg.mxu0
    %6083 = vmatpush.bf16.msra.mxu0 %v5942
    %6084 = vmatpush.bf16.msra.mxu0 %v5939
    %6085 = vmatpush.bf16.msra.mxu0 %v5936
    %6086 = vmatpush.bf16.msra.mxu0 %v5933
    %6087 = vmatpush.bf16.msra.mxu0 %v5930
    %6088 = vmatpush.bf16.msra.mxu0 %v5927
    %6089 = vmatpush.bf16.msra.mxu0 %v5924
    %6090 = vmatpush.bf16.msra.mxu0 %v5921
    %6091 = vmatmul.bf16.gmra.mxu0 %v5391
    %v6092 = vpop.f32.mrf.mxu0
    %v6093 = vadd.f32 %v6079, %v6092
    %v6094 = vpop.f32.mrf.mxu0
    %v6095 = vadd.f32 %v6081, %v6094
    %6096 = vdwg.mxu0
    %6097 = vmatpush.bf16.msra.mxu0 %v5871
    %6098 = vmatpush.bf16.msra.mxu0 %v5868
    %6099 = vmatpush.bf16.msra.mxu0 %v5865
    %6100 = vmatpush.bf16.msra.mxu0 %v5862
    %6101 = vmatpush.bf16.msra.mxu0 %v5859
    %6102 = vmatpush.bf16.msra.mxu0 %v5856
    %6103 = vmatpush.bf16.msra.mxu0 %v5853
    %6104 = vmatpush.bf16.msra.mxu0 %v5850
    %6105 = vmatmul.bf16.gmra.mxu0 %v5388
    %v6106 = vpop.f32.mrf.mxu0
    %v6107 = vadd.f32 %v5524, %v6106
    %v6108 = vpop.f32.mrf.mxu0
    %v6109 = vadd.f32 %v5524, %v6108
    %6110 = vdwg.mxu0
    %6111 = vmatpush.bf16.msra.mxu0 %v5895
    %6112 = vmatpush.bf16.msra.mxu0 %v5892
    %6113 = vmatpush.bf16.msra.mxu0 %v5889
    %6114 = vmatpush.bf16.msra.mxu0 %v5886
    %6115 = vmatpush.bf16.msra.mxu0 %v5883
    %6116 = vmatpush.bf16.msra.mxu0 %v5880
    %6117 = vmatpush.bf16.msra.mxu0 %v5877
    %6118 = vmatpush.bf16.msra.mxu0 %v5874
    %6119 = vmatmul.bf16.gmra.mxu0 %v5389
    %v6120 = vpop.f32.mrf.mxu0
    %v6121 = vadd.f32 %v6107, %v6120
    %v6122 = vpop.f32.mrf.mxu0
    %v6123 = vadd.f32 %v6109, %v6122
    %6124 = vdwg.mxu0
    %6125 = vmatpush.bf16.msra.mxu0 %v5919
    %6126 = vmatpush.bf16.msra.mxu0 %v5916
    %6127 = vmatpush.bf16.msra.mxu0 %v5913
    %6128 = vmatpush.bf16.msra.mxu0 %v5910
    %6129 = vmatpush.bf16.msra.mxu0 %v5907
    %6130 = vmatpush.bf16.msra.mxu0 %v5904
    %6131 = vmatpush.bf16.msra.mxu0 %v5901
    %6132 = vmatpush.bf16.msra.mxu0 %v5898
    %6133 = vmatmul.bf16.gmra.mxu0 %v5390
    %v6134 = vpop.f32.mrf.mxu0
    %v6135 = vadd.f32 %v6121, %v6134
    %v6136 = vpop.f32.mrf.mxu0
    %v6137 = vadd.f32 %v6123, %v6136
    %6138 = vdwg.mxu0
    %6139 = vmatpush.bf16.msra.mxu0 %v5943
    %6140 = vmatpush.bf16.msra.mxu0 %v5940
    %6141 = vmatpush.bf16.msra.mxu0 %v5937
    %6142 = vmatpush.bf16.msra.mxu0 %v5934
    %6143 = vmatpush.bf16.msra.mxu0 %v5931
    %6144 = vmatpush.bf16.msra.mxu0 %v5928
    %6145 = vmatpush.bf16.msra.mxu0 %v5925
    %6146 = vmatpush.bf16.msra.mxu0 %v5922
    %6147 = vmatmul.bf16.gmra.mxu0 %v5391
    %v6148 = vpop.f32.mrf.mxu0
    %v6149 = vadd.f32 %v6135, %v6148
    %v6150 = vpop.f32.mrf.mxu0
    %v6151 = vadd.f32 %v6137, %v6150
    %6152 = vdwg.mxu0
    %6153 = vmatpush.bf16.msra.mxu0 %v5872
    %6154 = vmatpush.bf16.msra.mxu0 %v5869
    %6155 = vmatpush.bf16.msra.mxu0 %v5866
    %6156 = vmatpush.bf16.msra.mxu0 %v5863
    %6157 = vmatpush.bf16.msra.mxu0 %v5860
    %6158 = vmatpush.bf16.msra.mxu0 %v5857
    %6159 = vmatpush.bf16.msra.mxu0 %v5854
    %6160 = vmatpush.bf16.msra.mxu0 %v5851
    %6161 = vmatmul.bf16.gmra.mxu0 %v5388
    %v6162 = vpop.f32.mrf.mxu0
    %v6163 = vadd.f32 %v5525, %v6162
    %v6164 = vpop.f32.mrf.mxu0
    %v6165 = vadd.f32 %v5525, %v6164
    %6166 = vdwg.mxu0
    %6167 = vmatpush.bf16.msra.mxu0 %v5896
    %6168 = vmatpush.bf16.msra.mxu0 %v5893
    %6169 = vmatpush.bf16.msra.mxu0 %v5890
    %6170 = vmatpush.bf16.msra.mxu0 %v5887
    %6171 = vmatpush.bf16.msra.mxu0 %v5884
    %6172 = vmatpush.bf16.msra.mxu0 %v5881
    %6173 = vmatpush.bf16.msra.mxu0 %v5878
    %6174 = vmatpush.bf16.msra.mxu0 %v5875
    %6175 = vmatmul.bf16.gmra.mxu0 %v5389
    %v6176 = vpop.f32.mrf.mxu0
    %v6177 = vadd.f32 %v6163, %v6176
    %v6178 = vpop.f32.mrf.mxu0
    %v6179 = vadd.f32 %v6165, %v6178
    %6180 = vdwg.mxu0
    %6181 = vmatpush.bf16.msra.mxu0 %v5920
    %6182 = vmatpush.bf16.msra.mxu0 %v5917
    %6183 = vmatpush.bf16.msra.mxu0 %v5914
    %6184 = vmatpush.bf16.msra.mxu0 %v5911
    %6185 = vmatpush.bf16.msra.mxu0 %v5908
    %6186 = vmatpush.bf16.msra.mxu0 %v5905
    %6187 = vmatpush.bf16.msra.mxu0 %v5902
    %6188 = vmatpush.bf16.msra.mxu0 %v5899
    %6189 = vmatmul.bf16.gmra.mxu0 %v5390
    %v6190 = vpop.f32.mrf.mxu0
    %v6191 = vadd.f32 %v6177, %v6190
    %v6192 = vpop.f32.mrf.mxu0
    %v6193 = vadd.f32 %v6179, %v6192
    %6194 = vdwg.mxu0
    %6195 = vmatpush.bf16.msra.mxu0 %v5944
    %6196 = vmatpush.bf16.msra.mxu0 %v5941
    %6197 = vmatpush.bf16.msra.mxu0 %v5938
    %6198 = vmatpush.bf16.msra.mxu0 %v5935
    %6199 = vmatpush.bf16.msra.mxu0 %v5932
    %6200 = vmatpush.bf16.msra.mxu0 %v5929
    %6201 = vmatpush.bf16.msra.mxu0 %v5926
    %6202 = vmatpush.bf16.msra.mxu0 %v5923
    %6203 = vmatmul.bf16.gmra.mxu0 %v5391
    %v6204 = vpop.f32.mrf.mxu0
    %v6205 = vadd.f32 %v6191, %v6204
    %v6206 = vpop.f32.mrf.mxu0
    %v6207 = vadd.f32 %v6193, %v6206
    %6208 = vdwg.mxu0
    %v6209 = vmax.f32 %v6093, 0.0
    %v6210 = vmax.f32 %v6149, 0.0
    %v6211 = vmax.f32 %v6205, 0.0
    %v6212 = vmax.f32 %v6095, 0.0
    %v6213 = vmax.f32 %v6151, 0.0
    %v6214 = vmax.f32 %v6207, 0.0
    %v6215 = vpack.c.bf16 %v6212, %v6209
    %v6216 = vpack.c.bf16 %v6213, %v6210
    %v6217 = vpack.c.bf16 %v6214, %v6211
    %v6218 = vld [vmem:[#allocation12] sm:$0xf]
    %v6219 = vld [vmem:[#allocation12 + $0x4] sm:$0xf]
    %v6220 = vld [vmem:[#allocation12 + $0x8] sm:$0xf]
    %v6221 = vld [vmem:[#allocation12 + $0xc] sm:$0xf]
    %v6222 = vld [vmem:[#allocation12 + $0x10] sm:$0xf]
    %v6223 = vld [vmem:[#allocation12 + $0x14] sm:$0xf]
    %v6224 = vld [vmem:[#allocation12 + $0x18] sm:$0xf]
    %v6225 = vld [vmem:[#allocation12 + $0x1c] sm:$0xf]
    %v6226 = vld [vmem:[#allocation12 + $0x20] sm:$0xf]
    %v6227 = vld [vmem:[#allocation12 + $0x24] sm:$0xf]
    %v6228 = vld [vmem:[#allocation12 + $0x28] sm:$0xf]
    %v6229 = vld [vmem:[#allocation12 + $0x2c] sm:$0xf]
    %v6230 = vld [vmem:[#allocation12 + $0x30] sm:$0xf]
    %v6231 = vld [vmem:[#allocation12 + $0x34] sm:$0xf]
    %v6232 = vld [vmem:[#allocation12 + $0x38] sm:$0xf]
    %v6233 = vld [vmem:[#allocation12 + $0x3c] sm:$0xf]
    %v6234 = vld [vmem:[#allocation12 + $0x40] sm:$0xf]
    %v6235 = vld [vmem:[#allocation12 + $0x44] sm:$0xf]
    %v6236 = vld [vmem:[#allocation12 + $0x48] sm:$0xf]
    %v6237 = vld [vmem:[#allocation12 + $0x4c] sm:$0xf]
    %v6238 = vld [vmem:[#allocation12 + $0x50] sm:$0xf]
    %v6239 = vld [vmem:[#allocation12 + $0x54] sm:$0xf]
    %v6240 = vld [vmem:[#allocation12 + $0x58] sm:$0xf]
    %v6241 = vld [vmem:[#allocation12 + $0x5c] sm:$0xf]
    %v6242 = vld [vmem:[#allocation12 + $0x60] sm:$0xf]
    %v6243 = vld [vmem:[#allocation12 + $0x64] sm:$0xf]
    %v6244 = vld [vmem:[#allocation12 + $0x68] sm:$0xf]
    %v6245 = vld [vmem:[#allocation12 + $0x6c] sm:$0xf]
    %v6246 = vld [vmem:[#allocation12 + $0x70] sm:$0xf]
    %v6247 = vld [vmem:[#allocation12 + $0x74] sm:$0xf]
    %v6248 = vld [vmem:[#allocation12 + $0x78] sm:$0xf]
    %v6249 = vld [vmem:[#allocation12 + $0x7c] sm:$0xf]
    %v6250 = vld [vmem:[#allocation12 + $0x80] sm:$0xf]
    %v6251 = vld [vmem:[#allocation12 + $0x84] sm:$0xf]
    %v6252 = vld [vmem:[#allocation12 + $0x88] sm:$0xf]
    %v6253 = vld [vmem:[#allocation12 + $0x8c] sm:$0xf]
    %v6254 = vld [vmem:[#allocation12 + $0x90] sm:$0xf]
    %v6255 = vld [vmem:[#allocation12 + $0x94] sm:$0xf]
    %v6256 = vld [vmem:[#allocation12 + $0x98] sm:$0xf]
    %v6257 = vld [vmem:[#allocation12 + $0x9c] sm:$0xf]
    %v6258 = vld [vmem:[#allocation12 + $0xa0] sm:$0xf]
    %v6259 = vld [vmem:[#allocation12 + $0xa4] sm:$0xf]
    %v6260 = vld [vmem:[#allocation12 + $0xa8] sm:$0xf]
    %v6261 = vld [vmem:[#allocation12 + $0xac] sm:$0xf]
    %v6262 = vld [vmem:[#allocation12 + $0xb0] sm:$0xf]
    %v6263 = vld [vmem:[#allocation12 + $0xb4] sm:$0xf]
    %v6264 = vld [vmem:[#allocation12 + $0xb8] sm:$0xf]
    %v6265 = vld [vmem:[#allocation12 + $0xbc] sm:$0xf]
    %v6266 = vld [vmem:[%s8 + $0x6] ss:$0 sm:$0xff]
    %v6315 = vunpack.c.l.b16 %v6218
    %v6316 = vunpack.c.l.b16 %v6219
    %v6317 = vunpack.c.l.b16 %v6220
    %v6318 = vunpack.c.l.b16 %v6221
    %v6319 = vunpack.c.l.b16 %v6222
    %v6320 = vunpack.c.l.b16 %v6223
    %v6321 = vunpack.c.l.b16 %v6224
    %v6322 = vunpack.c.l.b16 %v6225
    %v6323 = vunpack.c.l.b16 %v6226
    %v6324 = vunpack.c.l.b16 %v6227
    %v6325 = vunpack.c.l.b16 %v6228
    %v6326 = vunpack.c.l.b16 %v6229
    %v6327 = vunpack.c.l.b16 %v6230
    %v6328 = vunpack.c.l.b16 %v6231
    %v6329 = vunpack.c.l.b16 %v6232
    %v6330 = vunpack.c.l.b16 %v6233
    %v6331 = vunpack.c.l.b16 %v6234
    %v6332 = vunpack.c.l.b16 %v6235
    %v6333 = vunpack.c.l.b16 %v6236
    %v6334 = vunpack.c.l.b16 %v6237
    %v6335 = vunpack.c.l.b16 %v6238
    %v6336 = vunpack.c.l.b16 %v6239
    %v6337 = vunpack.c.l.b16 %v6240
    %v6338 = vunpack.c.l.b16 %v6241
    %v6339 = vunpack.c.l.b16 %v6242
    %v6340 = vunpack.c.l.b16 %v6243
    %v6341 = vunpack.c.l.b16 %v6244
    %v6342 = vunpack.c.l.b16 %v6245
    %v6343 = vunpack.c.l.b16 %v6246
    %v6344 = vunpack.c.l.b16 %v6247
    %v6345 = vunpack.c.l.b16 %v6248
    %v6346 = vunpack.c.l.b16 %v6249
    %v6347 = vunpack.c.l.b16 %v6250
    %v6348 = vunpack.c.l.b16 %v6251
    %v6349 = vunpack.c.l.b16 %v6252
    %v6350 = vunpack.c.l.b16 %v6253
    %v6351 = vunpack.c.l.b16 %v6254
    %v6352 = vunpack.c.l.b16 %v6255
    %v6353 = vunpack.c.l.b16 %v6256
    %v6354 = vunpack.c.l.b16 %v6257
    %v6355 = vunpack.c.l.b16 %v6258
    %v6356 = vunpack.c.l.b16 %v6259
    %v6357 = vunpack.c.l.b16 %v6260
    %v6358 = vunpack.c.l.b16 %v6261
    %v6359 = vunpack.c.l.b16 %v6262
    %v6360 = vunpack.c.l.b16 %v6263
    %v6361 = vunpack.c.l.b16 %v6264
    %v6362 = vunpack.c.l.b16 %v6265
    %v6363 = vpack.c.b16 %v6316, %v6315
    %v6364 = vpack.c.b16 %v6318, %v6317
    %v6365 = vpack.c.b16 %v6320, %v6319
    %v6366 = vpack.c.b16 %v6322, %v6321
    %v6367 = vpack.c.b16 %v6324, %v6323
    %v6368 = vpack.c.b16 %v6326, %v6325
    %v6369 = vpack.c.b16 %v6328, %v6327
    %v6370 = vpack.c.b16 %v6330, %v6329
    %v6371 = vpack.c.b16 %v6332, %v6331
    %v6372 = vpack.c.b16 %v6334, %v6333
    %v6373 = vpack.c.b16 %v6336, %v6335
    %v6374 = vpack.c.b16 %v6338, %v6337
    %v6375 = vpack.c.b16 %v6340, %v6339
    %v6376 = vpack.c.b16 %v6342, %v6341
    %v6377 = vpack.c.b16 %v6344, %v6343
    %v6378 = vpack.c.b16 %v6346, %v6345
    %v6379 = vpack.c.b16 %v6348, %v6347
    %v6380 = vpack.c.b16 %v6350, %v6349
    %v6381 = vpack.c.b16 %v6352, %v6351
    %v6382 = vpack.c.b16 %v6354, %v6353
    %v6383 = vpack.c.b16 %v6356, %v6355
    %v6384 = vpack.c.b16 %v6358, %v6357
    %v6385 = vpack.c.b16 %v6360, %v6359
    %v6386 = vpack.c.b16 %v6362, %v6361
    %6411 = vmatpush.bf16.msra.mxu0 %v6370
    %6412 = vmatpush.bf16.msra.mxu0 %v6369
    %6413 = vmatpush.bf16.msra.mxu0 %v6368
    %6414 = vmatpush.bf16.msra.mxu0 %v6367
    %6415 = vmatpush.bf16.msra.mxu0 %v6366
    %6416 = vmatpush.bf16.msra.mxu0 %v6365
    %6417 = vmatpush.bf16.msra.mxu0 %v6364
    %6418 = vmatpush.bf16.msra.mxu0 %v6363
    %6419 = vmatmul.bf16.gmra.mxu0 %v6215
    %v6420 = vpop.f32.mrf.mxu0
    %v6421 = vadd.f32 %v6266, %v6420
    %v6422 = vpop.f32.mrf.mxu0
    %v6423 = vadd.f32 %v6266, %v6422
    %6424 = vdwg.mxu0
    %6425 = vmatpush.bf16.msra.mxu0 %v6378
    %6426 = vmatpush.bf16.msra.mxu0 %v6377
    %6427 = vmatpush.bf16.msra.mxu0 %v6376
    %6428 = vmatpush.bf16.msra.mxu0 %v6375
    %6429 = vmatpush.bf16.msra.mxu0 %v6374
    %6430 = vmatpush.bf16.msra.mxu0 %v6373
    %6431 = vmatpush.bf16.msra.mxu0 %v6372
    %6432 = vmatpush.bf16.msra.mxu0 %v6371
    %6433 = vmatmul.bf16.gmra.mxu0 %v6216
    %v6434 = vpop.f32.mrf.mxu0
    %v6435 = vadd.f32 %v6421, %v6434
    %v6436 = vpop.f32.mrf.mxu0
    %v6437 = vadd.f32 %v6423, %v6436
    %6438 = vdwg.mxu0
    %6439 = vmatpush.bf16.msra.mxu0 %v6386
    %6440 = vmatpush.bf16.msra.mxu0 %v6385
    %6441 = vmatpush.bf16.msra.mxu0 %v6384
    %6442 = vmatpush.bf16.msra.mxu0 %v6383
    %6443 = vmatpush.bf16.msra.mxu0 %v6382
    %6444 = vmatpush.bf16.msra.mxu0 %v6381
    %6445 = vmatpush.bf16.msra.mxu0 %v6380
    %6446 = vmatpush.bf16.msra.mxu0 %v6379
    %6447 = vmatmul.bf16.gmra.mxu0 %v6217
    %v6448 = vpop.f32.mrf.mxu0
    %v6449 = vadd.f32 %v6435, %v6448
    %v6450 = vpop.f32.mrf.mxu0
    %v6451 = vadd.f32 %v6437, %v6450
    %6452 = vdwg.mxu0
    %v6453 = vpack.c.bf16 %v6449, %v6449
    %v6454 = vpack.c.bf16 %v6451, %v6451
    %6455 = vst [vmem:[%s9] sm:$0xf] %v6453
    %6456 = vst [vmem:[%s9 + $0x4] sm:$0xf] %v6454
    // Predicated region
    $region66: #{qnetwork_forward.1} parent=1 // pred_check
      _
    $region67: #{qnetwork_forward.1} parent=1 // pred_check_branch
      %6458 = sbr.rel (0) target = $region69
    $region68: #{qnetwork_forward.1} parent=1 // pred_region
      _
    $region69: #{qnetwork_forward.1} parent=1 // pred_fallthru
      _
    // Predicated region
    $region70: #{qnetwork_forward.1} parent=1 // pred_check
      _
    $region71: #{qnetwork_forward.1} parent=1 // pred_check_branch
      %6460 = sbr.rel (0) target = $region73
    $region72: #{qnetwork_forward.1} parent=1 // pred_region
      _
    $region73: #{qnetwork_forward.1} parent=1 // pred_fallthru
      _
    %6461 = vsyncpa [#allocation3], 1
    %6462 = vsyncpa [#allocation5], 1
    %6463 = vsyncpa [#allocation8], 1
    %6464 = vsyncpa [#allocation11], 1

</llo_original>
